<compile_context>
chip_gen: v7x
topology: tpu7x:2x2x1
jax: 0.10.0
libtpu: 0.0.40
codegen_flags: <defaults>
</compile_context>

<pallas_src>
import jax
import jax.numpy as jnp
from jax import lax
from jax.experimental import pallas as pl
from jax.experimental.pallas import tpu as pltpu


def _round_up(x, m):
    return ((x + m - 1) // m) * m


def seq2seq_attn_kernel(src2d_ref, tgt2d_ref,
                        w_ih_e_ref, w_hh_e_ref, b_e_ref,
                        w_en_ref, b_en_ref,
                        w_ih_d_emb_ref, b_d_ref, w_cat_ref,
                        w_fc_ref, b_fc_ref,
                        out_ref,
                        xg_e_sc, xg_d_sc, enc_t_sc, enc_b_sc, h_dec_sc,
                        hflat_sc):
    T_src, B, Hp = enc_t_sc.shape
    T_tgt = h_dec_sc.shape[0] + 1
    Vp = out_ref.shape[1]

    def gates_to_hc(gates, c):
        # PyTorch LSTM gate order: i, f, g, o.  Full-vreg transcendentals
        # (EUP slot), then lane-tile aligned 128-wide slices (Hp % 128 == 0).
        sg = jax.nn.sigmoid(gates)
        tg = jnp.tanh(gates)
        i = sg[:, 0:Hp]
        f = sg[:, Hp:2 * Hp]
        g = tg[:, 2 * Hp:3 * Hp]
        o = sg[:, 3 * Hp:4 * Hp]
        c_new = f * c + i * g
        h_new = o * jnp.tanh(c_new)
        return h_new, c_new

    # ---- hoisted input projections: one (T*B, E) @ (E, 4Hp) MXU matmul each,
    # biases folded in; re-packed into (T, B, 4Hp) scratches with static
    # slices so the serial loops index an aligned per-step slab.
    xg_e = jnp.dot(src2d_ref[...], w_ih_e_ref[...],
                   preferred_element_type=jnp.float32) + b_e_ref[...]
    for t in range(T_src):
        xg_e_sc[t] = xg_e[t * B:(t + 1) * B, :]

    xg_d = jnp.dot(tgt2d_ref[...], w_ih_d_emb_ref[...],
                   preferred_element_type=jnp.float32) + b_d_ref[...]
    for t in range(T_tgt - 1):
        xg_d_sc[t] = xg_d[t * B:(t + 1) * B, :]

    # ---------------- encoder LSTM: h / c loop-carried in vregs -------------
    def enc_step(t, carry):
        h, c = carry
        gates = xg_e_sc[t] + jnp.dot(h, w_hh_e_ref[...],
                                     preferred_element_type=jnp.float32)
        h, c = gates_to_hc(gates, c)
        enc_t_sc[t] = h                      # lane-dense (B, Hp) store
        return (h, c)

    h0 = jnp.zeros((B, Hp), jnp.float32)
    c0 = jnp.zeros((B, Hp), jnp.float32)
    h, c = lax.fori_loop(0, T_src, enc_step, (h0, c0), unroll=True)

    # ---- attention precompute (loop invariant), batch-major layout ---------
    for t in range(T_src):                   # static copies, outside recurrence
        enc_b_sc[:, t, :] = enc_t_sc[t]
    enc_b = enc_b_sc[...]                    # (B, T_src, Hp)

    w_en = w_en_ref[...]                     # (1, 2Hp): [W_h | W_enc]
    w_en_h = w_en[:, 0:Hp]                   # (1, Hp)
    w_en_e = w_en[:, Hp:2 * Hp]              # (1, Hp)
    b_en = b_en_ref[...]                     # (1, 1)
    ee = jnp.sum(enc_b * w_en_e[:, None, :], axis=2)        # (B, T_src)

    # ---------------- decoder: attention + fused LSTM cell ------------------
    def dec_step(t, carry):
        h, c = carry
        # energy_s = relu(W_en @ [h ; enc_s] + b); softmax over source pos.
        eh = jnp.sum(h * w_en_h, axis=1, keepdims=True)      # (B, 1) lane red.
        energy = jnp.maximum(ee + eh + b_en, 0.0)            # (B, T_src)
        m = jnp.max(energy, axis=1, keepdims=True)
        p = jnp.exp(energy - m)
        attn = p / jnp.sum(p, axis=1, keepdims=True)         # (B, T_src)
        context = jnp.sum(attn[:, :, None] * enc_b, axis=1)  # (B, Hp)

        # fused [context ; h] @ [W_ctx ; W_hh]: one MXU call per step;
        # embedding contribution + bias precomputed in xg_d_sc.
        xh = jnp.concatenate([context, h], axis=1)           # (B, 2Hp)
        gates = xg_d_sc[t - 1] + jnp.dot(xh, w_cat_ref[...],
                                         preferred_element_type=jnp.float32)
        h, c = gates_to_hc(gates, c)
        h_dec_sc[t - 1] = h                  # lane-dense (B, Hp) store
        return (h, c)

    lax.fori_loop(1, T_tgt, dec_step, (h, c), unroll=True)

    # ---- batched vocab projection + single lane-dense output store ---------
    hflat_sc[0:B, :] = jnp.zeros((B, Hp), jnp.float32)
    for t in range(1, T_tgt):                # static copies, outside recurrence
        hflat_sc[t * B:(t + 1) * B, :] = h_dec_sc[t - 1]
    out_ref[...] = jnp.dot(hflat_sc[...], w_fc_ref[...],
                           preferred_element_type=jnp.float32) + b_fc_ref[...]
    # outputs[0] = 0 (torch.zeros init; decoder writes t = 1..T_tgt-1).
    # Must stay AFTER the full projection store (b_fc would leak otherwise).
    out_ref[0:B, :] = jnp.zeros((B, Vp), jnp.float32)


def seq2seq_attention_lstm(src_tokens, tgt_tokens, p):
    """Wrapper: embedding lookups (glue), 128-lane padding, single pallas_call."""
    src_emb = jnp.take(p['emb_enc'], src_tokens, axis=0)    # (T_src, B, E)
    tgt_emb = jnp.take(p['emb_dec'], tgt_tokens, axis=0)    # (T_tgt, B, E)
    T_src, B, E = src_emb.shape
    T_tgt = tgt_emb.shape[0]
    H = p['w_hh_e'].shape[0]
    V_out = p['w_fc'].shape[1]
    Hp = _round_up(H, 128)
    Vp = _round_up(V_out, 128)

    # --- zero-pad hidden / vocab dims so every gate slice and hidden store in
    # the kernel is lane-tile aligned; padded lanes provably stay 0.
    def pad_gates(w):                        # (..., 4H) -> (..., 4Hp)
        lead = w.shape[:-1]
        w4 = w.reshape(lead + (4, H))
        w4 = jnp.pad(w4, [(0, 0)] * len(lead) + [(0, 0), (0, Hp - H)])
        return w4.reshape(lead + (4 * Hp,))

    def pad_h_rows(w):                       # (H, X) -> (Hp, X)
        return jnp.pad(w, ((0, Hp - H), (0, 0)))

    w_ih_e = pad_gates(p['w_ih_e'])
    w_hh_e = pad_gates(pad_h_rows(p['w_hh_e']))
    b_e = pad_gates(p['b_e'])
    w_en = jnp.pad(p['w_en'].reshape(1, 2, H),
                   ((0, 0), (0, 0), (0, Hp - H))).reshape(1, 2 * Hp)
    b_en = p['b_en']
    w_ih_d_emb = pad_gates(p['w_ih_d_emb'])
    b_d = pad_gates(p['b_d'])
    # fused decoder recurrent weight: rows 0:Hp = context, Hp:2Hp = hidden
    w_cat = jnp.concatenate([pad_gates(pad_h_rows(p['w_ih_d_ctx'])),
                             pad_gates(pad_h_rows(p['w_hh_d']))], axis=0)
    w_fc = jnp.pad(p['w_fc'], ((0, Hp - H), (0, Vp - V_out)))
    b_fc = jnp.pad(p['b_fc'], ((0, 0), (0, Vp - V_out)))

    # fold time/batch into one row axis so the hoisted input projections are
    # plain 2-D MXU matmuls; only the T_tgt-1 consumed target steps are kept.
    src2d = src_emb.reshape(T_src * B, E)
    tgt2d = tgt_emb[:T_tgt - 1].reshape((T_tgt - 1) * B, E)

    vmem = pl.BlockSpec(memory_space=pltpu.MemorySpace.VMEM)
    out2d = pl.pallas_call(
        seq2seq_attn_kernel,
        out_shape=jax.ShapeDtypeStruct((T_tgt * B, Vp), jnp.float32),
        in_specs=[vmem] * 12,
        out_specs=vmem,
        scratch_shapes=[
            pltpu.VMEM((T_src, B, 4 * Hp), jnp.float32),      # enc input gates
            pltpu.VMEM((T_tgt - 1, B, 4 * Hp), jnp.float32),  # dec emb gates
            pltpu.VMEM((T_src, B, Hp), jnp.float32),          # enc h (t-major)
            pltpu.VMEM((B, T_src, Hp), jnp.float32),          # enc h (b-major)
            pltpu.VMEM((T_tgt - 1, B, Hp), jnp.float32),      # dec h (t-major)
            pltpu.VMEM((T_tgt * B, Hp), jnp.float32),         # dec h (flat)
        ],
        compiler_params=pltpu.CompilerParams(
            vmem_limit_bytes=32 * 1024 * 1024),
    )(src2d, tgt2d, w_ih_e, w_hh_e, b_e, w_en, b_en,
      w_ih_d_emb, b_d, w_cat, w_fc, b_fc)
    return out2d.reshape(T_tgt, B, Vp)[:, :, :V_out]


def reference_forward(src_tokens, tgt_tokens, p):
    """Pure-JAX reference of the same forward (teacher forcing, tfr=1.0)."""
    src_emb = jnp.take(p['emb_enc'], src_tokens, axis=0)
    tgt_emb = jnp.take(p['emb_dec'], tgt_tokens, axis=0)
    T_src, B, _ = src_emb.shape
    T_tgt = tgt_emb.shape[0]
    H = p['w_hh_e'].shape[0]
    V_out = p['w_fc'].shape[1]

    def gates_to_hc(gates, c):
        i = jax.nn.sigmoid(gates[:, 0:H]); f = jax.nn.sigmoid(gates[:, H:2 * H])
        g = jnp.tanh(gates[:, 2 * H:3 * H]); o = jax.nn.sigmoid(gates[:, 3 * H:4 * H])
        c_new = f * c + i * g
        return o * jnp.tanh(c_new), c_new

    h = jnp.zeros((B, H), jnp.float32)
    c = jnp.zeros((B, H), jnp.float32)
    enc_out = []
    for t in range(T_src):
        gates = src_emb[t] @ p['w_ih_e'] + h @ p['w_hh_e'] + p['b_e']
        h, c = gates_to_hc(gates, c)
        enc_out.append(h)
    enc_out = jnp.stack(enc_out)

    w_en_h = p['w_en'][:, :H]
    w_en_e = p['w_en'][:, H:]
    outputs = [jnp.zeros((B, V_out), jnp.float32)]
    for t in range(1, T_tgt):
        x_emb = tgt_emb[t - 1]
        ee = jnp.sum(enc_out * w_en_e[None, :, :], axis=2)
        eh = (h @ w_en_h.T).T
        energy = jnp.maximum(ee + eh + p['b_en'], 0.0)
        attn = jax.nn.softmax(energy, axis=0)
        context = jnp.sum(attn[:, :, None] * enc_out, axis=0)
        gates = (context @ p['w_ih_d_ctx'] + x_emb @ p['w_ih_d_emb']
                 + h @ p['w_hh_d'] + p['b_d'])
        h, c = gates_to_hc(gates, c)
        outputs.append(h @ p['w_fc'] + p['b_fc'])
    return jnp.stack(outputs)


def init_params(key, v_in, v_out, e, h):
    ks = jax.random.split(key, 13)
    k_lstm = 1.0 / (h ** 0.5)
    k_en = 1.0 / ((2 * h) ** 0.5)
    k_fc = 1.0 / (h ** 0.5)

    def u(kk, shape, s):
        return jax.random.uniform(kk, shape, jnp.float32, -s, s)

    return dict(
        emb_enc=jax.random.normal(ks[0], (v_in, e), jnp.float32),
        emb_dec=jax.random.normal(ks[1], (v_out, e), jnp.float32),
        # encoder LSTM (weights pre-transposed to (in, 4H))
        w_ih_e=u(ks[2], (e, 4 * h), k_lstm),
        w_hh_e=u(ks[3], (h, 4 * h), k_lstm),
        b_e=u(ks[4], (1, 4 * h), k_lstm),
        # attention energy layer Linear(2H, 1): weight (1, 2H) = [W_h | W_enc]
        w_en=u(ks[5], (1, 2 * h), k_en),
        b_en=u(ks[6], (1, 1), k_en),
        # decoder LSTM, input = [context(H); embedding(E)], split weights
        w_ih_d_ctx=u(ks[7], (h, 4 * h), k_lstm),
        w_ih_d_emb=u(ks[8], (e, 4 * h), k_lstm),
        w_hh_d=u(ks[9], (h, 4 * h), k_lstm),
        b_d=u(ks[10], (1, 4 * h), k_lstm),
        # output projection Linear(H, V_out)
        w_fc=u(ks[11], (h, v_out), k_fc),
        b_fc=u(ks[12], (1, v_out), k_fc),
    )


if __name__ == "__main__":
    T_SRC, T_TGT, B = 8, 8, 2
    E, H = 16, 32
    V_IN, V_OUT = 20, 24

    key = jax.random.PRNGKey(0)
    kp, ksrc, ktgt = jax.random.split(key, 3)
    params = init_params(kp, V_IN, V_OUT, E, H)

    source = jax.random.randint(ksrc, (T_SRC, B), 0, V_IN, dtype=jnp.int32)
    target = jax.random.randint(ktgt, (T_TGT, B), 0, V_OUT, dtype=jnp.int32)

    out = seq2seq_attention_lstm(source, target, params)
    out = jax.block_until_ready(out)

    ref = reference_forward(source, target, params)
    assert out.shape == (T_TGT, B, V_OUT)
    assert bool(jnp.allclose(out, ref, atol=5e-2, rtol=5e-2)), \
        float(jnp.max(jnp.abs(out - ref)))

    print("KERNEL_OK")
</pallas_src>

<mosaic_0001>
module attributes {stable_mosaic.version = 11 : i64} {
  func.func @seq2seq_attn_kernel(%arg0: memref<16x16xf32, #tpu.memory_space<vmem>>, %arg1: memref<14x16xf32, #tpu.memory_space<vmem>>, %arg2: memref<16x512xf32, #tpu.memory_space<vmem>>, %arg3: memref<128x512xf32, #tpu.memory_space<vmem>>, %arg4: memref<1x512xf32, #tpu.memory_space<vmem>>, %arg5: memref<1x256xf32, #tpu.memory_space<vmem>>, %arg6: memref<1x1xf32, #tpu.memory_space<vmem>>, %arg7: memref<16x512xf32, #tpu.memory_space<vmem>>, %arg8: memref<1x512xf32, #tpu.memory_space<vmem>>, %arg9: memref<256x512xf32, #tpu.memory_space<vmem>>, %arg10: memref<128x128xf32, #tpu.memory_space<vmem>>, %arg11: memref<1x128xf32, #tpu.memory_space<vmem>>, %arg12: memref<16x128xf32, #tpu.memory_space<vmem>>, %arg13: memref<8x2x512xf32, #tpu.memory_space<vmem>>, %arg14: memref<7x2x512xf32, #tpu.memory_space<vmem>>, %arg15: memref<8x2x128xf32, #tpu.memory_space<vmem>>, %arg16: memref<2x8x128xf32, #tpu.memory_space<vmem>>, %arg17: memref<7x2x128xf32, #tpu.memory_space<vmem>>, %arg18: memref<16x128xf32, #tpu.memory_space<vmem>>) attributes {dimension_semantics = [], scalar_prefetch = 0 : i64, scratch_operands = 6 : i64, tpu.core_type = #tpu.core_type<tc>} {
    %c0 = arith.constant 0 : index
    %c0_0 = arith.constant 0 : index
    %0 = vector.load %arg0[%c0, %c0_0] : memref<16x16xf32, #tpu.memory_space<vmem>>, vector<16x16xf32>
    %c0_1 = arith.constant 0 : index
    %c0_2 = arith.constant 0 : index
    %1 = vector.load %arg2[%c0_1, %c0_2] : memref<16x512xf32, #tpu.memory_space<vmem>>, vector<16x512xf32>
    %cst = arith.constant dense<0.000000e+00> : vector<16x512xf32>
    %2 = tpu.matmul %0, %1, %cst {dimension_numbers = #tpu.dot_dimension_numbers<[1], [0], [0], [1], [0, 0, 1, 1], [], []>} : vector<16x16xf32>, vector<16x512xf32>, vector<16x512xf32> -> vector<16x512xf32>
    %c0_3 = arith.constant 0 : index
    %c0_4 = arith.constant 0 : index
    %3 = vector.load %arg4[%c0_3, %c0_4] : memref<1x512xf32, #tpu.memory_space<vmem>>, vector<1x512xf32>
    %4 = vector.broadcast %3 : vector<1x512xf32> to vector<16x512xf32>
    %5 = arith.addf %2, %4 : vector<16x512xf32>
    %6 = vector.extract_strided_slice %5 {offsets = [0, 0], sizes = [2, 512], strides = [1, 1]} : vector<16x512xf32> to vector<2x512xf32>
    %c0_5 = arith.constant 0 : index
    %c0_6 = arith.constant 0 : index
    %c0_7 = arith.constant 0 : index
    %7 = vector.load %arg13[%c0_5, %c0_6, %c0_7] : memref<8x2x512xf32, #tpu.memory_space<vmem>>, vector<1x2x512xf32>
    %8 = vector.shape_cast %7 : vector<1x2x512xf32> to vector<2x512xf32>
    %9 = vector.shape_cast %6 : vector<2x512xf32> to vector<1x2x512xf32>
    tpu.vector_store %arg13[%c0_5, %c0_6, %c0_7], %9 {strides = array<i32>} : memref<8x2x512xf32, #tpu.memory_space<vmem>>, vector<1x2x512xf32>,
    %10 = vector.extract_strided_slice %5 {offsets = [2, 0], sizes = [2, 512], strides = [1, 1]} : vector<16x512xf32> to vector<2x512xf32>
    %c1 = arith.constant 1 : index
    %c0_8 = arith.constant 0 : index
    %c0_9 = arith.constant 0 : index
    %11 = vector.load %arg13[%c1, %c0_8, %c0_9] : memref<8x2x512xf32, #tpu.memory_space<vmem>>, vector<1x2x512xf32>
    %12 = vector.shape_cast %11 : vector<1x2x512xf32> to vector<2x512xf32>
    %13 = vector.shape_cast %10 : vector<2x512xf32> to vector<1x2x512xf32>
    tpu.vector_store %arg13[%c1, %c0_8, %c0_9], %13 {strides = array<i32>} : memref<8x2x512xf32, #tpu.memory_space<vmem>>, vector<1x2x512xf32>,
    %14 = vector.extract_strided_slice %5 {offsets = [4, 0], sizes = [2, 512], strides = [1, 1]} : vector<16x512xf32> to vector<2x512xf32>
    %c2 = arith.constant 2 : index
    %c0_10 = arith.constant 0 : index
    %c0_11 = arith.constant 0 : index
    %15 = vector.load %arg13[%c2, %c0_10, %c0_11] : memref<8x2x512xf32, #tpu.memory_space<vmem>>, vector<1x2x512xf32>
    %16 = vector.shape_cast %15 : vector<1x2x512xf32> to vector<2x512xf32>
    %17 = vector.shape_cast %14 : vector<2x512xf32> to vector<1x2x512xf32>
    tpu.vector_store %arg13[%c2, %c0_10, %c0_11], %17 {strides = array<i32>} : memref<8x2x512xf32, #tpu.memory_space<vmem>>, vector<1x2x512xf32>,
    %18 = vector.extract_strided_slice %5 {offsets = [6, 0], sizes = [2, 512], strides = [1, 1]} : vector<16x512xf32> to vector<2x512xf32>
    %c3 = arith.constant 3 : index
    %c0_12 = arith.constant 0 : index
    %c0_13 = arith.constant 0 : index
    %19 = vector.load %arg13[%c3, %c0_12, %c0_13] : memref<8x2x512xf32, #tpu.memory_space<vmem>>, vector<1x2x512xf32>
    %20 = vector.shape_cast %19 : vector<1x2x512xf32> to vector<2x512xf32>
    %21 = vector.shape_cast %18 : vector<2x512xf32> to vector<1x2x512xf32>
    tpu.vector_store %arg13[%c3, %c0_12, %c0_13], %21 {strides = array<i32>} : memref<8x2x512xf32, #tpu.memory_space<vmem>>, vector<1x2x512xf32>,
    %22 = vector.extract_strided_slice %5 {offsets = [8, 0], sizes = [2, 512], strides = [1, 1]} : vector<16x512xf32> to vector<2x512xf32>
    %c4 = arith.constant 4 : index
    %c0_14 = arith.constant 0 : index
    %c0_15 = arith.constant 0 : index
    %23 = vector.load %arg13[%c4, %c0_14, %c0_15] : memref<8x2x512xf32, #tpu.memory_space<vmem>>, vector<1x2x512xf32>
    %24 = vector.shape_cast %23 : vector<1x2x512xf32> to vector<2x512xf32>
    %25 = vector.shape_cast %22 : vector<2x512xf32> to vector<1x2x512xf32>
    tpu.vector_store %arg13[%c4, %c0_14, %c0_15], %25 {strides = array<i32>} : memref<8x2x512xf32, #tpu.memory_space<vmem>>, vector<1x2x512xf32>,
    %26 = vector.extract_strided_slice %5 {offsets = [10, 0], sizes = [2, 512], strides = [1, 1]} : vector<16x512xf32> to vector<2x512xf32>
    %c5 = arith.constant 5 : index
    %c0_16 = arith.constant 0 : index
    %c0_17 = arith.constant 0 : index
    %27 = vector.load %arg13[%c5, %c0_16, %c0_17] : memref<8x2x512xf32, #tpu.memory_space<vmem>>, vector<1x2x512xf32>
    %28 = vector.shape_cast %27 : vector<1x2x512xf32> to vector<2x512xf32>
    %29 = vector.shape_cast %26 : vector<2x512xf32> to vector<1x2x512xf32>
    tpu.vector_store %arg13[%c5, %c0_16, %c0_17], %29 {strides = array<i32>} : memref<8x2x512xf32, #tpu.memory_space<vmem>>, vector<1x2x512xf32>,
    %30 = vector.extract_strided_slice %5 {offsets = [12, 0], sizes = [2, 512], strides = [1, 1]} : vector<16x512xf32> to vector<2x512xf32>
    %c6 = arith.constant 6 : index
    %c0_18 = arith.constant 0 : index
    %c0_19 = arith.constant 0 : index
    %31 = vector.load %arg13[%c6, %c0_18, %c0_19] : memref<8x2x512xf32, #tpu.memory_space<vmem>>, vector<1x2x512xf32>
    %32 = vector.shape_cast %31 : vector<1x2x512xf32> to vector<2x512xf32>
    %33 = vector.shape_cast %30 : vector<2x512xf32> to vector<1x2x512xf32>
    tpu.vector_store %arg13[%c6, %c0_18, %c0_19], %33 {strides = array<i32>} : memref<8x2x512xf32, #tpu.memory_space<vmem>>, vector<1x2x512xf32>,
    %34 = vector.extract_strided_slice %5 {offsets = [14, 0], sizes = [2, 512], strides = [1, 1]} : vector<16x512xf32> to vector<2x512xf32>
    %c7 = arith.constant 7 : index
    %c0_20 = arith.constant 0 : index
    %c0_21 = arith.constant 0 : index
    %35 = vector.load %arg13[%c7, %c0_20, %c0_21] : memref<8x2x512xf32, #tpu.memory_space<vmem>>, vector<1x2x512xf32>
    %36 = vector.shape_cast %35 : vector<1x2x512xf32> to vector<2x512xf32>
    %37 = vector.shape_cast %34 : vector<2x512xf32> to vector<1x2x512xf32>
    tpu.vector_store %arg13[%c7, %c0_20, %c0_21], %37 {strides = array<i32>} : memref<8x2x512xf32, #tpu.memory_space<vmem>>, vector<1x2x512xf32>,
    %c0_22 = arith.constant 0 : index
    %c0_23 = arith.constant 0 : index
    %38 = vector.load %arg1[%c0_22, %c0_23] : memref<14x16xf32, #tpu.memory_space<vmem>>, vector<14x16xf32>
    %c0_24 = arith.constant 0 : index
    %c0_25 = arith.constant 0 : index
    %39 = vector.load %arg7[%c0_24, %c0_25] : memref<16x512xf32, #tpu.memory_space<vmem>>, vector<16x512xf32>
    %cst_26 = arith.constant dense<0.000000e+00> : vector<14x512xf32>
    %40 = tpu.matmul %38, %39, %cst_26 {dimension_numbers = #tpu.dot_dimension_numbers<[1], [0], [0], [1], [0, 0, 1, 1], [], []>} : vector<14x16xf32>, vector<16x512xf32>, vector<14x512xf32> -> vector<14x512xf32>
    %c0_27 = arith.constant 0 : index
    %c0_28 = arith.constant 0 : index
    %41 = vector.load %arg8[%c0_27, %c0_28] : memref<1x512xf32, #tpu.memory_space<vmem>>, vector<1x512xf32>
    %42 = vector.broadcast %41 : vector<1x512xf32> to vector<14x512xf32>
    %43 = arith.addf %40, %42 : vector<14x512xf32>
    %44 = vector.extract_strided_slice %43 {offsets = [0, 0], sizes = [2, 512], strides = [1, 1]} : vector<14x512xf32> to vector<2x512xf32>
    %c0_29 = arith.constant 0 : index
    %c0_30 = arith.constant 0 : index
    %c0_31 = arith.constant 0 : index
    %45 = vector.load %arg14[%c0_29, %c0_30, %c0_31] : memref<7x2x512xf32, #tpu.memory_space<vmem>>, vector<1x2x512xf32>
    %46 = vector.shape_cast %45 : vector<1x2x512xf32> to vector<2x512xf32>
    %47 = vector.shape_cast %44 : vector<2x512xf32> to vector<1x2x512xf32>
    tpu.vector_store %arg14[%c0_29, %c0_30, %c0_31], %47 {strides = array<i32>} : memref<7x2x512xf32, #tpu.memory_space<vmem>>, vector<1x2x512xf32>,
    %48 = vector.extract_strided_slice %43 {offsets = [2, 0], sizes = [2, 512], strides = [1, 1]} : vector<14x512xf32> to vector<2x512xf32>
    %c1_32 = arith.constant 1 : index
    %c0_33 = arith.constant 0 : index
    %c0_34 = arith.constant 0 : index
    %49 = vector.load %arg14[%c1_32, %c0_33, %c0_34] : memref<7x2x512xf32, #tpu.memory_space<vmem>>, vector<1x2x512xf32>
    %50 = vector.shape_cast %49 : vector<1x2x512xf32> to vector<2x512xf32>
    %51 = vector.shape_cast %48 : vector<2x512xf32> to vector<1x2x512xf32>
    tpu.vector_store %arg14[%c1_32, %c0_33, %c0_34], %51 {strides = array<i32>} : memref<7x2x512xf32, #tpu.memory_space<vmem>>, vector<1x2x512xf32>,
    %52 = vector.extract_strided_slice %43 {offsets = [4, 0], sizes = [2, 512], strides = [1, 1]} : vector<14x512xf32> to vector<2x512xf32>
    %c2_35 = arith.constant 2 : index
    %c0_36 = arith.constant 0 : index
    %c0_37 = arith.constant 0 : index
    %53 = vector.load %arg14[%c2_35, %c0_36, %c0_37] : memref<7x2x512xf32, #tpu.memory_space<vmem>>, vector<1x2x512xf32>
    %54 = vector.shape_cast %53 : vector<1x2x512xf32> to vector<2x512xf32>
    %55 = vector.shape_cast %52 : vector<2x512xf32> to vector<1x2x512xf32>
    tpu.vector_store %arg14[%c2_35, %c0_36, %c0_37], %55 {strides = array<i32>} : memref<7x2x512xf32, #tpu.memory_space<vmem>>, vector<1x2x512xf32>,
    %56 = vector.extract_strided_slice %43 {offsets = [6, 0], sizes = [2, 512], strides = [1, 1]} : vector<14x512xf32> to vector<2x512xf32>
    %c3_38 = arith.constant 3 : index
    %c0_39 = arith.constant 0 : index
    %c0_40 = arith.constant 0 : index
    %57 = vector.load %arg14[%c3_38, %c0_39, %c0_40] : memref<7x2x512xf32, #tpu.memory_space<vmem>>, vector<1x2x512xf32>
    %58 = vector.shape_cast %57 : vector<1x2x512xf32> to vector<2x512xf32>
    %59 = vector.shape_cast %56 : vector<2x512xf32> to vector<1x2x512xf32>
    tpu.vector_store %arg14[%c3_38, %c0_39, %c0_40], %59 {strides = array<i32>} : memref<7x2x512xf32, #tpu.memory_space<vmem>>, vector<1x2x512xf32>,
    %60 = vector.extract_strided_slice %43 {offsets = [8, 0], sizes = [2, 512], strides = [1, 1]} : vector<14x512xf32> to vector<2x512xf32>
    %c4_41 = arith.constant 4 : index
    %c0_42 = arith.constant 0 : index
    %c0_43 = arith.constant 0 : index
    %61 = vector.load %arg14[%c4_41, %c0_42, %c0_43] : memref<7x2x512xf32, #tpu.memory_space<vmem>>, vector<1x2x512xf32>
    %62 = vector.shape_cast %61 : vector<1x2x512xf32> to vector<2x512xf32>
    %63 = vector.shape_cast %60 : vector<2x512xf32> to vector<1x2x512xf32>
    tpu.vector_store %arg14[%c4_41, %c0_42, %c0_43], %63 {strides = array<i32>} : memref<7x2x512xf32, #tpu.memory_space<vmem>>, vector<1x2x512xf32>,
    %64 = vector.extract_strided_slice %43 {offsets = [10, 0], sizes = [2, 512], strides = [1, 1]} : vector<14x512xf32> to vector<2x512xf32>
    %c5_44 = arith.constant 5 : index
    %c0_45 = arith.constant 0 : index
    %c0_46 = arith.constant 0 : index
    %65 = vector.load %arg14[%c5_44, %c0_45, %c0_46] : memref<7x2x512xf32, #tpu.memory_space<vmem>>, vector<1x2x512xf32>
    %66 = vector.shape_cast %65 : vector<1x2x512xf32> to vector<2x512xf32>
    %67 = vector.shape_cast %64 : vector<2x512xf32> to vector<1x2x512xf32>
    tpu.vector_store %arg14[%c5_44, %c0_45, %c0_46], %67 {strides = array<i32>} : memref<7x2x512xf32, #tpu.memory_space<vmem>>, vector<1x2x512xf32>,
    %68 = vector.extract_strided_slice %43 {offsets = [12, 0], sizes = [2, 512], strides = [1, 1]} : vector<14x512xf32> to vector<2x512xf32>
    %c6_47 = arith.constant 6 : index
    %c0_48 = arith.constant 0 : index
    %c0_49 = arith.constant 0 : index
    %69 = vector.load %arg14[%c6_47, %c0_48, %c0_49] : memref<7x2x512xf32, #tpu.memory_space<vmem>>, vector<1x2x512xf32>
    %70 = vector.shape_cast %69 : vector<1x2x512xf32> to vector<2x512xf32>
    %71 = vector.shape_cast %68 : vector<2x512xf32> to vector<1x2x512xf32>
    tpu.vector_store %arg14[%c6_47, %c0_48, %c0_49], %71 {strides = array<i32>} : memref<7x2x512xf32, #tpu.memory_space<vmem>>, vector<1x2x512xf32>,
    %cst_50 = arith.constant 0.000000e+00 : f32
    %72 = vector.broadcast %cst_50 : f32 to vector<2x128xf32>
    %cst_51 = arith.constant 0.000000e+00 : f32
    %73 = vector.broadcast %cst_51 : f32 to vector<2x128xf32>
    %c0_i32 = arith.constant 0 : i32
    %74 = arith.index_cast %c0_i32 : i32 to index
    %c0_52 = arith.constant 0 : index
    %c0_53 = arith.constant 0 : index
    %75 = vector.load %arg13[%74, %c0_52, %c0_53] : memref<8x2x512xf32, #tpu.memory_space<vmem>>, vector<1x2x512xf32>
    %76 = vector.shape_cast %75 : vector<1x2x512xf32> to vector<2x512xf32>
    %c0_54 = arith.constant 0 : index
    %c0_55 = arith.constant 0 : index
    %77 = vector.load %arg3[%c0_54, %c0_55] : memref<128x512xf32, #tpu.memory_space<vmem>>, vector<128x512xf32>
    %cst_56 = arith.constant dense<0.000000e+00> : vector<2x512xf32>
    %78 = tpu.matmul %72, %77, %cst_56 {dimension_numbers = #tpu.dot_dimension_numbers<[1], [0], [0], [1], [0, 0, 1, 1], [], []>} : vector<2x128xf32>, vector<128x512xf32>, vector<2x512xf32> -> vector<2x512xf32>
    %79 = arith.addf %76, %78 : vector<2x512xf32>
    %80 = arith.negf %79 : vector<2x512xf32>
    %81 = math.exp %80 : vector<2x512xf32>
    %cst_57 = arith.constant 1.000000e+00 : f32
    %82 = vector.broadcast %cst_57 : f32 to vector<2x512xf32>
    %83 = arith.addf %82, %81 : vector<2x512xf32>
    %84 = arith.divf %82, %83 : vector<2x512xf32>
    %85 = math.tanh %79 : vector<2x512xf32>
    %86 = vector.extract_strided_slice %84 {offsets = [0, 0], sizes = [2, 128], strides = [1, 1]} : vector<2x512xf32> to vector<2x128xf32>
    %87 = vector.extract_strided_slice %84 {offsets = [0, 128], sizes = [2, 128], strides = [1, 1]} : vector<2x512xf32> to vector<2x128xf32>
    %88 = vector.extract_strided_slice %85 {offsets = [0, 256], sizes = [2, 128], strides = [1, 1]} : vector<2x512xf32> to vector<2x128xf32>
    %89 = vector.extract_strided_slice %84 {offsets = [0, 384], sizes = [2, 128], strides = [1, 1]} : vector<2x512xf32> to vector<2x128xf32>
    %90 = arith.mulf %87, %73 : vector<2x128xf32>
    %91 = arith.mulf %86, %88 : vector<2x128xf32>
    %92 = arith.addf %90, %91 : vector<2x128xf32>
    %93 = math.tanh %92 : vector<2x128xf32>
    %94 = arith.mulf %89, %93 : vector<2x128xf32>
    %95 = arith.index_cast %c0_i32 : i32 to index
    %c0_58 = arith.constant 0 : index
    %c0_59 = arith.constant 0 : index
    %96 = vector.load %arg15[%95, %c0_58, %c0_59] : memref<8x2x128xf32, #tpu.memory_space<vmem>>, vector<1x2x128xf32>
    %97 = vector.shape_cast %96 : vector<1x2x128xf32> to vector<2x128xf32>
    %98 = vector.shape_cast %94 : vector<2x128xf32> to vector<1x2x128xf32>
    tpu.vector_store %arg15[%95, %c0_58, %c0_59], %98 {strides = array<i32>} : memref<8x2x128xf32, #tpu.memory_space<vmem>>, vector<1x2x128xf32>,
    %c1_i32 = arith.constant 1 : i32
    %99 = arith.index_cast %c1_i32 : i32 to index
    %c0_60 = arith.constant 0 : index
    %c0_61 = arith.constant 0 : index
    %100 = vector.load %arg13[%99, %c0_60, %c0_61] : memref<8x2x512xf32, #tpu.memory_space<vmem>>, vector<1x2x512xf32>
    %101 = vector.shape_cast %100 : vector<1x2x512xf32> to vector<2x512xf32>
    %c0_62 = arith.constant 0 : index
    %c0_63 = arith.constant 0 : index
    %102 = vector.load %arg3[%c0_62, %c0_63] : memref<128x512xf32, #tpu.memory_space<vmem>>, vector<128x512xf32>
    %cst_64 = arith.constant dense<0.000000e+00> : vector<2x512xf32>
    %103 = tpu.matmul %94, %102, %cst_64 {dimension_numbers = #tpu.dot_dimension_numbers<[1], [0], [0], [1], [0, 0, 1, 1], [], []>} : vector<2x128xf32>, vector<128x512xf32>, vector<2x512xf32> -> vector<2x512xf32>
    %104 = arith.addf %101, %103 : vector<2x512xf32>
    %105 = arith.negf %104 : vector<2x512xf32>
    %106 = math.exp %105 : vector<2x512xf32>
    %cst_65 = arith.constant 1.000000e+00 : f32
    %107 = vector.broadcast %cst_65 : f32 to vector<2x512xf32>
    %108 = arith.addf %107, %106 : vector<2x512xf32>
    %109 = arith.divf %107, %108 : vector<2x512xf32>
    %110 = math.tanh %104 : vector<2x512xf32>
    %111 = vector.extract_strided_slice %109 {offsets = [0, 0], sizes = [2, 128], strides = [1, 1]} : vector<2x512xf32> to vector<2x128xf32>
    %112 = vector.extract_strided_slice %109 {offsets = [0, 128], sizes = [2, 128], strides = [1, 1]} : vector<2x512xf32> to vector<2x128xf32>
    %113 = vector.extract_strided_slice %110 {offsets = [0, 256], sizes = [2, 128], strides = [1, 1]} : vector<2x512xf32> to vector<2x128xf32>
    %114 = vector.extract_strided_slice %109 {offsets = [0, 384], sizes = [2, 128], strides = [1, 1]} : vector<2x512xf32> to vector<2x128xf32>
    %115 = arith.mulf %112, %92 : vector<2x128xf32>
    %116 = arith.mulf %111, %113 : vector<2x128xf32>
    %117 = arith.addf %115, %116 : vector<2x128xf32>
    %118 = math.tanh %117 : vector<2x128xf32>
    %119 = arith.mulf %114, %118 : vector<2x128xf32>
    %120 = arith.index_cast %c1_i32 : i32 to index
    %c0_66 = arith.constant 0 : index
    %c0_67 = arith.constant 0 : index
    %121 = vector.load %arg15[%120, %c0_66, %c0_67] : memref<8x2x128xf32, #tpu.memory_space<vmem>>, vector<1x2x128xf32>
    %122 = vector.shape_cast %121 : vector<1x2x128xf32> to vector<2x128xf32>
    %123 = vector.shape_cast %119 : vector<2x128xf32> to vector<1x2x128xf32>
    tpu.vector_store %arg15[%120, %c0_66, %c0_67], %123 {strides = array<i32>} : memref<8x2x128xf32, #tpu.memory_space<vmem>>, vector<1x2x128xf32>,
    %c2_i32 = arith.constant 2 : i32
    %124 = arith.index_cast %c2_i32 : i32 to index
    %c0_68 = arith.constant 0 : index
    %c0_69 = arith.constant 0 : index
    %125 = vector.load %arg13[%124, %c0_68, %c0_69] : memref<8x2x512xf32, #tpu.memory_space<vmem>>, vector<1x2x512xf32>
    %126 = vector.shape_cast %125 : vector<1x2x512xf32> to vector<2x512xf32>
    %c0_70 = arith.constant 0 : index
    %c0_71 = arith.constant 0 : index
    %127 = vector.load %arg3[%c0_70, %c0_71] : memref<128x512xf32, #tpu.memory_space<vmem>>, vector<128x512xf32>
    %cst_72 = arith.constant dense<0.000000e+00> : vector<2x512xf32>
    %128 = tpu.matmul %119, %127, %cst_72 {dimension_numbers = #tpu.dot_dimension_numbers<[1], [0], [0], [1], [0, 0, 1, 1], [], []>} : vector<2x128xf32>, vector<128x512xf32>, vector<2x512xf32> -> vector<2x512xf32>
    %129 = arith.addf %126, %128 : vector<2x512xf32>
    %130 = arith.negf %129 : vector<2x512xf32>
    %131 = math.exp %130 : vector<2x512xf32>
    %cst_73 = arith.constant 1.000000e+00 : f32
    %132 = vector.broadcast %cst_73 : f32 to vector<2x512xf32>
    %133 = arith.addf %132, %131 : vector<2x512xf32>
    %134 = arith.divf %132, %133 : vector<2x512xf32>
    %135 = math.tanh %129 : vector<2x512xf32>
    %136 = vector.extract_strided_slice %134 {offsets = [0, 0], sizes = [2, 128], strides = [1, 1]} : vector<2x512xf32> to vector<2x128xf32>
    %137 = vector.extract_strided_slice %134 {offsets = [0, 128], sizes = [2, 128], strides = [1, 1]} : vector<2x512xf32> to vector<2x128xf32>
    %138 = vector.extract_strided_slice %135 {offsets = [0, 256], sizes = [2, 128], strides = [1, 1]} : vector<2x512xf32> to vector<2x128xf32>
    %139 = vector.extract_strided_slice %134 {offsets = [0, 384], sizes = [2, 128], strides = [1, 1]} : vector<2x512xf32> to vector<2x128xf32>
    %140 = arith.mulf %137, %117 : vector<2x128xf32>
    %141 = arith.mulf %136, %138 : vector<2x128xf32>
    %142 = arith.addf %140, %141 : vector<2x128xf32>
    %143 = math.tanh %142 : vector<2x128xf32>
    %144 = arith.mulf %139, %143 : vector<2x128xf32>
    %145 = arith.index_cast %c2_i32 : i32 to index
    %c0_74 = arith.constant 0 : index
    %c0_75 = arith.constant 0 : index
    %146 = vector.load %arg15[%145, %c0_74, %c0_75] : memref<8x2x128xf32, #tpu.memory_space<vmem>>, vector<1x2x128xf32>
    %147 = vector.shape_cast %146 : vector<1x2x128xf32> to vector<2x128xf32>
    %148 = vector.shape_cast %144 : vector<2x128xf32> to vector<1x2x128xf32>
    tpu.vector_store %arg15[%145, %c0_74, %c0_75], %148 {strides = array<i32>} : memref<8x2x128xf32, #tpu.memory_space<vmem>>, vector<1x2x128xf32>,
    %c3_i32 = arith.constant 3 : i32
    %149 = arith.index_cast %c3_i32 : i32 to index
    %c0_76 = arith.constant 0 : index
    %c0_77 = arith.constant 0 : index
    %150 = vector.load %arg13[%149, %c0_76, %c0_77] : memref<8x2x512xf32, #tpu.memory_space<vmem>>, vector<1x2x512xf32>
    %151 = vector.shape_cast %150 : vector<1x2x512xf32> to vector<2x512xf32>
    %c0_78 = arith.constant 0 : index
    %c0_79 = arith.constant 0 : index
    %152 = vector.load %arg3[%c0_78, %c0_79] : memref<128x512xf32, #tpu.memory_space<vmem>>, vector<128x512xf32>
    %cst_80 = arith.constant dense<0.000000e+00> : vector<2x512xf32>
    %153 = tpu.matmul %144, %152, %cst_80 {dimension_numbers = #tpu.dot_dimension_numbers<[1], [0], [0], [1], [0, 0, 1, 1], [], []>} : vector<2x128xf32>, vector<128x512xf32>, vector<2x512xf32> -> vector<2x512xf32>
    %154 = arith.addf %151, %153 : vector<2x512xf32>
    %155 = arith.negf %154 : vector<2x512xf32>
    %156 = math.exp %155 : vector<2x512xf32>
    %cst_81 = arith.constant 1.000000e+00 : f32
    %157 = vector.broadcast %cst_81 : f32 to vector<2x512xf32>
    %158 = arith.addf %157, %156 : vector<2x512xf32>
    %159 = arith.divf %157, %158 : vector<2x512xf32>
    %160 = math.tanh %154 : vector<2x512xf32>
    %161 = vector.extract_strided_slice %159 {offsets = [0, 0], sizes = [2, 128], strides = [1, 1]} : vector<2x512xf32> to vector<2x128xf32>
    %162 = vector.extract_strided_slice %159 {offsets = [0, 128], sizes = [2, 128], strides = [1, 1]} : vector<2x512xf32> to vector<2x128xf32>
    %163 = vector.extract_strided_slice %160 {offsets = [0, 256], sizes = [2, 128], strides = [1, 1]} : vector<2x512xf32> to vector<2x128xf32>
    %164 = vector.extract_strided_slice %159 {offsets = [0, 384], sizes = [2, 128], strides = [1, 1]} : vector<2x512xf32> to vector<2x128xf32>
    %165 = arith.mulf %162, %142 : vector<2x128xf32>
    %166 = arith.mulf %161, %163 : vector<2x128xf32>
    %167 = arith.addf %165, %166 : vector<2x128xf32>
    %168 = math.tanh %167 : vector<2x128xf32>
    %169 = arith.mulf %164, %168 : vector<2x128xf32>
    %170 = arith.index_cast %c3_i32 : i32 to index
    %c0_82 = arith.constant 0 : index
    %c0_83 = arith.constant 0 : index
    %171 = vector.load %arg15[%170, %c0_82, %c0_83] : memref<8x2x128xf32, #tpu.memory_space<vmem>>, vector<1x2x128xf32>
    %172 = vector.shape_cast %171 : vector<1x2x128xf32> to vector<2x128xf32>
    %173 = vector.shape_cast %169 : vector<2x128xf32> to vector<1x2x128xf32>
    tpu.vector_store %arg15[%170, %c0_82, %c0_83], %173 {strides = array<i32>} : memref<8x2x128xf32, #tpu.memory_space<vmem>>, vector<1x2x128xf32>,
    %c4_i32 = arith.constant 4 : i32
    %174 = arith.index_cast %c4_i32 : i32 to index
    %c0_84 = arith.constant 0 : index
    %c0_85 = arith.constant 0 : index
    %175 = vector.load %arg13[%174, %c0_84, %c0_85] : memref<8x2x512xf32, #tpu.memory_space<vmem>>, vector<1x2x512xf32>
    %176 = vector.shape_cast %175 : vector<1x2x512xf32> to vector<2x512xf32>
    %c0_86 = arith.constant 0 : index
    %c0_87 = arith.constant 0 : index
    %177 = vector.load %arg3[%c0_86, %c0_87] : memref<128x512xf32, #tpu.memory_space<vmem>>, vector<128x512xf32>
    %cst_88 = arith.constant dense<0.000000e+00> : vector<2x512xf32>
    %178 = tpu.matmul %169, %177, %cst_88 {dimension_numbers = #tpu.dot_dimension_numbers<[1], [0], [0], [1], [0, 0, 1, 1], [], []>} : vector<2x128xf32>, vector<128x512xf32>, vector<2x512xf32> -> vector<2x512xf32>
    %179 = arith.addf %176, %178 : vector<2x512xf32>
    %180 = arith.negf %179 : vector<2x512xf32>
    %181 = math.exp %180 : vector<2x512xf32>
    %cst_89 = arith.constant 1.000000e+00 : f32
    %182 = vector.broadcast %cst_89 : f32 to vector<2x512xf32>
    %183 = arith.addf %182, %181 : vector<2x512xf32>
    %184 = arith.divf %182, %183 : vector<2x512xf32>
    %185 = math.tanh %179 : vector<2x512xf32>
    %186 = vector.extract_strided_slice %184 {offsets = [0, 0], sizes = [2, 128], strides = [1, 1]} : vector<2x512xf32> to vector<2x128xf32>
    %187 = vector.extract_strided_slice %184 {offsets = [0, 128], sizes = [2, 128], strides = [1, 1]} : vector<2x512xf32> to vector<2x128xf32>
    %188 = vector.extract_strided_slice %185 {offsets = [0, 256], sizes = [2, 128], strides = [1, 1]} : vector<2x512xf32> to vector<2x128xf32>
    %189 = vector.extract_strided_slice %184 {offsets = [0, 384], sizes = [2, 128], strides = [1, 1]} : vector<2x512xf32> to vector<2x128xf32>
    %190 = arith.mulf %187, %167 : vector<2x128xf32>
    %191 = arith.mulf %186, %188 : vector<2x128xf32>
    %192 = arith.addf %190, %191 : vector<2x128xf32>
    %193 = math.tanh %192 : vector<2x128xf32>
    %194 = arith.mulf %189, %193 : vector<2x128xf32>
    %195 = arith.index_cast %c4_i32 : i32 to index
    %c0_90 = arith.constant 0 : index
    %c0_91 = arith.constant 0 : index
    %196 = vector.load %arg15[%195, %c0_90, %c0_91] : memref<8x2x128xf32, #tpu.memory_space<vmem>>, vector<1x2x128xf32>
    %197 = vector.shape_cast %196 : vector<1x2x128xf32> to vector<2x128xf32>
    %198 = vector.shape_cast %194 : vector<2x128xf32> to vector<1x2x128xf32>
    tpu.vector_store %arg15[%195, %c0_90, %c0_91], %198 {strides = array<i32>} : memref<8x2x128xf32, #tpu.memory_space<vmem>>, vector<1x2x128xf32>,
    %c5_i32 = arith.constant 5 : i32
    %199 = arith.index_cast %c5_i32 : i32 to index
    %c0_92 = arith.constant 0 : index
    %c0_93 = arith.constant 0 : index
    %200 = vector.load %arg13[%199, %c0_92, %c0_93] : memref<8x2x512xf32, #tpu.memory_space<vmem>>, vector<1x2x512xf32>
    %201 = vector.shape_cast %200 : vector<1x2x512xf32> to vector<2x512xf32>
    %c0_94 = arith.constant 0 : index
    %c0_95 = arith.constant 0 : index
    %202 = vector.load %arg3[%c0_94, %c0_95] : memref<128x512xf32, #tpu.memory_space<vmem>>, vector<128x512xf32>
    %cst_96 = arith.constant dense<0.000000e+00> : vector<2x512xf32>
    %203 = tpu.matmul %194, %202, %cst_96 {dimension_numbers = #tpu.dot_dimension_numbers<[1], [0], [0], [1], [0, 0, 1, 1], [], []>} : vector<2x128xf32>, vector<128x512xf32>, vector<2x512xf32> -> vector<2x512xf32>
    %204 = arith.addf %201, %203 : vector<2x512xf32>
    %205 = arith.negf %204 : vector<2x512xf32>
    %206 = math.exp %205 : vector<2x512xf32>
    %cst_97 = arith.constant 1.000000e+00 : f32
    %207 = vector.broadcast %cst_97 : f32 to vector<2x512xf32>
    %208 = arith.addf %207, %206 : vector<2x512xf32>
    %209 = arith.divf %207, %208 : vector<2x512xf32>
    %210 = math.tanh %204 : vector<2x512xf32>
    %211 = vector.extract_strided_slice %209 {offsets = [0, 0], sizes = [2, 128], strides = [1, 1]} : vector<2x512xf32> to vector<2x128xf32>
    %212 = vector.extract_strided_slice %209 {offsets = [0, 128], sizes = [2, 128], strides = [1, 1]} : vector<2x512xf32> to vector<2x128xf32>
    %213 = vector.extract_strided_slice %210 {offsets = [0, 256], sizes = [2, 128], strides = [1, 1]} : vector<2x512xf32> to vector<2x128xf32>
    %214 = vector.extract_strided_slice %209 {offsets = [0, 384], sizes = [2, 128], strides = [1, 1]} : vector<2x512xf32> to vector<2x128xf32>
    %215 = arith.mulf %212, %192 : vector<2x128xf32>
    %216 = arith.mulf %211, %213 : vector<2x128xf32>
    %217 = arith.addf %215, %216 : vector<2x128xf32>
    %218 = math.tanh %217 : vector<2x128xf32>
    %219 = arith.mulf %214, %218 : vector<2x128xf32>
    %220 = arith.index_cast %c5_i32 : i32 to index
    %c0_98 = arith.constant 0 : index
    %c0_99 = arith.constant 0 : index
    %221 = vector.load %arg15[%220, %c0_98, %c0_99] : memref<8x2x128xf32, #tpu.memory_space<vmem>>, vector<1x2x128xf32>
    %222 = vector.shape_cast %221 : vector<1x2x128xf32> to vector<2x128xf32>
    %223 = vector.shape_cast %219 : vector<2x128xf32> to vector<1x2x128xf32>
    tpu.vector_store %arg15[%220, %c0_98, %c0_99], %223 {strides = array<i32>} : memref<8x2x128xf32, #tpu.memory_space<vmem>>, vector<1x2x128xf32>,
    %c6_i32 = arith.constant 6 : i32
    %224 = arith.index_cast %c6_i32 : i32 to index
    %c0_100 = arith.constant 0 : index
    %c0_101 = arith.constant 0 : index
    %225 = vector.load %arg13[%224, %c0_100, %c0_101] : memref<8x2x512xf32, #tpu.memory_space<vmem>>, vector<1x2x512xf32>
    %226 = vector.shape_cast %225 : vector<1x2x512xf32> to vector<2x512xf32>
    %c0_102 = arith.constant 0 : index
    %c0_103 = arith.constant 0 : index
    %227 = vector.load %arg3[%c0_102, %c0_103] : memref<128x512xf32, #tpu.memory_space<vmem>>, vector<128x512xf32>
    %cst_104 = arith.constant dense<0.000000e+00> : vector<2x512xf32>
    %228 = tpu.matmul %219, %227, %cst_104 {dimension_numbers = #tpu.dot_dimension_numbers<[1], [0], [0], [1], [0, 0, 1, 1], [], []>} : vector<2x128xf32>, vector<128x512xf32>, vector<2x512xf32> -> vector<2x512xf32>
    %229 = arith.addf %226, %228 : vector<2x512xf32>
    %230 = arith.negf %229 : vector<2x512xf32>
    %231 = math.exp %230 : vector<2x512xf32>
    %cst_105 = arith.constant 1.000000e+00 : f32
    %232 = vector.broadcast %cst_105 : f32 to vector<2x512xf32>
    %233 = arith.addf %232, %231 : vector<2x512xf32>
    %234 = arith.divf %232, %233 : vector<2x512xf32>
    %235 = math.tanh %229 : vector<2x512xf32>
    %236 = vector.extract_strided_slice %234 {offsets = [0, 0], sizes = [2, 128], strides = [1, 1]} : vector<2x512xf32> to vector<2x128xf32>
    %237 = vector.extract_strided_slice %234 {offsets = [0, 128], sizes = [2, 128], strides = [1, 1]} : vector<2x512xf32> to vector<2x128xf32>
    %238 = vector.extract_strided_slice %235 {offsets = [0, 256], sizes = [2, 128], strides = [1, 1]} : vector<2x512xf32> to vector<2x128xf32>
    %239 = vector.extract_strided_slice %234 {offsets = [0, 384], sizes = [2, 128], strides = [1, 1]} : vector<2x512xf32> to vector<2x128xf32>
    %240 = arith.mulf %237, %217 : vector<2x128xf32>
    %241 = arith.mulf %236, %238 : vector<2x128xf32>
    %242 = arith.addf %240, %241 : vector<2x128xf32>
    %243 = math.tanh %242 : vector<2x128xf32>
    %244 = arith.mulf %239, %243 : vector<2x128xf32>
    %245 = arith.index_cast %c6_i32 : i32 to index
    %c0_106 = arith.constant 0 : index
    %c0_107 = arith.constant 0 : index
    %246 = vector.load %arg15[%245, %c0_106, %c0_107] : memref<8x2x128xf32, #tpu.memory_space<vmem>>, vector<1x2x128xf32>
    %247 = vector.shape_cast %246 : vector<1x2x128xf32> to vector<2x128xf32>
    %248 = vector.shape_cast %244 : vector<2x128xf32> to vector<1x2x128xf32>
    tpu.vector_store %arg15[%245, %c0_106, %c0_107], %248 {strides = array<i32>} : memref<8x2x128xf32, #tpu.memory_space<vmem>>, vector<1x2x128xf32>,
    %c7_i32 = arith.constant 7 : i32
    %249 = arith.index_cast %c7_i32 : i32 to index
    %c0_108 = arith.constant 0 : index
    %c0_109 = arith.constant 0 : index
    %250 = vector.load %arg13[%249, %c0_108, %c0_109] : memref<8x2x512xf32, #tpu.memory_space<vmem>>, vector<1x2x512xf32>
    %251 = vector.shape_cast %250 : vector<1x2x512xf32> to vector<2x512xf32>
    %c0_110 = arith.constant 0 : index
    %c0_111 = arith.constant 0 : index
    %252 = vector.load %arg3[%c0_110, %c0_111] : memref<128x512xf32, #tpu.memory_space<vmem>>, vector<128x512xf32>
    %cst_112 = arith.constant dense<0.000000e+00> : vector<2x512xf32>
    %253 = tpu.matmul %244, %252, %cst_112 {dimension_numbers = #tpu.dot_dimension_numbers<[1], [0], [0], [1], [0, 0, 1, 1], [], []>} : vector<2x128xf32>, vector<128x512xf32>, vector<2x512xf32> -> vector<2x512xf32>
    %254 = arith.addf %251, %253 : vector<2x512xf32>
    %255 = arith.negf %254 : vector<2x512xf32>
    %256 = math.exp %255 : vector<2x512xf32>
    %cst_113 = arith.constant 1.000000e+00 : f32
    %257 = vector.broadcast %cst_113 : f32 to vector<2x512xf32>
    %258 = arith.addf %257, %256 : vector<2x512xf32>
    %259 = arith.divf %257, %258 : vector<2x512xf32>
    %260 = math.tanh %254 : vector<2x512xf32>
    %261 = vector.extract_strided_slice %259 {offsets = [0, 0], sizes = [2, 128], strides = [1, 1]} : vector<2x512xf32> to vector<2x128xf32>
    %262 = vector.extract_strided_slice %259 {offsets = [0, 128], sizes = [2, 128], strides = [1, 1]} : vector<2x512xf32> to vector<2x128xf32>
    %263 = vector.extract_strided_slice %260 {offsets = [0, 256], sizes = [2, 128], strides = [1, 1]} : vector<2x512xf32> to vector<2x128xf32>
    %264 = vector.extract_strided_slice %259 {offsets = [0, 384], sizes = [2, 128], strides = [1, 1]} : vector<2x512xf32> to vector<2x128xf32>
    %265 = arith.mulf %262, %242 : vector<2x128xf32>
    %266 = arith.mulf %261, %263 : vector<2x128xf32>
    %267 = arith.addf %265, %266 : vector<2x128xf32>
    %268 = math.tanh %267 : vector<2x128xf32>
    %269 = arith.mulf %264, %268 : vector<2x128xf32>
    %270 = arith.index_cast %c7_i32 : i32 to index
    %c0_114 = arith.constant 0 : index
    %c0_115 = arith.constant 0 : index
    %271 = vector.load %arg15[%270, %c0_114, %c0_115] : memref<8x2x128xf32, #tpu.memory_space<vmem>>, vector<1x2x128xf32>
    %272 = vector.shape_cast %271 : vector<1x2x128xf32> to vector<2x128xf32>
    %273 = vector.shape_cast %269 : vector<2x128xf32> to vector<1x2x128xf32>
    tpu.vector_store %arg15[%270, %c0_114, %c0_115], %273 {strides = array<i32>} : memref<8x2x128xf32, #tpu.memory_space<vmem>>, vector<1x2x128xf32>,
    %c8_i32 = arith.constant 8 : i32
    %c0_116 = arith.constant 0 : index
    %c0_117 = arith.constant 0 : index
    %c0_118 = arith.constant 0 : index
    %274 = vector.load %arg15[%c0_116, %c0_117, %c0_118] : memref<8x2x128xf32, #tpu.memory_space<vmem>>, vector<1x2x128xf32>
    %275 = vector.shape_cast %274 : vector<1x2x128xf32> to vector<2x128xf32>
    %c0_119 = arith.constant 0 : index
    %c0_120 = arith.constant 0 : index
    %c0_121 = arith.constant 0 : index
    %276 = vector.load %arg16[%c0_119, %c0_120, %c0_121] : memref<2x8x128xf32, #tpu.memory_space<vmem>>, vector<2x1x128xf32>
    %277 = vector.shape_cast %276 : vector<2x1x128xf32> to vector<2x128xf32>
    %278 = vector.shape_cast %275 : vector<2x128xf32> to vector<2x1x128xf32>
    tpu.vector_store %arg16[%c0_119, %c0_120, %c0_121], %278 {strides = array<i32>} : memref<2x8x128xf32, #tpu.memory_space<vmem>>, vector<2x1x128xf32>,
    %c1_122 = arith.constant 1 : index
    %c0_123 = arith.constant 0 : index
    %c0_124 = arith.constant 0 : index
    %279 = vector.load %arg15[%c1_122, %c0_123, %c0_124] : memref<8x2x128xf32, #tpu.memory_space<vmem>>, vector<1x2x128xf32>
    %280 = vector.shape_cast %279 : vector<1x2x128xf32> to vector<2x128xf32>
    %c0_125 = arith.constant 0 : index
    %c1_126 = arith.constant 1 : index
    %c0_127 = arith.constant 0 : index
    %281 = vector.load %arg16[%c0_125, %c1_126, %c0_127] : memref<2x8x128xf32, #tpu.memory_space<vmem>>, vector<2x1x128xf32>
    %282 = vector.shape_cast %281 : vector<2x1x128xf32> to vector<2x128xf32>
    %283 = vector.shape_cast %280 : vector<2x128xf32> to vector<2x1x128xf32>
    tpu.vector_store %arg16[%c0_125, %c1_126, %c0_127], %283 {strides = array<i32>} : memref<2x8x128xf32, #tpu.memory_space<vmem>>, vector<2x1x128xf32>,
    %c2_128 = arith.constant 2 : index
    %c0_129 = arith.constant 0 : index
    %c0_130 = arith.constant 0 : index
    %284 = vector.load %arg15[%c2_128, %c0_129, %c0_130] : memref<8x2x128xf32, #tpu.memory_space<vmem>>, vector<1x2x128xf32>
    %285 = vector.shape_cast %284 : vector<1x2x128xf32> to vector<2x128xf32>
    %c0_131 = arith.constant 0 : index
    %c2_132 = arith.constant 2 : index
    %c0_133 = arith.constant 0 : index
    %286 = vector.load %arg16[%c0_131, %c2_132, %c0_133] : memref<2x8x128xf32, #tpu.memory_space<vmem>>, vector<2x1x128xf32>
    %287 = vector.shape_cast %286 : vector<2x1x128xf32> to vector<2x128xf32>
    %288 = vector.shape_cast %285 : vector<2x128xf32> to vector<2x1x128xf32>
    tpu.vector_store %arg16[%c0_131, %c2_132, %c0_133], %288 {strides = array<i32>} : memref<2x8x128xf32, #tpu.memory_space<vmem>>, vector<2x1x128xf32>,
    %c3_134 = arith.constant 3 : index
    %c0_135 = arith.constant 0 : index
    %c0_136 = arith.constant 0 : index
    %289 = vector.load %arg15[%c3_134, %c0_135, %c0_136] : memref<8x2x128xf32, #tpu.memory_space<vmem>>, vector<1x2x128xf32>
    %290 = vector.shape_cast %289 : vector<1x2x128xf32> to vector<2x128xf32>
    %c0_137 = arith.constant 0 : index
    %c3_138 = arith.constant 3 : index
    %c0_139 = arith.constant 0 : index
    %291 = vector.load %arg16[%c0_137, %c3_138, %c0_139] : memref<2x8x128xf32, #tpu.memory_space<vmem>>, vector<2x1x128xf32>
    %292 = vector.shape_cast %291 : vector<2x1x128xf32> to vector<2x128xf32>
    %293 = vector.shape_cast %290 : vector<2x128xf32> to vector<2x1x128xf32>
    tpu.vector_store %arg16[%c0_137, %c3_138, %c0_139], %293 {strides = array<i32>} : memref<2x8x128xf32, #tpu.memory_space<vmem>>, vector<2x1x128xf32>,
    %c4_140 = arith.constant 4 : index
    %c0_141 = arith.constant 0 : index
    %c0_142 = arith.constant 0 : index
    %294 = vector.load %arg15[%c4_140, %c0_141, %c0_142] : memref<8x2x128xf32, #tpu.memory_space<vmem>>, vector<1x2x128xf32>
    %295 = vector.shape_cast %294 : vector<1x2x128xf32> to vector<2x128xf32>
    %c0_143 = arith.constant 0 : index
    %c4_144 = arith.constant 4 : index
    %c0_145 = arith.constant 0 : index
    %296 = vector.load %arg16[%c0_143, %c4_144, %c0_145] : memref<2x8x128xf32, #tpu.memory_space<vmem>>, vector<2x1x128xf32>
    %297 = vector.shape_cast %296 : vector<2x1x128xf32> to vector<2x128xf32>
    %298 = vector.shape_cast %295 : vector<2x128xf32> to vector<2x1x128xf32>
    tpu.vector_store %arg16[%c0_143, %c4_144, %c0_145], %298 {strides = array<i32>} : memref<2x8x128xf32, #tpu.memory_space<vmem>>, vector<2x1x128xf32>,
    %c5_146 = arith.constant 5 : index
    %c0_147 = arith.constant 0 : index
    %c0_148 = arith.constant 0 : index
    %299 = vector.load %arg15[%c5_146, %c0_147, %c0_148] : memref<8x2x128xf32, #tpu.memory_space<vmem>>, vector<1x2x128xf32>
    %300 = vector.shape_cast %299 : vector<1x2x128xf32> to vector<2x128xf32>
    %c0_149 = arith.constant 0 : index
    %c5_150 = arith.constant 5 : index
    %c0_151 = arith.constant 0 : index
    %301 = vector.load %arg16[%c0_149, %c5_150, %c0_151] : memref<2x8x128xf32, #tpu.memory_space<vmem>>, vector<2x1x128xf32>
    %302 = vector.shape_cast %301 : vector<2x1x128xf32> to vector<2x128xf32>
    %303 = vector.shape_cast %300 : vector<2x128xf32> to vector<2x1x128xf32>
    tpu.vector_store %arg16[%c0_149, %c5_150, %c0_151], %303 {strides = array<i32>} : memref<2x8x128xf32, #tpu.memory_space<vmem>>, vector<2x1x128xf32>,
    %c6_152 = arith.constant 6 : index
    %c0_153 = arith.constant 0 : index
    %c0_154 = arith.constant 0 : index
    %304 = vector.load %arg15[%c6_152, %c0_153, %c0_154] : memref<8x2x128xf32, #tpu.memory_space<vmem>>, vector<1x2x128xf32>
    %305 = vector.shape_cast %304 : vector<1x2x128xf32> to vector<2x128xf32>
    %c0_155 = arith.constant 0 : index
    %c6_156 = arith.constant 6 : index
    %c0_157 = arith.constant 0 : index
    %306 = vector.load %arg16[%c0_155, %c6_156, %c0_157] : memref<2x8x128xf32, #tpu.memory_space<vmem>>, vector<2x1x128xf32>
    %307 = vector.shape_cast %306 : vector<2x1x128xf32> to vector<2x128xf32>
    %308 = vector.shape_cast %305 : vector<2x128xf32> to vector<2x1x128xf32>
    tpu.vector_store %arg16[%c0_155, %c6_156, %c0_157], %308 {strides = array<i32>} : memref<2x8x128xf32, #tpu.memory_space<vmem>>, vector<2x1x128xf32>,
    %c7_158 = arith.constant 7 : index
    %c0_159 = arith.constant 0 : index
    %c0_160 = arith.constant 0 : index
    %309 = vector.load %arg15[%c7_158, %c0_159, %c0_160] : memref<8x2x128xf32, #tpu.memory_space<vmem>>, vector<1x2x128xf32>
    %310 = vector.shape_cast %309 : vector<1x2x128xf32> to vector<2x128xf32>
    %c0_161 = arith.constant 0 : index
    %c7_162 = arith.constant 7 : index
    %c0_163 = arith.constant 0 : index
    %311 = vector.load %arg16[%c0_161, %c7_162, %c0_163] : memref<2x8x128xf32, #tpu.memory_space<vmem>>, vector<2x1x128xf32>
    %312 = vector.shape_cast %311 : vector<2x1x128xf32> to vector<2x128xf32>
    %313 = vector.shape_cast %310 : vector<2x128xf32> to vector<2x1x128xf32>
    tpu.vector_store %arg16[%c0_161, %c7_162, %c0_163], %313 {strides = array<i32>} : memref<2x8x128xf32, #tpu.memory_space<vmem>>, vector<2x1x128xf32>,
    %c0_164 = arith.constant 0 : index
    %c0_165 = arith.constant 0 : index
    %c0_166 = arith.constant 0 : index
    %314 = vector.load %arg16[%c0_164, %c0_165, %c0_166] : memref<2x8x128xf32, #tpu.memory_space<vmem>>, vector<2x8x128xf32>
    %c0_167 = arith.constant 0 : index
    %c0_168 = arith.constant 0 : index
    %315 = vector.load %arg5[%c0_167, %c0_168] : memref<1x256xf32, #tpu.memory_space<vmem>>, vector<1x256xf32>
    %316 = vector.extract_strided_slice %315 {offsets = [0, 0], sizes = [1, 128], strides = [1, 1]} : vector<1x256xf32> to vector<1x128xf32>
    %317 = vector.extract_strided_slice %315 {offsets = [0, 128], sizes = [1, 128], strides = [1, 1]} : vector<1x256xf32> to vector<1x128xf32>
    %c0_169 = arith.constant 0 : index
    %c0_170 = arith.constant 0 : index
    %318 = vector.load %arg6[%c0_169, %c0_170] : memref<1x1xf32, #tpu.memory_space<vmem>>, vector<1x1xf32>
    %319 = vector.shape_cast %317 : vector<1x128xf32> to vector<1x1x128xf32>
    %320 = vector.broadcast %319 : vector<1x1x128xf32> to vector<2x8x128xf32>
    %321 = arith.mulf %314, %320 : vector<2x8x128xf32>
    %cst_171 = arith.constant dense<0.000000e+00> : vector<2x8xf32>
    %322 = vector.multi_reduction <add>, %321, %cst_171 [2] : vector<2x8x128xf32> to vector<2x8xf32>
    %c1_i32_172 = arith.constant 1 : i32
    %323 = vector.broadcast %316 : vector<1x128xf32> to vector<2x128xf32>
    %324 = arith.mulf %269, %323 : vector<2x128xf32>
    %cst_173 = arith.constant dense<0.000000e+00> : vector<2xf32>
    %325 = vector.multi_reduction <add>, %324, %cst_173 [1] : vector<2x128xf32> to vector<2xf32>
    %326 = vector.shape_cast %325 : vector<2xf32> to vector<2x1xf32>
    %327 = vector.broadcast %326 : vector<2x1xf32> to vector<2x8xf32>
    %328 = arith.addf %322, %327 : vector<2x8xf32>
    %329 = vector.broadcast %318 : vector<1x1xf32> to vector<2x8xf32>
    %330 = arith.addf %328, %329 : vector<2x8xf32>
    %cst_174 = arith.constant 0.000000e+00 : f32
    %331 = vector.broadcast %cst_174 : f32 to vector<2x8xf32>
    %332 = arith.maximumf %330, %331 : vector<2x8xf32>
    %cst_175 = arith.constant dense<0xFF800000> : vector<2xf32>
    %333 = vector.multi_reduction <maximumf>, %332, %cst_175 [1] : vector<2x8xf32> to vector<2xf32>
    %334 = vector.shape_cast %333 : vector<2xf32> to vector<2x1xf32>
    %335 = vector.broadcast %334 : vector<2x1xf32> to vector<2x8xf32>
    %336 = arith.subf %332, %335 : vector<2x8xf32>
    %337 = math.exp %336 : vector<2x8xf32>
    %cst_176 = arith.constant dense<0.000000e+00> : vector<2xf32>
    %338 = vector.multi_reduction <add>, %337, %cst_176 [1] : vector<2x8xf32> to vector<2xf32>
    %339 = vector.shape_cast %338 : vector<2xf32> to vector<2x1xf32>
    %340 = vector.broadcast %339 : vector<2x1xf32> to vector<2x8xf32>
    %341 = arith.divf %337, %340 : vector<2x8xf32>
    %342 = vector.shape_cast %341 : vector<2x8xf32> to vector<2x8x1xf32>
    %343 = vector.broadcast %342 : vector<2x8x1xf32> to vector<2x8x128xf32>
    %344 = arith.mulf %343, %314 : vector<2x8x128xf32>
    %cst_177 = arith.constant dense<0.000000e+00> : vector<2x128xf32>
    %345 = vector.multi_reduction <add>, %344, %cst_177 [1] : vector<2x8x128xf32> to vector<2x128xf32>
    %346 = tpu.concatenate %345, %269 in 1 : vector<2x128xf32>, vector<2x128xf32> -> vector<2x256xf32>
    %c1_i32_178 = arith.constant 1 : i32
    %347 = arith.subi %c1_i32_172, %c1_i32_178 : i32
    %348 = arith.index_cast %347 : i32 to index
    %c0_179 = arith.constant 0 : index
    %c0_180 = arith.constant 0 : index
    %349 = vector.load %arg14[%348, %c0_179, %c0_180] : memref<7x2x512xf32, #tpu.memory_space<vmem>>, vector<1x2x512xf32>
    %350 = vector.shape_cast %349 : vector<1x2x512xf32> to vector<2x512xf32>
    %c0_181 = arith.constant 0 : index
    %c0_182 = arith.constant 0 : index
    %351 = vector.load %arg9[%c0_181, %c0_182] : memref<256x512xf32, #tpu.memory_space<vmem>>, vector<256x512xf32>
    %cst_183 = arith.constant dense<0.000000e+00> : vector<2x512xf32>
    %352 = tpu.matmul %346, %351, %cst_183 {dimension_numbers = #tpu.dot_dimension_numbers<[1], [0], [0], [1], [0, 0, 1, 1], [], []>} : vector<2x256xf32>, vector<256x512xf32>, vector<2x512xf32> -> vector<2x512xf32>
    %353 = arith.addf %350, %352 : vector<2x512xf32>
    %354 = arith.negf %353 : vector<2x512xf32>
    %355 = math.exp %354 : vector<2x512xf32>
    %cst_184 = arith.constant 1.000000e+00 : f32
    %356 = vector.broadcast %cst_184 : f32 to vector<2x512xf32>
    %357 = arith.addf %356, %355 : vector<2x512xf32>
    %358 = arith.divf %356, %357 : vector<2x512xf32>
    %359 = math.tanh %353 : vector<2x512xf32>
    %360 = vector.extract_strided_slice %358 {offsets = [0, 0], sizes = [2, 128], strides = [1, 1]} : vector<2x512xf32> to vector<2x128xf32>
    %361 = vector.extract_strided_slice %358 {offsets = [0, 128], sizes = [2, 128], strides = [1, 1]} : vector<2x512xf32> to vector<2x128xf32>
    %362 = vector.extract_strided_slice %359 {offsets = [0, 256], sizes = [2, 128], strides = [1, 1]} : vector<2x512xf32> to vector<2x128xf32>
    %363 = vector.extract_strided_slice %358 {offsets = [0, 384], sizes = [2, 128], strides = [1, 1]} : vector<2x512xf32> to vector<2x128xf32>
    %364 = arith.mulf %361, %267 : vector<2x128xf32>
    %365 = arith.mulf %360, %362 : vector<2x128xf32>
    %366 = arith.addf %364, %365 : vector<2x128xf32>
    %367 = math.tanh %366 : vector<2x128xf32>
    %368 = arith.mulf %363, %367 : vector<2x128xf32>
    %c1_i32_185 = arith.constant 1 : i32
    %369 = arith.subi %c1_i32_172, %c1_i32_185 : i32
    %370 = arith.index_cast %369 : i32 to index
    %c0_186 = arith.constant 0 : index
    %c0_187 = arith.constant 0 : index
    %371 = vector.load %arg17[%370, %c0_186, %c0_187] : memref<7x2x128xf32, #tpu.memory_space<vmem>>, vector<1x2x128xf32>
    %372 = vector.shape_cast %371 : vector<1x2x128xf32> to vector<2x128xf32>
    %373 = vector.shape_cast %368 : vector<2x128xf32> to vector<1x2x128xf32>
    tpu.vector_store %arg17[%370, %c0_186, %c0_187], %373 {strides = array<i32>} : memref<7x2x128xf32, #tpu.memory_space<vmem>>, vector<1x2x128xf32>,
    %c2_i32_188 = arith.constant 2 : i32
    %374 = vector.broadcast %316 : vector<1x128xf32> to vector<2x128xf32>
    %375 = arith.mulf %368, %374 : vector<2x128xf32>
    %cst_189 = arith.constant dense<0.000000e+00> : vector<2xf32>
    %376 = vector.multi_reduction <add>, %375, %cst_189 [1] : vector<2x128xf32> to vector<2xf32>
    %377 = vector.shape_cast %376 : vector<2xf32> to vector<2x1xf32>
    %378 = vector.broadcast %377 : vector<2x1xf32> to vector<2x8xf32>
    %379 = arith.addf %322, %378 : vector<2x8xf32>
    %380 = vector.broadcast %318 : vector<1x1xf32> to vector<2x8xf32>
    %381 = arith.addf %379, %380 : vector<2x8xf32>
    %cst_190 = arith.constant 0.000000e+00 : f32
    %382 = vector.broadcast %cst_190 : f32 to vector<2x8xf32>
    %383 = arith.maximumf %381, %382 : vector<2x8xf32>
    %cst_191 = arith.constant dense<0xFF800000> : vector<2xf32>
    %384 = vector.multi_reduction <maximumf>, %383, %cst_191 [1] : vector<2x8xf32> to vector<2xf32>
    %385 = vector.shape_cast %384 : vector<2xf32> to vector<2x1xf32>
    %386 = vector.broadcast %385 : vector<2x1xf32> to vector<2x8xf32>
    %387 = arith.subf %383, %386 : vector<2x8xf32>
    %388 = math.exp %387 : vector<2x8xf32>
    %cst_192 = arith.constant dense<0.000000e+00> : vector<2xf32>
    %389 = vector.multi_reduction <add>, %388, %cst_192 [1] : vector<2x8xf32> to vector<2xf32>
    %390 = vector.shape_cast %389 : vector<2xf32> to vector<2x1xf32>
    %391 = vector.broadcast %390 : vector<2x1xf32> to vector<2x8xf32>
    %392 = arith.divf %388, %391 : vector<2x8xf32>
    %393 = vector.shape_cast %392 : vector<2x8xf32> to vector<2x8x1xf32>
    %394 = vector.broadcast %393 : vector<2x8x1xf32> to vector<2x8x128xf32>
    %395 = arith.mulf %394, %314 : vector<2x8x128xf32>
    %cst_193 = arith.constant dense<0.000000e+00> : vector<2x128xf32>
    %396 = vector.multi_reduction <add>, %395, %cst_193 [1] : vector<2x8x128xf32> to vector<2x128xf32>
    %397 = tpu.concatenate %396, %368 in 1 : vector<2x128xf32>, vector<2x128xf32> -> vector<2x256xf32>
    %c1_i32_194 = arith.constant 1 : i32
    %398 = arith.subi %c2_i32_188, %c1_i32_194 : i32
    %399 = arith.index_cast %398 : i32 to index
    %c0_195 = arith.constant 0 : index
    %c0_196 = arith.constant 0 : index
    %400 = vector.load %arg14[%399, %c0_195, %c0_196] : memref<7x2x512xf32, #tpu.memory_space<vmem>>, vector<1x2x512xf32>
    %401 = vector.shape_cast %400 : vector<1x2x512xf32> to vector<2x512xf32>
    %c0_197 = arith.constant 0 : index
    %c0_198 = arith.constant 0 : index
    %402 = vector.load %arg9[%c0_197, %c0_198] : memref<256x512xf32, #tpu.memory_space<vmem>>, vector<256x512xf32>
    %cst_199 = arith.constant dense<0.000000e+00> : vector<2x512xf32>
    %403 = tpu.matmul %397, %402, %cst_199 {dimension_numbers = #tpu.dot_dimension_numbers<[1], [0], [0], [1], [0, 0, 1, 1], [], []>} : vector<2x256xf32>, vector<256x512xf32>, vector<2x512xf32> -> vector<2x512xf32>
    %404 = arith.addf %401, %403 : vector<2x512xf32>
    %405 = arith.negf %404 : vector<2x512xf32>
    %406 = math.exp %405 : vector<2x512xf32>
    %cst_200 = arith.constant 1.000000e+00 : f32
    %407 = vector.broadcast %cst_200 : f32 to vector<2x512xf32>
    %408 = arith.addf %407, %406 : vector<2x512xf32>
    %409 = arith.divf %407, %408 : vector<2x512xf32>
    %410 = math.tanh %404 : vector<2x512xf32>
    %411 = vector.extract_strided_slice %409 {offsets = [0, 0], sizes = [2, 128], strides = [1, 1]} : vector<2x512xf32> to vector<2x128xf32>
    %412 = vector.extract_strided_slice %409 {offsets = [0, 128], sizes = [2, 128], strides = [1, 1]} : vector<2x512xf32> to vector<2x128xf32>
    %413 = vector.extract_strided_slice %410 {offsets = [0, 256], sizes = [2, 128], strides = [1, 1]} : vector<2x512xf32> to vector<2x128xf32>
    %414 = vector.extract_strided_slice %409 {offsets = [0, 384], sizes = [2, 128], strides = [1, 1]} : vector<2x512xf32> to vector<2x128xf32>
    %415 = arith.mulf %412, %366 : vector<2x128xf32>
    %416 = arith.mulf %411, %413 : vector<2x128xf32>
    %417 = arith.addf %415, %416 : vector<2x128xf32>
    %418 = math.tanh %417 : vector<2x128xf32>
    %419 = arith.mulf %414, %418 : vector<2x128xf32>
    %c1_i32_201 = arith.constant 1 : i32
    %420 = arith.subi %c2_i32_188, %c1_i32_201 : i32
    %421 = arith.index_cast %420 : i32 to index
    %c0_202 = arith.constant 0 : index
    %c0_203 = arith.constant 0 : index
    %422 = vector.load %arg17[%421, %c0_202, %c0_203] : memref<7x2x128xf32, #tpu.memory_space<vmem>>, vector<1x2x128xf32>
    %423 = vector.shape_cast %422 : vector<1x2x128xf32> to vector<2x128xf32>
    %424 = vector.shape_cast %419 : vector<2x128xf32> to vector<1x2x128xf32>
    tpu.vector_store %arg17[%421, %c0_202, %c0_203], %424 {strides = array<i32>} : memref<7x2x128xf32, #tpu.memory_space<vmem>>, vector<1x2x128xf32>,
    %c3_i32_204 = arith.constant 3 : i32
    %425 = vector.broadcast %316 : vector<1x128xf32> to vector<2x128xf32>
    %426 = arith.mulf %419, %425 : vector<2x128xf32>
    %cst_205 = arith.constant dense<0.000000e+00> : vector<2xf32>
    %427 = vector.multi_reduction <add>, %426, %cst_205 [1] : vector<2x128xf32> to vector<2xf32>
    %428 = vector.shape_cast %427 : vector<2xf32> to vector<2x1xf32>
    %429 = vector.broadcast %428 : vector<2x1xf32> to vector<2x8xf32>
    %430 = arith.addf %322, %429 : vector<2x8xf32>
    %431 = vector.broadcast %318 : vector<1x1xf32> to vector<2x8xf32>
    %432 = arith.addf %430, %431 : vector<2x8xf32>
    %cst_206 = arith.constant 0.000000e+00 : f32
    %433 = vector.broadcast %cst_206 : f32 to vector<2x8xf32>
    %434 = arith.maximumf %432, %433 : vector<2x8xf32>
    %cst_207 = arith.constant dense<0xFF800000> : vector<2xf32>
    %435 = vector.multi_reduction <maximumf>, %434, %cst_207 [1] : vector<2x8xf32> to vector<2xf32>
    %436 = vector.shape_cast %435 : vector<2xf32> to vector<2x1xf32>
    %437 = vector.broadcast %436 : vector<2x1xf32> to vector<2x8xf32>
    %438 = arith.subf %434, %437 : vector<2x8xf32>
    %439 = math.exp %438 : vector<2x8xf32>
    %cst_208 = arith.constant dense<0.000000e+00> : vector<2xf32>
    %440 = vector.multi_reduction <add>, %439, %cst_208 [1] : vector<2x8xf32> to vector<2xf32>
    %441 = vector.shape_cast %440 : vector<2xf32> to vector<2x1xf32>
    %442 = vector.broadcast %441 : vector<2x1xf32> to vector<2x8xf32>
    %443 = arith.divf %439, %442 : vector<2x8xf32>
    %444 = vector.shape_cast %443 : vector<2x8xf32> to vector<2x8x1xf32>
    %445 = vector.broadcast %444 : vector<2x8x1xf32> to vector<2x8x128xf32>
    %446 = arith.mulf %445, %314 : vector<2x8x128xf32>
    %cst_209 = arith.constant dense<0.000000e+00> : vector<2x128xf32>
    %447 = vector.multi_reduction <add>, %446, %cst_209 [1] : vector<2x8x128xf32> to vector<2x128xf32>
    %448 = tpu.concatenate %447, %419 in 1 : vector<2x128xf32>, vector<2x128xf32> -> vector<2x256xf32>
    %c1_i32_210 = arith.constant 1 : i32
    %449 = arith.subi %c3_i32_204, %c1_i32_210 : i32
    %450 = arith.index_cast %449 : i32 to index
    %c0_211 = arith.constant 0 : index
    %c0_212 = arith.constant 0 : index
    %451 = vector.load %arg14[%450, %c0_211, %c0_212] : memref<7x2x512xf32, #tpu.memory_space<vmem>>, vector<1x2x512xf32>
    %452 = vector.shape_cast %451 : vector<1x2x512xf32> to vector<2x512xf32>
    %c0_213 = arith.constant 0 : index
    %c0_214 = arith.constant 0 : index
    %453 = vector.load %arg9[%c0_213, %c0_214] : memref<256x512xf32, #tpu.memory_space<vmem>>, vector<256x512xf32>
    %cst_215 = arith.constant dense<0.000000e+00> : vector<2x512xf32>
    %454 = tpu.matmul %448, %453, %cst_215 {dimension_numbers = #tpu.dot_dimension_numbers<[1], [0], [0], [1], [0, 0, 1, 1], [], []>} : vector<2x256xf32>, vector<256x512xf32>, vector<2x512xf32> -> vector<2x512xf32>
    %455 = arith.addf %452, %454 : vector<2x512xf32>
    %456 = arith.negf %455 : vector<2x512xf32>
    %457 = math.exp %456 : vector<2x512xf32>
    %cst_216 = arith.constant 1.000000e+00 : f32
    %458 = vector.broadcast %cst_216 : f32 to vector<2x512xf32>
    %459 = arith.addf %458, %457 : vector<2x512xf32>
    %460 = arith.divf %458, %459 : vector<2x512xf32>
    %461 = math.tanh %455 : vector<2x512xf32>
    %462 = vector.extract_strided_slice %460 {offsets = [0, 0], sizes = [2, 128], strides = [1, 1]} : vector<2x512xf32> to vector<2x128xf32>
    %463 = vector.extract_strided_slice %460 {offsets = [0, 128], sizes = [2, 128], strides = [1, 1]} : vector<2x512xf32> to vector<2x128xf32>
    %464 = vector.extract_strided_slice %461 {offsets = [0, 256], sizes = [2, 128], strides = [1, 1]} : vector<2x512xf32> to vector<2x128xf32>
    %465 = vector.extract_strided_slice %460 {offsets = [0, 384], sizes = [2, 128], strides = [1, 1]} : vector<2x512xf32> to vector<2x128xf32>
    %466 = arith.mulf %463, %417 : vector<2x128xf32>
    %467 = arith.mulf %462, %464 : vector<2x128xf32>
    %468 = arith.addf %466, %467 : vector<2x128xf32>
    %469 = math.tanh %468 : vector<2x128xf32>
    %470 = arith.mulf %465, %469 : vector<2x128xf32>
    %c1_i32_217 = arith.constant 1 : i32
    %471 = arith.subi %c3_i32_204, %c1_i32_217 : i32
    %472 = arith.index_cast %471 : i32 to index
    %c0_218 = arith.constant 0 : index
    %c0_219 = arith.constant 0 : index
    %473 = vector.load %arg17[%472, %c0_218, %c0_219] : memref<7x2x128xf32, #tpu.memory_space<vmem>>, vector<1x2x128xf32>
    %474 = vector.shape_cast %473 : vector<1x2x128xf32> to vector<2x128xf32>
    %475 = vector.shape_cast %470 : vector<2x128xf32> to vector<1x2x128xf32>
    tpu.vector_store %arg17[%472, %c0_218, %c0_219], %475 {strides = array<i32>} : memref<7x2x128xf32, #tpu.memory_space<vmem>>, vector<1x2x128xf32>,
    %c4_i32_220 = arith.constant 4 : i32
    %476 = vector.broadcast %316 : vector<1x128xf32> to vector<2x128xf32>
    %477 = arith.mulf %470, %476 : vector<2x128xf32>
    %cst_221 = arith.constant dense<0.000000e+00> : vector<2xf32>
    %478 = vector.multi_reduction <add>, %477, %cst_221 [1] : vector<2x128xf32> to vector<2xf32>
    %479 = vector.shape_cast %478 : vector<2xf32> to vector<2x1xf32>
    %480 = vector.broadcast %479 : vector<2x1xf32> to vector<2x8xf32>
    %481 = arith.addf %322, %480 : vector<2x8xf32>
    %482 = vector.broadcast %318 : vector<1x1xf32> to vector<2x8xf32>
    %483 = arith.addf %481, %482 : vector<2x8xf32>
    %cst_222 = arith.constant 0.000000e+00 : f32
    %484 = vector.broadcast %cst_222 : f32 to vector<2x8xf32>
    %485 = arith.maximumf %483, %484 : vector<2x8xf32>
    %cst_223 = arith.constant dense<0xFF800000> : vector<2xf32>
    %486 = vector.multi_reduction <maximumf>, %485, %cst_223 [1] : vector<2x8xf32> to vector<2xf32>
    %487 = vector.shape_cast %486 : vector<2xf32> to vector<2x1xf32>
    %488 = vector.broadcast %487 : vector<2x1xf32> to vector<2x8xf32>
    %489 = arith.subf %485, %488 : vector<2x8xf32>
    %490 = math.exp %489 : vector<2x8xf32>
    %cst_224 = arith.constant dense<0.000000e+00> : vector<2xf32>
    %491 = vector.multi_reduction <add>, %490, %cst_224 [1] : vector<2x8xf32> to vector<2xf32>
    %492 = vector.shape_cast %491 : vector<2xf32> to vector<2x1xf32>
    %493 = vector.broadcast %492 : vector<2x1xf32> to vector<2x8xf32>
    %494 = arith.divf %490, %493 : vector<2x8xf32>
    %495 = vector.shape_cast %494 : vector<2x8xf32> to vector<2x8x1xf32>
    %496 = vector.broadcast %495 : vector<2x8x1xf32> to vector<2x8x128xf32>
    %497 = arith.mulf %496, %314 : vector<2x8x128xf32>
    %cst_225 = arith.constant dense<0.000000e+00> : vector<2x128xf32>
    %498 = vector.multi_reduction <add>, %497, %cst_225 [1] : vector<2x8x128xf32> to vector<2x128xf32>
    %499 = tpu.concatenate %498, %470 in 1 : vector<2x128xf32>, vector<2x128xf32> -> vector<2x256xf32>
    %c1_i32_226 = arith.constant 1 : i32
    %500 = arith.subi %c4_i32_220, %c1_i32_226 : i32
    %501 = arith.index_cast %500 : i32 to index
    %c0_227 = arith.constant 0 : index
    %c0_228 = arith.constant 0 : index
    %502 = vector.load %arg14[%501, %c0_227, %c0_228] : memref<7x2x512xf32, #tpu.memory_space<vmem>>, vector<1x2x512xf32>
    %503 = vector.shape_cast %502 : vector<1x2x512xf32> to vector<2x512xf32>
    %c0_229 = arith.constant 0 : index
    %c0_230 = arith.constant 0 : index
    %504 = vector.load %arg9[%c0_229, %c0_230] : memref<256x512xf32, #tpu.memory_space<vmem>>, vector<256x512xf32>
    %cst_231 = arith.constant dense<0.000000e+00> : vector<2x512xf32>
    %505 = tpu.matmul %499, %504, %cst_231 {dimension_numbers = #tpu.dot_dimension_numbers<[1], [0], [0], [1], [0, 0, 1, 1], [], []>} : vector<2x256xf32>, vector<256x512xf32>, vector<2x512xf32> -> vector<2x512xf32>
    %506 = arith.addf %503, %505 : vector<2x512xf32>
    %507 = arith.negf %506 : vector<2x512xf32>
    %508 = math.exp %507 : vector<2x512xf32>
    %cst_232 = arith.constant 1.000000e+00 : f32
    %509 = vector.broadcast %cst_232 : f32 to vector<2x512xf32>
    %510 = arith.addf %509, %508 : vector<2x512xf32>
    %511 = arith.divf %509, %510 : vector<2x512xf32>
    %512 = math.tanh %506 : vector<2x512xf32>
    %513 = vector.extract_strided_slice %511 {offsets = [0, 0], sizes = [2, 128], strides = [1, 1]} : vector<2x512xf32> to vector<2x128xf32>
    %514 = vector.extract_strided_slice %511 {offsets = [0, 128], sizes = [2, 128], strides = [1, 1]} : vector<2x512xf32> to vector<2x128xf32>
    %515 = vector.extract_strided_slice %512 {offsets = [0, 256], sizes = [2, 128], strides = [1, 1]} : vector<2x512xf32> to vector<2x128xf32>
    %516 = vector.extract_strided_slice %511 {offsets = [0, 384], sizes = [2, 128], strides = [1, 1]} : vector<2x512xf32> to vector<2x128xf32>
    %517 = arith.mulf %514, %468 : vector<2x128xf32>
    %518 = arith.mulf %513, %515 : vector<2x128xf32>
    %519 = arith.addf %517, %518 : vector<2x128xf32>
    %520 = math.tanh %519 : vector<2x128xf32>
    %521 = arith.mulf %516, %520 : vector<2x128xf32>
    %c1_i32_233 = arith.constant 1 : i32
    %522 = arith.subi %c4_i32_220, %c1_i32_233 : i32
    %523 = arith.index_cast %522 : i32 to index
    %c0_234 = arith.constant 0 : index
    %c0_235 = arith.constant 0 : index
    %524 = vector.load %arg17[%523, %c0_234, %c0_235] : memref<7x2x128xf32, #tpu.memory_space<vmem>>, vector<1x2x128xf32>
    %525 = vector.shape_cast %524 : vector<1x2x128xf32> to vector<2x128xf32>
    %526 = vector.shape_cast %521 : vector<2x128xf32> to vector<1x2x128xf32>
    tpu.vector_store %arg17[%523, %c0_234, %c0_235], %526 {strides = array<i32>} : memref<7x2x128xf32, #tpu.memory_space<vmem>>, vector<1x2x128xf32>,
    %c5_i32_236 = arith.constant 5 : i32
    %527 = vector.broadcast %316 : vector<1x128xf32> to vector<2x128xf32>
    %528 = arith.mulf %521, %527 : vector<2x128xf32>
    %cst_237 = arith.constant dense<0.000000e+00> : vector<2xf32>
    %529 = vector.multi_reduction <add>, %528, %cst_237 [1] : vector<2x128xf32> to vector<2xf32>
    %530 = vector.shape_cast %529 : vector<2xf32> to vector<2x1xf32>
    %531 = vector.broadcast %530 : vector<2x1xf32> to vector<2x8xf32>
    %532 = arith.addf %322, %531 : vector<2x8xf32>
    %533 = vector.broadcast %318 : vector<1x1xf32> to vector<2x8xf32>
    %534 = arith.addf %532, %533 : vector<2x8xf32>
    %cst_238 = arith.constant 0.000000e+00 : f32
    %535 = vector.broadcast %cst_238 : f32 to vector<2x8xf32>
    %536 = arith.maximumf %534, %535 : vector<2x8xf32>
    %cst_239 = arith.constant dense<0xFF800000> : vector<2xf32>
    %537 = vector.multi_reduction <maximumf>, %536, %cst_239 [1] : vector<2x8xf32> to vector<2xf32>
    %538 = vector.shape_cast %537 : vector<2xf32> to vector<2x1xf32>
    %539 = vector.broadcast %538 : vector<2x1xf32> to vector<2x8xf32>
    %540 = arith.subf %536, %539 : vector<2x8xf32>
    %541 = math.exp %540 : vector<2x8xf32>
    %cst_240 = arith.constant dense<0.000000e+00> : vector<2xf32>
    %542 = vector.multi_reduction <add>, %541, %cst_240 [1] : vector<2x8xf32> to vector<2xf32>
    %543 = vector.shape_cast %542 : vector<2xf32> to vector<2x1xf32>
    %544 = vector.broadcast %543 : vector<2x1xf32> to vector<2x8xf32>
    %545 = arith.divf %541, %544 : vector<2x8xf32>
    %546 = vector.shape_cast %545 : vector<2x8xf32> to vector<2x8x1xf32>
    %547 = vector.broadcast %546 : vector<2x8x1xf32> to vector<2x8x128xf32>
    %548 = arith.mulf %547, %314 : vector<2x8x128xf32>
    %cst_241 = arith.constant dense<0.000000e+00> : vector<2x128xf32>
    %549 = vector.multi_reduction <add>, %548, %cst_241 [1] : vector<2x8x128xf32> to vector<2x128xf32>
    %550 = tpu.concatenate %549, %521 in 1 : vector<2x128xf32>, vector<2x128xf32> -> vector<2x256xf32>
    %c1_i32_242 = arith.constant 1 : i32
    %551 = arith.subi %c5_i32_236, %c1_i32_242 : i32
    %552 = arith.index_cast %551 : i32 to index
    %c0_243 = arith.constant 0 : index
    %c0_244 = arith.constant 0 : index
    %553 = vector.load %arg14[%552, %c0_243, %c0_244] : memref<7x2x512xf32, #tpu.memory_space<vmem>>, vector<1x2x512xf32>
    %554 = vector.shape_cast %553 : vector<1x2x512xf32> to vector<2x512xf32>
    %c0_245 = arith.constant 0 : index
    %c0_246 = arith.constant 0 : index
    %555 = vector.load %arg9[%c0_245, %c0_246] : memref<256x512xf32, #tpu.memory_space<vmem>>, vector<256x512xf32>
    %cst_247 = arith.constant dense<0.000000e+00> : vector<2x512xf32>
    %556 = tpu.matmul %550, %555, %cst_247 {dimension_numbers = #tpu.dot_dimension_numbers<[1], [0], [0], [1], [0, 0, 1, 1], [], []>} : vector<2x256xf32>, vector<256x512xf32>, vector<2x512xf32> -> vector<2x512xf32>
    %557 = arith.addf %554, %556 : vector<2x512xf32>
    %558 = arith.negf %557 : vector<2x512xf32>
    %559 = math.exp %558 : vector<2x512xf32>
    %cst_248 = arith.constant 1.000000e+00 : f32
    %560 = vector.broadcast %cst_248 : f32 to vector<2x512xf32>
    %561 = arith.addf %560, %559 : vector<2x512xf32>
    %562 = arith.divf %560, %561 : vector<2x512xf32>
    %563 = math.tanh %557 : vector<2x512xf32>
    %564 = vector.extract_strided_slice %562 {offsets = [0, 0], sizes = [2, 128], strides = [1, 1]} : vector<2x512xf32> to vector<2x128xf32>
    %565 = vector.extract_strided_slice %562 {offsets = [0, 128], sizes = [2, 128], strides = [1, 1]} : vector<2x512xf32> to vector<2x128xf32>
    %566 = vector.extract_strided_slice %563 {offsets = [0, 256], sizes = [2, 128], strides = [1, 1]} : vector<2x512xf32> to vector<2x128xf32>
    %567 = vector.extract_strided_slice %562 {offsets = [0, 384], sizes = [2, 128], strides = [1, 1]} : vector<2x512xf32> to vector<2x128xf32>
    %568 = arith.mulf %565, %519 : vector<2x128xf32>
    %569 = arith.mulf %564, %566 : vector<2x128xf32>
    %570 = arith.addf %568, %569 : vector<2x128xf32>
    %571 = math.tanh %570 : vector<2x128xf32>
    %572 = arith.mulf %567, %571 : vector<2x128xf32>
    %c1_i32_249 = arith.constant 1 : i32
    %573 = arith.subi %c5_i32_236, %c1_i32_249 : i32
    %574 = arith.index_cast %573 : i32 to index
    %c0_250 = arith.constant 0 : index
    %c0_251 = arith.constant 0 : index
    %575 = vector.load %arg17[%574, %c0_250, %c0_251] : memref<7x2x128xf32, #tpu.memory_space<vmem>>, vector<1x2x128xf32>
    %576 = vector.shape_cast %575 : vector<1x2x128xf32> to vector<2x128xf32>
    %577 = vector.shape_cast %572 : vector<2x128xf32> to vector<1x2x128xf32>
    tpu.vector_store %arg17[%574, %c0_250, %c0_251], %577 {strides = array<i32>} : memref<7x2x128xf32, #tpu.memory_space<vmem>>, vector<1x2x128xf32>,
    %c6_i32_252 = arith.constant 6 : i32
    %578 = vector.broadcast %316 : vector<1x128xf32> to vector<2x128xf32>
    %579 = arith.mulf %572, %578 : vector<2x128xf32>
    %cst_253 = arith.constant dense<0.000000e+00> : vector<2xf32>
    %580 = vector.multi_reduction <add>, %579, %cst_253 [1] : vector<2x128xf32> to vector<2xf32>
    %581 = vector.shape_cast %580 : vector<2xf32> to vector<2x1xf32>
    %582 = vector.broadcast %581 : vector<2x1xf32> to vector<2x8xf32>
    %583 = arith.addf %322, %582 : vector<2x8xf32>
    %584 = vector.broadcast %318 : vector<1x1xf32> to vector<2x8xf32>
    %585 = arith.addf %583, %584 : vector<2x8xf32>
    %cst_254 = arith.constant 0.000000e+00 : f32
    %586 = vector.broadcast %cst_254 : f32 to vector<2x8xf32>
    %587 = arith.maximumf %585, %586 : vector<2x8xf32>
    %cst_255 = arith.constant dense<0xFF800000> : vector<2xf32>
    %588 = vector.multi_reduction <maximumf>, %587, %cst_255 [1] : vector<2x8xf32> to vector<2xf32>
    %589 = vector.shape_cast %588 : vector<2xf32> to vector<2x1xf32>
    %590 = vector.broadcast %589 : vector<2x1xf32> to vector<2x8xf32>
    %591 = arith.subf %587, %590 : vector<2x8xf32>
    %592 = math.exp %591 : vector<2x8xf32>
    %cst_256 = arith.constant dense<0.000000e+00> : vector<2xf32>
    %593 = vector.multi_reduction <add>, %592, %cst_256 [1] : vector<2x8xf32> to vector<2xf32>
    %594 = vector.shape_cast %593 : vector<2xf32> to vector<2x1xf32>
    %595 = vector.broadcast %594 : vector<2x1xf32> to vector<2x8xf32>
    %596 = arith.divf %592, %595 : vector<2x8xf32>
    %597 = vector.shape_cast %596 : vector<2x8xf32> to vector<2x8x1xf32>
    %598 = vector.broadcast %597 : vector<2x8x1xf32> to vector<2x8x128xf32>
    %599 = arith.mulf %598, %314 : vector<2x8x128xf32>
    %cst_257 = arith.constant dense<0.000000e+00> : vector<2x128xf32>
    %600 = vector.multi_reduction <add>, %599, %cst_257 [1] : vector<2x8x128xf32> to vector<2x128xf32>
    %601 = tpu.concatenate %600, %572 in 1 : vector<2x128xf32>, vector<2x128xf32> -> vector<2x256xf32>
    %c1_i32_258 = arith.constant 1 : i32
    %602 = arith.subi %c6_i32_252, %c1_i32_258 : i32
    %603 = arith.index_cast %602 : i32 to index
    %c0_259 = arith.constant 0 : index
    %c0_260 = arith.constant 0 : index
    %604 = vector.load %arg14[%603, %c0_259, %c0_260] : memref<7x2x512xf32, #tpu.memory_space<vmem>>, vector<1x2x512xf32>
    %605 = vector.shape_cast %604 : vector<1x2x512xf32> to vector<2x512xf32>
    %c0_261 = arith.constant 0 : index
    %c0_262 = arith.constant 0 : index
    %606 = vector.load %arg9[%c0_261, %c0_262] : memref<256x512xf32, #tpu.memory_space<vmem>>, vector<256x512xf32>
    %cst_263 = arith.constant dense<0.000000e+00> : vector<2x512xf32>
    %607 = tpu.matmul %601, %606, %cst_263 {dimension_numbers = #tpu.dot_dimension_numbers<[1], [0], [0], [1], [0, 0, 1, 1], [], []>} : vector<2x256xf32>, vector<256x512xf32>, vector<2x512xf32> -> vector<2x512xf32>
    %608 = arith.addf %605, %607 : vector<2x512xf32>
    %609 = arith.negf %608 : vector<2x512xf32>
    %610 = math.exp %609 : vector<2x512xf32>
    %cst_264 = arith.constant 1.000000e+00 : f32
    %611 = vector.broadcast %cst_264 : f32 to vector<2x512xf32>
    %612 = arith.addf %611, %610 : vector<2x512xf32>
    %613 = arith.divf %611, %612 : vector<2x512xf32>
    %614 = math.tanh %608 : vector<2x512xf32>
    %615 = vector.extract_strided_slice %613 {offsets = [0, 0], sizes = [2, 128], strides = [1, 1]} : vector<2x512xf32> to vector<2x128xf32>
    %616 = vector.extract_strided_slice %613 {offsets = [0, 128], sizes = [2, 128], strides = [1, 1]} : vector<2x512xf32> to vector<2x128xf32>
    %617 = vector.extract_strided_slice %614 {offsets = [0, 256], sizes = [2, 128], strides = [1, 1]} : vector<2x512xf32> to vector<2x128xf32>
    %618 = vector.extract_strided_slice %613 {offsets = [0, 384], sizes = [2, 128], strides = [1, 1]} : vector<2x512xf32> to vector<2x128xf32>
    %619 = arith.mulf %616, %570 : vector<2x128xf32>
    %620 = arith.mulf %615, %617 : vector<2x128xf32>
    %621 = arith.addf %619, %620 : vector<2x128xf32>
    %622 = math.tanh %621 : vector<2x128xf32>
    %623 = arith.mulf %618, %622 : vector<2x128xf32>
    %c1_i32_265 = arith.constant 1 : i32
    %624 = arith.subi %c6_i32_252, %c1_i32_265 : i32
    %625 = arith.index_cast %624 : i32 to index
    %c0_266 = arith.constant 0 : index
    %c0_267 = arith.constant 0 : index
    %626 = vector.load %arg17[%625, %c0_266, %c0_267] : memref<7x2x128xf32, #tpu.memory_space<vmem>>, vector<1x2x128xf32>
    %627 = vector.shape_cast %626 : vector<1x2x128xf32> to vector<2x128xf32>
    %628 = vector.shape_cast %623 : vector<2x128xf32> to vector<1x2x128xf32>
    tpu.vector_store %arg17[%625, %c0_266, %c0_267], %628 {strides = array<i32>} : memref<7x2x128xf32, #tpu.memory_space<vmem>>, vector<1x2x128xf32>,
    %c7_i32_268 = arith.constant 7 : i32
    %629 = vector.broadcast %316 : vector<1x128xf32> to vector<2x128xf32>
    %630 = arith.mulf %623, %629 : vector<2x128xf32>
    %cst_269 = arith.constant dense<0.000000e+00> : vector<2xf32>
    %631 = vector.multi_reduction <add>, %630, %cst_269 [1] : vector<2x128xf32> to vector<2xf32>
    %632 = vector.shape_cast %631 : vector<2xf32> to vector<2x1xf32>
    %633 = vector.broadcast %632 : vector<2x1xf32> to vector<2x8xf32>
    %634 = arith.addf %322, %633 : vector<2x8xf32>
    %635 = vector.broadcast %318 : vector<1x1xf32> to vector<2x8xf32>
    %636 = arith.addf %634, %635 : vector<2x8xf32>
    %cst_270 = arith.constant 0.000000e+00 : f32
    %637 = vector.broadcast %cst_270 : f32 to vector<2x8xf32>
    %638 = arith.maximumf %636, %637 : vector<2x8xf32>
    %cst_271 = arith.constant dense<0xFF800000> : vector<2xf32>
    %639 = vector.multi_reduction <maximumf>, %638, %cst_271 [1] : vector<2x8xf32> to vector<2xf32>
    %640 = vector.shape_cast %639 : vector<2xf32> to vector<2x1xf32>
    %641 = vector.broadcast %640 : vector<2x1xf32> to vector<2x8xf32>
    %642 = arith.subf %638, %641 : vector<2x8xf32>
    %643 = math.exp %642 : vector<2x8xf32>
    %cst_272 = arith.constant dense<0.000000e+00> : vector<2xf32>
    %644 = vector.multi_reduction <add>, %643, %cst_272 [1] : vector<2x8xf32> to vector<2xf32>
    %645 = vector.shape_cast %644 : vector<2xf32> to vector<2x1xf32>
    %646 = vector.broadcast %645 : vector<2x1xf32> to vector<2x8xf32>
    %647 = arith.divf %643, %646 : vector<2x8xf32>
    %648 = vector.shape_cast %647 : vector<2x8xf32> to vector<2x8x1xf32>
    %649 = vector.broadcast %648 : vector<2x8x1xf32> to vector<2x8x128xf32>
    %650 = arith.mulf %649, %314 : vector<2x8x128xf32>
    %cst_273 = arith.constant dense<0.000000e+00> : vector<2x128xf32>
    %651 = vector.multi_reduction <add>, %650, %cst_273 [1] : vector<2x8x128xf32> to vector<2x128xf32>
    %652 = tpu.concatenate %651, %623 in 1 : vector<2x128xf32>, vector<2x128xf32> -> vector<2x256xf32>
    %c1_i32_274 = arith.constant 1 : i32
    %653 = arith.subi %c7_i32_268, %c1_i32_274 : i32
    %654 = arith.index_cast %653 : i32 to index
    %c0_275 = arith.constant 0 : index
    %c0_276 = arith.constant 0 : index
    %655 = vector.load %arg14[%654, %c0_275, %c0_276] : memref<7x2x512xf32, #tpu.memory_space<vmem>>, vector<1x2x512xf32>
    %656 = vector.shape_cast %655 : vector<1x2x512xf32> to vector<2x512xf32>
    %c0_277 = arith.constant 0 : index
    %c0_278 = arith.constant 0 : index
    %657 = vector.load %arg9[%c0_277, %c0_278] : memref<256x512xf32, #tpu.memory_space<vmem>>, vector<256x512xf32>
    %cst_279 = arith.constant dense<0.000000e+00> : vector<2x512xf32>
    %658 = tpu.matmul %652, %657, %cst_279 {dimension_numbers = #tpu.dot_dimension_numbers<[1], [0], [0], [1], [0, 0, 1, 1], [], []>} : vector<2x256xf32>, vector<256x512xf32>, vector<2x512xf32> -> vector<2x512xf32>
    %659 = arith.addf %656, %658 : vector<2x512xf32>
    %660 = arith.negf %659 : vector<2x512xf32>
    %661 = math.exp %660 : vector<2x512xf32>
    %cst_280 = arith.constant 1.000000e+00 : f32
    %662 = vector.broadcast %cst_280 : f32 to vector<2x512xf32>
    %663 = arith.addf %662, %661 : vector<2x512xf32>
    %664 = arith.divf %662, %663 : vector<2x512xf32>
    %665 = math.tanh %659 : vector<2x512xf32>
    %666 = vector.extract_strided_slice %664 {offsets = [0, 0], sizes = [2, 128], strides = [1, 1]} : vector<2x512xf32> to vector<2x128xf32>
    %667 = vector.extract_strided_slice %664 {offsets = [0, 128], sizes = [2, 128], strides = [1, 1]} : vector<2x512xf32> to vector<2x128xf32>
    %668 = vector.extract_strided_slice %665 {offsets = [0, 256], sizes = [2, 128], strides = [1, 1]} : vector<2x512xf32> to vector<2x128xf32>
    %669 = vector.extract_strided_slice %664 {offsets = [0, 384], sizes = [2, 128], strides = [1, 1]} : vector<2x512xf32> to vector<2x128xf32>
    %670 = arith.mulf %667, %621 : vector<2x128xf32>
    %671 = arith.mulf %666, %668 : vector<2x128xf32>
    %672 = arith.addf %670, %671 : vector<2x128xf32>
    %673 = math.tanh %672 : vector<2x128xf32>
    %674 = arith.mulf %669, %673 : vector<2x128xf32>
    %c1_i32_281 = arith.constant 1 : i32
    %675 = arith.subi %c7_i32_268, %c1_i32_281 : i32
    %676 = arith.index_cast %675 : i32 to index
    %c0_282 = arith.constant 0 : index
    %c0_283 = arith.constant 0 : index
    %677 = vector.load %arg17[%676, %c0_282, %c0_283] : memref<7x2x128xf32, #tpu.memory_space<vmem>>, vector<1x2x128xf32>
    %678 = vector.shape_cast %677 : vector<1x2x128xf32> to vector<2x128xf32>
    %679 = vector.shape_cast %674 : vector<2x128xf32> to vector<1x2x128xf32>
    tpu.vector_store %arg17[%676, %c0_282, %c0_283], %679 {strides = array<i32>} : memref<7x2x128xf32, #tpu.memory_space<vmem>>, vector<1x2x128xf32>,
    %c7_i32_284 = arith.constant 7 : i32
    %cst_285 = arith.constant 0.000000e+00 : f32
    %680 = vector.broadcast %cst_285 : f32 to vector<2x128xf32>
    %c0_286 = arith.constant 0 : index
    %c0_287 = arith.constant 0 : index
    %681 = vector.load %arg18[%c0_286, %c0_287] : memref<16x128xf32, #tpu.memory_space<vmem>>, vector<2x128xf32>
    tpu.vector_store %arg18[%c0_286, %c0_287], %680 {strides = array<i32>} : memref<16x128xf32, #tpu.memory_space<vmem>>, vector<2x128xf32>,
    %c0_288 = arith.constant 0 : index
    %c0_289 = arith.constant 0 : index
    %c0_290 = arith.constant 0 : index
    %682 = vector.load %arg17[%c0_288, %c0_289, %c0_290] : memref<7x2x128xf32, #tpu.memory_space<vmem>>, vector<1x2x128xf32>
    %683 = vector.shape_cast %682 : vector<1x2x128xf32> to vector<2x128xf32>
    %c2_291 = arith.constant 2 : index
    %c0_292 = arith.constant 0 : index
    %684 = vector.load %arg18[%c2_291, %c0_292] : memref<16x128xf32, #tpu.memory_space<vmem>>, vector<2x128xf32>
    tpu.vector_store %arg18[%c2_291, %c0_292], %683 {strides = array<i32>} : memref<16x128xf32, #tpu.memory_space<vmem>>, vector<2x128xf32>,
    %c1_293 = arith.constant 1 : index
    %c0_294 = arith.constant 0 : index
    %c0_295 = arith.constant 0 : index
    %685 = vector.load %arg17[%c1_293, %c0_294, %c0_295] : memref<7x2x128xf32, #tpu.memory_space<vmem>>, vector<1x2x128xf32>
    %686 = vector.shape_cast %685 : vector<1x2x128xf32> to vector<2x128xf32>
    %c4_296 = arith.constant 4 : index
    %c0_297 = arith.constant 0 : index
    %687 = vector.load %arg18[%c4_296, %c0_297] : memref<16x128xf32, #tpu.memory_space<vmem>>, vector<2x128xf32>
    tpu.vector_store %arg18[%c4_296, %c0_297], %686 {strides = array<i32>} : memref<16x128xf32, #tpu.memory_space<vmem>>, vector<2x128xf32>,
    %c2_298 = arith.constant 2 : index
    %c0_299 = arith.constant 0 : index
    %c0_300 = arith.constant 0 : index
    %688 = vector.load %arg17[%c2_298, %c0_299, %c0_300] : memref<7x2x128xf32, #tpu.memory_space<vmem>>, vector<1x2x128xf32>
    %689 = vector.shape_cast %688 : vector<1x2x128xf32> to vector<2x128xf32>
    %c6_301 = arith.constant 6 : index
    %c0_302 = arith.constant 0 : index
    %690 = vector.load %arg18[%c6_301, %c0_302] : memref<16x128xf32, #tpu.memory_space<vmem>>, vector<2x128xf32>
    tpu.vector_store %arg18[%c6_301, %c0_302], %689 {strides = array<i32>} : memref<16x128xf32, #tpu.memory_space<vmem>>, vector<2x128xf32>,
    %c3_303 = arith.constant 3 : index
    %c0_304 = arith.constant 0 : index
    %c0_305 = arith.constant 0 : index
    %691 = vector.load %arg17[%c3_303, %c0_304, %c0_305] : memref<7x2x128xf32, #tpu.memory_space<vmem>>, vector<1x2x128xf32>
    %692 = vector.shape_cast %691 : vector<1x2x128xf32> to vector<2x128xf32>
    %c8 = arith.constant 8 : index
    %c0_306 = arith.constant 0 : index
    %693 = vector.load %arg18[%c8, %c0_306] : memref<16x128xf32, #tpu.memory_space<vmem>>, vector<2x128xf32>
    tpu.vector_store %arg18[%c8, %c0_306], %692 {strides = array<i32>} : memref<16x128xf32, #tpu.memory_space<vmem>>, vector<2x128xf32>,
    %c4_307 = arith.constant 4 : index
    %c0_308 = arith.constant 0 : index
    %c0_309 = arith.constant 0 : index
    %694 = vector.load %arg17[%c4_307, %c0_308, %c0_309] : memref<7x2x128xf32, #tpu.memory_space<vmem>>, vector<1x2x128xf32>
    %695 = vector.shape_cast %694 : vector<1x2x128xf32> to vector<2x128xf32>
    %c10 = arith.constant 10 : index
    %c0_310 = arith.constant 0 : index
    %696 = vector.load %arg18[%c10, %c0_310] : memref<16x128xf32, #tpu.memory_space<vmem>>, vector<2x128xf32>
    tpu.vector_store %arg18[%c10, %c0_310], %695 {strides = array<i32>} : memref<16x128xf32, #tpu.memory_space<vmem>>, vector<2x128xf32>,
    %c5_311 = arith.constant 5 : index
    %c0_312 = arith.constant 0 : index
    %c0_313 = arith.constant 0 : index
    %697 = vector.load %arg17[%c5_311, %c0_312, %c0_313] : memref<7x2x128xf32, #tpu.memory_space<vmem>>, vector<1x2x128xf32>
    %698 = vector.shape_cast %697 : vector<1x2x128xf32> to vector<2x128xf32>
    %c12 = arith.constant 12 : index
    %c0_314 = arith.constant 0 : index
    %699 = vector.load %arg18[%c12, %c0_314] : memref<16x128xf32, #tpu.memory_space<vmem>>, vector<2x128xf32>
    tpu.vector_store %arg18[%c12, %c0_314], %698 {strides = array<i32>} : memref<16x128xf32, #tpu.memory_space<vmem>>, vector<2x128xf32>,
    %c6_315 = arith.constant 6 : index
    %c0_316 = arith.constant 0 : index
    %c0_317 = arith.constant 0 : index
    %700 = vector.load %arg17[%c6_315, %c0_316, %c0_317] : memref<7x2x128xf32, #tpu.memory_space<vmem>>, vector<1x2x128xf32>
    %701 = vector.shape_cast %700 : vector<1x2x128xf32> to vector<2x128xf32>
    %c14 = arith.constant 14 : index
    %c0_318 = arith.constant 0 : index
    %702 = vector.load %arg18[%c14, %c0_318] : memref<16x128xf32, #tpu.memory_space<vmem>>, vector<2x128xf32>
    tpu.vector_store %arg18[%c14, %c0_318], %701 {strides = array<i32>} : memref<16x128xf32, #tpu.memory_space<vmem>>, vector<2x128xf32>,
    %c0_319 = arith.constant 0 : index
    %c0_320 = arith.constant 0 : index
    %703 = vector.load %arg18[%c0_319, %c0_320] : memref<16x128xf32, #tpu.memory_space<vmem>>, vector<16x128xf32>
    %c0_321 = arith.constant 0 : index
    %c0_322 = arith.constant 0 : index
    %704 = vector.load %arg10[%c0_321, %c0_322] : memref<128x128xf32, #tpu.memory_space<vmem>>, vector<128x128xf32>
    %cst_323 = arith.constant dense<0.000000e+00> : vector<16x128xf32>
    %705 = tpu.matmul %703, %704, %cst_323 {dimension_numbers = #tpu.dot_dimension_numbers<[1], [0], [0], [1], [0, 0, 1, 1], [], []>} : vector<16x128xf32>, vector<128x128xf32>, vector<16x128xf32> -> vector<16x128xf32>
    %c0_324 = arith.constant 0 : index
    %c0_325 = arith.constant 0 : index
    %706 = vector.load %arg11[%c0_324, %c0_325] : memref<1x128xf32, #tpu.memory_space<vmem>>, vector<1x128xf32>
    %707 = vector.broadcast %706 : vector<1x128xf32> to vector<16x128xf32>
    %708 = arith.addf %705, %707 : vector<16x128xf32>
    %c0_326 = arith.constant 0 : index
    %c0_327 = arith.constant 0 : index
    %709 = vector.load %arg12[%c0_326, %c0_327] : memref<16x128xf32, #tpu.memory_space<vmem>>, vector<16x128xf32>
    tpu.vector_store %arg12[%c0_326, %c0_327], %708 {strides = array<i32>} : memref<16x128xf32, #tpu.memory_space<vmem>>, vector<16x128xf32>,
    %cst_328 = arith.constant 0.000000e+00 : f32
    %710 = vector.broadcast %cst_328 : f32 to vector<2x128xf32>
    %c0_329 = arith.constant 0 : index
    %c0_330 = arith.constant 0 : index
    %711 = vector.load %arg12[%c0_329, %c0_330] : memref<16x128xf32, #tpu.memory_space<vmem>>, vector<2x128xf32>
    tpu.vector_store %arg12[%c0_329, %c0_330], %710 {strides = array<i32>} : memref<16x128xf32, #tpu.memory_space<vmem>>, vector<2x128xf32>,
    return
  }
}

</mosaic_0001>

<llo_original>
// kernel: tpu_custom_call.1
$region0: #{tpu_custom_call.1}
  #allocation0 [shape = 'u32[]', space=smem, size = 0x4, offset = 0x4, fixed_abs, tag = 'smem constant byte address 0x4 - core index']
  #allocation1 [shape = 'u32[144,128]{1,0:T(1,128)}', space=vmem, size = 0x12000, scoped, tag = 'internal scratch']
  #allocation2 [shape = 'f32[8,2,512]{2,1,0:T(2,128)}', space=vmem, size = 0x8000, scoped, tag = 'scratch operand']
  #allocation3 [shape = 'f32[7,2,512]{2,1,0:T(2,128)}', space=vmem, size = 0x7000, scoped, tag = 'scratch operand']
  #allocation4 [shape = 'f32[8,2,128]{2,1,0:T(2,128)}', space=vmem, size = 0x2000, scoped, tag = 'scratch operand']
  #allocation5 [shape = 'f32[2,8,128]{2,1,0:T(8,128)}', space=vmem, size = 0x2000, scoped, tag = 'scratch operand']
  #allocation6 [shape = 'f32[7,2,128]{2,1,0:T(2,128)}', space=vmem, size = 0x1c00, scoped, tag = 'scratch operand']
  #allocation7 [shape = 'f32[16,128]{1,0:T(8,128)}', space=vmem, size = 0x2000, scoped, tag = 'scratch operand']
  #allocation8 [shape = 'f32[1,1]{1,0:T(1,128)S(1)}', space=vmem, size = 0x200, scoped, tag = 'scoped memory for tpu_custom_call.1']
  %s0 = inlined_call_operand.hbm [shape: f32[16,16], index: 0, kind: input, shape index: {}]
  %s1 = inlined_call_operand.hbm [shape: f32[14,16], index: 1, kind: input, shape index: {}]
  %s2 = inlined_call_operand.hbm [shape: f32[16,512], index: 2, kind: input, shape index: {}]
  %s3 = inlined_call_operand.hbm [shape: f32[128,512], index: 3, kind: input, shape index: {}]
  %s4 = inlined_call_operand.vmem [shape: f32[1,512], index: 4, kind: input, shape index: {}]
  %s5 = inlined_call_operand.vmem [shape: f32[1,256], index: 5, kind: input, shape index: {}]
  %s6 = inlined_call_operand.<no memory space> [shape: f32[1,1], index: 6, kind: input, shape index: {}]
  %s7 = inlined_call_operand.hbm [shape: f32[16,512], index: 7, kind: input, shape index: {}]
  %s8 = inlined_call_operand.vmem [shape: f32[1,512], index: 8, kind: input, shape index: {}]
  %s9 = inlined_call_operand.hbm [shape: f32[256,512], index: 9, kind: input, shape index: {}]
  %s10 = inlined_call_operand.hbm [shape: f32[128,128], index: 10, kind: input, shape index: {}]
  %s11 = inlined_call_operand.vmem [shape: f32[1,128], index: 11, kind: input, shape index: {}]
  %s12 = inlined_call_operand.hbm [shape: f32[16,128], index: 12, kind: output, shape index: {}]
  %s13 = sld [smem:[#allocation0]]
  $region86: #{tpu_custom_call.1} parent=0
    _
  %s15 = ssub.s32 1, %s13
  %s16 = scalar_select 0, %s15, %s13
  %v17 = vstv %s6
  %18 = vst [vmem:[#allocation8] sm:$0x1] %v17
  $region1: #{tpu_custom_call.1} parent=0
    #allocation9 [shape = 'u8[8192]{0}', space=vmem, size = 0x2000, scoped, tag = 'input window, operand 0, single buffered']
    #allocation10 [shape = 's32[1]{0}', space=sflag, size = 0x4, scoped, tag = 'scoped memory for tpu_custom_call.1']
    #allocation11 [shape = 's32[1]{0}', space=sflag, size = 0x4, scoped, tag = 'scoped memory for tpu_custom_call.1']
    #allocation12 [shape = 'u8[8192]{0}', space=vmem, size = 0x2000, scoped, tag = 'input window, operand 1, single buffered']
    #allocation13 [shape = 's32[1]{0}', space=sflag, size = 0x4, scoped, tag = 'scoped memory for tpu_custom_call.1']
    #allocation14 [shape = 'u8[32768]{0}', space=vmem, size = 0x8000, scoped, tag = 'input window, operand 2, single buffered']
    #allocation15 [shape = 'u8[262144]{0}', space=vmem, size = 0x40000, scoped, tag = 'input window, operand 3, single buffered']
    #allocation16 [shape = 's32[1]{0}', space=sflag, size = 0x4, scoped, tag = 'scoped memory for tpu_custom_call.1']
    #allocation17 [shape = 'u8[32768]{0}', space=vmem, size = 0x8000, scoped, tag = 'input window, operand 7, single buffered']
    #allocation18 [shape = 'u8[524288]{0}', space=vmem, size = 0x80000, scoped, tag = 'input window, operand 9, single buffered']
    #allocation19 [shape = 's32[1]{0}', space=sflag, size = 0x4, scoped, tag = 'scoped memory for tpu_custom_call.1']
    #allocation20 [shape = 'u8[65536]{0}', space=vmem, size = 0x10000, scoped, tag = 'input window, operand 10, single buffered']
    #allocation21 [shape = 'u8[8192]{0}', space=vmem, size = 0x2000, scoped, tag = 'output window, operand 0, single buffered']
    %19 = vsyncpa [#allocation10], 0
    %20 = vsyncpa [#allocation13], 0
    %21 = vsyncpa [#allocation16], 0
    %22 = vsyncpa [#allocation19], 0
    %23 = vsyncpa [#allocation11], 0
    // Predicated region
    $region2: #{tpu_custom_call.1} parent=1 // pred_check
      _
    $region3: #{tpu_custom_call.1} parent=1 // pred_check_branch
      %25 = sbr.rel (0) target = $region5
    $region4: #{tpu_custom_call.1} parent=1 // pred_region
      %s27 = ssub.s32 256, 256
      %28 = vsyncadd [#allocation10], %s27
      %s29 = sshll.u32 [#allocation9], 4
      %s30 = int_to_ptr.vmem [resolvable:$true] %s29
      %35 = dma.hbm_to_vmem [thread:$0]  %s0, 256, %s30, [#allocation10], 128, 128, 8
    $region5: #{tpu_custom_call.1} parent=1 // pred_fallthru
      _
    // Predicated region
    $region6: #{tpu_custom_call.1} parent=1 // pred_check
      _
    $region7: #{tpu_custom_call.1} parent=1 // pred_check_branch
      %37 = sbr.rel (0) target = $region9
    $region8: #{tpu_custom_call.1} parent=1 // pred_region
      %s39 = ssub.s32 256, 256
      %40 = vsyncadd [#allocation13], %s39
      %s41 = sshll.u32 [#allocation12], 4
      %s42 = int_to_ptr.vmem [resolvable:$true] %s41
      %47 = dma.hbm_to_vmem [thread:$0]  %s1, 256, %s42, [#allocation13], 128, 128, 8
    $region9: #{tpu_custom_call.1} parent=1 // pred_fallthru
      _
    // Predicated region
    $region10: #{tpu_custom_call.1} parent=1 // pred_check
      _
    $region11: #{tpu_custom_call.1} parent=1 // pred_check_branch
      %49 = sbr.rel (0) target = $region13
    $region12: #{tpu_custom_call.1} parent=1 // pred_region
      %s51 = ssub.s32 1024, 1024
      %52 = vsyncadd [#allocation13], %s51
      %s53 = sshll.u32 [#allocation14], 4
      %s54 = int_to_ptr.vmem [resolvable:$true] %s53
      %59 = dma.hbm_to_vmem [thread:$0]  %s2, 1024, %s54, [#allocation13], 512, 512, 32
    $region13: #{tpu_custom_call.1} parent=1 // pred_fallthru
      _
    // Predicated region
    $region14: #{tpu_custom_call.1} parent=1 // pred_check
      _
    $region15: #{tpu_custom_call.1} parent=1 // pred_check_branch
      %61 = sbr.rel (0) target = $region17
    $region16: #{tpu_custom_call.1} parent=1 // pred_region
      %s63 = ssub.s32 8192, 8192
      %64 = vsyncadd [#allocation16], %s63
      %s65 = sshll.u32 [#allocation15], 4
      %s66 = int_to_ptr.vmem [resolvable:$true] %s65
      %71 = dma.hbm_to_vmem [thread:$0]  %s3, 8192, %s66, [#allocation16], 512, 512, 32
    $region17: #{tpu_custom_call.1} parent=1 // pred_fallthru
      _
    // Predicated region
    $region18: #{tpu_custom_call.1} parent=1 // pred_check
      _
    $region19: #{tpu_custom_call.1} parent=1 // pred_check_branch
      %73 = sbr.rel (0) target = $region21
    $region20: #{tpu_custom_call.1} parent=1 // pred_region
      _
    $region21: #{tpu_custom_call.1} parent=1 // pred_fallthru
      _
    // Predicated region
    $region22: #{tpu_custom_call.1} parent=1 // pred_check
      _
    $region23: #{tpu_custom_call.1} parent=1 // pred_check_branch
      %75 = sbr.rel (0) target = $region25
    $region24: #{tpu_custom_call.1} parent=1 // pred_region
      _
    $region25: #{tpu_custom_call.1} parent=1 // pred_fallthru
      _
    // Predicated region
    $region26: #{tpu_custom_call.1} parent=1 // pred_check
      _
    $region27: #{tpu_custom_call.1} parent=1 // pred_check_branch
      %77 = sbr.rel (0) target = $region29
    $region28: #{tpu_custom_call.1} parent=1 // pred_region
      _
    $region29: #{tpu_custom_call.1} parent=1 // pred_fallthru
      _
    // Predicated region
    $region30: #{tpu_custom_call.1} parent=1 // pred_check
      _
    $region31: #{tpu_custom_call.1} parent=1 // pred_check_branch
      %79 = sbr.rel (0) target = $region33
    $region32: #{tpu_custom_call.1} parent=1 // pred_region
      %s81 = ssub.s32 1024, 1024
      %82 = vsyncadd [#allocation16], %s81
      %s83 = sshll.u32 [#allocation17], 4
      %s84 = int_to_ptr.vmem [resolvable:$true] %s83
      %89 = dma.hbm_to_vmem [thread:$0]  %s7, 1024, %s84, [#allocation16], 512, 512, 32
    $region33: #{tpu_custom_call.1} parent=1 // pred_fallthru
      _
    // Predicated region
    $region34: #{tpu_custom_call.1} parent=1 // pred_check
      _
    $region35: #{tpu_custom_call.1} parent=1 // pred_check_branch
      %91 = sbr.rel (0) target = $region37
    $region36: #{tpu_custom_call.1} parent=1 // pred_region
      _
    $region37: #{tpu_custom_call.1} parent=1 // pred_fallthru
      _
    // Predicated region
    $region38: #{tpu_custom_call.1} parent=1 // pred_check
      _
    $region39: #{tpu_custom_call.1} parent=1 // pred_check_branch
      %93 = sbr.rel (0) target = $region41
    $region40: #{tpu_custom_call.1} parent=1 // pred_region
      %s95 = ssub.s32 16384, 16384
      %96 = vsyncadd [#allocation19], %s95
      %s97 = sshll.u32 [#allocation18], 4
      %s98 = int_to_ptr.vmem [resolvable:$true] %s97
      %103 = dma.hbm_to_vmem [thread:$0]  %s9, 16384, %s98, [#allocation19], 512, 512, 32
    $region41: #{tpu_custom_call.1} parent=1 // pred_fallthru
      _
    // Predicated region
    $region42: #{tpu_custom_call.1} parent=1 // pred_check
      _
    $region43: #{tpu_custom_call.1} parent=1 // pred_check_branch
      %105 = sbr.rel (0) target = $region45
    $region44: #{tpu_custom_call.1} parent=1 // pred_region
      %s107 = ssub.s32 2048, 2048
      %108 = vsyncadd [#allocation19], %s107
      %s109 = sshll.u32 [#allocation20], 4
      %s110 = int_to_ptr.vmem [resolvable:$true] %s109
      %115 = dma.hbm_to_vmem [thread:$0]  %s10, 2048, %s110, [#allocation19], 128, 128, 8
    $region45: #{tpu_custom_call.1} parent=1 // pred_fallthru
      _
    // Predicated region
    $region46: #{tpu_custom_call.1} parent=1 // pred_check
      _
    $region47: #{tpu_custom_call.1} parent=1 // pred_check_branch
      %117 = sbr.rel (0) target = $region49
    $region48: #{tpu_custom_call.1} parent=1 // pred_region
      _
    $region49: #{tpu_custom_call.1} parent=1 // pred_fallthru
      _
    // Predicated region
    $region50: #{tpu_custom_call.1} parent=1 // pred_check
      _
    $region51: #{tpu_custom_call.1} parent=1 // pred_check_branch
      %119 = sbr.rel (0) target = $region53
    $region52: #{tpu_custom_call.1} parent=1 // pred_region
      %120 = dma.done [#allocation10], 256
    $region53: #{tpu_custom_call.1} parent=1 // pred_fallthru
      _
    // Predicated region
    $region54: #{tpu_custom_call.1} parent=1 // pred_check
      _
    $region55: #{tpu_custom_call.1} parent=1 // pred_check_branch
      %122 = sbr.rel (0) target = $region57
    $region56: #{tpu_custom_call.1} parent=1 // pred_region
      %123 = dma.done [#allocation13], 256
    $region57: #{tpu_custom_call.1} parent=1 // pred_fallthru
      _
    // Predicated region
    $region58: #{tpu_custom_call.1} parent=1 // pred_check
      _
    $region59: #{tpu_custom_call.1} parent=1 // pred_check_branch
      %125 = sbr.rel (0) target = $region61
    $region60: #{tpu_custom_call.1} parent=1 // pred_region
      %126 = dma.done [#allocation13], 1024
    $region61: #{tpu_custom_call.1} parent=1 // pred_fallthru
      _
    // Predicated region
    $region62: #{tpu_custom_call.1} parent=1 // pred_check
      _
    $region63: #{tpu_custom_call.1} parent=1 // pred_check_branch
      %128 = sbr.rel (0) target = $region65
    $region64: #{tpu_custom_call.1} parent=1 // pred_region
      %129 = dma.done [#allocation16], 8192
    $region65: #{tpu_custom_call.1} parent=1 // pred_fallthru
      _
    // Predicated region
    $region66: #{tpu_custom_call.1} parent=1 // pred_check
      _
    $region67: #{tpu_custom_call.1} parent=1 // pred_check_branch
      %131 = sbr.rel (0) target = $region69
    $region68: #{tpu_custom_call.1} parent=1 // pred_region
      %132 = dma.done [#allocation16], 1024
    $region69: #{tpu_custom_call.1} parent=1 // pred_fallthru
      _
    // Predicated region
    $region70: #{tpu_custom_call.1} parent=1 // pred_check
      _
    $region71: #{tpu_custom_call.1} parent=1 // pred_check_branch
      %134 = sbr.rel (0) target = $region73
    $region72: #{tpu_custom_call.1} parent=1 // pred_region
      %135 = dma.done [#allocation19], 16384
    $region73: #{tpu_custom_call.1} parent=1 // pred_fallthru
      _
    // Predicated region
    $region74: #{tpu_custom_call.1} parent=1 // pred_check
      _
    $region75: #{tpu_custom_call.1} parent=1 // pred_check_branch
      %137 = sbr.rel (0) target = $region77
    $region76: #{tpu_custom_call.1} parent=1 // pred_region
      %138 = dma.done [#allocation19], 2048
    $region77: #{tpu_custom_call.1} parent=1 // pred_fallthru
      _
    %v139 = vld [vmem:[#allocation9] sm:$0xff]
    %v140 = vld [vmem:[#allocation9 + $0x8] sm:$0xff]
    %v141 = vld [vmem:[#allocation14] sm:$0xff]
    %v142 = vld [vmem:[#allocation14 + $0x8] sm:$0xff]
    %v143 = vld [vmem:[#allocation14 + $0x10] sm:$0xff]
    %v144 = vld [vmem:[#allocation14 + $0x18] sm:$0xff]
    %v145 = vld [vmem:[#allocation14 + $0x20] sm:$0xff]
    %v146 = vld [vmem:[#allocation14 + $0x28] sm:$0xff]
    %v147 = vld [vmem:[#allocation14 + $0x30] sm:$0xff]
    %v148 = vld [vmem:[#allocation14 + $0x38] sm:$0xff]
    %v149 = vld [vmem:[%s4] sm:$0xf]
    %v151 = vlaneseq
    %v152 = vshrl.u32 %v151, 7
    %v153 = vsub.s32 0, %v152
    %v154 = vrot.slane %v149, %v153
    %v155 = vlaneseq
    %v156 = vshrl.u32 %v155, 7
    %v157 = vsub.s32 1, %v156
    %v158 = vrot.slane %v149, %v157
    %v159 = vlaneseq
    %v160 = vshrl.u32 %v159, 7
    %v161 = vsub.s32 2, %v160
    %v162 = vrot.slane %v149, %v161
    %v163 = vlaneseq
    %v164 = vshrl.u32 %v163, 7
    %v165 = vsub.s32 3, %v164
    %v166 = vrot.slane %v149, %v165
    %vm171 = vcmask 130048
    %v173 = vsel %vm171, %v139, 0
    %v176 = vsel %vm171, %v140, 0
    %178 = vmatprep.subr.mxu0 %v142
    %179 = vmatpush1.msra.mxu0 %v141
    %180 = vmatprep.subr.mxu0 %v146
    %181 = vmatpush1.msra.mxu0 %v145
    %182 = vmatprep.subr.mxu0 0.0
    %183 = vmatpush1.msra.mxu0 0.0
    %184 = vmatprep.subr.mxu0 0.0
    %185 = vmatpush1.msra.mxu0 0.0
    %186 = vmatprep.subr.mxu0 0.0
    %187 = vmatpush1.msra.mxu0 0.0
    %188 = vmatprep.subr.mxu0 0.0
    %189 = vmatpush1.msra.mxu0 0.0
    %190 = vmatprep.subr.mxu0 0.0
    %191 = vmatpush1.msra.mxu0 0.0
    %192 = vmatprep.subr.mxu0 0.0
    %193 = vmatpush1.msra.mxu0 0.0
    %194 = vmatprep.subr.mxu0 0.0
    %195 = vmatpush1.msra.mxu0 0.0
    %196 = vmatprep.subr.mxu0 0.0
    %197 = vmatpush1.msra.mxu0 0.0
    %198 = vmatprep.subr.mxu0 0.0
    %199 = vmatpush1.msra.mxu0 0.0
    %200 = vmatprep.subr.mxu0 0.0
    %201 = vmatpush1.msra.mxu0 0.0
    %202 = vmatprep.subr.mxu0 0.0
    %203 = vmatpush1.msra.mxu0 0.0
    %204 = vmatprep.subr.mxu0 0.0
    %205 = vmatpush1.msra.mxu0 0.0
    %206 = vmatprep.subr.mxu0 0.0
    %207 = vmatpush1.msra.mxu0 0.0
    %208 = vmatprep.subr.mxu0 0.0
    %209 = vmatpush1.msra.mxu0 0.0
    %210 = vmatprep.subr.mxu0 0.0
    %211 = vmatpush1.msra.mxu0 0.0
    %212 = vmatprep.subr.mxu0 0.0
    %213 = vmatpush1.msra.mxu0 0.0
    %214 = vmatprep.subr.mxu0 0.0
    %215 = vmatpush1.msra.mxu0 0.0
    %216 = vmatprep.subr.mxu0 0.0
    %217 = vmatpush1.msra.mxu0 0.0
    %218 = vmatprep.subr.mxu0 0.0
    %219 = vmatpush1.msra.mxu0 0.0
    %220 = vmatprep.subr.mxu0 0.0
    %221 = vmatpush1.msra.mxu0 0.0
    %222 = vmatprep.subr.mxu0 0.0
    %223 = vmatpush1.msra.mxu0 0.0
    %224 = vmatprep.subr.mxu0 0.0
    %225 = vmatpush1.msra.mxu0 0.0
    %226 = vmatprep.subr.mxu0 0.0
    %227 = vmatpush1.msra.mxu0 0.0
    %228 = vmatprep.subr.mxu0 0.0
    %229 = vmatpush1.msra.mxu0 0.0
    %230 = vmatprep.subr.mxu0 0.0
    %231 = vmatpush1.msra.mxu0 0.0
    %232 = vmatprep.subr.mxu0 0.0
    %233 = vmatpush1.msra.mxu0 0.0
    %234 = vmatprep.subr.mxu0 0.0
    %235 = vmatpush1.msra.mxu0 0.0
    %236 = vmatprep.subr.mxu0 0.0
    %237 = vmatpush1.msra.mxu0 0.0
    %238 = vmatprep.subr.mxu0 0.0
    %239 = vmatpush1.msra.mxu0 0.0
    %240 = vmatprep.subr.mxu0 0.0
    %241 = vmatpush1.msra.mxu0 0.0
    %242 = vmatprep.mubr.f32.mxu0 0.0
    %243 = vmatmul.mubr.f32.gmra.mrb[0].mxu0 %v173
    %v244 = vpop.f32.mrb[0].mxu0
    %v245 = vadd.f32 %v154, %v244
    %v246 = vpop.f32.mrb[0].mxu0
    %v247 = vadd.f32 %v158, %v246
    %248 = vmatprep.mubr.f32.mxu0 0.0
    %249 = vmatmul.mubr.f32.gmra.mrb[0].mxu0 %v176
    %v250 = vpop.f32.mrb[0].mxu0
    %v251 = vadd.f32 %v154, %v250
    %v252 = vpop.f32.mrb[0].mxu0
    %v253 = vadd.f32 %v158, %v252
    %254 = vdwg.mxu0
    %255 = vmatprep.subr.mxu0 %v144
    %256 = vmatpush1.msra.mxu0 %v143
    %257 = vmatprep.subr.mxu0 %v148
    %258 = vmatpush1.msra.mxu0 %v147
    %259 = vmatprep.subr.mxu0 0.0
    %260 = vmatpush1.msra.mxu0 0.0
    %261 = vmatprep.subr.mxu0 0.0
    %262 = vmatpush1.msra.mxu0 0.0
    %263 = vmatprep.subr.mxu0 0.0
    %264 = vmatpush1.msra.mxu0 0.0
    %265 = vmatprep.subr.mxu0 0.0
    %266 = vmatpush1.msra.mxu0 0.0
    %267 = vmatprep.subr.mxu0 0.0
    %268 = vmatpush1.msra.mxu0 0.0
    %269 = vmatprep.subr.mxu0 0.0
    %270 = vmatpush1.msra.mxu0 0.0
    %271 = vmatprep.subr.mxu0 0.0
    %272 = vmatpush1.msra.mxu0 0.0
    %273 = vmatprep.subr.mxu0 0.0
    %274 = vmatpush1.msra.mxu0 0.0
    %275 = vmatprep.subr.mxu0 0.0
    %276 = vmatpush1.msra.mxu0 0.0
    %277 = vmatprep.subr.mxu0 0.0
    %278 = vmatpush1.msra.mxu0 0.0
    %279 = vmatprep.subr.mxu0 0.0
    %280 = vmatpush1.msra.mxu0 0.0
    %281 = vmatprep.subr.mxu0 0.0
    %282 = vmatpush1.msra.mxu0 0.0
    %283 = vmatprep.subr.mxu0 0.0
    %284 = vmatpush1.msra.mxu0 0.0
    %285 = vmatprep.subr.mxu0 0.0
    %286 = vmatpush1.msra.mxu0 0.0
    %287 = vmatprep.subr.mxu0 0.0
    %288 = vmatpush1.msra.mxu0 0.0
    %289 = vmatprep.subr.mxu0 0.0
    %290 = vmatpush1.msra.mxu0 0.0
    %291 = vmatprep.subr.mxu0 0.0
    %292 = vmatpush1.msra.mxu0 0.0
    %293 = vmatprep.subr.mxu0 0.0
    %294 = vmatpush1.msra.mxu0 0.0
    %295 = vmatprep.subr.mxu0 0.0
    %296 = vmatpush1.msra.mxu0 0.0
    %297 = vmatprep.subr.mxu0 0.0
    %298 = vmatpush1.msra.mxu0 0.0
    %299 = vmatprep.subr.mxu0 0.0
    %300 = vmatpush1.msra.mxu0 0.0
    %301 = vmatprep.subr.mxu0 0.0
    %302 = vmatpush1.msra.mxu0 0.0
    %303 = vmatprep.subr.mxu0 0.0
    %304 = vmatpush1.msra.mxu0 0.0
    %305 = vmatprep.subr.mxu0 0.0
    %306 = vmatpush1.msra.mxu0 0.0
    %307 = vmatprep.subr.mxu0 0.0
    %308 = vmatpush1.msra.mxu0 0.0
    %309 = vmatprep.subr.mxu0 0.0
    %310 = vmatpush1.msra.mxu0 0.0
    %311 = vmatprep.subr.mxu0 0.0
    %312 = vmatpush1.msra.mxu0 0.0
    %313 = vmatprep.subr.mxu0 0.0
    %314 = vmatpush1.msra.mxu0 0.0
    %315 = vmatprep.subr.mxu0 0.0
    %316 = vmatpush1.msra.mxu0 0.0
    %317 = vmatprep.subr.mxu0 0.0
    %318 = vmatpush1.msra.mxu0 0.0
    %319 = vmatprep.mubr.f32.mxu0 0.0
    %320 = vmatmul.mubr.f32.gmra.mrb[0].mxu0 %v173
    %v321 = vpop.f32.mrb[0].mxu0
    %v322 = vadd.f32 %v162, %v321
    %v323 = vpop.f32.mrb[0].mxu0
    %v324 = vadd.f32 %v166, %v323
    %325 = vmatprep.mubr.f32.mxu0 0.0
    %326 = vmatmul.mubr.f32.gmra.mrb[0].mxu0 %v176
    %v327 = vpop.f32.mrb[0].mxu0
    %v328 = vadd.f32 %v162, %v327
    %v329 = vpop.f32.mrb[0].mxu0
    %v330 = vadd.f32 %v166, %v329
    %331 = vdwg.mxu0
    %v336 = vcombine.low %v245, %v247
    %v337 = vcombine.low %v322, %v324
    %v339 = vunpack.c.l.s4 1983009808
    %v340 = vunpack.c.0.s8 %v339
    %v341 = vlaneseq
    %v342 = vshrl.u32 %v341, 7
    %v343 = vsub.s32 %v340, %v342
    %v344 = vrot.slane %v336, %v343
    %v346 = vunpack.c.l.s4 1983009808
    %v347 = vunpack.c.0.s8 %v346
    %v348 = vlaneseq
    %v349 = vshrl.u32 %v348, 7
    %v350 = vsub.s32 %v347, %v349
    %v351 = vrot.slane %v337, %v350
    %v352 = vcombine.low %v344, %v351
    %354 = vst [vmem:[#allocation2] sm:$0xff] %v352
    %v355 = vcombine.high %v344, %v351
    %s357 = scalar_lea.vmem [#allocation2], 8
    %358 = vst [vmem:[%s357] sm:$0xff] %v355
    %v359 = vcombine.high %v245, %v247
    %v360 = vcombine.high %v322, %v324
    %v362 = vunpack.c.l.s4 1983009808
    %v363 = vunpack.c.0.s8 %v362
    %v364 = vlaneseq
    %v365 = vshrl.u32 %v364, 7
    %v366 = vsub.s32 %v363, %v365
    %v367 = vrot.slane %v359, %v366
    %v369 = vunpack.c.l.s4 1983009808
    %v370 = vunpack.c.0.s8 %v369
    %v371 = vlaneseq
    %v372 = vshrl.u32 %v371, 7
    %v373 = vsub.s32 %v370, %v372
    %v374 = vrot.slane %v360, %v373
    %v375 = vcombine.low %v367, %v374
    %s377 = scalar_lea.vmem [#allocation2], 16
    %378 = vst [vmem:[%s377] sm:$0xff] %v375
    %v379 = vcombine.high %v367, %v374
    %s381 = scalar_lea.vmem [#allocation2], 24
    %382 = vst [vmem:[%s381] sm:$0xff] %v379
    %v387 = vcombine.low %v251, %v253
    %v388 = vcombine.low %v328, %v330
    %v390 = vunpack.c.l.s4 1983009808
    %v391 = vunpack.c.0.s8 %v390
    %v392 = vlaneseq
    %v393 = vshrl.u32 %v392, 7
    %v394 = vsub.s32 %v391, %v393
    %v395 = vrot.slane %v387, %v394
    %v397 = vunpack.c.l.s4 1983009808
    %v398 = vunpack.c.0.s8 %v397
    %v399 = vlaneseq
    %v400 = vshrl.u32 %v399, 7
    %v401 = vsub.s32 %v398, %v400
    %v402 = vrot.slane %v388, %v401
    %v403 = vcombine.low %v395, %v402
    %s405 = scalar_lea.vmem [#allocation2], 32
    %406 = vst [vmem:[%s405] sm:$0xff] %v403
    %v407 = vcombine.high %v395, %v402
    %s409 = scalar_lea.vmem [#allocation2], 40
    %410 = vst [vmem:[%s409] sm:$0xff] %v407
    %v411 = vcombine.high %v251, %v253
    %v412 = vcombine.high %v328, %v330
    %v414 = vunpack.c.l.s4 1983009808
    %v415 = vunpack.c.0.s8 %v414
    %v416 = vlaneseq
    %v417 = vshrl.u32 %v416, 7
    %v418 = vsub.s32 %v415, %v417
    %v419 = vrot.slane %v411, %v418
    %v421 = vunpack.c.l.s4 1983009808
    %v422 = vunpack.c.0.s8 %v421
    %v423 = vlaneseq
    %v424 = vshrl.u32 %v423, 7
    %v425 = vsub.s32 %v422, %v424
    %v426 = vrot.slane %v412, %v425
    %v427 = vcombine.low %v419, %v426
    %s429 = scalar_lea.vmem [#allocation2], 48
    %430 = vst [vmem:[%s429] sm:$0xff] %v427
    %v431 = vcombine.high %v419, %v426
    %s433 = scalar_lea.vmem [#allocation2], 56
    %434 = vst [vmem:[%s433] sm:$0xff] %v431
    %v435 = vld [vmem:[#allocation12] sm:$0xff]
    %v436 = vld [vmem:[#allocation12 + $0x8] sm:$0x3f]
    %v437 = vld [vmem:[#allocation17] sm:$0xff]
    %v438 = vld [vmem:[#allocation17 + $0x8] sm:$0xff]
    %v439 = vld [vmem:[#allocation17 + $0x10] sm:$0xff]
    %v440 = vld [vmem:[#allocation17 + $0x18] sm:$0xff]
    %v441 = vld [vmem:[#allocation17 + $0x20] sm:$0xff]
    %v442 = vld [vmem:[#allocation17 + $0x28] sm:$0xff]
    %v443 = vld [vmem:[#allocation17 + $0x30] sm:$0xff]
    %v444 = vld [vmem:[#allocation17 + $0x38] sm:$0xff]
    %v445 = vld [vmem:[%s8] sm:$0xf]
    %v447 = vlaneseq
    %v448 = vshrl.u32 %v447, 7
    %v449 = vsub.s32 0, %v448
    %v450 = vrot.slane %v445, %v449
    %v451 = vlaneseq
    %v452 = vshrl.u32 %v451, 7
    %v453 = vsub.s32 1, %v452
    %v454 = vrot.slane %v445, %v453
    %v455 = vlaneseq
    %v456 = vshrl.u32 %v455, 7
    %v457 = vsub.s32 2, %v456
    %v458 = vrot.slane %v445, %v457
    %v459 = vlaneseq
    %v460 = vshrl.u32 %v459, 7
    %v461 = vsub.s32 3, %v460
    %v462 = vrot.slane %v445, %v461
    %v468 = vsel %vm171, %v435, 0
    %v471 = vsel %vm171, %v436, 0
    %473 = vmatprep.subr.mxu0 %v438
    %474 = vmatpush1.msra.mxu0 %v437
    %475 = vmatprep.subr.mxu0 %v442
    %476 = vmatpush1.msra.mxu0 %v441
    %477 = vmatprep.subr.mxu0 0.0
    %478 = vmatpush1.msra.mxu0 0.0
    %479 = vmatprep.subr.mxu0 0.0
    %480 = vmatpush1.msra.mxu0 0.0
    %481 = vmatprep.subr.mxu0 0.0
    %482 = vmatpush1.msra.mxu0 0.0
    %483 = vmatprep.subr.mxu0 0.0
    %484 = vmatpush1.msra.mxu0 0.0
    %485 = vmatprep.subr.mxu0 0.0
    %486 = vmatpush1.msra.mxu0 0.0
    %487 = vmatprep.subr.mxu0 0.0
    %488 = vmatpush1.msra.mxu0 0.0
    %489 = vmatprep.subr.mxu0 0.0
    %490 = vmatpush1.msra.mxu0 0.0
    %491 = vmatprep.subr.mxu0 0.0
    %492 = vmatpush1.msra.mxu0 0.0
    %493 = vmatprep.subr.mxu0 0.0
    %494 = vmatpush1.msra.mxu0 0.0
    %495 = vmatprep.subr.mxu0 0.0
    %496 = vmatpush1.msra.mxu0 0.0
    %497 = vmatprep.subr.mxu0 0.0
    %498 = vmatpush1.msra.mxu0 0.0
    %499 = vmatprep.subr.mxu0 0.0
    %500 = vmatpush1.msra.mxu0 0.0
    %501 = vmatprep.subr.mxu0 0.0
    %502 = vmatpush1.msra.mxu0 0.0
    %503 = vmatprep.subr.mxu0 0.0
    %504 = vmatpush1.msra.mxu0 0.0
    %505 = vmatprep.subr.mxu0 0.0
    %506 = vmatpush1.msra.mxu0 0.0
    %507 = vmatprep.subr.mxu0 0.0
    %508 = vmatpush1.msra.mxu0 0.0
    %509 = vmatprep.subr.mxu0 0.0
    %510 = vmatpush1.msra.mxu0 0.0
    %511 = vmatprep.subr.mxu0 0.0
    %512 = vmatpush1.msra.mxu0 0.0
    %513 = vmatprep.subr.mxu0 0.0
    %514 = vmatpush1.msra.mxu0 0.0
    %515 = vmatprep.subr.mxu0 0.0
    %516 = vmatpush1.msra.mxu0 0.0
    %517 = vmatprep.subr.mxu0 0.0
    %518 = vmatpush1.msra.mxu0 0.0
    %519 = vmatprep.subr.mxu0 0.0
    %520 = vmatpush1.msra.mxu0 0.0
    %521 = vmatprep.subr.mxu0 0.0
    %522 = vmatpush1.msra.mxu0 0.0
    %523 = vmatprep.subr.mxu0 0.0
    %524 = vmatpush1.msra.mxu0 0.0
    %525 = vmatprep.subr.mxu0 0.0
    %526 = vmatpush1.msra.mxu0 0.0
    %527 = vmatprep.subr.mxu0 0.0
    %528 = vmatpush1.msra.mxu0 0.0
    %529 = vmatprep.subr.mxu0 0.0
    %530 = vmatpush1.msra.mxu0 0.0
    %531 = vmatprep.subr.mxu0 0.0
    %532 = vmatpush1.msra.mxu0 0.0
    %533 = vmatprep.subr.mxu0 0.0
    %534 = vmatpush1.msra.mxu0 0.0
    %535 = vmatprep.subr.mxu0 0.0
    %536 = vmatpush1.msra.mxu0 0.0
    %537 = vmatprep.mubr.f32.mxu0 0.0
    %538 = vmatmul.mubr.f32.gmra.mrb[0].mxu0 %v468
    %v539 = vpop.f32.mrb[0].mxu0
    %v540 = vadd.f32 %v450, %v539
    %v541 = vpop.f32.mrb[0].mxu0
    %v542 = vadd.f32 %v454, %v541
    %543 = vmatprep.mubr.f32.mxu0 0.0
    %544 = vmatmul.mubr.f32.gmra.mrb[0].mxu0 %v471
    %v545 = vpop.f32.mrb[0].mxu0
    %v546 = vadd.f32 %v450, %v545
    %v547 = vpop.f32.mrb[0].mxu0
    %v548 = vadd.f32 %v454, %v547
    %549 = vdwg.mxu0
    %550 = vmatprep.subr.mxu0 %v440
    %551 = vmatpush1.msra.mxu0 %v439
    %552 = vmatprep.subr.mxu0 %v444
    %553 = vmatpush1.msra.mxu0 %v443
    %554 = vmatprep.subr.mxu0 0.0
    %555 = vmatpush1.msra.mxu0 0.0
    %556 = vmatprep.subr.mxu0 0.0
    %557 = vmatpush1.msra.mxu0 0.0
    %558 = vmatprep.subr.mxu0 0.0
    %559 = vmatpush1.msra.mxu0 0.0
    %560 = vmatprep.subr.mxu0 0.0
    %561 = vmatpush1.msra.mxu0 0.0
    %562 = vmatprep.subr.mxu0 0.0
    %563 = vmatpush1.msra.mxu0 0.0
    %564 = vmatprep.subr.mxu0 0.0
    %565 = vmatpush1.msra.mxu0 0.0
    %566 = vmatprep.subr.mxu0 0.0
    %567 = vmatpush1.msra.mxu0 0.0
    %568 = vmatprep.subr.mxu0 0.0
    %569 = vmatpush1.msra.mxu0 0.0
    %570 = vmatprep.subr.mxu0 0.0
    %571 = vmatpush1.msra.mxu0 0.0
    %572 = vmatprep.subr.mxu0 0.0
    %573 = vmatpush1.msra.mxu0 0.0
    %574 = vmatprep.subr.mxu0 0.0
    %575 = vmatpush1.msra.mxu0 0.0
    %576 = vmatprep.subr.mxu0 0.0
    %577 = vmatpush1.msra.mxu0 0.0
    %578 = vmatprep.subr.mxu0 0.0
    %579 = vmatpush1.msra.mxu0 0.0
    %580 = vmatprep.subr.mxu0 0.0
    %581 = vmatpush1.msra.mxu0 0.0
    %582 = vmatprep.subr.mxu0 0.0
    %583 = vmatpush1.msra.mxu0 0.0
    %584 = vmatprep.subr.mxu0 0.0
    %585 = vmatpush1.msra.mxu0 0.0
    %586 = vmatprep.subr.mxu0 0.0
    %587 = vmatpush1.msra.mxu0 0.0
    %588 = vmatprep.subr.mxu0 0.0
    %589 = vmatpush1.msra.mxu0 0.0
    %590 = vmatprep.subr.mxu0 0.0
    %591 = vmatpush1.msra.mxu0 0.0
    %592 = vmatprep.subr.mxu0 0.0
    %593 = vmatpush1.msra.mxu0 0.0
    %594 = vmatprep.subr.mxu0 0.0
    %595 = vmatpush1.msra.mxu0 0.0
    %596 = vmatprep.subr.mxu0 0.0
    %597 = vmatpush1.msra.mxu0 0.0
    %598 = vmatprep.subr.mxu0 0.0
    %599 = vmatpush1.msra.mxu0 0.0
    %600 = vmatprep.subr.mxu0 0.0
    %601 = vmatpush1.msra.mxu0 0.0
    %602 = vmatprep.subr.mxu0 0.0
    %603 = vmatpush1.msra.mxu0 0.0
    %604 = vmatprep.subr.mxu0 0.0
    %605 = vmatpush1.msra.mxu0 0.0
    %606 = vmatprep.subr.mxu0 0.0
    %607 = vmatpush1.msra.mxu0 0.0
    %608 = vmatprep.subr.mxu0 0.0
    %609 = vmatpush1.msra.mxu0 0.0
    %610 = vmatprep.subr.mxu0 0.0
    %611 = vmatpush1.msra.mxu0 0.0
    %612 = vmatprep.subr.mxu0 0.0
    %613 = vmatpush1.msra.mxu0 0.0
    %614 = vmatprep.mubr.f32.mxu0 0.0
    %615 = vmatmul.mubr.f32.gmra.mrb[0].mxu0 %v468
    %v616 = vpop.f32.mrb[0].mxu0
    %v617 = vadd.f32 %v458, %v616
    %v618 = vpop.f32.mrb[0].mxu0
    %v619 = vadd.f32 %v462, %v618
    %620 = vmatprep.mubr.f32.mxu0 0.0
    %621 = vmatmul.mubr.f32.gmra.mrb[0].mxu0 %v471
    %v622 = vpop.f32.mrb[0].mxu0
    %v623 = vadd.f32 %v458, %v622
    %v624 = vpop.f32.mrb[0].mxu0
    %v625 = vadd.f32 %v462, %v624
    %626 = vdwg.mxu0
    %v631 = vcombine.low %v540, %v542
    %v632 = vcombine.low %v617, %v619
    %v634 = vunpack.c.l.s4 1983009808
    %v635 = vunpack.c.0.s8 %v634
    %v636 = vlaneseq
    %v637 = vshrl.u32 %v636, 7
    %v638 = vsub.s32 %v635, %v637
    %v639 = vrot.slane %v631, %v638
    %v641 = vunpack.c.l.s4 1983009808
    %v642 = vunpack.c.0.s8 %v641
    %v643 = vlaneseq
    %v644 = vshrl.u32 %v643, 7
    %v645 = vsub.s32 %v642, %v644
    %v646 = vrot.slane %v632, %v645
    %v647 = vcombine.low %v639, %v646
    %649 = vst [vmem:[#allocation3] sm:$0xff] %v647
    %v650 = vcombine.high %v639, %v646
    %s652 = scalar_lea.vmem [#allocation3], 8
    %653 = vst [vmem:[%s652] sm:$0xff] %v650
    %v654 = vcombine.high %v540, %v542
    %v655 = vcombine.high %v617, %v619
    %v657 = vunpack.c.l.s4 1983009808
    %v658 = vunpack.c.0.s8 %v657
    %v659 = vlaneseq
    %v660 = vshrl.u32 %v659, 7
    %v661 = vsub.s32 %v658, %v660
    %v662 = vrot.slane %v654, %v661
    %v664 = vunpack.c.l.s4 1983009808
    %v665 = vunpack.c.0.s8 %v664
    %v666 = vlaneseq
    %v667 = vshrl.u32 %v666, 7
    %v668 = vsub.s32 %v665, %v667
    %v669 = vrot.slane %v655, %v668
    %v670 = vcombine.low %v662, %v669
    %s672 = scalar_lea.vmem [#allocation3], 16
    %673 = vst [vmem:[%s672] sm:$0xff] %v670
    %v674 = vcombine.high %v662, %v669
    %s676 = scalar_lea.vmem [#allocation3], 24
    %677 = vst [vmem:[%s676] sm:$0xff] %v674
    %v682 = vcombine.low %v546, %v548
    %v683 = vcombine.low %v623, %v625
    %v685 = vunpack.c.l.s4 1983009808
    %v686 = vunpack.c.0.s8 %v685
    %v687 = vlaneseq
    %v688 = vshrl.u32 %v687, 7
    %v689 = vsub.s32 %v686, %v688
    %v690 = vrot.slane %v682, %v689
    %v692 = vunpack.c.l.s4 1983009808
    %v693 = vunpack.c.0.s8 %v692
    %v694 = vlaneseq
    %v695 = vshrl.u32 %v694, 7
    %v696 = vsub.s32 %v693, %v695
    %v697 = vrot.slane %v683, %v696
    %v698 = vcombine.low %v690, %v697
    %s700 = scalar_lea.vmem [#allocation3], 32
    %701 = vst [vmem:[%s700] sm:$0xff] %v698
    %v702 = vcombine.high %v690, %v697
    %s704 = scalar_lea.vmem [#allocation3], 40
    %705 = vst [vmem:[%s704] sm:$0xff] %v702
    %v706 = vcombine.high %v546, %v548
    %v707 = vcombine.high %v623, %v625
    %v709 = vunpack.c.l.s4 1983009808
    %v710 = vunpack.c.0.s8 %v709
    %v711 = vlaneseq
    %v712 = vshrl.u32 %v711, 7
    %v713 = vsub.s32 %v710, %v712
    %v714 = vrot.slane %v706, %v713
    %v716 = vunpack.c.l.s4 1983009808
    %v717 = vunpack.c.0.s8 %v716
    %v718 = vlaneseq
    %v719 = vshrl.u32 %v718, 7
    %v720 = vsub.s32 %v717, %v719
    %v721 = vrot.slane %v707, %v720
    %v722 = vcombine.low %v714, %v721
    %s724 = scalar_lea.vmem [#allocation3], 48
    %725 = vst [vmem:[%s724] sm:$0xff] %v722
    %v726 = vld [vmem:[#allocation2] sm:$0xff]
    %v727 = vld [vmem:[#allocation15] sm:$0xff]
    %v728 = vld [vmem:[#allocation15 + $0x8] sm:$0xff]
    %v729 = vld [vmem:[#allocation15 + $0x10] sm:$0xff]
    %v730 = vld [vmem:[#allocation15 + $0x18] sm:$0xff]
    %v731 = vld [vmem:[#allocation15 + $0x20] sm:$0xff]
    %v732 = vld [vmem:[#allocation15 + $0x28] sm:$0xff]
    %v733 = vld [vmem:[#allocation15 + $0x30] sm:$0xff]
    %v734 = vld [vmem:[#allocation15 + $0x38] sm:$0xff]
    %v735 = vld [vmem:[#allocation15 + $0x40] sm:$0xff]
    %v736 = vld [vmem:[#allocation15 + $0x48] sm:$0xff]
    %v737 = vld [vmem:[#allocation15 + $0x50] sm:$0xff]
    %v738 = vld [vmem:[#allocation15 + $0x58] sm:$0xff]
    %v739 = vld [vmem:[#allocation15 + $0x60] sm:$0xff]
    %v740 = vld [vmem:[#allocation15 + $0x68] sm:$0xff]
    %v741 = vld [vmem:[#allocation15 + $0x70] sm:$0xff]
    %v742 = vld [vmem:[#allocation15 + $0x78] sm:$0xff]
    %v743 = vld [vmem:[#allocation15 + $0x80] sm:$0xff]
    %v744 = vld [vmem:[#allocation15 + $0x88] sm:$0xff]
    %v745 = vld [vmem:[#allocation15 + $0x90] sm:$0xff]
    %v746 = vld [vmem:[#allocation15 + $0x98] sm:$0xff]
    %v747 = vld [vmem:[#allocation15 + $0xa0] sm:$0xff]
    %v748 = vld [vmem:[#allocation15 + $0xa8] sm:$0xff]
    %v749 = vld [vmem:[#allocation15 + $0xb0] sm:$0xff]
    %v750 = vld [vmem:[#allocation15 + $0xb8] sm:$0xff]
    %v751 = vld [vmem:[#allocation15 + $0xc0] sm:$0xff]
    %v752 = vld [vmem:[#allocation15 + $0xc8] sm:$0xff]
    %v753 = vld [vmem:[#allocation15 + $0xd0] sm:$0xff]
    %v754 = vld [vmem:[#allocation15 + $0xd8] sm:$0xff]
    %v755 = vld [vmem:[#allocation15 + $0xe0] sm:$0xff]
    %v756 = vld [vmem:[#allocation15 + $0xe8] sm:$0xff]
    %v757 = vld [vmem:[#allocation15 + $0xf0] sm:$0xff]
    %v758 = vld [vmem:[#allocation15 + $0xf8] sm:$0xff]
    %v759 = vld [vmem:[#allocation15 + $0x100] sm:$0xff]
    %v760 = vld [vmem:[#allocation15 + $0x108] sm:$0xff]
    %v761 = vld [vmem:[#allocation15 + $0x110] sm:$0xff]
    %v762 = vld [vmem:[#allocation15 + $0x118] sm:$0xff]
    %v763 = vld [vmem:[#allocation15 + $0x120] sm:$0xff]
    %v764 = vld [vmem:[#allocation15 + $0x128] sm:$0xff]
    %v765 = vld [vmem:[#allocation15 + $0x130] sm:$0xff]
    %v766 = vld [vmem:[#allocation15 + $0x138] sm:$0xff]
    %v767 = vld [vmem:[#allocation15 + $0x140] sm:$0xff]
    %v768 = vld [vmem:[#allocation15 + $0x148] sm:$0xff]
    %v769 = vld [vmem:[#allocation15 + $0x150] sm:$0xff]
    %v770 = vld [vmem:[#allocation15 + $0x158] sm:$0xff]
    %v771 = vld [vmem:[#allocation15 + $0x160] sm:$0xff]
    %v772 = vld [vmem:[#allocation15 + $0x168] sm:$0xff]
    %v773 = vld [vmem:[#allocation15 + $0x170] sm:$0xff]
    %v774 = vld [vmem:[#allocation15 + $0x178] sm:$0xff]
    %v775 = vld [vmem:[#allocation15 + $0x180] sm:$0xff]
    %v776 = vld [vmem:[#allocation15 + $0x188] sm:$0xff]
    %v777 = vld [vmem:[#allocation15 + $0x190] sm:$0xff]
    %v778 = vld [vmem:[#allocation15 + $0x198] sm:$0xff]
    %v779 = vld [vmem:[#allocation15 + $0x1a0] sm:$0xff]
    %v780 = vld [vmem:[#allocation15 + $0x1a8] sm:$0xff]
    %v781 = vld [vmem:[#allocation15 + $0x1b0] sm:$0xff]
    %v782 = vld [vmem:[#allocation15 + $0x1b8] sm:$0xff]
    %v783 = vld [vmem:[#allocation15 + $0x1c0] sm:$0xff]
    %v784 = vld [vmem:[#allocation15 + $0x1c8] sm:$0xff]
    %v785 = vld [vmem:[#allocation15 + $0x1d0] sm:$0xff]
    %v786 = vld [vmem:[#allocation15 + $0x1d8] sm:$0xff]
    %v787 = vld [vmem:[#allocation15 + $0x1e0] sm:$0xff]
    %v788 = vld [vmem:[#allocation15 + $0x1e8] sm:$0xff]
    %v789 = vld [vmem:[#allocation15 + $0x1f0] sm:$0xff]
    %v790 = vld [vmem:[#allocation15 + $0x1f8] sm:$0xff]
    %791 = vmatprep.subr.mxu0 %v728
    %792 = vmatpush1.msra.mxu0 %v727
    %793 = vmatprep.subr.mxu0 %v732
    %794 = vmatpush1.msra.mxu0 %v731
    %795 = vmatprep.subr.mxu0 %v736
    %796 = vmatpush1.msra.mxu0 %v735
    %797 = vmatprep.subr.mxu0 %v740
    %798 = vmatpush1.msra.mxu0 %v739
    %799 = vmatprep.subr.mxu0 %v744
    %800 = vmatpush1.msra.mxu0 %v743
    %801 = vmatprep.subr.mxu0 %v748
    %802 = vmatpush1.msra.mxu0 %v747
    %803 = vmatprep.subr.mxu0 %v752
    %804 = vmatpush1.msra.mxu0 %v751
    %805 = vmatprep.subr.mxu0 %v756
    %806 = vmatpush1.msra.mxu0 %v755
    %807 = vmatprep.subr.mxu0 %v760
    %808 = vmatpush1.msra.mxu0 %v759
    %809 = vmatprep.subr.mxu0 %v764
    %810 = vmatpush1.msra.mxu0 %v763
    %811 = vmatprep.subr.mxu0 %v768
    %812 = vmatpush1.msra.mxu0 %v767
    %813 = vmatprep.subr.mxu0 %v772
    %814 = vmatpush1.msra.mxu0 %v771
    %815 = vmatprep.subr.mxu0 %v776
    %816 = vmatpush1.msra.mxu0 %v775
    %817 = vmatprep.subr.mxu0 %v780
    %818 = vmatpush1.msra.mxu0 %v779
    %819 = vmatprep.subr.mxu0 %v784
    %820 = vmatpush1.msra.mxu0 %v783
    %821 = vmatprep.subr.mxu0 %v788
    %822 = vmatpush1.msra.mxu0 %v787
    %823 = vmatprep.subr.mxu0 0.0
    %824 = vmatpush1.msra.mxu0 0.0
    %825 = vmatprep.subr.mxu0 0.0
    %826 = vmatpush1.msra.mxu0 0.0
    %827 = vmatprep.subr.mxu0 0.0
    %828 = vmatpush1.msra.mxu0 0.0
    %829 = vmatprep.subr.mxu0 0.0
    %830 = vmatpush1.msra.mxu0 0.0
    %831 = vmatprep.subr.mxu0 0.0
    %832 = vmatpush1.msra.mxu0 0.0
    %833 = vmatprep.subr.mxu0 0.0
    %834 = vmatpush1.msra.mxu0 0.0
    %835 = vmatprep.subr.mxu0 0.0
    %836 = vmatpush1.msra.mxu0 0.0
    %837 = vmatprep.subr.mxu0 0.0
    %838 = vmatpush1.msra.mxu0 0.0
    %839 = vmatprep.subr.mxu0 0.0
    %840 = vmatpush1.msra.mxu0 0.0
    %841 = vmatprep.subr.mxu0 0.0
    %842 = vmatpush1.msra.mxu0 0.0
    %843 = vmatprep.subr.mxu0 0.0
    %844 = vmatpush1.msra.mxu0 0.0
    %845 = vmatprep.subr.mxu0 0.0
    %846 = vmatpush1.msra.mxu0 0.0
    %847 = vmatprep.subr.mxu0 0.0
    %848 = vmatpush1.msra.mxu0 0.0
    %849 = vmatprep.subr.mxu0 0.0
    %850 = vmatpush1.msra.mxu0 0.0
    %851 = vmatprep.subr.mxu0 0.0
    %852 = vmatpush1.msra.mxu0 0.0
    %853 = vmatprep.subr.mxu0 0.0
    %854 = vmatpush1.msra.mxu0 0.0
    %855 = vmatprep.mubr.f32.mxu0 0.0
    %856 = vmatmul.mubr.f32.gmra.mrb[0].mxu0 0.0
    %v857 = vpop.f32.mrb[0].mxu0
    %v858 = vadd.f32 0.0, %v857
    %v859 = vpop.f32.mrb[0].mxu0
    %v860 = vadd.f32 0.0, %v859
    %861 = vdwg.mxu0
    %862 = vmatprep.subr.mxu0 %v730
    %863 = vmatpush1.msra.mxu0 %v729
    %864 = vmatprep.subr.mxu0 %v734
    %865 = vmatpush1.msra.mxu0 %v733
    %866 = vmatprep.subr.mxu0 %v738
    %867 = vmatpush1.msra.mxu0 %v737
    %868 = vmatprep.subr.mxu0 %v742
    %869 = vmatpush1.msra.mxu0 %v741
    %870 = vmatprep.subr.mxu0 %v746
    %871 = vmatpush1.msra.mxu0 %v745
    %872 = vmatprep.subr.mxu0 %v750
    %873 = vmatpush1.msra.mxu0 %v749
    %874 = vmatprep.subr.mxu0 %v754
    %875 = vmatpush1.msra.mxu0 %v753
    %876 = vmatprep.subr.mxu0 %v758
    %877 = vmatpush1.msra.mxu0 %v757
    %878 = vmatprep.subr.mxu0 %v762
    %879 = vmatpush1.msra.mxu0 %v761
    %880 = vmatprep.subr.mxu0 %v766
    %881 = vmatpush1.msra.mxu0 %v765
    %882 = vmatprep.subr.mxu0 %v770
    %883 = vmatpush1.msra.mxu0 %v769
    %884 = vmatprep.subr.mxu0 %v774
    %885 = vmatpush1.msra.mxu0 %v773
    %886 = vmatprep.subr.mxu0 %v778
    %887 = vmatpush1.msra.mxu0 %v777
    %888 = vmatprep.subr.mxu0 %v782
    %889 = vmatpush1.msra.mxu0 %v781
    %890 = vmatprep.subr.mxu0 %v786
    %891 = vmatpush1.msra.mxu0 %v785
    %892 = vmatprep.subr.mxu0 %v790
    %893 = vmatpush1.msra.mxu0 %v789
    %894 = vmatprep.subr.mxu0 0.0
    %895 = vmatpush1.msra.mxu0 0.0
    %896 = vmatprep.subr.mxu0 0.0
    %897 = vmatpush1.msra.mxu0 0.0
    %898 = vmatprep.subr.mxu0 0.0
    %899 = vmatpush1.msra.mxu0 0.0
    %900 = vmatprep.subr.mxu0 0.0
    %901 = vmatpush1.msra.mxu0 0.0
    %902 = vmatprep.subr.mxu0 0.0
    %903 = vmatpush1.msra.mxu0 0.0
    %904 = vmatprep.subr.mxu0 0.0
    %905 = vmatpush1.msra.mxu0 0.0
    %906 = vmatprep.subr.mxu0 0.0
    %907 = vmatpush1.msra.mxu0 0.0
    %908 = vmatprep.subr.mxu0 0.0
    %909 = vmatpush1.msra.mxu0 0.0
    %910 = vmatprep.subr.mxu0 0.0
    %911 = vmatpush1.msra.mxu0 0.0
    %912 = vmatprep.subr.mxu0 0.0
    %913 = vmatpush1.msra.mxu0 0.0
    %914 = vmatprep.subr.mxu0 0.0
    %915 = vmatpush1.msra.mxu0 0.0
    %916 = vmatprep.subr.mxu0 0.0
    %917 = vmatpush1.msra.mxu0 0.0
    %918 = vmatprep.subr.mxu0 0.0
    %919 = vmatpush1.msra.mxu0 0.0
    %920 = vmatprep.subr.mxu0 0.0
    %921 = vmatpush1.msra.mxu0 0.0
    %922 = vmatprep.subr.mxu0 0.0
    %923 = vmatpush1.msra.mxu0 0.0
    %924 = vmatprep.subr.mxu0 0.0
    %925 = vmatpush1.msra.mxu0 0.0
    %926 = vmatprep.mubr.f32.mxu0 0.0
    %927 = vmatmul.mubr.f32.gmra.mrb[0].mxu0 0.0
    %v928 = vpop.f32.mrb[0].mxu0
    %v929 = vadd.f32 0.0, %v928
    %v930 = vpop.f32.mrb[0].mxu0
    %v931 = vadd.f32 0.0, %v930
    %932 = vdwg.mxu0
    %v937 = vcombine.low %v858, %v860
    %v938 = vcombine.low %v929, %v931
    %v940 = vunpack.c.l.s4 1983009808
    %v941 = vunpack.c.0.s8 %v940
    %v942 = vlaneseq
    %v943 = vshrl.u32 %v942, 7
    %v944 = vsub.s32 %v941, %v943
    %v945 = vrot.slane %v937, %v944
    %v947 = vunpack.c.l.s4 1983009808
    %v948 = vunpack.c.0.s8 %v947
    %v949 = vlaneseq
    %v950 = vshrl.u32 %v949, 7
    %v951 = vsub.s32 %v948, %v950
    %v952 = vrot.slane %v938, %v951
    %v953 = vcombine.low %v945, %v952
    %v955 = vadd.f32 %v726, %v953
    %v956 = vxor.u32 %v955, 2147483648
    %v957 = vmul.f32 %v956, 1.442695
    %v958 = vpow.pop %v957
    %v959 = vadd.f32 %v958, 1.0
    %v960 = vrcp.pop %v959
    %v961 = vmul.f32 1.0, %v960
    %v962 = vtanh.pop %v955
    %v964 = vrot.slane %v961, 2
    %v966 = vmul.f32 %v964, 0.0
    %v968 = vrot.slane %v962, 4
    %v970 = vmul.f32 %v961, %v968
    %v971 = vadd.f32 %v966, %v970
    %v972 = vtanh.pop %v971
    %v973 = vrot.slane %v961, 6
    %v975 = vmul.f32 %v973, %v972
    %976 = vst [vmem:[#allocation4] sm:$0x3] %v975
    %v977 = vld [vmem:[%s357] sm:$0xff]
    %v978 = vld [vmem:[#allocation15] sm:$0xff]
    %v979 = vld [vmem:[#allocation15 + $0x8] sm:$0xff]
    %v980 = vld [vmem:[#allocation15 + $0x10] sm:$0xff]
    %v981 = vld [vmem:[#allocation15 + $0x18] sm:$0xff]
    %v982 = vld [vmem:[#allocation15 + $0x20] sm:$0xff]
    %v983 = vld [vmem:[#allocation15 + $0x28] sm:$0xff]
    %v984 = vld [vmem:[#allocation15 + $0x30] sm:$0xff]
    %v985 = vld [vmem:[#allocation15 + $0x38] sm:$0xff]
    %v986 = vld [vmem:[#allocation15 + $0x40] sm:$0xff]
    %v987 = vld [vmem:[#allocation15 + $0x48] sm:$0xff]
    %v988 = vld [vmem:[#allocation15 + $0x50] sm:$0xff]
    %v989 = vld [vmem:[#allocation15 + $0x58] sm:$0xff]
    %v990 = vld [vmem:[#allocation15 + $0x60] sm:$0xff]
    %v991 = vld [vmem:[#allocation15 + $0x68] sm:$0xff]
    %v992 = vld [vmem:[#allocation15 + $0x70] sm:$0xff]
    %v993 = vld [vmem:[#allocation15 + $0x78] sm:$0xff]
    %v994 = vld [vmem:[#allocation15 + $0x80] sm:$0xff]
    %v995 = vld [vmem:[#allocation15 + $0x88] sm:$0xff]
    %v996 = vld [vmem:[#allocation15 + $0x90] sm:$0xff]
    %v997 = vld [vmem:[#allocation15 + $0x98] sm:$0xff]
    %v998 = vld [vmem:[#allocation15 + $0xa0] sm:$0xff]
    %v999 = vld [vmem:[#allocation15 + $0xa8] sm:$0xff]
    %v1000 = vld [vmem:[#allocation15 + $0xb0] sm:$0xff]
    %v1001 = vld [vmem:[#allocation15 + $0xb8] sm:$0xff]
    %v1002 = vld [vmem:[#allocation15 + $0xc0] sm:$0xff]
    %v1003 = vld [vmem:[#allocation15 + $0xc8] sm:$0xff]
    %v1004 = vld [vmem:[#allocation15 + $0xd0] sm:$0xff]
    %v1005 = vld [vmem:[#allocation15 + $0xd8] sm:$0xff]
    %v1006 = vld [vmem:[#allocation15 + $0xe0] sm:$0xff]
    %v1007 = vld [vmem:[#allocation15 + $0xe8] sm:$0xff]
    %v1008 = vld [vmem:[#allocation15 + $0xf0] sm:$0xff]
    %v1009 = vld [vmem:[#allocation15 + $0xf8] sm:$0xff]
    %v1010 = vld [vmem:[#allocation15 + $0x100] sm:$0xff]
    %v1011 = vld [vmem:[#allocation15 + $0x108] sm:$0xff]
    %v1012 = vld [vmem:[#allocation15 + $0x110] sm:$0xff]
    %v1013 = vld [vmem:[#allocation15 + $0x118] sm:$0xff]
    %v1014 = vld [vmem:[#allocation15 + $0x120] sm:$0xff]
    %v1015 = vld [vmem:[#allocation15 + $0x128] sm:$0xff]
    %v1016 = vld [vmem:[#allocation15 + $0x130] sm:$0xff]
    %v1017 = vld [vmem:[#allocation15 + $0x138] sm:$0xff]
    %v1018 = vld [vmem:[#allocation15 + $0x140] sm:$0xff]
    %v1019 = vld [vmem:[#allocation15 + $0x148] sm:$0xff]
    %v1020 = vld [vmem:[#allocation15 + $0x150] sm:$0xff]
    %v1021 = vld [vmem:[#allocation15 + $0x158] sm:$0xff]
    %v1022 = vld [vmem:[#allocation15 + $0x160] sm:$0xff]
    %v1023 = vld [vmem:[#allocation15 + $0x168] sm:$0xff]
    %v1024 = vld [vmem:[#allocation15 + $0x170] sm:$0xff]
    %v1025 = vld [vmem:[#allocation15 + $0x178] sm:$0xff]
    %v1026 = vld [vmem:[#allocation15 + $0x180] sm:$0xff]
    %v1027 = vld [vmem:[#allocation15 + $0x188] sm:$0xff]
    %v1028 = vld [vmem:[#allocation15 + $0x190] sm:$0xff]
    %v1029 = vld [vmem:[#allocation15 + $0x198] sm:$0xff]
    %v1030 = vld [vmem:[#allocation15 + $0x1a0] sm:$0xff]
    %v1031 = vld [vmem:[#allocation15 + $0x1a8] sm:$0xff]
    %v1032 = vld [vmem:[#allocation15 + $0x1b0] sm:$0xff]
    %v1033 = vld [vmem:[#allocation15 + $0x1b8] sm:$0xff]
    %v1034 = vld [vmem:[#allocation15 + $0x1c0] sm:$0xff]
    %v1035 = vld [vmem:[#allocation15 + $0x1c8] sm:$0xff]
    %v1036 = vld [vmem:[#allocation15 + $0x1d0] sm:$0xff]
    %v1037 = vld [vmem:[#allocation15 + $0x1d8] sm:$0xff]
    %v1038 = vld [vmem:[#allocation15 + $0x1e0] sm:$0xff]
    %v1039 = vld [vmem:[#allocation15 + $0x1e8] sm:$0xff]
    %v1040 = vld [vmem:[#allocation15 + $0x1f0] sm:$0xff]
    %v1041 = vld [vmem:[#allocation15 + $0x1f8] sm:$0xff]
    %1042 = vmatprep.subr.mxu0 %v979
    %1043 = vmatpush1.msra.mxu0 %v978
    %1044 = vmatprep.subr.mxu0 %v983
    %1045 = vmatpush1.msra.mxu0 %v982
    %1046 = vmatprep.subr.mxu0 %v987
    %1047 = vmatpush1.msra.mxu0 %v986
    %1048 = vmatprep.subr.mxu0 %v991
    %1049 = vmatpush1.msra.mxu0 %v990
    %1050 = vmatprep.subr.mxu0 %v995
    %1051 = vmatpush1.msra.mxu0 %v994
    %1052 = vmatprep.subr.mxu0 %v999
    %1053 = vmatpush1.msra.mxu0 %v998
    %1054 = vmatprep.subr.mxu0 %v1003
    %1055 = vmatpush1.msra.mxu0 %v1002
    %1056 = vmatprep.subr.mxu0 %v1007
    %1057 = vmatpush1.msra.mxu0 %v1006
    %1058 = vmatprep.subr.mxu0 %v1011
    %1059 = vmatpush1.msra.mxu0 %v1010
    %1060 = vmatprep.subr.mxu0 %v1015
    %1061 = vmatpush1.msra.mxu0 %v1014
    %1062 = vmatprep.subr.mxu0 %v1019
    %1063 = vmatpush1.msra.mxu0 %v1018
    %1064 = vmatprep.subr.mxu0 %v1023
    %1065 = vmatpush1.msra.mxu0 %v1022
    %1066 = vmatprep.subr.mxu0 %v1027
    %1067 = vmatpush1.msra.mxu0 %v1026
    %1068 = vmatprep.subr.mxu0 %v1031
    %1069 = vmatpush1.msra.mxu0 %v1030
    %1070 = vmatprep.subr.mxu0 %v1035
    %1071 = vmatpush1.msra.mxu0 %v1034
    %1072 = vmatprep.subr.mxu0 %v1039
    %1073 = vmatpush1.msra.mxu0 %v1038
    %1074 = vmatprep.subr.mxu0 0.0
    %1075 = vmatpush1.msra.mxu0 0.0
    %1076 = vmatprep.subr.mxu0 0.0
    %1077 = vmatpush1.msra.mxu0 0.0
    %1078 = vmatprep.subr.mxu0 0.0
    %1079 = vmatpush1.msra.mxu0 0.0
    %1080 = vmatprep.subr.mxu0 0.0
    %1081 = vmatpush1.msra.mxu0 0.0
    %1082 = vmatprep.subr.mxu0 0.0
    %1083 = vmatpush1.msra.mxu0 0.0
    %1084 = vmatprep.subr.mxu0 0.0
    %1085 = vmatpush1.msra.mxu0 0.0
    %1086 = vmatprep.subr.mxu0 0.0
    %1087 = vmatpush1.msra.mxu0 0.0
    %1088 = vmatprep.subr.mxu0 0.0
    %1089 = vmatpush1.msra.mxu0 0.0
    %1090 = vmatprep.subr.mxu0 0.0
    %1091 = vmatpush1.msra.mxu0 0.0
    %1092 = vmatprep.subr.mxu0 0.0
    %1093 = vmatpush1.msra.mxu0 0.0
    %1094 = vmatprep.subr.mxu0 0.0
    %1095 = vmatpush1.msra.mxu0 0.0
    %1096 = vmatprep.subr.mxu0 0.0
    %1097 = vmatpush1.msra.mxu0 0.0
    %1098 = vmatprep.subr.mxu0 0.0
    %1099 = vmatpush1.msra.mxu0 0.0
    %1100 = vmatprep.subr.mxu0 0.0
    %1101 = vmatpush1.msra.mxu0 0.0
    %1102 = vmatprep.subr.mxu0 0.0
    %1103 = vmatpush1.msra.mxu0 0.0
    %1104 = vmatprep.subr.mxu0 0.0
    %1105 = vmatpush1.msra.mxu0 0.0
    %1106 = vmatprep.mubr.f32.mxu0 0.0
    %1107 = vmatmul.mubr.f32.gmra.mrb[0].mxu0 %v975
    %v1108 = vpop.f32.mrb[0].mxu0
    %v1109 = vadd.f32 0.0, %v1108
    %v1110 = vpop.f32.mrb[0].mxu0
    %v1111 = vadd.f32 0.0, %v1110
    %1112 = vdwg.mxu0
    %1113 = vmatprep.subr.mxu0 %v981
    %1114 = vmatpush1.msra.mxu0 %v980
    %1115 = vmatprep.subr.mxu0 %v985
    %1116 = vmatpush1.msra.mxu0 %v984
    %1117 = vmatprep.subr.mxu0 %v989
    %1118 = vmatpush1.msra.mxu0 %v988
    %1119 = vmatprep.subr.mxu0 %v993
    %1120 = vmatpush1.msra.mxu0 %v992
    %1121 = vmatprep.subr.mxu0 %v997
    %1122 = vmatpush1.msra.mxu0 %v996
    %1123 = vmatprep.subr.mxu0 %v1001
    %1124 = vmatpush1.msra.mxu0 %v1000
    %1125 = vmatprep.subr.mxu0 %v1005
    %1126 = vmatpush1.msra.mxu0 %v1004
    %1127 = vmatprep.subr.mxu0 %v1009
    %1128 = vmatpush1.msra.mxu0 %v1008
    %1129 = vmatprep.subr.mxu0 %v1013
    %1130 = vmatpush1.msra.mxu0 %v1012
    %1131 = vmatprep.subr.mxu0 %v1017
    %1132 = vmatpush1.msra.mxu0 %v1016
    %1133 = vmatprep.subr.mxu0 %v1021
    %1134 = vmatpush1.msra.mxu0 %v1020
    %1135 = vmatprep.subr.mxu0 %v1025
    %1136 = vmatpush1.msra.mxu0 %v1024
    %1137 = vmatprep.subr.mxu0 %v1029
    %1138 = vmatpush1.msra.mxu0 %v1028
    %1139 = vmatprep.subr.mxu0 %v1033
    %1140 = vmatpush1.msra.mxu0 %v1032
    %1141 = vmatprep.subr.mxu0 %v1037
    %1142 = vmatpush1.msra.mxu0 %v1036
    %1143 = vmatprep.subr.mxu0 %v1041
    %1144 = vmatpush1.msra.mxu0 %v1040
    %1145 = vmatprep.subr.mxu0 0.0
    %1146 = vmatpush1.msra.mxu0 0.0
    %1147 = vmatprep.subr.mxu0 0.0
    %1148 = vmatpush1.msra.mxu0 0.0
    %1149 = vmatprep.subr.mxu0 0.0
    %1150 = vmatpush1.msra.mxu0 0.0
    %1151 = vmatprep.subr.mxu0 0.0
    %1152 = vmatpush1.msra.mxu0 0.0
    %1153 = vmatprep.subr.mxu0 0.0
    %1154 = vmatpush1.msra.mxu0 0.0
    %1155 = vmatprep.subr.mxu0 0.0
    %1156 = vmatpush1.msra.mxu0 0.0
    %1157 = vmatprep.subr.mxu0 0.0
    %1158 = vmatpush1.msra.mxu0 0.0
    %1159 = vmatprep.subr.mxu0 0.0
    %1160 = vmatpush1.msra.mxu0 0.0
    %1161 = vmatprep.subr.mxu0 0.0
    %1162 = vmatpush1.msra.mxu0 0.0
    %1163 = vmatprep.subr.mxu0 0.0
    %1164 = vmatpush1.msra.mxu0 0.0
    %1165 = vmatprep.subr.mxu0 0.0
    %1166 = vmatpush1.msra.mxu0 0.0
    %1167 = vmatprep.subr.mxu0 0.0
    %1168 = vmatpush1.msra.mxu0 0.0
    %1169 = vmatprep.subr.mxu0 0.0
    %1170 = vmatpush1.msra.mxu0 0.0
    %1171 = vmatprep.subr.mxu0 0.0
    %1172 = vmatpush1.msra.mxu0 0.0
    %1173 = vmatprep.subr.mxu0 0.0
    %1174 = vmatpush1.msra.mxu0 0.0
    %1175 = vmatprep.subr.mxu0 0.0
    %1176 = vmatpush1.msra.mxu0 0.0
    %1177 = vmatprep.mubr.f32.mxu0 0.0
    %1178 = vmatmul.mubr.f32.gmra.mrb[0].mxu0 %v975
    %v1179 = vpop.f32.mrb[0].mxu0
    %v1180 = vadd.f32 0.0, %v1179
    %v1181 = vpop.f32.mrb[0].mxu0
    %v1182 = vadd.f32 0.0, %v1181
    %1183 = vdwg.mxu0
    %v1188 = vcombine.low %v1109, %v1111
    %v1189 = vcombine.low %v1180, %v1182
    %v1191 = vunpack.c.l.s4 1983009808
    %v1192 = vunpack.c.0.s8 %v1191
    %v1193 = vlaneseq
    %v1194 = vshrl.u32 %v1193, 7
    %v1195 = vsub.s32 %v1192, %v1194
    %v1196 = vrot.slane %v1188, %v1195
    %v1198 = vunpack.c.l.s4 1983009808
    %v1199 = vunpack.c.0.s8 %v1198
    %v1200 = vlaneseq
    %v1201 = vshrl.u32 %v1200, 7
    %v1202 = vsub.s32 %v1199, %v1201
    %v1203 = vrot.slane %v1189, %v1202
    %v1204 = vcombine.low %v1196, %v1203
    %v1206 = vadd.f32 %v977, %v1204
    %v1207 = vxor.u32 %v1206, 2147483648
    %v1208 = vmul.f32 %v1207, 1.442695
    %v1209 = vpow.pop %v1208
    %v1210 = vadd.f32 %v1209, 1.0
    %v1211 = vrcp.pop %v1210
    %v1212 = vmul.f32 1.0, %v1211
    %v1213 = vtanh.pop %v1206
    %v1215 = vrot.slane %v1212, 2
    %v1217 = vmul.f32 %v1215, %v971
    %v1219 = vrot.slane %v1213, 4
    %v1221 = vmul.f32 %v1212, %v1219
    %v1222 = vadd.f32 %v1217, %v1221
    %v1223 = vtanh.pop %v1222
    %v1224 = vrot.slane %v1212, 6
    %v1226 = vmul.f32 %v1224, %v1223
    %s1227 = scalar_lea.vmem [#allocation4], 2
    %1228 = vst [vmem:[%s1227] sm:$0x3] %v1226
    %v1229 = vld [vmem:[%s377] sm:$0xff]
    %v1230 = vld [vmem:[#allocation15] sm:$0xff]
    %v1231 = vld [vmem:[#allocation15 + $0x8] sm:$0xff]
    %v1232 = vld [vmem:[#allocation15 + $0x10] sm:$0xff]
    %v1233 = vld [vmem:[#allocation15 + $0x18] sm:$0xff]
    %v1234 = vld [vmem:[#allocation15 + $0x20] sm:$0xff]
    %v1235 = vld [vmem:[#allocation15 + $0x28] sm:$0xff]
    %v1236 = vld [vmem:[#allocation15 + $0x30] sm:$0xff]
    %v1237 = vld [vmem:[#allocation15 + $0x38] sm:$0xff]
    %v1238 = vld [vmem:[#allocation15 + $0x40] sm:$0xff]
    %v1239 = vld [vmem:[#allocation15 + $0x48] sm:$0xff]
    %v1240 = vld [vmem:[#allocation15 + $0x50] sm:$0xff]
    %v1241 = vld [vmem:[#allocation15 + $0x58] sm:$0xff]
    %v1242 = vld [vmem:[#allocation15 + $0x60] sm:$0xff]
    %v1243 = vld [vmem:[#allocation15 + $0x68] sm:$0xff]
    %v1244 = vld [vmem:[#allocation15 + $0x70] sm:$0xff]
    %v1245 = vld [vmem:[#allocation15 + $0x78] sm:$0xff]
    %v1246 = vld [vmem:[#allocation15 + $0x80] sm:$0xff]
    %v1247 = vld [vmem:[#allocation15 + $0x88] sm:$0xff]
    %v1248 = vld [vmem:[#allocation15 + $0x90] sm:$0xff]
    %v1249 = vld [vmem:[#allocation15 + $0x98] sm:$0xff]
    %v1250 = vld [vmem:[#allocation15 + $0xa0] sm:$0xff]
    %v1251 = vld [vmem:[#allocation15 + $0xa8] sm:$0xff]
    %v1252 = vld [vmem:[#allocation15 + $0xb0] sm:$0xff]
    %v1253 = vld [vmem:[#allocation15 + $0xb8] sm:$0xff]
    %v1254 = vld [vmem:[#allocation15 + $0xc0] sm:$0xff]
    %v1255 = vld [vmem:[#allocation15 + $0xc8] sm:$0xff]
    %v1256 = vld [vmem:[#allocation15 + $0xd0] sm:$0xff]
    %v1257 = vld [vmem:[#allocation15 + $0xd8] sm:$0xff]
    %v1258 = vld [vmem:[#allocation15 + $0xe0] sm:$0xff]
    %v1259 = vld [vmem:[#allocation15 + $0xe8] sm:$0xff]
    %v1260 = vld [vmem:[#allocation15 + $0xf0] sm:$0xff]
    %v1261 = vld [vmem:[#allocation15 + $0xf8] sm:$0xff]
    %v1262 = vld [vmem:[#allocation15 + $0x100] sm:$0xff]
    %v1263 = vld [vmem:[#allocation15 + $0x108] sm:$0xff]
    %v1264 = vld [vmem:[#allocation15 + $0x110] sm:$0xff]
    %v1265 = vld [vmem:[#allocation15 + $0x118] sm:$0xff]
    %v1266 = vld [vmem:[#allocation15 + $0x120] sm:$0xff]
    %v1267 = vld [vmem:[#allocation15 + $0x128] sm:$0xff]
    %v1268 = vld [vmem:[#allocation15 + $0x130] sm:$0xff]
    %v1269 = vld [vmem:[#allocation15 + $0x138] sm:$0xff]
    %v1270 = vld [vmem:[#allocation15 + $0x140] sm:$0xff]
    %v1271 = vld [vmem:[#allocation15 + $0x148] sm:$0xff]
    %v1272 = vld [vmem:[#allocation15 + $0x150] sm:$0xff]
    %v1273 = vld [vmem:[#allocation15 + $0x158] sm:$0xff]
    %v1274 = vld [vmem:[#allocation15 + $0x160] sm:$0xff]
    %v1275 = vld [vmem:[#allocation15 + $0x168] sm:$0xff]
    %v1276 = vld [vmem:[#allocation15 + $0x170] sm:$0xff]
    %v1277 = vld [vmem:[#allocation15 + $0x178] sm:$0xff]
    %v1278 = vld [vmem:[#allocation15 + $0x180] sm:$0xff]
    %v1279 = vld [vmem:[#allocation15 + $0x188] sm:$0xff]
    %v1280 = vld [vmem:[#allocation15 + $0x190] sm:$0xff]
    %v1281 = vld [vmem:[#allocation15 + $0x198] sm:$0xff]
    %v1282 = vld [vmem:[#allocation15 + $0x1a0] sm:$0xff]
    %v1283 = vld [vmem:[#allocation15 + $0x1a8] sm:$0xff]
    %v1284 = vld [vmem:[#allocation15 + $0x1b0] sm:$0xff]
    %v1285 = vld [vmem:[#allocation15 + $0x1b8] sm:$0xff]
    %v1286 = vld [vmem:[#allocation15 + $0x1c0] sm:$0xff]
    %v1287 = vld [vmem:[#allocation15 + $0x1c8] sm:$0xff]
    %v1288 = vld [vmem:[#allocation15 + $0x1d0] sm:$0xff]
    %v1289 = vld [vmem:[#allocation15 + $0x1d8] sm:$0xff]
    %v1290 = vld [vmem:[#allocation15 + $0x1e0] sm:$0xff]
    %v1291 = vld [vmem:[#allocation15 + $0x1e8] sm:$0xff]
    %v1292 = vld [vmem:[#allocation15 + $0x1f0] sm:$0xff]
    %v1293 = vld [vmem:[#allocation15 + $0x1f8] sm:$0xff]
    %1294 = vmatprep.subr.mxu0 %v1231
    %1295 = vmatpush1.msra.mxu0 %v1230
    %1296 = vmatprep.subr.mxu0 %v1235
    %1297 = vmatpush1.msra.mxu0 %v1234
    %1298 = vmatprep.subr.mxu0 %v1239
    %1299 = vmatpush1.msra.mxu0 %v1238
    %1300 = vmatprep.subr.mxu0 %v1243
    %1301 = vmatpush1.msra.mxu0 %v1242
    %1302 = vmatprep.subr.mxu0 %v1247
    %1303 = vmatpush1.msra.mxu0 %v1246
    %1304 = vmatprep.subr.mxu0 %v1251
    %1305 = vmatpush1.msra.mxu0 %v1250
    %1306 = vmatprep.subr.mxu0 %v1255
    %1307 = vmatpush1.msra.mxu0 %v1254
    %1308 = vmatprep.subr.mxu0 %v1259
    %1309 = vmatpush1.msra.mxu0 %v1258
    %1310 = vmatprep.subr.mxu0 %v1263
    %1311 = vmatpush1.msra.mxu0 %v1262
    %1312 = vmatprep.subr.mxu0 %v1267
    %1313 = vmatpush1.msra.mxu0 %v1266
    %1314 = vmatprep.subr.mxu0 %v1271
    %1315 = vmatpush1.msra.mxu0 %v1270
    %1316 = vmatprep.subr.mxu0 %v1275
    %1317 = vmatpush1.msra.mxu0 %v1274
    %1318 = vmatprep.subr.mxu0 %v1279
    %1319 = vmatpush1.msra.mxu0 %v1278
    %1320 = vmatprep.subr.mxu0 %v1283
    %1321 = vmatpush1.msra.mxu0 %v1282
    %1322 = vmatprep.subr.mxu0 %v1287
    %1323 = vmatpush1.msra.mxu0 %v1286
    %1324 = vmatprep.subr.mxu0 %v1291
    %1325 = vmatpush1.msra.mxu0 %v1290
    %1326 = vmatprep.subr.mxu0 0.0
    %1327 = vmatpush1.msra.mxu0 0.0
    %1328 = vmatprep.subr.mxu0 0.0
    %1329 = vmatpush1.msra.mxu0 0.0
    %1330 = vmatprep.subr.mxu0 0.0
    %1331 = vmatpush1.msra.mxu0 0.0
    %1332 = vmatprep.subr.mxu0 0.0
    %1333 = vmatpush1.msra.mxu0 0.0
    %1334 = vmatprep.subr.mxu0 0.0
    %1335 = vmatpush1.msra.mxu0 0.0
    %1336 = vmatprep.subr.mxu0 0.0
    %1337 = vmatpush1.msra.mxu0 0.0
    %1338 = vmatprep.subr.mxu0 0.0
    %1339 = vmatpush1.msra.mxu0 0.0
    %1340 = vmatprep.subr.mxu0 0.0
    %1341 = vmatpush1.msra.mxu0 0.0
    %1342 = vmatprep.subr.mxu0 0.0
    %1343 = vmatpush1.msra.mxu0 0.0
    %1344 = vmatprep.subr.mxu0 0.0
    %1345 = vmatpush1.msra.mxu0 0.0
    %1346 = vmatprep.subr.mxu0 0.0
    %1347 = vmatpush1.msra.mxu0 0.0
    %1348 = vmatprep.subr.mxu0 0.0
    %1349 = vmatpush1.msra.mxu0 0.0
    %1350 = vmatprep.subr.mxu0 0.0
    %1351 = vmatpush1.msra.mxu0 0.0
    %1352 = vmatprep.subr.mxu0 0.0
    %1353 = vmatpush1.msra.mxu0 0.0
    %1354 = vmatprep.subr.mxu0 0.0
    %1355 = vmatpush1.msra.mxu0 0.0
    %1356 = vmatprep.subr.mxu0 0.0
    %1357 = vmatpush1.msra.mxu0 0.0
    %1358 = vmatprep.mubr.f32.mxu0 0.0
    %1359 = vmatmul.mubr.f32.gmra.mrb[0].mxu0 %v1226
    %v1360 = vpop.f32.mrb[0].mxu0
    %v1361 = vadd.f32 0.0, %v1360
    %v1362 = vpop.f32.mrb[0].mxu0
    %v1363 = vadd.f32 0.0, %v1362
    %1364 = vdwg.mxu0
    %1365 = vmatprep.subr.mxu0 %v1233
    %1366 = vmatpush1.msra.mxu0 %v1232
    %1367 = vmatprep.subr.mxu0 %v1237
    %1368 = vmatpush1.msra.mxu0 %v1236
    %1369 = vmatprep.subr.mxu0 %v1241
    %1370 = vmatpush1.msra.mxu0 %v1240
    %1371 = vmatprep.subr.mxu0 %v1245
    %1372 = vmatpush1.msra.mxu0 %v1244
    %1373 = vmatprep.subr.mxu0 %v1249
    %1374 = vmatpush1.msra.mxu0 %v1248
    %1375 = vmatprep.subr.mxu0 %v1253
    %1376 = vmatpush1.msra.mxu0 %v1252
    %1377 = vmatprep.subr.mxu0 %v1257
    %1378 = vmatpush1.msra.mxu0 %v1256
    %1379 = vmatprep.subr.mxu0 %v1261
    %1380 = vmatpush1.msra.mxu0 %v1260
    %1381 = vmatprep.subr.mxu0 %v1265
    %1382 = vmatpush1.msra.mxu0 %v1264
    %1383 = vmatprep.subr.mxu0 %v1269
    %1384 = vmatpush1.msra.mxu0 %v1268
    %1385 = vmatprep.subr.mxu0 %v1273
    %1386 = vmatpush1.msra.mxu0 %v1272
    %1387 = vmatprep.subr.mxu0 %v1277
    %1388 = vmatpush1.msra.mxu0 %v1276
    %1389 = vmatprep.subr.mxu0 %v1281
    %1390 = vmatpush1.msra.mxu0 %v1280
    %1391 = vmatprep.subr.mxu0 %v1285
    %1392 = vmatpush1.msra.mxu0 %v1284
    %1393 = vmatprep.subr.mxu0 %v1289
    %1394 = vmatpush1.msra.mxu0 %v1288
    %1395 = vmatprep.subr.mxu0 %v1293
    %1396 = vmatpush1.msra.mxu0 %v1292
    %1397 = vmatprep.subr.mxu0 0.0
    %1398 = vmatpush1.msra.mxu0 0.0
    %1399 = vmatprep.subr.mxu0 0.0
    %1400 = vmatpush1.msra.mxu0 0.0
    %1401 = vmatprep.subr.mxu0 0.0
    %1402 = vmatpush1.msra.mxu0 0.0
    %1403 = vmatprep.subr.mxu0 0.0
    %1404 = vmatpush1.msra.mxu0 0.0
    %1405 = vmatprep.subr.mxu0 0.0
    %1406 = vmatpush1.msra.mxu0 0.0
    %1407 = vmatprep.subr.mxu0 0.0
    %1408 = vmatpush1.msra.mxu0 0.0
    %1409 = vmatprep.subr.mxu0 0.0
    %1410 = vmatpush1.msra.mxu0 0.0
    %1411 = vmatprep.subr.mxu0 0.0
    %1412 = vmatpush1.msra.mxu0 0.0
    %1413 = vmatprep.subr.mxu0 0.0
    %1414 = vmatpush1.msra.mxu0 0.0
    %1415 = vmatprep.subr.mxu0 0.0
    %1416 = vmatpush1.msra.mxu0 0.0
    %1417 = vmatprep.subr.mxu0 0.0
    %1418 = vmatpush1.msra.mxu0 0.0
    %1419 = vmatprep.subr.mxu0 0.0
    %1420 = vmatpush1.msra.mxu0 0.0
    %1421 = vmatprep.subr.mxu0 0.0
    %1422 = vmatpush1.msra.mxu0 0.0
    %1423 = vmatprep.subr.mxu0 0.0
    %1424 = vmatpush1.msra.mxu0 0.0
    %1425 = vmatprep.subr.mxu0 0.0
    %1426 = vmatpush1.msra.mxu0 0.0
    %1427 = vmatprep.subr.mxu0 0.0
    %1428 = vmatpush1.msra.mxu0 0.0
    %1429 = vmatprep.mubr.f32.mxu0 0.0
    %1430 = vmatmul.mubr.f32.gmra.mrb[0].mxu0 %v1226
    %v1431 = vpop.f32.mrb[0].mxu0
    %v1432 = vadd.f32 0.0, %v1431
    %v1433 = vpop.f32.mrb[0].mxu0
    %v1434 = vadd.f32 0.0, %v1433
    %1435 = vdwg.mxu0
    %v1440 = vcombine.low %v1361, %v1363
    %v1441 = vcombine.low %v1432, %v1434
    %v1443 = vunpack.c.l.s4 1983009808
    %v1444 = vunpack.c.0.s8 %v1443
    %v1445 = vlaneseq
    %v1446 = vshrl.u32 %v1445, 7
    %v1447 = vsub.s32 %v1444, %v1446
    %v1448 = vrot.slane %v1440, %v1447
    %v1450 = vunpack.c.l.s4 1983009808
    %v1451 = vunpack.c.0.s8 %v1450
    %v1452 = vlaneseq
    %v1453 = vshrl.u32 %v1452, 7
    %v1454 = vsub.s32 %v1451, %v1453
    %v1455 = vrot.slane %v1441, %v1454
    %v1456 = vcombine.low %v1448, %v1455
    %v1458 = vadd.f32 %v1229, %v1456
    %v1459 = vxor.u32 %v1458, 2147483648
    %v1460 = vmul.f32 %v1459, 1.442695
    %v1461 = vpow.pop %v1460
    %v1462 = vadd.f32 %v1461, 1.0
    %v1463 = vrcp.pop %v1462
    %v1464 = vmul.f32 1.0, %v1463
    %v1465 = vtanh.pop %v1458
    %v1467 = vrot.slane %v1464, 2
    %v1469 = vmul.f32 %v1467, %v1222
    %v1471 = vrot.slane %v1465, 4
    %v1473 = vmul.f32 %v1464, %v1471
    %v1474 = vadd.f32 %v1469, %v1473
    %v1475 = vtanh.pop %v1474
    %v1476 = vrot.slane %v1464, 6
    %v1478 = vmul.f32 %v1476, %v1475
    %s1479 = scalar_lea.vmem [#allocation4], 4
    %1480 = vst [vmem:[%s1479] sm:$0x3] %v1478
    %v1481 = vld [vmem:[%s381] sm:$0xff]
    %v1482 = vld [vmem:[#allocation15] sm:$0xff]
    %v1483 = vld [vmem:[#allocation15 + $0x8] sm:$0xff]
    %v1484 = vld [vmem:[#allocation15 + $0x10] sm:$0xff]
    %v1485 = vld [vmem:[#allocation15 + $0x18] sm:$0xff]
    %v1486 = vld [vmem:[#allocation15 + $0x20] sm:$0xff]
    %v1487 = vld [vmem:[#allocation15 + $0x28] sm:$0xff]
    %v1488 = vld [vmem:[#allocation15 + $0x30] sm:$0xff]
    %v1489 = vld [vmem:[#allocation15 + $0x38] sm:$0xff]
    %v1490 = vld [vmem:[#allocation15 + $0x40] sm:$0xff]
    %v1491 = vld [vmem:[#allocation15 + $0x48] sm:$0xff]
    %v1492 = vld [vmem:[#allocation15 + $0x50] sm:$0xff]
    %v1493 = vld [vmem:[#allocation15 + $0x58] sm:$0xff]
    %v1494 = vld [vmem:[#allocation15 + $0x60] sm:$0xff]
    %v1495 = vld [vmem:[#allocation15 + $0x68] sm:$0xff]
    %v1496 = vld [vmem:[#allocation15 + $0x70] sm:$0xff]
    %v1497 = vld [vmem:[#allocation15 + $0x78] sm:$0xff]
    %v1498 = vld [vmem:[#allocation15 + $0x80] sm:$0xff]
    %v1499 = vld [vmem:[#allocation15 + $0x88] sm:$0xff]
    %v1500 = vld [vmem:[#allocation15 + $0x90] sm:$0xff]
    %v1501 = vld [vmem:[#allocation15 + $0x98] sm:$0xff]
    %v1502 = vld [vmem:[#allocation15 + $0xa0] sm:$0xff]
    %v1503 = vld [vmem:[#allocation15 + $0xa8] sm:$0xff]
    %v1504 = vld [vmem:[#allocation15 + $0xb0] sm:$0xff]
    %v1505 = vld [vmem:[#allocation15 + $0xb8] sm:$0xff]
    %v1506 = vld [vmem:[#allocation15 + $0xc0] sm:$0xff]
    %v1507 = vld [vmem:[#allocation15 + $0xc8] sm:$0xff]
    %v1508 = vld [vmem:[#allocation15 + $0xd0] sm:$0xff]
    %v1509 = vld [vmem:[#allocation15 + $0xd8] sm:$0xff]
    %v1510 = vld [vmem:[#allocation15 + $0xe0] sm:$0xff]
    %v1511 = vld [vmem:[#allocation15 + $0xe8] sm:$0xff]
    %v1512 = vld [vmem:[#allocation15 + $0xf0] sm:$0xff]
    %v1513 = vld [vmem:[#allocation15 + $0xf8] sm:$0xff]
    %v1514 = vld [vmem:[#allocation15 + $0x100] sm:$0xff]
    %v1515 = vld [vmem:[#allocation15 + $0x108] sm:$0xff]
    %v1516 = vld [vmem:[#allocation15 + $0x110] sm:$0xff]
    %v1517 = vld [vmem:[#allocation15 + $0x118] sm:$0xff]
    %v1518 = vld [vmem:[#allocation15 + $0x120] sm:$0xff]
    %v1519 = vld [vmem:[#allocation15 + $0x128] sm:$0xff]
    %v1520 = vld [vmem:[#allocation15 + $0x130] sm:$0xff]
    %v1521 = vld [vmem:[#allocation15 + $0x138] sm:$0xff]
    %v1522 = vld [vmem:[#allocation15 + $0x140] sm:$0xff]
    %v1523 = vld [vmem:[#allocation15 + $0x148] sm:$0xff]
    %v1524 = vld [vmem:[#allocation15 + $0x150] sm:$0xff]
    %v1525 = vld [vmem:[#allocation15 + $0x158] sm:$0xff]
    %v1526 = vld [vmem:[#allocation15 + $0x160] sm:$0xff]
    %v1527 = vld [vmem:[#allocation15 + $0x168] sm:$0xff]
    %v1528 = vld [vmem:[#allocation15 + $0x170] sm:$0xff]
    %v1529 = vld [vmem:[#allocation15 + $0x178] sm:$0xff]
    %v1530 = vld [vmem:[#allocation15 + $0x180] sm:$0xff]
    %v1531 = vld [vmem:[#allocation15 + $0x188] sm:$0xff]
    %v1532 = vld [vmem:[#allocation15 + $0x190] sm:$0xff]
    %v1533 = vld [vmem:[#allocation15 + $0x198] sm:$0xff]
    %v1534 = vld [vmem:[#allocation15 + $0x1a0] sm:$0xff]
    %v1535 = vld [vmem:[#allocation15 + $0x1a8] sm:$0xff]
    %v1536 = vld [vmem:[#allocation15 + $0x1b0] sm:$0xff]
    %v1537 = vld [vmem:[#allocation15 + $0x1b8] sm:$0xff]
    %v1538 = vld [vmem:[#allocation15 + $0x1c0] sm:$0xff]
    %v1539 = vld [vmem:[#allocation15 + $0x1c8] sm:$0xff]
    %v1540 = vld [vmem:[#allocation15 + $0x1d0] sm:$0xff]
    %v1541 = vld [vmem:[#allocation15 + $0x1d8] sm:$0xff]
    %v1542 = vld [vmem:[#allocation15 + $0x1e0] sm:$0xff]
    %v1543 = vld [vmem:[#allocation15 + $0x1e8] sm:$0xff]
    %v1544 = vld [vmem:[#allocation15 + $0x1f0] sm:$0xff]
    %v1545 = vld [vmem:[#allocation15 + $0x1f8] sm:$0xff]
    %1546 = vmatprep.subr.mxu0 %v1483
    %1547 = vmatpush1.msra.mxu0 %v1482
    %1548 = vmatprep.subr.mxu0 %v1487
    %1549 = vmatpush1.msra.mxu0 %v1486
    %1550 = vmatprep.subr.mxu0 %v1491
    %1551 = vmatpush1.msra.mxu0 %v1490
    %1552 = vmatprep.subr.mxu0 %v1495
    %1553 = vmatpush1.msra.mxu0 %v1494
    %1554 = vmatprep.subr.mxu0 %v1499
    %1555 = vmatpush1.msra.mxu0 %v1498
    %1556 = vmatprep.subr.mxu0 %v1503
    %1557 = vmatpush1.msra.mxu0 %v1502
    %1558 = vmatprep.subr.mxu0 %v1507
    %1559 = vmatpush1.msra.mxu0 %v1506
    %1560 = vmatprep.subr.mxu0 %v1511
    %1561 = vmatpush1.msra.mxu0 %v1510
    %1562 = vmatprep.subr.mxu0 %v1515
    %1563 = vmatpush1.msra.mxu0 %v1514
    %1564 = vmatprep.subr.mxu0 %v1519
    %1565 = vmatpush1.msra.mxu0 %v1518
    %1566 = vmatprep.subr.mxu0 %v1523
    %1567 = vmatpush1.msra.mxu0 %v1522
    %1568 = vmatprep.subr.mxu0 %v1527
    %1569 = vmatpush1.msra.mxu0 %v1526
    %1570 = vmatprep.subr.mxu0 %v1531
    %1571 = vmatpush1.msra.mxu0 %v1530
    %1572 = vmatprep.subr.mxu0 %v1535
    %1573 = vmatpush1.msra.mxu0 %v1534
    %1574 = vmatprep.subr.mxu0 %v1539
    %1575 = vmatpush1.msra.mxu0 %v1538
    %1576 = vmatprep.subr.mxu0 %v1543
    %1577 = vmatpush1.msra.mxu0 %v1542
    %1578 = vmatprep.subr.mxu0 0.0
    %1579 = vmatpush1.msra.mxu0 0.0
    %1580 = vmatprep.subr.mxu0 0.0
    %1581 = vmatpush1.msra.mxu0 0.0
    %1582 = vmatprep.subr.mxu0 0.0
    %1583 = vmatpush1.msra.mxu0 0.0
    %1584 = vmatprep.subr.mxu0 0.0
    %1585 = vmatpush1.msra.mxu0 0.0
    %1586 = vmatprep.subr.mxu0 0.0
    %1587 = vmatpush1.msra.mxu0 0.0
    %1588 = vmatprep.subr.mxu0 0.0
    %1589 = vmatpush1.msra.mxu0 0.0
    %1590 = vmatprep.subr.mxu0 0.0
    %1591 = vmatpush1.msra.mxu0 0.0
    %1592 = vmatprep.subr.mxu0 0.0
    %1593 = vmatpush1.msra.mxu0 0.0
    %1594 = vmatprep.subr.mxu0 0.0
    %1595 = vmatpush1.msra.mxu0 0.0
    %1596 = vmatprep.subr.mxu0 0.0
    %1597 = vmatpush1.msra.mxu0 0.0
    %1598 = vmatprep.subr.mxu0 0.0
    %1599 = vmatpush1.msra.mxu0 0.0
    %1600 = vmatprep.subr.mxu0 0.0
    %1601 = vmatpush1.msra.mxu0 0.0
    %1602 = vmatprep.subr.mxu0 0.0
    %1603 = vmatpush1.msra.mxu0 0.0
    %1604 = vmatprep.subr.mxu0 0.0
    %1605 = vmatpush1.msra.mxu0 0.0
    %1606 = vmatprep.subr.mxu0 0.0
    %1607 = vmatpush1.msra.mxu0 0.0
    %1608 = vmatprep.subr.mxu0 0.0
    %1609 = vmatpush1.msra.mxu0 0.0
    %1610 = vmatprep.mubr.f32.mxu0 0.0
    %1611 = vmatmul.mubr.f32.gmra.mrb[0].mxu0 %v1478
    %v1612 = vpop.f32.mrb[0].mxu0
    %v1613 = vadd.f32 0.0, %v1612
    %v1614 = vpop.f32.mrb[0].mxu0
    %v1615 = vadd.f32 0.0, %v1614
    %1616 = vdwg.mxu0
    %1617 = vmatprep.subr.mxu0 %v1485
    %1618 = vmatpush1.msra.mxu0 %v1484
    %1619 = vmatprep.subr.mxu0 %v1489
    %1620 = vmatpush1.msra.mxu0 %v1488
    %1621 = vmatprep.subr.mxu0 %v1493
    %1622 = vmatpush1.msra.mxu0 %v1492
    %1623 = vmatprep.subr.mxu0 %v1497
    %1624 = vmatpush1.msra.mxu0 %v1496
    %1625 = vmatprep.subr.mxu0 %v1501
    %1626 = vmatpush1.msra.mxu0 %v1500
    %1627 = vmatprep.subr.mxu0 %v1505
    %1628 = vmatpush1.msra.mxu0 %v1504
    %1629 = vmatprep.subr.mxu0 %v1509
    %1630 = vmatpush1.msra.mxu0 %v1508
    %1631 = vmatprep.subr.mxu0 %v1513
    %1632 = vmatpush1.msra.mxu0 %v1512
    %1633 = vmatprep.subr.mxu0 %v1517
    %1634 = vmatpush1.msra.mxu0 %v1516
    %1635 = vmatprep.subr.mxu0 %v1521
    %1636 = vmatpush1.msra.mxu0 %v1520
    %1637 = vmatprep.subr.mxu0 %v1525
    %1638 = vmatpush1.msra.mxu0 %v1524
    %1639 = vmatprep.subr.mxu0 %v1529
    %1640 = vmatpush1.msra.mxu0 %v1528
    %1641 = vmatprep.subr.mxu0 %v1533
    %1642 = vmatpush1.msra.mxu0 %v1532
    %1643 = vmatprep.subr.mxu0 %v1537
    %1644 = vmatpush1.msra.mxu0 %v1536
    %1645 = vmatprep.subr.mxu0 %v1541
    %1646 = vmatpush1.msra.mxu0 %v1540
    %1647 = vmatprep.subr.mxu0 %v1545
    %1648 = vmatpush1.msra.mxu0 %v1544
    %1649 = vmatprep.subr.mxu0 0.0
    %1650 = vmatpush1.msra.mxu0 0.0
    %1651 = vmatprep.subr.mxu0 0.0
    %1652 = vmatpush1.msra.mxu0 0.0
    %1653 = vmatprep.subr.mxu0 0.0
    %1654 = vmatpush1.msra.mxu0 0.0
    %1655 = vmatprep.subr.mxu0 0.0
    %1656 = vmatpush1.msra.mxu0 0.0
    %1657 = vmatprep.subr.mxu0 0.0
    %1658 = vmatpush1.msra.mxu0 0.0
    %1659 = vmatprep.subr.mxu0 0.0
    %1660 = vmatpush1.msra.mxu0 0.0
    %1661 = vmatprep.subr.mxu0 0.0
    %1662 = vmatpush1.msra.mxu0 0.0
    %1663 = vmatprep.subr.mxu0 0.0
    %1664 = vmatpush1.msra.mxu0 0.0
    %1665 = vmatprep.subr.mxu0 0.0
    %1666 = vmatpush1.msra.mxu0 0.0
    %1667 = vmatprep.subr.mxu0 0.0
    %1668 = vmatpush1.msra.mxu0 0.0
    %1669 = vmatprep.subr.mxu0 0.0
    %1670 = vmatpush1.msra.mxu0 0.0
    %1671 = vmatprep.subr.mxu0 0.0
    %1672 = vmatpush1.msra.mxu0 0.0
    %1673 = vmatprep.subr.mxu0 0.0
    %1674 = vmatpush1.msra.mxu0 0.0
    %1675 = vmatprep.subr.mxu0 0.0
    %1676 = vmatpush1.msra.mxu0 0.0
    %1677 = vmatprep.subr.mxu0 0.0
    %1678 = vmatpush1.msra.mxu0 0.0
    %1679 = vmatprep.subr.mxu0 0.0
    %1680 = vmatpush1.msra.mxu0 0.0
    %1681 = vmatprep.mubr.f32.mxu0 0.0
    %1682 = vmatmul.mubr.f32.gmra.mrb[0].mxu0 %v1478
    %v1683 = vpop.f32.mrb[0].mxu0
    %v1684 = vadd.f32 0.0, %v1683
    %v1685 = vpop.f32.mrb[0].mxu0
    %v1686 = vadd.f32 0.0, %v1685
    %1687 = vdwg.mxu0
    %v1692 = vcombine.low %v1613, %v1615
    %v1693 = vcombine.low %v1684, %v1686
    %v1695 = vunpack.c.l.s4 1983009808
    %v1696 = vunpack.c.0.s8 %v1695
    %v1697 = vlaneseq
    %v1698 = vshrl.u32 %v1697, 7
    %v1699 = vsub.s32 %v1696, %v1698
    %v1700 = vrot.slane %v1692, %v1699
    %v1702 = vunpack.c.l.s4 1983009808
    %v1703 = vunpack.c.0.s8 %v1702
    %v1704 = vlaneseq
    %v1705 = vshrl.u32 %v1704, 7
    %v1706 = vsub.s32 %v1703, %v1705
    %v1707 = vrot.slane %v1693, %v1706
    %v1708 = vcombine.low %v1700, %v1707
    %v1710 = vadd.f32 %v1481, %v1708
    %v1711 = vxor.u32 %v1710, 2147483648
    %v1712 = vmul.f32 %v1711, 1.442695
    %v1713 = vpow.pop %v1712
    %v1714 = vadd.f32 %v1713, 1.0
    %v1715 = vrcp.pop %v1714
    %v1716 = vmul.f32 1.0, %v1715
    %v1717 = vtanh.pop %v1710
    %v1719 = vrot.slane %v1716, 2
    %v1721 = vmul.f32 %v1719, %v1474
    %v1723 = vrot.slane %v1717, 4
    %v1725 = vmul.f32 %v1716, %v1723
    %v1726 = vadd.f32 %v1721, %v1725
    %v1727 = vtanh.pop %v1726
    %v1728 = vrot.slane %v1716, 6
    %v1730 = vmul.f32 %v1728, %v1727
    %s1731 = scalar_lea.vmem [#allocation4], 6
    %1732 = vst [vmem:[%s1731] sm:$0x3] %v1730
    %v1733 = vld [vmem:[%s405] sm:$0xff]
    %v1734 = vld [vmem:[#allocation15] sm:$0xff]
    %v1735 = vld [vmem:[#allocation15 + $0x8] sm:$0xff]
    %v1736 = vld [vmem:[#allocation15 + $0x10] sm:$0xff]
    %v1737 = vld [vmem:[#allocation15 + $0x18] sm:$0xff]
    %v1738 = vld [vmem:[#allocation15 + $0x20] sm:$0xff]
    %v1739 = vld [vmem:[#allocation15 + $0x28] sm:$0xff]
    %v1740 = vld [vmem:[#allocation15 + $0x30] sm:$0xff]
    %v1741 = vld [vmem:[#allocation15 + $0x38] sm:$0xff]
    %v1742 = vld [vmem:[#allocation15 + $0x40] sm:$0xff]
    %v1743 = vld [vmem:[#allocation15 + $0x48] sm:$0xff]
    %v1744 = vld [vmem:[#allocation15 + $0x50] sm:$0xff]
    %v1745 = vld [vmem:[#allocation15 + $0x58] sm:$0xff]
    %v1746 = vld [vmem:[#allocation15 + $0x60] sm:$0xff]
    %v1747 = vld [vmem:[#allocation15 + $0x68] sm:$0xff]
    %v1748 = vld [vmem:[#allocation15 + $0x70] sm:$0xff]
    %v1749 = vld [vmem:[#allocation15 + $0x78] sm:$0xff]
    %v1750 = vld [vmem:[#allocation15 + $0x80] sm:$0xff]
    %v1751 = vld [vmem:[#allocation15 + $0x88] sm:$0xff]
    %v1752 = vld [vmem:[#allocation15 + $0x90] sm:$0xff]
    %v1753 = vld [vmem:[#allocation15 + $0x98] sm:$0xff]
    %v1754 = vld [vmem:[#allocation15 + $0xa0] sm:$0xff]
    %v1755 = vld [vmem:[#allocation15 + $0xa8] sm:$0xff]
    %v1756 = vld [vmem:[#allocation15 + $0xb0] sm:$0xff]
    %v1757 = vld [vmem:[#allocation15 + $0xb8] sm:$0xff]
    %v1758 = vld [vmem:[#allocation15 + $0xc0] sm:$0xff]
    %v1759 = vld [vmem:[#allocation15 + $0xc8] sm:$0xff]
    %v1760 = vld [vmem:[#allocation15 + $0xd0] sm:$0xff]
    %v1761 = vld [vmem:[#allocation15 + $0xd8] sm:$0xff]
    %v1762 = vld [vmem:[#allocation15 + $0xe0] sm:$0xff]
    %v1763 = vld [vmem:[#allocation15 + $0xe8] sm:$0xff]
    %v1764 = vld [vmem:[#allocation15 + $0xf0] sm:$0xff]
    %v1765 = vld [vmem:[#allocation15 + $0xf8] sm:$0xff]
    %v1766 = vld [vmem:[#allocation15 + $0x100] sm:$0xff]
    %v1767 = vld [vmem:[#allocation15 + $0x108] sm:$0xff]
    %v1768 = vld [vmem:[#allocation15 + $0x110] sm:$0xff]
    %v1769 = vld [vmem:[#allocation15 + $0x118] sm:$0xff]
    %v1770 = vld [vmem:[#allocation15 + $0x120] sm:$0xff]
    %v1771 = vld [vmem:[#allocation15 + $0x128] sm:$0xff]
    %v1772 = vld [vmem:[#allocation15 + $0x130] sm:$0xff]
    %v1773 = vld [vmem:[#allocation15 + $0x138] sm:$0xff]
    %v1774 = vld [vmem:[#allocation15 + $0x140] sm:$0xff]
    %v1775 = vld [vmem:[#allocation15 + $0x148] sm:$0xff]
    %v1776 = vld [vmem:[#allocation15 + $0x150] sm:$0xff]
    %v1777 = vld [vmem:[#allocation15 + $0x158] sm:$0xff]
    %v1778 = vld [vmem:[#allocation15 + $0x160] sm:$0xff]
    %v1779 = vld [vmem:[#allocation15 + $0x168] sm:$0xff]
    %v1780 = vld [vmem:[#allocation15 + $0x170] sm:$0xff]
    %v1781 = vld [vmem:[#allocation15 + $0x178] sm:$0xff]
    %v1782 = vld [vmem:[#allocation15 + $0x180] sm:$0xff]
    %v1783 = vld [vmem:[#allocation15 + $0x188] sm:$0xff]
    %v1784 = vld [vmem:[#allocation15 + $0x190] sm:$0xff]
    %v1785 = vld [vmem:[#allocation15 + $0x198] sm:$0xff]
    %v1786 = vld [vmem:[#allocation15 + $0x1a0] sm:$0xff]
    %v1787 = vld [vmem:[#allocation15 + $0x1a8] sm:$0xff]
    %v1788 = vld [vmem:[#allocation15 + $0x1b0] sm:$0xff]
    %v1789 = vld [vmem:[#allocation15 + $0x1b8] sm:$0xff]
    %v1790 = vld [vmem:[#allocation15 + $0x1c0] sm:$0xff]
    %v1791 = vld [vmem:[#allocation15 + $0x1c8] sm:$0xff]
    %v1792 = vld [vmem:[#allocation15 + $0x1d0] sm:$0xff]
    %v1793 = vld [vmem:[#allocation15 + $0x1d8] sm:$0xff]
    %v1794 = vld [vmem:[#allocation15 + $0x1e0] sm:$0xff]
    %v1795 = vld [vmem:[#allocation15 + $0x1e8] sm:$0xff]
    %v1796 = vld [vmem:[#allocation15 + $0x1f0] sm:$0xff]
    %v1797 = vld [vmem:[#allocation15 + $0x1f8] sm:$0xff]
    %1798 = vmatprep.subr.mxu0 %v1735
    %1799 = vmatpush1.msra.mxu0 %v1734
    %1800 = vmatprep.subr.mxu0 %v1739
    %1801 = vmatpush1.msra.mxu0 %v1738
    %1802 = vmatprep.subr.mxu0 %v1743
    %1803 = vmatpush1.msra.mxu0 %v1742
    %1804 = vmatprep.subr.mxu0 %v1747
    %1805 = vmatpush1.msra.mxu0 %v1746
    %1806 = vmatprep.subr.mxu0 %v1751
    %1807 = vmatpush1.msra.mxu0 %v1750
    %1808 = vmatprep.subr.mxu0 %v1755
    %1809 = vmatpush1.msra.mxu0 %v1754
    %1810 = vmatprep.subr.mxu0 %v1759
    %1811 = vmatpush1.msra.mxu0 %v1758
    %1812 = vmatprep.subr.mxu0 %v1763
    %1813 = vmatpush1.msra.mxu0 %v1762
    %1814 = vmatprep.subr.mxu0 %v1767
    %1815 = vmatpush1.msra.mxu0 %v1766
    %1816 = vmatprep.subr.mxu0 %v1771
    %1817 = vmatpush1.msra.mxu0 %v1770
    %1818 = vmatprep.subr.mxu0 %v1775
    %1819 = vmatpush1.msra.mxu0 %v1774
    %1820 = vmatprep.subr.mxu0 %v1779
    %1821 = vmatpush1.msra.mxu0 %v1778
    %1822 = vmatprep.subr.mxu0 %v1783
    %1823 = vmatpush1.msra.mxu0 %v1782
    %1824 = vmatprep.subr.mxu0 %v1787
    %1825 = vmatpush1.msra.mxu0 %v1786
    %1826 = vmatprep.subr.mxu0 %v1791
    %1827 = vmatpush1.msra.mxu0 %v1790
    %1828 = vmatprep.subr.mxu0 %v1795
    %1829 = vmatpush1.msra.mxu0 %v1794
    %1830 = vmatprep.subr.mxu0 0.0
    %1831 = vmatpush1.msra.mxu0 0.0
    %1832 = vmatprep.subr.mxu0 0.0
    %1833 = vmatpush1.msra.mxu0 0.0
    %1834 = vmatprep.subr.mxu0 0.0
    %1835 = vmatpush1.msra.mxu0 0.0
    %1836 = vmatprep.subr.mxu0 0.0
    %1837 = vmatpush1.msra.mxu0 0.0
    %1838 = vmatprep.subr.mxu0 0.0
    %1839 = vmatpush1.msra.mxu0 0.0
    %1840 = vmatprep.subr.mxu0 0.0
    %1841 = vmatpush1.msra.mxu0 0.0
    %1842 = vmatprep.subr.mxu0 0.0
    %1843 = vmatpush1.msra.mxu0 0.0
    %1844 = vmatprep.subr.mxu0 0.0
    %1845 = vmatpush1.msra.mxu0 0.0
    %1846 = vmatprep.subr.mxu0 0.0
    %1847 = vmatpush1.msra.mxu0 0.0
    %1848 = vmatprep.subr.mxu0 0.0
    %1849 = vmatpush1.msra.mxu0 0.0
    %1850 = vmatprep.subr.mxu0 0.0
    %1851 = vmatpush1.msra.mxu0 0.0
    %1852 = vmatprep.subr.mxu0 0.0
    %1853 = vmatpush1.msra.mxu0 0.0
    %1854 = vmatprep.subr.mxu0 0.0
    %1855 = vmatpush1.msra.mxu0 0.0
    %1856 = vmatprep.subr.mxu0 0.0
    %1857 = vmatpush1.msra.mxu0 0.0
    %1858 = vmatprep.subr.mxu0 0.0
    %1859 = vmatpush1.msra.mxu0 0.0
    %1860 = vmatprep.subr.mxu0 0.0
    %1861 = vmatpush1.msra.mxu0 0.0
    %1862 = vmatprep.mubr.f32.mxu0 0.0
    %1863 = vmatmul.mubr.f32.gmra.mrb[0].mxu0 %v1730
    %v1864 = vpop.f32.mrb[0].mxu0
    %v1865 = vadd.f32 0.0, %v1864
    %v1866 = vpop.f32.mrb[0].mxu0
    %v1867 = vadd.f32 0.0, %v1866
    %1868 = vdwg.mxu0
    %1869 = vmatprep.subr.mxu0 %v1737
    %1870 = vmatpush1.msra.mxu0 %v1736
    %1871 = vmatprep.subr.mxu0 %v1741
    %1872 = vmatpush1.msra.mxu0 %v1740
    %1873 = vmatprep.subr.mxu0 %v1745
    %1874 = vmatpush1.msra.mxu0 %v1744
    %1875 = vmatprep.subr.mxu0 %v1749
    %1876 = vmatpush1.msra.mxu0 %v1748
    %1877 = vmatprep.subr.mxu0 %v1753
    %1878 = vmatpush1.msra.mxu0 %v1752
    %1879 = vmatprep.subr.mxu0 %v1757
    %1880 = vmatpush1.msra.mxu0 %v1756
    %1881 = vmatprep.subr.mxu0 %v1761
    %1882 = vmatpush1.msra.mxu0 %v1760
    %1883 = vmatprep.subr.mxu0 %v1765
    %1884 = vmatpush1.msra.mxu0 %v1764
    %1885 = vmatprep.subr.mxu0 %v1769
    %1886 = vmatpush1.msra.mxu0 %v1768
    %1887 = vmatprep.subr.mxu0 %v1773
    %1888 = vmatpush1.msra.mxu0 %v1772
    %1889 = vmatprep.subr.mxu0 %v1777
    %1890 = vmatpush1.msra.mxu0 %v1776
    %1891 = vmatprep.subr.mxu0 %v1781
    %1892 = vmatpush1.msra.mxu0 %v1780
    %1893 = vmatprep.subr.mxu0 %v1785
    %1894 = vmatpush1.msra.mxu0 %v1784
    %1895 = vmatprep.subr.mxu0 %v1789
    %1896 = vmatpush1.msra.mxu0 %v1788
    %1897 = vmatprep.subr.mxu0 %v1793
    %1898 = vmatpush1.msra.mxu0 %v1792
    %1899 = vmatprep.subr.mxu0 %v1797
    %1900 = vmatpush1.msra.mxu0 %v1796
    %1901 = vmatprep.subr.mxu0 0.0
    %1902 = vmatpush1.msra.mxu0 0.0
    %1903 = vmatprep.subr.mxu0 0.0
    %1904 = vmatpush1.msra.mxu0 0.0
    %1905 = vmatprep.subr.mxu0 0.0
    %1906 = vmatpush1.msra.mxu0 0.0
    %1907 = vmatprep.subr.mxu0 0.0
    %1908 = vmatpush1.msra.mxu0 0.0
    %1909 = vmatprep.subr.mxu0 0.0
    %1910 = vmatpush1.msra.mxu0 0.0
    %1911 = vmatprep.subr.mxu0 0.0
    %1912 = vmatpush1.msra.mxu0 0.0
    %1913 = vmatprep.subr.mxu0 0.0
    %1914 = vmatpush1.msra.mxu0 0.0
    %1915 = vmatprep.subr.mxu0 0.0
    %1916 = vmatpush1.msra.mxu0 0.0
    %1917 = vmatprep.subr.mxu0 0.0
    %1918 = vmatpush1.msra.mxu0 0.0
    %1919 = vmatprep.subr.mxu0 0.0
    %1920 = vmatpush1.msra.mxu0 0.0
    %1921 = vmatprep.subr.mxu0 0.0
    %1922 = vmatpush1.msra.mxu0 0.0
    %1923 = vmatprep.subr.mxu0 0.0
    %1924 = vmatpush1.msra.mxu0 0.0
    %1925 = vmatprep.subr.mxu0 0.0
    %1926 = vmatpush1.msra.mxu0 0.0
    %1927 = vmatprep.subr.mxu0 0.0
    %1928 = vmatpush1.msra.mxu0 0.0
    %1929 = vmatprep.subr.mxu0 0.0
    %1930 = vmatpush1.msra.mxu0 0.0
    %1931 = vmatprep.subr.mxu0 0.0
    %1932 = vmatpush1.msra.mxu0 0.0
    %1933 = vmatprep.mubr.f32.mxu0 0.0
    %1934 = vmatmul.mubr.f32.gmra.mrb[0].mxu0 %v1730
    %v1935 = vpop.f32.mrb[0].mxu0
    %v1936 = vadd.f32 0.0, %v1935
    %v1937 = vpop.f32.mrb[0].mxu0
    %v1938 = vadd.f32 0.0, %v1937
    %1939 = vdwg.mxu0
    %v1944 = vcombine.low %v1865, %v1867
    %v1945 = vcombine.low %v1936, %v1938
    %v1947 = vunpack.c.l.s4 1983009808
    %v1948 = vunpack.c.0.s8 %v1947
    %v1949 = vlaneseq
    %v1950 = vshrl.u32 %v1949, 7
    %v1951 = vsub.s32 %v1948, %v1950
    %v1952 = vrot.slane %v1944, %v1951
    %v1954 = vunpack.c.l.s4 1983009808
    %v1955 = vunpack.c.0.s8 %v1954
    %v1956 = vlaneseq
    %v1957 = vshrl.u32 %v1956, 7
    %v1958 = vsub.s32 %v1955, %v1957
    %v1959 = vrot.slane %v1945, %v1958
    %v1960 = vcombine.low %v1952, %v1959
    %v1962 = vadd.f32 %v1733, %v1960
    %v1963 = vxor.u32 %v1962, 2147483648
    %v1964 = vmul.f32 %v1963, 1.442695
    %v1965 = vpow.pop %v1964
    %v1966 = vadd.f32 %v1965, 1.0
    %v1967 = vrcp.pop %v1966
    %v1968 = vmul.f32 1.0, %v1967
    %v1969 = vtanh.pop %v1962
    %v1971 = vrot.slane %v1968, 2
    %v1973 = vmul.f32 %v1971, %v1726
    %v1975 = vrot.slane %v1969, 4
    %v1977 = vmul.f32 %v1968, %v1975
    %v1978 = vadd.f32 %v1973, %v1977
    %v1979 = vtanh.pop %v1978
    %v1980 = vrot.slane %v1968, 6
    %v1982 = vmul.f32 %v1980, %v1979
    %s1983 = scalar_lea.vmem [#allocation4], 8
    %1984 = vst [vmem:[%s1983] sm:$0x3] %v1982
    %v1985 = vld [vmem:[%s409] sm:$0xff]
    %v1986 = vld [vmem:[#allocation15] sm:$0xff]
    %v1987 = vld [vmem:[#allocation15 + $0x8] sm:$0xff]
    %v1988 = vld [vmem:[#allocation15 + $0x10] sm:$0xff]
    %v1989 = vld [vmem:[#allocation15 + $0x18] sm:$0xff]
    %v1990 = vld [vmem:[#allocation15 + $0x20] sm:$0xff]
    %v1991 = vld [vmem:[#allocation15 + $0x28] sm:$0xff]
    %v1992 = vld [vmem:[#allocation15 + $0x30] sm:$0xff]
    %v1993 = vld [vmem:[#allocation15 + $0x38] sm:$0xff]
    %v1994 = vld [vmem:[#allocation15 + $0x40] sm:$0xff]
    %v1995 = vld [vmem:[#allocation15 + $0x48] sm:$0xff]
    %v1996 = vld [vmem:[#allocation15 + $0x50] sm:$0xff]
    %v1997 = vld [vmem:[#allocation15 + $0x58] sm:$0xff]
    %v1998 = vld [vmem:[#allocation15 + $0x60] sm:$0xff]
    %v1999 = vld [vmem:[#allocation15 + $0x68] sm:$0xff]
    %v2000 = vld [vmem:[#allocation15 + $0x70] sm:$0xff]
    %v2001 = vld [vmem:[#allocation15 + $0x78] sm:$0xff]
    %v2002 = vld [vmem:[#allocation15 + $0x80] sm:$0xff]
    %v2003 = vld [vmem:[#allocation15 + $0x88] sm:$0xff]
    %v2004 = vld [vmem:[#allocation15 + $0x90] sm:$0xff]
    %v2005 = vld [vmem:[#allocation15 + $0x98] sm:$0xff]
    %v2006 = vld [vmem:[#allocation15 + $0xa0] sm:$0xff]
    %v2007 = vld [vmem:[#allocation15 + $0xa8] sm:$0xff]
    %v2008 = vld [vmem:[#allocation15 + $0xb0] sm:$0xff]
    %v2009 = vld [vmem:[#allocation15 + $0xb8] sm:$0xff]
    %v2010 = vld [vmem:[#allocation15 + $0xc0] sm:$0xff]
    %v2011 = vld [vmem:[#allocation15 + $0xc8] sm:$0xff]
    %v2012 = vld [vmem:[#allocation15 + $0xd0] sm:$0xff]
    %v2013 = vld [vmem:[#allocation15 + $0xd8] sm:$0xff]
    %v2014 = vld [vmem:[#allocation15 + $0xe0] sm:$0xff]
    %v2015 = vld [vmem:[#allocation15 + $0xe8] sm:$0xff]
    %v2016 = vld [vmem:[#allocation15 + $0xf0] sm:$0xff]
    %v2017 = vld [vmem:[#allocation15 + $0xf8] sm:$0xff]
    %v2018 = vld [vmem:[#allocation15 + $0x100] sm:$0xff]
    %v2019 = vld [vmem:[#allocation15 + $0x108] sm:$0xff]
    %v2020 = vld [vmem:[#allocation15 + $0x110] sm:$0xff]
    %v2021 = vld [vmem:[#allocation15 + $0x118] sm:$0xff]
    %v2022 = vld [vmem:[#allocation15 + $0x120] sm:$0xff]
    %v2023 = vld [vmem:[#allocation15 + $0x128] sm:$0xff]
    %v2024 = vld [vmem:[#allocation15 + $0x130] sm:$0xff]
    %v2025 = vld [vmem:[#allocation15 + $0x138] sm:$0xff]
    %v2026 = vld [vmem:[#allocation15 + $0x140] sm:$0xff]
    %v2027 = vld [vmem:[#allocation15 + $0x148] sm:$0xff]
    %v2028 = vld [vmem:[#allocation15 + $0x150] sm:$0xff]
    %v2029 = vld [vmem:[#allocation15 + $0x158] sm:$0xff]
    %v2030 = vld [vmem:[#allocation15 + $0x160] sm:$0xff]
    %v2031 = vld [vmem:[#allocation15 + $0x168] sm:$0xff]
    %v2032 = vld [vmem:[#allocation15 + $0x170] sm:$0xff]
    %v2033 = vld [vmem:[#allocation15 + $0x178] sm:$0xff]
    %v2034 = vld [vmem:[#allocation15 + $0x180] sm:$0xff]
    %v2035 = vld [vmem:[#allocation15 + $0x188] sm:$0xff]
    %v2036 = vld [vmem:[#allocation15 + $0x190] sm:$0xff]
    %v2037 = vld [vmem:[#allocation15 + $0x198] sm:$0xff]
    %v2038 = vld [vmem:[#allocation15 + $0x1a0] sm:$0xff]
    %v2039 = vld [vmem:[#allocation15 + $0x1a8] sm:$0xff]
    %v2040 = vld [vmem:[#allocation15 + $0x1b0] sm:$0xff]
    %v2041 = vld [vmem:[#allocation15 + $0x1b8] sm:$0xff]
    %v2042 = vld [vmem:[#allocation15 + $0x1c0] sm:$0xff]
    %v2043 = vld [vmem:[#allocation15 + $0x1c8] sm:$0xff]
    %v2044 = vld [vmem:[#allocation15 + $0x1d0] sm:$0xff]
    %v2045 = vld [vmem:[#allocation15 + $0x1d8] sm:$0xff]
    %v2046 = vld [vmem:[#allocation15 + $0x1e0] sm:$0xff]
    %v2047 = vld [vmem:[#allocation15 + $0x1e8] sm:$0xff]
    %v2048 = vld [vmem:[#allocation15 + $0x1f0] sm:$0xff]
    %v2049 = vld [vmem:[#allocation15 + $0x1f8] sm:$0xff]
    %2050 = vmatprep.subr.mxu0 %v1987
    %2051 = vmatpush1.msra.mxu0 %v1986
    %2052 = vmatprep.subr.mxu0 %v1991
    %2053 = vmatpush1.msra.mxu0 %v1990
    %2054 = vmatprep.subr.mxu0 %v1995
    %2055 = vmatpush1.msra.mxu0 %v1994
    %2056 = vmatprep.subr.mxu0 %v1999
    %2057 = vmatpush1.msra.mxu0 %v1998
    %2058 = vmatprep.subr.mxu0 %v2003
    %2059 = vmatpush1.msra.mxu0 %v2002
    %2060 = vmatprep.subr.mxu0 %v2007
    %2061 = vmatpush1.msra.mxu0 %v2006
    %2062 = vmatprep.subr.mxu0 %v2011
    %2063 = vmatpush1.msra.mxu0 %v2010
    %2064 = vmatprep.subr.mxu0 %v2015
    %2065 = vmatpush1.msra.mxu0 %v2014
    %2066 = vmatprep.subr.mxu0 %v2019
    %2067 = vmatpush1.msra.mxu0 %v2018
    %2068 = vmatprep.subr.mxu0 %v2023
    %2069 = vmatpush1.msra.mxu0 %v2022
    %2070 = vmatprep.subr.mxu0 %v2027
    %2071 = vmatpush1.msra.mxu0 %v2026
    %2072 = vmatprep.subr.mxu0 %v2031
    %2073 = vmatpush1.msra.mxu0 %v2030
    %2074 = vmatprep.subr.mxu0 %v2035
    %2075 = vmatpush1.msra.mxu0 %v2034
    %2076 = vmatprep.subr.mxu0 %v2039
    %2077 = vmatpush1.msra.mxu0 %v2038
    %2078 = vmatprep.subr.mxu0 %v2043
    %2079 = vmatpush1.msra.mxu0 %v2042
    %2080 = vmatprep.subr.mxu0 %v2047
    %2081 = vmatpush1.msra.mxu0 %v2046
    %2082 = vmatprep.subr.mxu0 0.0
    %2083 = vmatpush1.msra.mxu0 0.0
    %2084 = vmatprep.subr.mxu0 0.0
    %2085 = vmatpush1.msra.mxu0 0.0
    %2086 = vmatprep.subr.mxu0 0.0
    %2087 = vmatpush1.msra.mxu0 0.0
    %2088 = vmatprep.subr.mxu0 0.0
    %2089 = vmatpush1.msra.mxu0 0.0
    %2090 = vmatprep.subr.mxu0 0.0
    %2091 = vmatpush1.msra.mxu0 0.0
    %2092 = vmatprep.subr.mxu0 0.0
    %2093 = vmatpush1.msra.mxu0 0.0
    %2094 = vmatprep.subr.mxu0 0.0
    %2095 = vmatpush1.msra.mxu0 0.0
    %2096 = vmatprep.subr.mxu0 0.0
    %2097 = vmatpush1.msra.mxu0 0.0
    %2098 = vmatprep.subr.mxu0 0.0
    %2099 = vmatpush1.msra.mxu0 0.0
    %2100 = vmatprep.subr.mxu0 0.0
    %2101 = vmatpush1.msra.mxu0 0.0
    %2102 = vmatprep.subr.mxu0 0.0
    %2103 = vmatpush1.msra.mxu0 0.0
    %2104 = vmatprep.subr.mxu0 0.0
    %2105 = vmatpush1.msra.mxu0 0.0
    %2106 = vmatprep.subr.mxu0 0.0
    %2107 = vmatpush1.msra.mxu0 0.0
    %2108 = vmatprep.subr.mxu0 0.0
    %2109 = vmatpush1.msra.mxu0 0.0
    %2110 = vmatprep.subr.mxu0 0.0
    %2111 = vmatpush1.msra.mxu0 0.0
    %2112 = vmatprep.subr.mxu0 0.0
    %2113 = vmatpush1.msra.mxu0 0.0
    %2114 = vmatprep.mubr.f32.mxu0 0.0
    %2115 = vmatmul.mubr.f32.gmra.mrb[0].mxu0 %v1982
    %v2116 = vpop.f32.mrb[0].mxu0
    %v2117 = vadd.f32 0.0, %v2116
    %v2118 = vpop.f32.mrb[0].mxu0
    %v2119 = vadd.f32 0.0, %v2118
    %2120 = vdwg.mxu0
    %2121 = vmatprep.subr.mxu0 %v1989
    %2122 = vmatpush1.msra.mxu0 %v1988
    %2123 = vmatprep.subr.mxu0 %v1993
    %2124 = vmatpush1.msra.mxu0 %v1992
    %2125 = vmatprep.subr.mxu0 %v1997
    %2126 = vmatpush1.msra.mxu0 %v1996
    %2127 = vmatprep.subr.mxu0 %v2001
    %2128 = vmatpush1.msra.mxu0 %v2000
    %2129 = vmatprep.subr.mxu0 %v2005
    %2130 = vmatpush1.msra.mxu0 %v2004
    %2131 = vmatprep.subr.mxu0 %v2009
    %2132 = vmatpush1.msra.mxu0 %v2008
    %2133 = vmatprep.subr.mxu0 %v2013
    %2134 = vmatpush1.msra.mxu0 %v2012
    %2135 = vmatprep.subr.mxu0 %v2017
    %2136 = vmatpush1.msra.mxu0 %v2016
    %2137 = vmatprep.subr.mxu0 %v2021
    %2138 = vmatpush1.msra.mxu0 %v2020
    %2139 = vmatprep.subr.mxu0 %v2025
    %2140 = vmatpush1.msra.mxu0 %v2024
    %2141 = vmatprep.subr.mxu0 %v2029
    %2142 = vmatpush1.msra.mxu0 %v2028
    %2143 = vmatprep.subr.mxu0 %v2033
    %2144 = vmatpush1.msra.mxu0 %v2032
    %2145 = vmatprep.subr.mxu0 %v2037
    %2146 = vmatpush1.msra.mxu0 %v2036
    %2147 = vmatprep.subr.mxu0 %v2041
    %2148 = vmatpush1.msra.mxu0 %v2040
    %2149 = vmatprep.subr.mxu0 %v2045
    %2150 = vmatpush1.msra.mxu0 %v2044
    %2151 = vmatprep.subr.mxu0 %v2049
    %2152 = vmatpush1.msra.mxu0 %v2048
    %2153 = vmatprep.subr.mxu0 0.0
    %2154 = vmatpush1.msra.mxu0 0.0
    %2155 = vmatprep.subr.mxu0 0.0
    %2156 = vmatpush1.msra.mxu0 0.0
    %2157 = vmatprep.subr.mxu0 0.0
    %2158 = vmatpush1.msra.mxu0 0.0
    %2159 = vmatprep.subr.mxu0 0.0
    %2160 = vmatpush1.msra.mxu0 0.0
    %2161 = vmatprep.subr.mxu0 0.0
    %2162 = vmatpush1.msra.mxu0 0.0
    %2163 = vmatprep.subr.mxu0 0.0
    %2164 = vmatpush1.msra.mxu0 0.0
    %2165 = vmatprep.subr.mxu0 0.0
    %2166 = vmatpush1.msra.mxu0 0.0
    %2167 = vmatprep.subr.mxu0 0.0
    %2168 = vmatpush1.msra.mxu0 0.0
    %2169 = vmatprep.subr.mxu0 0.0
    %2170 = vmatpush1.msra.mxu0 0.0
    %2171 = vmatprep.subr.mxu0 0.0
    %2172 = vmatpush1.msra.mxu0 0.0
    %2173 = vmatprep.subr.mxu0 0.0
    %2174 = vmatpush1.msra.mxu0 0.0
    %2175 = vmatprep.subr.mxu0 0.0
    %2176 = vmatpush1.msra.mxu0 0.0
    %2177 = vmatprep.subr.mxu0 0.0
    %2178 = vmatpush1.msra.mxu0 0.0
    %2179 = vmatprep.subr.mxu0 0.0
    %2180 = vmatpush1.msra.mxu0 0.0
    %2181 = vmatprep.subr.mxu0 0.0
    %2182 = vmatpush1.msra.mxu0 0.0
    %2183 = vmatprep.subr.mxu0 0.0
    %2184 = vmatpush1.msra.mxu0 0.0
    %2185 = vmatprep.mubr.f32.mxu0 0.0
    %2186 = vmatmul.mubr.f32.gmra.mrb[0].mxu0 %v1982
    %v2187 = vpop.f32.mrb[0].mxu0
    %v2188 = vadd.f32 0.0, %v2187
    %v2189 = vpop.f32.mrb[0].mxu0
    %v2190 = vadd.f32 0.0, %v2189
    %2191 = vdwg.mxu0
    %v2196 = vcombine.low %v2117, %v2119
    %v2197 = vcombine.low %v2188, %v2190
    %v2199 = vunpack.c.l.s4 1983009808
    %v2200 = vunpack.c.0.s8 %v2199
    %v2201 = vlaneseq
    %v2202 = vshrl.u32 %v2201, 7
    %v2203 = vsub.s32 %v2200, %v2202
    %v2204 = vrot.slane %v2196, %v2203
    %v2206 = vunpack.c.l.s4 1983009808
    %v2207 = vunpack.c.0.s8 %v2206
    %v2208 = vlaneseq
    %v2209 = vshrl.u32 %v2208, 7
    %v2210 = vsub.s32 %v2207, %v2209
    %v2211 = vrot.slane %v2197, %v2210
    %v2212 = vcombine.low %v2204, %v2211
    %v2214 = vadd.f32 %v1985, %v2212
    %v2215 = vxor.u32 %v2214, 2147483648
    %v2216 = vmul.f32 %v2215, 1.442695
    %v2217 = vpow.pop %v2216
    %v2218 = vadd.f32 %v2217, 1.0
    %v2219 = vrcp.pop %v2218
    %v2220 = vmul.f32 1.0, %v2219
    %v2221 = vtanh.pop %v2214
    %v2223 = vrot.slane %v2220, 2
    %v2225 = vmul.f32 %v2223, %v1978
    %v2227 = vrot.slane %v2221, 4
    %v2229 = vmul.f32 %v2220, %v2227
    %v2230 = vadd.f32 %v2225, %v2229
    %v2231 = vtanh.pop %v2230
    %v2232 = vrot.slane %v2220, 6
    %v2234 = vmul.f32 %v2232, %v2231
    %s2235 = scalar_lea.vmem [#allocation4], 10
    %2236 = vst [vmem:[%s2235] sm:$0x3] %v2234
    %v2237 = vld [vmem:[%s429] sm:$0xff]
    %v2238 = vld [vmem:[#allocation15] sm:$0xff]
    %v2239 = vld [vmem:[#allocation15 + $0x8] sm:$0xff]
    %v2240 = vld [vmem:[#allocation15 + $0x10] sm:$0xff]
    %v2241 = vld [vmem:[#allocation15 + $0x18] sm:$0xff]
    %v2242 = vld [vmem:[#allocation15 + $0x20] sm:$0xff]
    %v2243 = vld [vmem:[#allocation15 + $0x28] sm:$0xff]
    %v2244 = vld [vmem:[#allocation15 + $0x30] sm:$0xff]
    %v2245 = vld [vmem:[#allocation15 + $0x38] sm:$0xff]
    %v2246 = vld [vmem:[#allocation15 + $0x40] sm:$0xff]
    %v2247 = vld [vmem:[#allocation15 + $0x48] sm:$0xff]
    %v2248 = vld [vmem:[#allocation15 + $0x50] sm:$0xff]
    %v2249 = vld [vmem:[#allocation15 + $0x58] sm:$0xff]
    %v2250 = vld [vmem:[#allocation15 + $0x60] sm:$0xff]
    %v2251 = vld [vmem:[#allocation15 + $0x68] sm:$0xff]
    %v2252 = vld [vmem:[#allocation15 + $0x70] sm:$0xff]
    %v2253 = vld [vmem:[#allocation15 + $0x78] sm:$0xff]
    %v2254 = vld [vmem:[#allocation15 + $0x80] sm:$0xff]
    %v2255 = vld [vmem:[#allocation15 + $0x88] sm:$0xff]
    %v2256 = vld [vmem:[#allocation15 + $0x90] sm:$0xff]
    %v2257 = vld [vmem:[#allocation15 + $0x98] sm:$0xff]
    %v2258 = vld [vmem:[#allocation15 + $0xa0] sm:$0xff]
    %v2259 = vld [vmem:[#allocation15 + $0xa8] sm:$0xff]
    %v2260 = vld [vmem:[#allocation15 + $0xb0] sm:$0xff]
    %v2261 = vld [vmem:[#allocation15 + $0xb8] sm:$0xff]
    %v2262 = vld [vmem:[#allocation15 + $0xc0] sm:$0xff]
    %v2263 = vld [vmem:[#allocation15 + $0xc8] sm:$0xff]
    %v2264 = vld [vmem:[#allocation15 + $0xd0] sm:$0xff]
    %v2265 = vld [vmem:[#allocation15 + $0xd8] sm:$0xff]
    %v2266 = vld [vmem:[#allocation15 + $0xe0] sm:$0xff]
    %v2267 = vld [vmem:[#allocation15 + $0xe8] sm:$0xff]
    %v2268 = vld [vmem:[#allocation15 + $0xf0] sm:$0xff]
    %v2269 = vld [vmem:[#allocation15 + $0xf8] sm:$0xff]
    %v2270 = vld [vmem:[#allocation15 + $0x100] sm:$0xff]
    %v2271 = vld [vmem:[#allocation15 + $0x108] sm:$0xff]
    %v2272 = vld [vmem:[#allocation15 + $0x110] sm:$0xff]
    %v2273 = vld [vmem:[#allocation15 + $0x118] sm:$0xff]
    %v2274 = vld [vmem:[#allocation15 + $0x120] sm:$0xff]
    %v2275 = vld [vmem:[#allocation15 + $0x128] sm:$0xff]
    %v2276 = vld [vmem:[#allocation15 + $0x130] sm:$0xff]
    %v2277 = vld [vmem:[#allocation15 + $0x138] sm:$0xff]
    %v2278 = vld [vmem:[#allocation15 + $0x140] sm:$0xff]
    %v2279 = vld [vmem:[#allocation15 + $0x148] sm:$0xff]
    %v2280 = vld [vmem:[#allocation15 + $0x150] sm:$0xff]
    %v2281 = vld [vmem:[#allocation15 + $0x158] sm:$0xff]
    %v2282 = vld [vmem:[#allocation15 + $0x160] sm:$0xff]
    %v2283 = vld [vmem:[#allocation15 + $0x168] sm:$0xff]
    %v2284 = vld [vmem:[#allocation15 + $0x170] sm:$0xff]
    %v2285 = vld [vmem:[#allocation15 + $0x178] sm:$0xff]
    %v2286 = vld [vmem:[#allocation15 + $0x180] sm:$0xff]
    %v2287 = vld [vmem:[#allocation15 + $0x188] sm:$0xff]
    %v2288 = vld [vmem:[#allocation15 + $0x190] sm:$0xff]
    %v2289 = vld [vmem:[#allocation15 + $0x198] sm:$0xff]
    %v2290 = vld [vmem:[#allocation15 + $0x1a0] sm:$0xff]
    %v2291 = vld [vmem:[#allocation15 + $0x1a8] sm:$0xff]
    %v2292 = vld [vmem:[#allocation15 + $0x1b0] sm:$0xff]
    %v2293 = vld [vmem:[#allocation15 + $0x1b8] sm:$0xff]
    %v2294 = vld [vmem:[#allocation15 + $0x1c0] sm:$0xff]
    %v2295 = vld [vmem:[#allocation15 + $0x1c8] sm:$0xff]
    %v2296 = vld [vmem:[#allocation15 + $0x1d0] sm:$0xff]
    %v2297 = vld [vmem:[#allocation15 + $0x1d8] sm:$0xff]
    %v2298 = vld [vmem:[#allocation15 + $0x1e0] sm:$0xff]
    %v2299 = vld [vmem:[#allocation15 + $0x1e8] sm:$0xff]
    %v2300 = vld [vmem:[#allocation15 + $0x1f0] sm:$0xff]
    %v2301 = vld [vmem:[#allocation15 + $0x1f8] sm:$0xff]
    %2302 = vmatprep.subr.mxu0 %v2239
    %2303 = vmatpush1.msra.mxu0 %v2238
    %2304 = vmatprep.subr.mxu0 %v2243
    %2305 = vmatpush1.msra.mxu0 %v2242
    %2306 = vmatprep.subr.mxu0 %v2247
    %2307 = vmatpush1.msra.mxu0 %v2246
    %2308 = vmatprep.subr.mxu0 %v2251
    %2309 = vmatpush1.msra.mxu0 %v2250
    %2310 = vmatprep.subr.mxu0 %v2255
    %2311 = vmatpush1.msra.mxu0 %v2254
    %2312 = vmatprep.subr.mxu0 %v2259
    %2313 = vmatpush1.msra.mxu0 %v2258
    %2314 = vmatprep.subr.mxu0 %v2263
    %2315 = vmatpush1.msra.mxu0 %v2262
    %2316 = vmatprep.subr.mxu0 %v2267
    %2317 = vmatpush1.msra.mxu0 %v2266
    %2318 = vmatprep.subr.mxu0 %v2271
    %2319 = vmatpush1.msra.mxu0 %v2270
    %2320 = vmatprep.subr.mxu0 %v2275
    %2321 = vmatpush1.msra.mxu0 %v2274
    %2322 = vmatprep.subr.mxu0 %v2279
    %2323 = vmatpush1.msra.mxu0 %v2278
    %2324 = vmatprep.subr.mxu0 %v2283
    %2325 = vmatpush1.msra.mxu0 %v2282
    %2326 = vmatprep.subr.mxu0 %v2287
    %2327 = vmatpush1.msra.mxu0 %v2286
    %2328 = vmatprep.subr.mxu0 %v2291
    %2329 = vmatpush1.msra.mxu0 %v2290
    %2330 = vmatprep.subr.mxu0 %v2295
    %2331 = vmatpush1.msra.mxu0 %v2294
    %2332 = vmatprep.subr.mxu0 %v2299
    %2333 = vmatpush1.msra.mxu0 %v2298
    %2334 = vmatprep.subr.mxu0 0.0
    %2335 = vmatpush1.msra.mxu0 0.0
    %2336 = vmatprep.subr.mxu0 0.0
    %2337 = vmatpush1.msra.mxu0 0.0
    %2338 = vmatprep.subr.mxu0 0.0
    %2339 = vmatpush1.msra.mxu0 0.0
    %2340 = vmatprep.subr.mxu0 0.0
    %2341 = vmatpush1.msra.mxu0 0.0
    %2342 = vmatprep.subr.mxu0 0.0
    %2343 = vmatpush1.msra.mxu0 0.0
    %2344 = vmatprep.subr.mxu0 0.0
    %2345 = vmatpush1.msra.mxu0 0.0
    %2346 = vmatprep.subr.mxu0 0.0
    %2347 = vmatpush1.msra.mxu0 0.0
    %2348 = vmatprep.subr.mxu0 0.0
    %2349 = vmatpush1.msra.mxu0 0.0
    %2350 = vmatprep.subr.mxu0 0.0
    %2351 = vmatpush1.msra.mxu0 0.0
    %2352 = vmatprep.subr.mxu0 0.0
    %2353 = vmatpush1.msra.mxu0 0.0
    %2354 = vmatprep.subr.mxu0 0.0
    %2355 = vmatpush1.msra.mxu0 0.0
    %2356 = vmatprep.subr.mxu0 0.0
    %2357 = vmatpush1.msra.mxu0 0.0
    %2358 = vmatprep.subr.mxu0 0.0
    %2359 = vmatpush1.msra.mxu0 0.0
    %2360 = vmatprep.subr.mxu0 0.0
    %2361 = vmatpush1.msra.mxu0 0.0
    %2362 = vmatprep.subr.mxu0 0.0
    %2363 = vmatpush1.msra.mxu0 0.0
    %2364 = vmatprep.subr.mxu0 0.0
    %2365 = vmatpush1.msra.mxu0 0.0
    %2366 = vmatprep.mubr.f32.mxu0 0.0
    %2367 = vmatmul.mubr.f32.gmra.mrb[0].mxu0 %v2234
    %v2368 = vpop.f32.mrb[0].mxu0
    %v2369 = vadd.f32 0.0, %v2368
    %v2370 = vpop.f32.mrb[0].mxu0
    %v2371 = vadd.f32 0.0, %v2370
    %2372 = vdwg.mxu0
    %2373 = vmatprep.subr.mxu0 %v2241
    %2374 = vmatpush1.msra.mxu0 %v2240
    %2375 = vmatprep.subr.mxu0 %v2245
    %2376 = vmatpush1.msra.mxu0 %v2244
    %2377 = vmatprep.subr.mxu0 %v2249
    %2378 = vmatpush1.msra.mxu0 %v2248
    %2379 = vmatprep.subr.mxu0 %v2253
    %2380 = vmatpush1.msra.mxu0 %v2252
    %2381 = vmatprep.subr.mxu0 %v2257
    %2382 = vmatpush1.msra.mxu0 %v2256
    %2383 = vmatprep.subr.mxu0 %v2261
    %2384 = vmatpush1.msra.mxu0 %v2260
    %2385 = vmatprep.subr.mxu0 %v2265
    %2386 = vmatpush1.msra.mxu0 %v2264
    %2387 = vmatprep.subr.mxu0 %v2269
    %2388 = vmatpush1.msra.mxu0 %v2268
    %2389 = vmatprep.subr.mxu0 %v2273
    %2390 = vmatpush1.msra.mxu0 %v2272
    %2391 = vmatprep.subr.mxu0 %v2277
    %2392 = vmatpush1.msra.mxu0 %v2276
    %2393 = vmatprep.subr.mxu0 %v2281
    %2394 = vmatpush1.msra.mxu0 %v2280
    %2395 = vmatprep.subr.mxu0 %v2285
    %2396 = vmatpush1.msra.mxu0 %v2284
    %2397 = vmatprep.subr.mxu0 %v2289
    %2398 = vmatpush1.msra.mxu0 %v2288
    %2399 = vmatprep.subr.mxu0 %v2293
    %2400 = vmatpush1.msra.mxu0 %v2292
    %2401 = vmatprep.subr.mxu0 %v2297
    %2402 = vmatpush1.msra.mxu0 %v2296
    %2403 = vmatprep.subr.mxu0 %v2301
    %2404 = vmatpush1.msra.mxu0 %v2300
    %2405 = vmatprep.subr.mxu0 0.0
    %2406 = vmatpush1.msra.mxu0 0.0
    %2407 = vmatprep.subr.mxu0 0.0
    %2408 = vmatpush1.msra.mxu0 0.0
    %2409 = vmatprep.subr.mxu0 0.0
    %2410 = vmatpush1.msra.mxu0 0.0
    %2411 = vmatprep.subr.mxu0 0.0
    %2412 = vmatpush1.msra.mxu0 0.0
    %2413 = vmatprep.subr.mxu0 0.0
    %2414 = vmatpush1.msra.mxu0 0.0
    %2415 = vmatprep.subr.mxu0 0.0
    %2416 = vmatpush1.msra.mxu0 0.0
    %2417 = vmatprep.subr.mxu0 0.0
    %2418 = vmatpush1.msra.mxu0 0.0
    %2419 = vmatprep.subr.mxu0 0.0
    %2420 = vmatpush1.msra.mxu0 0.0
    %2421 = vmatprep.subr.mxu0 0.0
    %2422 = vmatpush1.msra.mxu0 0.0
    %2423 = vmatprep.subr.mxu0 0.0
    %2424 = vmatpush1.msra.mxu0 0.0
    %2425 = vmatprep.subr.mxu0 0.0
    %2426 = vmatpush1.msra.mxu0 0.0
    %2427 = vmatprep.subr.mxu0 0.0
    %2428 = vmatpush1.msra.mxu0 0.0
    %2429 = vmatprep.subr.mxu0 0.0
    %2430 = vmatpush1.msra.mxu0 0.0
    %2431 = vmatprep.subr.mxu0 0.0
    %2432 = vmatpush1.msra.mxu0 0.0
    %2433 = vmatprep.subr.mxu0 0.0
    %2434 = vmatpush1.msra.mxu0 0.0
    %2435 = vmatprep.subr.mxu0 0.0
    %2436 = vmatpush1.msra.mxu0 0.0
    %2437 = vmatprep.mubr.f32.mxu0 0.0
    %2438 = vmatmul.mubr.f32.gmra.mrb[0].mxu0 %v2234
    %v2439 = vpop.f32.mrb[0].mxu0
    %v2440 = vadd.f32 0.0, %v2439
    %v2441 = vpop.f32.mrb[0].mxu0
    %v2442 = vadd.f32 0.0, %v2441
    %2443 = vdwg.mxu0
    %v2448 = vcombine.low %v2369, %v2371
    %v2449 = vcombine.low %v2440, %v2442
    %v2451 = vunpack.c.l.s4 1983009808
    %v2452 = vunpack.c.0.s8 %v2451
    %v2453 = vlaneseq
    %v2454 = vshrl.u32 %v2453, 7
    %v2455 = vsub.s32 %v2452, %v2454
    %v2456 = vrot.slane %v2448, %v2455
    %v2458 = vunpack.c.l.s4 1983009808
    %v2459 = vunpack.c.0.s8 %v2458
    %v2460 = vlaneseq
    %v2461 = vshrl.u32 %v2460, 7
    %v2462 = vsub.s32 %v2459, %v2461
    %v2463 = vrot.slane %v2449, %v2462
    %v2464 = vcombine.low %v2456, %v2463
    %v2466 = vadd.f32 %v2237, %v2464
    %v2467 = vxor.u32 %v2466, 2147483648
    %v2468 = vmul.f32 %v2467, 1.442695
    %v2469 = vpow.pop %v2468
    %v2470 = vadd.f32 %v2469, 1.0
    %v2471 = vrcp.pop %v2470
    %v2472 = vmul.f32 1.0, %v2471
    %v2473 = vtanh.pop %v2466
    %v2475 = vrot.slane %v2472, 2
    %v2477 = vmul.f32 %v2475, %v2230
    %v2479 = vrot.slane %v2473, 4
    %v2481 = vmul.f32 %v2472, %v2479
    %v2482 = vadd.f32 %v2477, %v2481
    %v2483 = vtanh.pop %v2482
    %v2484 = vrot.slane %v2472, 6
    %v2486 = vmul.f32 %v2484, %v2483
    %s2487 = scalar_lea.vmem [#allocation4], 12
    %2488 = vst [vmem:[%s2487] sm:$0x3] %v2486
    %v2489 = vld [vmem:[%s433] sm:$0xff]
    %v2490 = vld [vmem:[#allocation15] sm:$0xff]
    %v2491 = vld [vmem:[#allocation15 + $0x8] sm:$0xff]
    %v2492 = vld [vmem:[#allocation15 + $0x10] sm:$0xff]
    %v2493 = vld [vmem:[#allocation15 + $0x18] sm:$0xff]
    %v2494 = vld [vmem:[#allocation15 + $0x20] sm:$0xff]
    %v2495 = vld [vmem:[#allocation15 + $0x28] sm:$0xff]
    %v2496 = vld [vmem:[#allocation15 + $0x30] sm:$0xff]
    %v2497 = vld [vmem:[#allocation15 + $0x38] sm:$0xff]
    %v2498 = vld [vmem:[#allocation15 + $0x40] sm:$0xff]
    %v2499 = vld [vmem:[#allocation15 + $0x48] sm:$0xff]
    %v2500 = vld [vmem:[#allocation15 + $0x50] sm:$0xff]
    %v2501 = vld [vmem:[#allocation15 + $0x58] sm:$0xff]
    %v2502 = vld [vmem:[#allocation15 + $0x60] sm:$0xff]
    %v2503 = vld [vmem:[#allocation15 + $0x68] sm:$0xff]
    %v2504 = vld [vmem:[#allocation15 + $0x70] sm:$0xff]
    %v2505 = vld [vmem:[#allocation15 + $0x78] sm:$0xff]
    %v2506 = vld [vmem:[#allocation15 + $0x80] sm:$0xff]
    %v2507 = vld [vmem:[#allocation15 + $0x88] sm:$0xff]
    %v2508 = vld [vmem:[#allocation15 + $0x90] sm:$0xff]
    %v2509 = vld [vmem:[#allocation15 + $0x98] sm:$0xff]
    %v2510 = vld [vmem:[#allocation15 + $0xa0] sm:$0xff]
    %v2511 = vld [vmem:[#allocation15 + $0xa8] sm:$0xff]
    %v2512 = vld [vmem:[#allocation15 + $0xb0] sm:$0xff]
    %v2513 = vld [vmem:[#allocation15 + $0xb8] sm:$0xff]
    %v2514 = vld [vmem:[#allocation15 + $0xc0] sm:$0xff]
    %v2515 = vld [vmem:[#allocation15 + $0xc8] sm:$0xff]
    %v2516 = vld [vmem:[#allocation15 + $0xd0] sm:$0xff]
    %v2517 = vld [vmem:[#allocation15 + $0xd8] sm:$0xff]
    %v2518 = vld [vmem:[#allocation15 + $0xe0] sm:$0xff]
    %v2519 = vld [vmem:[#allocation15 + $0xe8] sm:$0xff]
    %v2520 = vld [vmem:[#allocation15 + $0xf0] sm:$0xff]
    %v2521 = vld [vmem:[#allocation15 + $0xf8] sm:$0xff]
    %v2522 = vld [vmem:[#allocation15 + $0x100] sm:$0xff]
    %v2523 = vld [vmem:[#allocation15 + $0x108] sm:$0xff]
    %v2524 = vld [vmem:[#allocation15 + $0x110] sm:$0xff]
    %v2525 = vld [vmem:[#allocation15 + $0x118] sm:$0xff]
    %v2526 = vld [vmem:[#allocation15 + $0x120] sm:$0xff]
    %v2527 = vld [vmem:[#allocation15 + $0x128] sm:$0xff]
    %v2528 = vld [vmem:[#allocation15 + $0x130] sm:$0xff]
    %v2529 = vld [vmem:[#allocation15 + $0x138] sm:$0xff]
    %v2530 = vld [vmem:[#allocation15 + $0x140] sm:$0xff]
    %v2531 = vld [vmem:[#allocation15 + $0x148] sm:$0xff]
    %v2532 = vld [vmem:[#allocation15 + $0x150] sm:$0xff]
    %v2533 = vld [vmem:[#allocation15 + $0x158] sm:$0xff]
    %v2534 = vld [vmem:[#allocation15 + $0x160] sm:$0xff]
    %v2535 = vld [vmem:[#allocation15 + $0x168] sm:$0xff]
    %v2536 = vld [vmem:[#allocation15 + $0x170] sm:$0xff]
    %v2537 = vld [vmem:[#allocation15 + $0x178] sm:$0xff]
    %v2538 = vld [vmem:[#allocation15 + $0x180] sm:$0xff]
    %v2539 = vld [vmem:[#allocation15 + $0x188] sm:$0xff]
    %v2540 = vld [vmem:[#allocation15 + $0x190] sm:$0xff]
    %v2541 = vld [vmem:[#allocation15 + $0x198] sm:$0xff]
    %v2542 = vld [vmem:[#allocation15 + $0x1a0] sm:$0xff]
    %v2543 = vld [vmem:[#allocation15 + $0x1a8] sm:$0xff]
    %v2544 = vld [vmem:[#allocation15 + $0x1b0] sm:$0xff]
    %v2545 = vld [vmem:[#allocation15 + $0x1b8] sm:$0xff]
    %v2546 = vld [vmem:[#allocation15 + $0x1c0] sm:$0xff]
    %v2547 = vld [vmem:[#allocation15 + $0x1c8] sm:$0xff]
    %v2548 = vld [vmem:[#allocation15 + $0x1d0] sm:$0xff]
    %v2549 = vld [vmem:[#allocation15 + $0x1d8] sm:$0xff]
    %v2550 = vld [vmem:[#allocation15 + $0x1e0] sm:$0xff]
    %v2551 = vld [vmem:[#allocation15 + $0x1e8] sm:$0xff]
    %v2552 = vld [vmem:[#allocation15 + $0x1f0] sm:$0xff]
    %v2553 = vld [vmem:[#allocation15 + $0x1f8] sm:$0xff]
    %2554 = vmatprep.subr.mxu0 %v2491
    %2555 = vmatpush1.msra.mxu0 %v2490
    %2556 = vmatprep.subr.mxu0 %v2495
    %2557 = vmatpush1.msra.mxu0 %v2494
    %2558 = vmatprep.subr.mxu0 %v2499
    %2559 = vmatpush1.msra.mxu0 %v2498
    %2560 = vmatprep.subr.mxu0 %v2503
    %2561 = vmatpush1.msra.mxu0 %v2502
    %2562 = vmatprep.subr.mxu0 %v2507
    %2563 = vmatpush1.msra.mxu0 %v2506
    %2564 = vmatprep.subr.mxu0 %v2511
    %2565 = vmatpush1.msra.mxu0 %v2510
    %2566 = vmatprep.subr.mxu0 %v2515
    %2567 = vmatpush1.msra.mxu0 %v2514
    %2568 = vmatprep.subr.mxu0 %v2519
    %2569 = vmatpush1.msra.mxu0 %v2518
    %2570 = vmatprep.subr.mxu0 %v2523
    %2571 = vmatpush1.msra.mxu0 %v2522
    %2572 = vmatprep.subr.mxu0 %v2527
    %2573 = vmatpush1.msra.mxu0 %v2526
    %2574 = vmatprep.subr.mxu0 %v2531
    %2575 = vmatpush1.msra.mxu0 %v2530
    %2576 = vmatprep.subr.mxu0 %v2535
    %2577 = vmatpush1.msra.mxu0 %v2534
    %2578 = vmatprep.subr.mxu0 %v2539
    %2579 = vmatpush1.msra.mxu0 %v2538
    %2580 = vmatprep.subr.mxu0 %v2543
    %2581 = vmatpush1.msra.mxu0 %v2542
    %2582 = vmatprep.subr.mxu0 %v2547
    %2583 = vmatpush1.msra.mxu0 %v2546
    %2584 = vmatprep.subr.mxu0 %v2551
    %2585 = vmatpush1.msra.mxu0 %v2550
    %2586 = vmatprep.subr.mxu0 0.0
    %2587 = vmatpush1.msra.mxu0 0.0
    %2588 = vmatprep.subr.mxu0 0.0
    %2589 = vmatpush1.msra.mxu0 0.0
    %2590 = vmatprep.subr.mxu0 0.0
    %2591 = vmatpush1.msra.mxu0 0.0
    %2592 = vmatprep.subr.mxu0 0.0
    %2593 = vmatpush1.msra.mxu0 0.0
    %2594 = vmatprep.subr.mxu0 0.0
    %2595 = vmatpush1.msra.mxu0 0.0
    %2596 = vmatprep.subr.mxu0 0.0
    %2597 = vmatpush1.msra.mxu0 0.0
    %2598 = vmatprep.subr.mxu0 0.0
    %2599 = vmatpush1.msra.mxu0 0.0
    %2600 = vmatprep.subr.mxu0 0.0
    %2601 = vmatpush1.msra.mxu0 0.0
    %2602 = vmatprep.subr.mxu0 0.0
    %2603 = vmatpush1.msra.mxu0 0.0
    %2604 = vmatprep.subr.mxu0 0.0
    %2605 = vmatpush1.msra.mxu0 0.0
    %2606 = vmatprep.subr.mxu0 0.0
    %2607 = vmatpush1.msra.mxu0 0.0
    %2608 = vmatprep.subr.mxu0 0.0
    %2609 = vmatpush1.msra.mxu0 0.0
    %2610 = vmatprep.subr.mxu0 0.0
    %2611 = vmatpush1.msra.mxu0 0.0
    %2612 = vmatprep.subr.mxu0 0.0
    %2613 = vmatpush1.msra.mxu0 0.0
    %2614 = vmatprep.subr.mxu0 0.0
    %2615 = vmatpush1.msra.mxu0 0.0
    %2616 = vmatprep.subr.mxu0 0.0
    %2617 = vmatpush1.msra.mxu0 0.0
    %2618 = vmatprep.mubr.f32.mxu0 0.0
    %2619 = vmatmul.mubr.f32.gmra.mrb[0].mxu0 %v2486
    %v2620 = vpop.f32.mrb[0].mxu0
    %v2621 = vadd.f32 0.0, %v2620
    %v2622 = vpop.f32.mrb[0].mxu0
    %v2623 = vadd.f32 0.0, %v2622
    %2624 = vdwg.mxu0
    %2625 = vmatprep.subr.mxu0 %v2493
    %2626 = vmatpush1.msra.mxu0 %v2492
    %2627 = vmatprep.subr.mxu0 %v2497
    %2628 = vmatpush1.msra.mxu0 %v2496
    %2629 = vmatprep.subr.mxu0 %v2501
    %2630 = vmatpush1.msra.mxu0 %v2500
    %2631 = vmatprep.subr.mxu0 %v2505
    %2632 = vmatpush1.msra.mxu0 %v2504
    %2633 = vmatprep.subr.mxu0 %v2509
    %2634 = vmatpush1.msra.mxu0 %v2508
    %2635 = vmatprep.subr.mxu0 %v2513
    %2636 = vmatpush1.msra.mxu0 %v2512
    %2637 = vmatprep.subr.mxu0 %v2517
    %2638 = vmatpush1.msra.mxu0 %v2516
    %2639 = vmatprep.subr.mxu0 %v2521
    %2640 = vmatpush1.msra.mxu0 %v2520
    %2641 = vmatprep.subr.mxu0 %v2525
    %2642 = vmatpush1.msra.mxu0 %v2524
    %2643 = vmatprep.subr.mxu0 %v2529
    %2644 = vmatpush1.msra.mxu0 %v2528
    %2645 = vmatprep.subr.mxu0 %v2533
    %2646 = vmatpush1.msra.mxu0 %v2532
    %2647 = vmatprep.subr.mxu0 %v2537
    %2648 = vmatpush1.msra.mxu0 %v2536
    %2649 = vmatprep.subr.mxu0 %v2541
    %2650 = vmatpush1.msra.mxu0 %v2540
    %2651 = vmatprep.subr.mxu0 %v2545
    %2652 = vmatpush1.msra.mxu0 %v2544
    %2653 = vmatprep.subr.mxu0 %v2549
    %2654 = vmatpush1.msra.mxu0 %v2548
    %2655 = vmatprep.subr.mxu0 %v2553
    %2656 = vmatpush1.msra.mxu0 %v2552
    %2657 = vmatprep.subr.mxu0 0.0
    %2658 = vmatpush1.msra.mxu0 0.0
    %2659 = vmatprep.subr.mxu0 0.0
    %2660 = vmatpush1.msra.mxu0 0.0
    %2661 = vmatprep.subr.mxu0 0.0
    %2662 = vmatpush1.msra.mxu0 0.0
    %2663 = vmatprep.subr.mxu0 0.0
    %2664 = vmatpush1.msra.mxu0 0.0
    %2665 = vmatprep.subr.mxu0 0.0
    %2666 = vmatpush1.msra.mxu0 0.0
    %2667 = vmatprep.subr.mxu0 0.0
    %2668 = vmatpush1.msra.mxu0 0.0
    %2669 = vmatprep.subr.mxu0 0.0
    %2670 = vmatpush1.msra.mxu0 0.0
    %2671 = vmatprep.subr.mxu0 0.0
    %2672 = vmatpush1.msra.mxu0 0.0
    %2673 = vmatprep.subr.mxu0 0.0
    %2674 = vmatpush1.msra.mxu0 0.0
    %2675 = vmatprep.subr.mxu0 0.0
    %2676 = vmatpush1.msra.mxu0 0.0
    %2677 = vmatprep.subr.mxu0 0.0
    %2678 = vmatpush1.msra.mxu0 0.0
    %2679 = vmatprep.subr.mxu0 0.0
    %2680 = vmatpush1.msra.mxu0 0.0
    %2681 = vmatprep.subr.mxu0 0.0
    %2682 = vmatpush1.msra.mxu0 0.0
    %2683 = vmatprep.subr.mxu0 0.0
    %2684 = vmatpush1.msra.mxu0 0.0
    %2685 = vmatprep.subr.mxu0 0.0
    %2686 = vmatpush1.msra.mxu0 0.0
    %2687 = vmatprep.subr.mxu0 0.0
    %2688 = vmatpush1.msra.mxu0 0.0
    %2689 = vmatprep.mubr.f32.mxu0 0.0
    %2690 = vmatmul.mubr.f32.gmra.mrb[0].mxu0 %v2486
    %v2691 = vpop.f32.mrb[0].mxu0
    %v2692 = vadd.f32 0.0, %v2691
    %v2693 = vpop.f32.mrb[0].mxu0
    %v2694 = vadd.f32 0.0, %v2693
    %2695 = vdwg.mxu0
    %v2700 = vcombine.low %v2621, %v2623
    %v2701 = vcombine.low %v2692, %v2694
    %v2703 = vunpack.c.l.s4 1983009808
    %v2704 = vunpack.c.0.s8 %v2703
    %v2705 = vlaneseq
    %v2706 = vshrl.u32 %v2705, 7
    %v2707 = vsub.s32 %v2704, %v2706
    %v2708 = vrot.slane %v2700, %v2707
    %v2710 = vunpack.c.l.s4 1983009808
    %v2711 = vunpack.c.0.s8 %v2710
    %v2712 = vlaneseq
    %v2713 = vshrl.u32 %v2712, 7
    %v2714 = vsub.s32 %v2711, %v2713
    %v2715 = vrot.slane %v2701, %v2714
    %v2716 = vcombine.low %v2708, %v2715
    %v2718 = vadd.f32 %v2489, %v2716
    %v2719 = vxor.u32 %v2718, 2147483648
    %v2720 = vmul.f32 %v2719, 1.442695
    %v2721 = vpow.pop %v2720
    %v2722 = vadd.f32 %v2721, 1.0
    %v2723 = vrcp.pop %v2722
    %v2724 = vmul.f32 1.0, %v2723
    %v2725 = vtanh.pop %v2718
    %v2727 = vrot.slane %v2724, 2
    %v2729 = vmul.f32 %v2727, %v2482
    %v2731 = vrot.slane %v2725, 4
    %v2733 = vmul.f32 %v2724, %v2731
    %v2734 = vadd.f32 %v2729, %v2733
    %v2735 = vtanh.pop %v2734
    %v2736 = vrot.slane %v2724, 6
    %v2738 = vmul.f32 %v2736, %v2735
    %s2739 = scalar_lea.vmem [#allocation4], 14
    %2740 = vst [vmem:[%s2739] sm:$0x3] %v2738
    %v2741 = vld [vmem:[#allocation4] sm:$0x3]
    %v2744 = vunpack.c.l.s4 1966171168
    %v2745 = vunpack.c.0.s8 %v2744
    %v2746 = vlaneseq
    %v2747 = vshrl.u32 %v2746, 7
    %v2748 = vsub.s32 %v2745, %v2747
    %v2749 = vrot.slane %v2741, %v2748
    %v2750 = vcombine.high %v2749, %v2749
    %v2752 = vunpack.c.l.s4 1966171168
    %v2753 = vunpack.c.0.s8 %v2752
    %v2754 = vlaneseq
    %v2755 = vshrl.u32 %v2754, 7
    %v2756 = vsub.s32 %v2753, %v2755
    %v2757 = vrot.slane %v2749, %v2756
    %v2759 = vunpack.c.l.s4 1966171168
    %v2760 = vunpack.c.0.s8 %v2759
    %v2761 = vlaneseq
    %v2762 = vshrl.u32 %v2761, 7
    %v2763 = vsub.s32 %v2760, %v2762
    %v2764 = vrot.slane %v2750, %v2763
    %2767 = vst [vmem:[#allocation5] sm:$0x1] %v2757
    %2768 = vst [vmem:[#allocation5 + $0x8] sm:$0x1] %v2764
    %v2769 = vld [vmem:[%s1227] sm:$0x3]
    %v2772 = vunpack.c.l.s4 1966171168
    %v2773 = vunpack.c.0.s8 %v2772
    %v2774 = vlaneseq
    %v2775 = vshrl.u32 %v2774, 7
    %v2776 = vsub.s32 %v2773, %v2775
    %v2777 = vrot.slane %v2769, %v2776
    %v2778 = vcombine.high %v2777, %v2777
    %v2780 = vunpack.c.l.s4 1966171168
    %v2781 = vunpack.c.0.s8 %v2780
    %v2782 = vlaneseq
    %v2783 = vshrl.u32 %v2782, 7
    %v2784 = vsub.s32 %v2781, %v2783
    %v2785 = vrot.slane %v2777, %v2784
    %v2787 = vunpack.c.l.s4 1966171168
    %v2788 = vunpack.c.0.s8 %v2787
    %v2789 = vlaneseq
    %v2790 = vshrl.u32 %v2789, 7
    %v2791 = vsub.s32 %v2788, %v2790
    %v2792 = vrot.slane %v2778, %v2791
    %2795 = vst [vmem:[#allocation5 + $0x1] sm:$0x1] %v2785
    %2796 = vst [vmem:[#allocation5 + $0x9] sm:$0x1] %v2792
    %v2797 = vld [vmem:[%s1479] sm:$0x3]
    %v2800 = vunpack.c.l.s4 1966171168
    %v2801 = vunpack.c.0.s8 %v2800
    %v2802 = vlaneseq
    %v2803 = vshrl.u32 %v2802, 7
    %v2804 = vsub.s32 %v2801, %v2803
    %v2805 = vrot.slane %v2797, %v2804
    %v2806 = vcombine.high %v2805, %v2805
    %v2808 = vunpack.c.l.s4 1966171168
    %v2809 = vunpack.c.0.s8 %v2808
    %v2810 = vlaneseq
    %v2811 = vshrl.u32 %v2810, 7
    %v2812 = vsub.s32 %v2809, %v2811
    %v2813 = vrot.slane %v2805, %v2812
    %v2815 = vunpack.c.l.s4 1966171168
    %v2816 = vunpack.c.0.s8 %v2815
    %v2817 = vlaneseq
    %v2818 = vshrl.u32 %v2817, 7
    %v2819 = vsub.s32 %v2816, %v2818
    %v2820 = vrot.slane %v2806, %v2819
    %2823 = vst [vmem:[#allocation5 + $0x2] sm:$0x1] %v2813
    %2824 = vst [vmem:[#allocation5 + $0xa] sm:$0x1] %v2820
    %v2825 = vld [vmem:[%s1731] sm:$0x3]
    %v2828 = vunpack.c.l.s4 1966171168
    %v2829 = vunpack.c.0.s8 %v2828
    %v2830 = vlaneseq
    %v2831 = vshrl.u32 %v2830, 7
    %v2832 = vsub.s32 %v2829, %v2831
    %v2833 = vrot.slane %v2825, %v2832
    %v2834 = vcombine.high %v2833, %v2833
    %v2836 = vunpack.c.l.s4 1966171168
    %v2837 = vunpack.c.0.s8 %v2836
    %v2838 = vlaneseq
    %v2839 = vshrl.u32 %v2838, 7
    %v2840 = vsub.s32 %v2837, %v2839
    %v2841 = vrot.slane %v2833, %v2840
    %v2843 = vunpack.c.l.s4 1966171168
    %v2844 = vunpack.c.0.s8 %v2843
    %v2845 = vlaneseq
    %v2846 = vshrl.u32 %v2845, 7
    %v2847 = vsub.s32 %v2844, %v2846
    %v2848 = vrot.slane %v2834, %v2847
    %2851 = vst [vmem:[#allocation5 + $0x3] sm:$0x1] %v2841
    %2852 = vst [vmem:[#allocation5 + $0xb] sm:$0x1] %v2848
    %v2853 = vld [vmem:[%s1983] sm:$0x3]
    %v2856 = vunpack.c.l.s4 1966171168
    %v2857 = vunpack.c.0.s8 %v2856
    %v2858 = vlaneseq
    %v2859 = vshrl.u32 %v2858, 7
    %v2860 = vsub.s32 %v2857, %v2859
    %v2861 = vrot.slane %v2853, %v2860
    %v2862 = vcombine.high %v2861, %v2861
    %v2864 = vunpack.c.l.s4 1966171168
    %v2865 = vunpack.c.0.s8 %v2864
    %v2866 = vlaneseq
    %v2867 = vshrl.u32 %v2866, 7
    %v2868 = vsub.s32 %v2865, %v2867
    %v2869 = vrot.slane %v2861, %v2868
    %v2871 = vunpack.c.l.s4 1966171168
    %v2872 = vunpack.c.0.s8 %v2871
    %v2873 = vlaneseq
    %v2874 = vshrl.u32 %v2873, 7
    %v2875 = vsub.s32 %v2872, %v2874
    %v2876 = vrot.slane %v2862, %v2875
    %2879 = vst [vmem:[#allocation5 + $0x4] sm:$0x1] %v2869
    %2880 = vst [vmem:[#allocation5 + $0xc] sm:$0x1] %v2876
    %v2881 = vld [vmem:[%s2235] sm:$0x3]
    %v2884 = vunpack.c.l.s4 1966171168
    %v2885 = vunpack.c.0.s8 %v2884
    %v2886 = vlaneseq
    %v2887 = vshrl.u32 %v2886, 7
    %v2888 = vsub.s32 %v2885, %v2887
    %v2889 = vrot.slane %v2881, %v2888
    %v2890 = vcombine.high %v2889, %v2889
    %v2892 = vunpack.c.l.s4 1966171168
    %v2893 = vunpack.c.0.s8 %v2892
    %v2894 = vlaneseq
    %v2895 = vshrl.u32 %v2894, 7
    %v2896 = vsub.s32 %v2893, %v2895
    %v2897 = vrot.slane %v2889, %v2896
    %v2899 = vunpack.c.l.s4 1966171168
    %v2900 = vunpack.c.0.s8 %v2899
    %v2901 = vlaneseq
    %v2902 = vshrl.u32 %v2901, 7
    %v2903 = vsub.s32 %v2900, %v2902
    %v2904 = vrot.slane %v2890, %v2903
    %2907 = vst [vmem:[#allocation5 + $0x5] sm:$0x1] %v2897
    %2908 = vst [vmem:[#allocation5 + $0xd] sm:$0x1] %v2904
    %v2909 = vld [vmem:[%s2487] sm:$0x3]
    %v2912 = vunpack.c.l.s4 1966171168
    %v2913 = vunpack.c.0.s8 %v2912
    %v2914 = vlaneseq
    %v2915 = vshrl.u32 %v2914, 7
    %v2916 = vsub.s32 %v2913, %v2915
    %v2917 = vrot.slane %v2909, %v2916
    %v2918 = vcombine.high %v2917, %v2917
    %v2920 = vunpack.c.l.s4 1966171168
    %v2921 = vunpack.c.0.s8 %v2920
    %v2922 = vlaneseq
    %v2923 = vshrl.u32 %v2922, 7
    %v2924 = vsub.s32 %v2921, %v2923
    %v2925 = vrot.slane %v2917, %v2924
    %v2927 = vunpack.c.l.s4 1966171168
    %v2928 = vunpack.c.0.s8 %v2927
    %v2929 = vlaneseq
    %v2930 = vshrl.u32 %v2929, 7
    %v2931 = vsub.s32 %v2928, %v2930
    %v2932 = vrot.slane %v2918, %v2931
    %2935 = vst [vmem:[#allocation5 + $0x6] sm:$0x1] %v2925
    %2936 = vst [vmem:[#allocation5 + $0xe] sm:$0x1] %v2932
    %v2937 = vld [vmem:[%s2739] sm:$0x3]
    %v2940 = vunpack.c.l.s4 1966171168
    %v2941 = vunpack.c.0.s8 %v2940
    %v2942 = vlaneseq
    %v2943 = vshrl.u32 %v2942, 7
    %v2944 = vsub.s32 %v2941, %v2943
    %v2945 = vrot.slane %v2937, %v2944
    %v2946 = vcombine.high %v2945, %v2945
    %v2948 = vunpack.c.l.s4 1966171168
    %v2949 = vunpack.c.0.s8 %v2948
    %v2950 = vlaneseq
    %v2951 = vshrl.u32 %v2950, 7
    %v2952 = vsub.s32 %v2949, %v2951
    %v2953 = vrot.slane %v2945, %v2952
    %v2955 = vunpack.c.l.s4 1966171168
    %v2956 = vunpack.c.0.s8 %v2955
    %v2957 = vlaneseq
    %v2958 = vshrl.u32 %v2957, 7
    %v2959 = vsub.s32 %v2956, %v2958
    %v2960 = vrot.slane %v2946, %v2959
    %2963 = vst [vmem:[#allocation5 + $0x7] sm:$0x1] %v2953
    %2964 = vst [vmem:[#allocation5 + $0xf] sm:$0x1] %v2960
    %v2965 = vld [vmem:[#allocation5] sm:$0xff]
    %v2966 = vld [vmem:[#allocation5 + $0x8] sm:$0xff]
    %v2967 = vld [vmem:[%s5] sm:$0x3]
    %v2968 = vld [vmem:[#allocation8] sm:$0x1]
    %v2970 = vrot.slane %v2967, 1
    %v2971 = vlaneseq
    %v2972 = vshrl.u32 %v2971, 7
    %v2973 = vsub.s32 0, %v2972
    %v2974 = vrot.slane %v2970, %v2973
    %v2976 = vmul.f32 %v2965, %v2974
    %v2977 = vmul.f32 %v2966, %v2974
    %2978 = vadd.xlane.f32.xlu0 %v2976
    %v2979 = vpop.xlane.xlu0 %2978
    %2980 = vadd.xlane.f32.xlu0 %v2977
    %v2981 = vpop.xlane.xlu0 %2980
    %v2982 = vlaneseq
    %v2983 = vshrl.u32 %v2982, 7
    %v2984 = vsub.s32 0, %v2983
    %v2985 = vrot.slane %v2967, %v2984
    %v2987 = vmul.f32 %v2738, %v2985
    %vm2988 = vcmask 1041408
    %v2989 = vsel %vm2988, %v2987, 0.0
    %2990 = vadd.xlane.f32.xlu0 %v2989
    %v2991 = vpop.xlane.xlu0 %2990
    %v2993 = vlaneseq
    %v2994 = vshrl.u32 %v2993, 7
    %v2995 = vsub.s32 0, %v2994
    %v2996 = vrot.slane %v2991, %v2995
    %v2997 = vlaneseq
    %v2998 = vshrl.u32 %v2997, 7
    %v2999 = vsub.s32 1, %v2998
    %v3000 = vrot.slane %v2991, %v2999
    %v3003 = vadd.f32 %v2979, %v2996
    %v3004 = vadd.f32 %v2981, %v3000
    %v3006 = vlaneseq
    %v3007 = vshrl.u32 %v3006, 7
    %v3008 = vsub.s32 0, %v3007
    %v3009 = vrot.slane %v2968, %v3008
    %3010 = vset.pattern.permute.xlu0 0
    %3011 = vperm.xlu0 %3010, %v3009
    %v3012 = vpop.permute.xlu0 %3011
    %v3014 = vadd.f32 %v3003, %v3012
    %v3015 = vadd.f32 %v3004, %v3012
    %v3016 = vmax.f32 %v3014, 0.0
    %v3017 = vmax.f32 %v3015, 0.0
    %3020 = vset.pattern.permute.xlu0 0
    %3021 = vperm.xlu0 %3020, %v3016
    %v3022 = vpop.permute.xlu0 %3021
    %3023 = vset.pattern.permute.xlu0 0
    %3024 = vperm.xlu0 %3023, %v3017
    %v3025 = vpop.permute.xlu0 %3024
    %v3026 = vlaneseq
    %v3027 = vand.u32 %v3026, 127
    %v3028 = vlaneseq
    %v3029 = vshrl.u32 %v3028, 7
    %v3030 = vsub.s32 %v3027, %v3029
    %v3031 = vrot.slane %v3022, %v3030
    %v3032 = vlaneseq
    %v3033 = vshrl.u32 %v3032, 7
    %v3034 = vsub.s32 %v3027, %v3033
    %v3035 = vrot.slane %v3025, %v3034
    %vm3036 = vcmask 1041409
    %v3037 = vsel %vm3036, %v3035, %v3031
    %vm3039 = vcmask 58368
    %v3040 = vsel %vm3039, %v3037, -inf
    %3041 = vmax.xlane.f32.xlu0 %v3040
    %v3042 = vpop.xlane.xlu0 %3041
    %v3044 = vlaneseq
    %v3045 = vshrl.u32 %v3044, 7
    %v3046 = vsub.s32 0, %v3045
    %v3047 = vrot.slane %v3042, %v3046
    %v3048 = vlaneseq
    %v3049 = vshrl.u32 %v3048, 7
    %v3050 = vsub.s32 1, %v3049
    %v3051 = vrot.slane %v3042, %v3050
    %v3054 = vsub.f32 %v3016, %v3047
    %v3055 = vsub.f32 %v3017, %v3051
    %v3056 = vmul.f32 %v3054, 1.442695
    %v3057 = vpow.pop %v3056
    %v3058 = vmul.f32 %v3055, 1.442695
    %v3059 = vpow.pop %v3058
    %3062 = vset.pattern.permute.xlu0 0
    %3063 = vperm.xlu0 %3062, %v3057
    %v3064 = vpop.permute.xlu0 %3063
    %3065 = vset.pattern.permute.xlu0 0
    %3066 = vperm.xlu0 %3065, %v3059
    %v3067 = vpop.permute.xlu0 %3066
    %v3068 = vlaneseq
    %v3069 = vshrl.u32 %v3068, 7
    %v3070 = vsub.s32 %v3027, %v3069
    %v3071 = vrot.slane %v3064, %v3070
    %v3072 = vlaneseq
    %v3073 = vshrl.u32 %v3072, 7
    %v3074 = vsub.s32 %v3027, %v3073
    %v3075 = vrot.slane %v3067, %v3074
    %v3076 = vsel %vm3036, %v3075, %v3071
    %v3078 = vsel %vm3039, %v3076, 0.0
    %3079 = vadd.xlane.f32.xlu0 %v3078
    %v3080 = vpop.xlane.xlu0 %3079
    %v3082 = vlaneseq
    %v3083 = vshrl.u32 %v3082, 7
    %v3084 = vsub.s32 0, %v3083
    %v3085 = vrot.slane %v3080, %v3084
    %v3086 = vlaneseq
    %v3087 = vshrl.u32 %v3086, 7
    %v3088 = vsub.s32 1, %v3087
    %v3089 = vrot.slane %v3080, %v3088
    %v3092 = vrcp.pop %v3085
    %v3093 = vmul.f32 %v3057, %v3092
    %v3094 = vrcp.pop %v3089
    %v3095 = vmul.f32 %v3059, %v3094
    %3097 = vset.pattern.permute.xlu0 0
    %3098 = vperm.xlu0 %3097, %v3093
    %v3099 = vpop.permute.xlu0 %3098
    %3102 = vset.pattern.permute.xlu0 0
    %3103 = vperm.xlu0 %3102, %v3095
    %v3104 = vpop.permute.xlu0 %3103
    %v3106 = vmul.f32 %v3099, %v2965
    %v3107 = vmul.f32 %v3104, %v2966
    %v3108 = vrot.slane %v3106, 4
    %v3109 = vadd.f32 %v3106, %v3108
    %v3110 = vrot.slane %v3109, 2
    %v3111 = vadd.f32 %v3109, %v3110
    %v3112 = vrot.slane %v3111, 1
    %v3113 = vadd.f32 %v3111, %v3112
    %v3114 = vrot.slane %v3107, 4
    %v3115 = vadd.f32 %v3107, %v3114
    %v3116 = vrot.slane %v3115, 2
    %v3117 = vadd.f32 %v3115, %v3116
    %v3118 = vrot.slane %v3117, 1
    %v3119 = vadd.f32 %v3117, %v3118
    %v3122 = vsel %vm3036, %v3119, %v3113
    %v3124 = vld [vmem:[#allocation3] sm:$0xff]
    %v3125 = vld [vmem:[#allocation18] sm:$0xff]
    %v3126 = vld [vmem:[#allocation18 + $0x8] sm:$0xff]
    %v3127 = vld [vmem:[#allocation18 + $0x10] sm:$0xff]
    %v3128 = vld [vmem:[#allocation18 + $0x18] sm:$0xff]
    %v3129 = vld [vmem:[#allocation18 + $0x20] sm:$0xff]
    %v3130 = vld [vmem:[#allocation18 + $0x28] sm:$0xff]
    %v3131 = vld [vmem:[#allocation18 + $0x30] sm:$0xff]
    %v3132 = vld [vmem:[#allocation18 + $0x38] sm:$0xff]
    %v3133 = vld [vmem:[#allocation18 + $0x40] sm:$0xff]
    %v3134 = vld [vmem:[#allocation18 + $0x48] sm:$0xff]
    %v3135 = vld [vmem:[#allocation18 + $0x50] sm:$0xff]
    %v3136 = vld [vmem:[#allocation18 + $0x58] sm:$0xff]
    %v3137 = vld [vmem:[#allocation18 + $0x60] sm:$0xff]
    %v3138 = vld [vmem:[#allocation18 + $0x68] sm:$0xff]
    %v3139 = vld [vmem:[#allocation18 + $0x70] sm:$0xff]
    %v3140 = vld [vmem:[#allocation18 + $0x78] sm:$0xff]
    %v3141 = vld [vmem:[#allocation18 + $0x80] sm:$0xff]
    %v3142 = vld [vmem:[#allocation18 + $0x88] sm:$0xff]
    %v3143 = vld [vmem:[#allocation18 + $0x90] sm:$0xff]
    %v3144 = vld [vmem:[#allocation18 + $0x98] sm:$0xff]
    %v3145 = vld [vmem:[#allocation18 + $0xa0] sm:$0xff]
    %v3146 = vld [vmem:[#allocation18 + $0xa8] sm:$0xff]
    %v3147 = vld [vmem:[#allocation18 + $0xb0] sm:$0xff]
    %v3148 = vld [vmem:[#allocation18 + $0xb8] sm:$0xff]
    %v3149 = vld [vmem:[#allocation18 + $0xc0] sm:$0xff]
    %v3150 = vld [vmem:[#allocation18 + $0xc8] sm:$0xff]
    %v3151 = vld [vmem:[#allocation18 + $0xd0] sm:$0xff]
    %v3152 = vld [vmem:[#allocation18 + $0xd8] sm:$0xff]
    %v3153 = vld [vmem:[#allocation18 + $0xe0] sm:$0xff]
    %v3154 = vld [vmem:[#allocation18 + $0xe8] sm:$0xff]
    %v3155 = vld [vmem:[#allocation18 + $0xf0] sm:$0xff]
    %v3156 = vld [vmem:[#allocation18 + $0xf8] sm:$0xff]
    %v3157 = vld [vmem:[#allocation18 + $0x100] sm:$0xff]
    %v3158 = vld [vmem:[#allocation18 + $0x108] sm:$0xff]
    %v3159 = vld [vmem:[#allocation18 + $0x110] sm:$0xff]
    %v3160 = vld [vmem:[#allocation18 + $0x118] sm:$0xff]
    %v3161 = vld [vmem:[#allocation18 + $0x120] sm:$0xff]
    %v3162 = vld [vmem:[#allocation18 + $0x128] sm:$0xff]
    %v3163 = vld [vmem:[#allocation18 + $0x130] sm:$0xff]
    %v3164 = vld [vmem:[#allocation18 + $0x138] sm:$0xff]
    %v3165 = vld [vmem:[#allocation18 + $0x140] sm:$0xff]
    %v3166 = vld [vmem:[#allocation18 + $0x148] sm:$0xff]
    %v3167 = vld [vmem:[#allocation18 + $0x150] sm:$0xff]
    %v3168 = vld [vmem:[#allocation18 + $0x158] sm:$0xff]
    %v3169 = vld [vmem:[#allocation18 + $0x160] sm:$0xff]
    %v3170 = vld [vmem:[#allocation18 + $0x168] sm:$0xff]
    %v3171 = vld [vmem:[#allocation18 + $0x170] sm:$0xff]
    %v3172 = vld [vmem:[#allocation18 + $0x178] sm:$0xff]
    %v3173 = vld [vmem:[#allocation18 + $0x180] sm:$0xff]
    %v3174 = vld [vmem:[#allocation18 + $0x188] sm:$0xff]
    %v3175 = vld [vmem:[#allocation18 + $0x190] sm:$0xff]
    %v3176 = vld [vmem:[#allocation18 + $0x198] sm:$0xff]
    %v3177 = vld [vmem:[#allocation18 + $0x1a0] sm:$0xff]
    %v3178 = vld [vmem:[#allocation18 + $0x1a8] sm:$0xff]
    %v3179 = vld [vmem:[#allocation18 + $0x1b0] sm:$0xff]
    %v3180 = vld [vmem:[#allocation18 + $0x1b8] sm:$0xff]
    %v3181 = vld [vmem:[#allocation18 + $0x1c0] sm:$0xff]
    %v3182 = vld [vmem:[#allocation18 + $0x1c8] sm:$0xff]
    %v3183 = vld [vmem:[#allocation18 + $0x1d0] sm:$0xff]
    %v3184 = vld [vmem:[#allocation18 + $0x1d8] sm:$0xff]
    %v3185 = vld [vmem:[#allocation18 + $0x1e0] sm:$0xff]
    %v3186 = vld [vmem:[#allocation18 + $0x1e8] sm:$0xff]
    %v3187 = vld [vmem:[#allocation18 + $0x1f0] sm:$0xff]
    %v3188 = vld [vmem:[#allocation18 + $0x1f8] sm:$0xff]
    %v3189 = vld [vmem:[#allocation18 + $0x200] sm:$0xff]
    %v3190 = vld [vmem:[#allocation18 + $0x208] sm:$0xff]
    %v3191 = vld [vmem:[#allocation18 + $0x210] sm:$0xff]
    %v3192 = vld [vmem:[#allocation18 + $0x218] sm:$0xff]
    %v3193 = vld [vmem:[#allocation18 + $0x220] sm:$0xff]
    %v3194 = vld [vmem:[#allocation18 + $0x228] sm:$0xff]
    %v3195 = vld [vmem:[#allocation18 + $0x230] sm:$0xff]
    %v3196 = vld [vmem:[#allocation18 + $0x238] sm:$0xff]
    %v3197 = vld [vmem:[#allocation18 + $0x240] sm:$0xff]
    %v3198 = vld [vmem:[#allocation18 + $0x248] sm:$0xff]
    %v3199 = vld [vmem:[#allocation18 + $0x250] sm:$0xff]
    %v3200 = vld [vmem:[#allocation18 + $0x258] sm:$0xff]
    %v3201 = vld [vmem:[#allocation18 + $0x260] sm:$0xff]
    %v3202 = vld [vmem:[#allocation18 + $0x268] sm:$0xff]
    %v3203 = vld [vmem:[#allocation18 + $0x270] sm:$0xff]
    %v3204 = vld [vmem:[#allocation18 + $0x278] sm:$0xff]
    %v3205 = vld [vmem:[#allocation18 + $0x280] sm:$0xff]
    %v3206 = vld [vmem:[#allocation18 + $0x288] sm:$0xff]
    %v3207 = vld [vmem:[#allocation18 + $0x290] sm:$0xff]
    %v3208 = vld [vmem:[#allocation18 + $0x298] sm:$0xff]
    %v3209 = vld [vmem:[#allocation18 + $0x2a0] sm:$0xff]
    %v3210 = vld [vmem:[#allocation18 + $0x2a8] sm:$0xff]
    %v3211 = vld [vmem:[#allocation18 + $0x2b0] sm:$0xff]
    %v3212 = vld [vmem:[#allocation18 + $0x2b8] sm:$0xff]
    %v3213 = vld [vmem:[#allocation18 + $0x2c0] sm:$0xff]
    %v3214 = vld [vmem:[#allocation18 + $0x2c8] sm:$0xff]
    %v3215 = vld [vmem:[#allocation18 + $0x2d0] sm:$0xff]
    %v3216 = vld [vmem:[#allocation18 + $0x2d8] sm:$0xff]
    %v3217 = vld [vmem:[#allocation18 + $0x2e0] sm:$0xff]
    %v3218 = vld [vmem:[#allocation18 + $0x2e8] sm:$0xff]
    %v3219 = vld [vmem:[#allocation18 + $0x2f0] sm:$0xff]
    %v3220 = vld [vmem:[#allocation18 + $0x2f8] sm:$0xff]
    %v3221 = vld [vmem:[#allocation18 + $0x300] sm:$0xff]
    %v3222 = vld [vmem:[#allocation18 + $0x308] sm:$0xff]
    %v3223 = vld [vmem:[#allocation18 + $0x310] sm:$0xff]
    %v3224 = vld [vmem:[#allocation18 + $0x318] sm:$0xff]
    %v3225 = vld [vmem:[#allocation18 + $0x320] sm:$0xff]
    %v3226 = vld [vmem:[#allocation18 + $0x328] sm:$0xff]
    %v3227 = vld [vmem:[#allocation18 + $0x330] sm:$0xff]
    %v3228 = vld [vmem:[#allocation18 + $0x338] sm:$0xff]
    %v3229 = vld [vmem:[#allocation18 + $0x340] sm:$0xff]
    %v3230 = vld [vmem:[#allocation18 + $0x348] sm:$0xff]
    %v3231 = vld [vmem:[#allocation18 + $0x350] sm:$0xff]
    %v3232 = vld [vmem:[#allocation18 + $0x358] sm:$0xff]
    %v3233 = vld [vmem:[#allocation18 + $0x360] sm:$0xff]
    %v3234 = vld [vmem:[#allocation18 + $0x368] sm:$0xff]
    %v3235 = vld [vmem:[#allocation18 + $0x370] sm:$0xff]
    %v3236 = vld [vmem:[#allocation18 + $0x378] sm:$0xff]
    %v3237 = vld [vmem:[#allocation18 + $0x380] sm:$0xff]
    %v3238 = vld [vmem:[#allocation18 + $0x388] sm:$0xff]
    %v3239 = vld [vmem:[#allocation18 + $0x390] sm:$0xff]
    %v3240 = vld [vmem:[#allocation18 + $0x398] sm:$0xff]
    %v3241 = vld [vmem:[#allocation18 + $0x3a0] sm:$0xff]
    %v3242 = vld [vmem:[#allocation18 + $0x3a8] sm:$0xff]
    %v3243 = vld [vmem:[#allocation18 + $0x3b0] sm:$0xff]
    %v3244 = vld [vmem:[#allocation18 + $0x3b8] sm:$0xff]
    %v3245 = vld [vmem:[#allocation18 + $0x3c0] sm:$0xff]
    %v3246 = vld [vmem:[#allocation18 + $0x3c8] sm:$0xff]
    %v3247 = vld [vmem:[#allocation18 + $0x3d0] sm:$0xff]
    %v3248 = vld [vmem:[#allocation18 + $0x3d8] sm:$0xff]
    %v3249 = vld [vmem:[#allocation18 + $0x3e0] sm:$0xff]
    %v3250 = vld [vmem:[#allocation18 + $0x3e8] sm:$0xff]
    %v3251 = vld [vmem:[#allocation18 + $0x3f0] sm:$0xff]
    %v3252 = vld [vmem:[#allocation18 + $0x3f8] sm:$0xff]
    %3253 = vmatprep.subr.mxu0 %v3126
    %3254 = vmatpush1.msra.mxu0 %v3125
    %3255 = vmatprep.subr.mxu0 %v3130
    %3256 = vmatpush1.msra.mxu0 %v3129
    %3257 = vmatprep.subr.mxu0 %v3134
    %3258 = vmatpush1.msra.mxu0 %v3133
    %3259 = vmatprep.subr.mxu0 %v3138
    %3260 = vmatpush1.msra.mxu0 %v3137
    %3261 = vmatprep.subr.mxu0 %v3142
    %3262 = vmatpush1.msra.mxu0 %v3141
    %3263 = vmatprep.subr.mxu0 %v3146
    %3264 = vmatpush1.msra.mxu0 %v3145
    %3265 = vmatprep.subr.mxu0 %v3150
    %3266 = vmatpush1.msra.mxu0 %v3149
    %3267 = vmatprep.subr.mxu0 %v3154
    %3268 = vmatpush1.msra.mxu0 %v3153
    %3269 = vmatprep.subr.mxu0 %v3158
    %3270 = vmatpush1.msra.mxu0 %v3157
    %3271 = vmatprep.subr.mxu0 %v3162
    %3272 = vmatpush1.msra.mxu0 %v3161
    %3273 = vmatprep.subr.mxu0 %v3166
    %3274 = vmatpush1.msra.mxu0 %v3165
    %3275 = vmatprep.subr.mxu0 %v3170
    %3276 = vmatpush1.msra.mxu0 %v3169
    %3277 = vmatprep.subr.mxu0 %v3174
    %3278 = vmatpush1.msra.mxu0 %v3173
    %3279 = vmatprep.subr.mxu0 %v3178
    %3280 = vmatpush1.msra.mxu0 %v3177
    %3281 = vmatprep.subr.mxu0 %v3182
    %3282 = vmatpush1.msra.mxu0 %v3181
    %3283 = vmatprep.subr.mxu0 %v3186
    %3284 = vmatpush1.msra.mxu0 %v3185
    %3285 = vmatprep.subr.mxu0 %v3190
    %3286 = vmatpush1.msra.mxu0 %v3189
    %3287 = vmatprep.subr.mxu0 %v3194
    %3288 = vmatpush1.msra.mxu0 %v3193
    %3289 = vmatprep.subr.mxu0 %v3198
    %3290 = vmatpush1.msra.mxu0 %v3197
    %3291 = vmatprep.subr.mxu0 %v3202
    %3292 = vmatpush1.msra.mxu0 %v3201
    %3293 = vmatprep.subr.mxu0 %v3206
    %3294 = vmatpush1.msra.mxu0 %v3205
    %3295 = vmatprep.subr.mxu0 %v3210
    %3296 = vmatpush1.msra.mxu0 %v3209
    %3297 = vmatprep.subr.mxu0 %v3214
    %3298 = vmatpush1.msra.mxu0 %v3213
    %3299 = vmatprep.subr.mxu0 %v3218
    %3300 = vmatpush1.msra.mxu0 %v3217
    %3301 = vmatprep.subr.mxu0 %v3222
    %3302 = vmatpush1.msra.mxu0 %v3221
    %3303 = vmatprep.subr.mxu0 %v3226
    %3304 = vmatpush1.msra.mxu0 %v3225
    %3305 = vmatprep.subr.mxu0 %v3230
    %3306 = vmatpush1.msra.mxu0 %v3229
    %3307 = vmatprep.subr.mxu0 %v3234
    %3308 = vmatpush1.msra.mxu0 %v3233
    %3309 = vmatprep.subr.mxu0 %v3238
    %3310 = vmatpush1.msra.mxu0 %v3237
    %3311 = vmatprep.subr.mxu0 %v3242
    %3312 = vmatpush1.msra.mxu0 %v3241
    %3313 = vmatprep.subr.mxu0 %v3246
    %3314 = vmatpush1.msra.mxu0 %v3245
    %3315 = vmatprep.subr.mxu0 %v3250
    %3316 = vmatpush1.msra.mxu0 %v3249
    %3317 = vmatprep.mubr.f32.mxu0 %v2738
    %3318 = vmatmul.mubr.f32.gmra.mrb[0].mxu0 %v3122
    %v3319 = vpop.f32.mrb[0].mxu0
    %v3320 = vadd.f32 0.0, %v3319
    %v3321 = vpop.f32.mrb[0].mxu0
    %v3322 = vadd.f32 0.0, %v3321
    %3323 = vdwg.mxu0
    %3324 = vmatprep.subr.mxu0 %v3128
    %3325 = vmatpush1.msra.mxu0 %v3127
    %3326 = vmatprep.subr.mxu0 %v3132
    %3327 = vmatpush1.msra.mxu0 %v3131
    %3328 = vmatprep.subr.mxu0 %v3136
    %3329 = vmatpush1.msra.mxu0 %v3135
    %3330 = vmatprep.subr.mxu0 %v3140
    %3331 = vmatpush1.msra.mxu0 %v3139
    %3332 = vmatprep.subr.mxu0 %v3144
    %3333 = vmatpush1.msra.mxu0 %v3143
    %3334 = vmatprep.subr.mxu0 %v3148
    %3335 = vmatpush1.msra.mxu0 %v3147
    %3336 = vmatprep.subr.mxu0 %v3152
    %3337 = vmatpush1.msra.mxu0 %v3151
    %3338 = vmatprep.subr.mxu0 %v3156
    %3339 = vmatpush1.msra.mxu0 %v3155
    %3340 = vmatprep.subr.mxu0 %v3160
    %3341 = vmatpush1.msra.mxu0 %v3159
    %3342 = vmatprep.subr.mxu0 %v3164
    %3343 = vmatpush1.msra.mxu0 %v3163
    %3344 = vmatprep.subr.mxu0 %v3168
    %3345 = vmatpush1.msra.mxu0 %v3167
    %3346 = vmatprep.subr.mxu0 %v3172
    %3347 = vmatpush1.msra.mxu0 %v3171
    %3348 = vmatprep.subr.mxu0 %v3176
    %3349 = vmatpush1.msra.mxu0 %v3175
    %3350 = vmatprep.subr.mxu0 %v3180
    %3351 = vmatpush1.msra.mxu0 %v3179
    %3352 = vmatprep.subr.mxu0 %v3184
    %3353 = vmatpush1.msra.mxu0 %v3183
    %3354 = vmatprep.subr.mxu0 %v3188
    %3355 = vmatpush1.msra.mxu0 %v3187
    %3356 = vmatprep.subr.mxu0 %v3192
    %3357 = vmatpush1.msra.mxu0 %v3191
    %3358 = vmatprep.subr.mxu0 %v3196
    %3359 = vmatpush1.msra.mxu0 %v3195
    %3360 = vmatprep.subr.mxu0 %v3200
    %3361 = vmatpush1.msra.mxu0 %v3199
    %3362 = vmatprep.subr.mxu0 %v3204
    %3363 = vmatpush1.msra.mxu0 %v3203
    %3364 = vmatprep.subr.mxu0 %v3208
    %3365 = vmatpush1.msra.mxu0 %v3207
    %3366 = vmatprep.subr.mxu0 %v3212
    %3367 = vmatpush1.msra.mxu0 %v3211
    %3368 = vmatprep.subr.mxu0 %v3216
    %3369 = vmatpush1.msra.mxu0 %v3215
    %3370 = vmatprep.subr.mxu0 %v3220
    %3371 = vmatpush1.msra.mxu0 %v3219
    %3372 = vmatprep.subr.mxu0 %v3224
    %3373 = vmatpush1.msra.mxu0 %v3223
    %3374 = vmatprep.subr.mxu0 %v3228
    %3375 = vmatpush1.msra.mxu0 %v3227
    %3376 = vmatprep.subr.mxu0 %v3232
    %3377 = vmatpush1.msra.mxu0 %v3231
    %3378 = vmatprep.subr.mxu0 %v3236
    %3379 = vmatpush1.msra.mxu0 %v3235
    %3380 = vmatprep.subr.mxu0 %v3240
    %3381 = vmatpush1.msra.mxu0 %v3239
    %3382 = vmatprep.subr.mxu0 %v3244
    %3383 = vmatpush1.msra.mxu0 %v3243
    %3384 = vmatprep.subr.mxu0 %v3248
    %3385 = vmatpush1.msra.mxu0 %v3247
    %3386 = vmatprep.subr.mxu0 %v3252
    %3387 = vmatpush1.msra.mxu0 %v3251
    %3388 = vmatprep.mubr.f32.mxu0 %v2738
    %3389 = vmatmul.mubr.f32.gmra.mrb[0].mxu0 %v3122
    %v3390 = vpop.f32.mrb[0].mxu0
    %v3391 = vadd.f32 0.0, %v3390
    %v3392 = vpop.f32.mrb[0].mxu0
    %v3393 = vadd.f32 0.0, %v3392
    %3394 = vdwg.mxu0
    %v3399 = vcombine.low %v3320, %v3322
    %v3400 = vcombine.low %v3391, %v3393
    %v3402 = vunpack.c.l.s4 1983009808
    %v3403 = vunpack.c.0.s8 %v3402
    %v3404 = vlaneseq
    %v3405 = vshrl.u32 %v3404, 7
    %v3406 = vsub.s32 %v3403, %v3405
    %v3407 = vrot.slane %v3399, %v3406
    %v3409 = vunpack.c.l.s4 1983009808
    %v3410 = vunpack.c.0.s8 %v3409
    %v3411 = vlaneseq
    %v3412 = vshrl.u32 %v3411, 7
    %v3413 = vsub.s32 %v3410, %v3412
    %v3414 = vrot.slane %v3400, %v3413
    %v3415 = vcombine.low %v3407, %v3414
    %v3417 = vadd.f32 %v3124, %v3415
    %v3418 = vxor.u32 %v3417, 2147483648
    %v3419 = vmul.f32 %v3418, 1.442695
    %v3420 = vpow.pop %v3419
    %v3421 = vadd.f32 %v3420, 1.0
    %v3422 = vrcp.pop %v3421
    %v3423 = vmul.f32 1.0, %v3422
    %v3424 = vtanh.pop %v3417
    %v3426 = vrot.slane %v3423, 2
    %v3428 = vmul.f32 %v3426, %v2734
    %v3430 = vrot.slane %v3424, 4
    %v3432 = vmul.f32 %v3423, %v3430
    %v3433 = vadd.f32 %v3428, %v3432
    %v3434 = vtanh.pop %v3433
    %v3435 = vrot.slane %v3423, 6
    %v3437 = vmul.f32 %v3435, %v3434
    %3438 = vst [vmem:[#allocation6] sm:$0x3] %v3437
    %v3439 = vmul.f32 %v3437, %v2985
    %v3440 = vsel %vm2988, %v3439, 0.0
    %3441 = vadd.xlane.f32.xlu0 %v3440
    %v3442 = vpop.xlane.xlu0 %3441
    %v3444 = vlaneseq
    %v3445 = vshrl.u32 %v3444, 7
    %v3446 = vsub.s32 0, %v3445
    %v3447 = vrot.slane %v3442, %v3446
    %v3448 = vlaneseq
    %v3449 = vshrl.u32 %v3448, 7
    %v3450 = vsub.s32 1, %v3449
    %v3451 = vrot.slane %v3442, %v3450
    %v3454 = vadd.f32 %v2979, %v3447
    %v3455 = vadd.f32 %v2981, %v3451
    %v3456 = vadd.f32 %v3454, %v3012
    %v3457 = vadd.f32 %v3455, %v3012
    %v3458 = vmax.f32 %v3456, 0.0
    %v3459 = vmax.f32 %v3457, 0.0
    %3462 = vset.pattern.permute.xlu0 0
    %3463 = vperm.xlu0 %3462, %v3458
    %v3464 = vpop.permute.xlu0 %3463
    %3465 = vset.pattern.permute.xlu0 0
    %3466 = vperm.xlu0 %3465, %v3459
    %v3467 = vpop.permute.xlu0 %3466
    %v3468 = vlaneseq
    %v3469 = vshrl.u32 %v3468, 7
    %v3470 = vsub.s32 %v3027, %v3469
    %v3471 = vrot.slane %v3464, %v3470
    %v3472 = vlaneseq
    %v3473 = vshrl.u32 %v3472, 7
    %v3474 = vsub.s32 %v3027, %v3473
    %v3475 = vrot.slane %v3467, %v3474
    %v3476 = vsel %vm3036, %v3475, %v3471
    %v3478 = vsel %vm3039, %v3476, -inf
    %3479 = vmax.xlane.f32.xlu0 %v3478
    %v3480 = vpop.xlane.xlu0 %3479
    %v3482 = vlaneseq
    %v3483 = vshrl.u32 %v3482, 7
    %v3484 = vsub.s32 0, %v3483
    %v3485 = vrot.slane %v3480, %v3484
    %v3486 = vlaneseq
    %v3487 = vshrl.u32 %v3486, 7
    %v3488 = vsub.s32 1, %v3487
    %v3489 = vrot.slane %v3480, %v3488
    %v3492 = vsub.f32 %v3458, %v3485
    %v3493 = vsub.f32 %v3459, %v3489
    %v3494 = vmul.f32 %v3492, 1.442695
    %v3495 = vpow.pop %v3494
    %v3496 = vmul.f32 %v3493, 1.442695
    %v3497 = vpow.pop %v3496
    %3500 = vset.pattern.permute.xlu0 0
    %3501 = vperm.xlu0 %3500, %v3495
    %v3502 = vpop.permute.xlu0 %3501
    %3503 = vset.pattern.permute.xlu0 0
    %3504 = vperm.xlu0 %3503, %v3497
    %v3505 = vpop.permute.xlu0 %3504
    %v3506 = vlaneseq
    %v3507 = vshrl.u32 %v3506, 7
    %v3508 = vsub.s32 %v3027, %v3507
    %v3509 = vrot.slane %v3502, %v3508
    %v3510 = vlaneseq
    %v3511 = vshrl.u32 %v3510, 7
    %v3512 = vsub.s32 %v3027, %v3511
    %v3513 = vrot.slane %v3505, %v3512
    %v3514 = vsel %vm3036, %v3513, %v3509
    %v3516 = vsel %vm3039, %v3514, 0.0
    %3517 = vadd.xlane.f32.xlu0 %v3516
    %v3518 = vpop.xlane.xlu0 %3517
    %v3520 = vlaneseq
    %v3521 = vshrl.u32 %v3520, 7
    %v3522 = vsub.s32 0, %v3521
    %v3523 = vrot.slane %v3518, %v3522
    %v3524 = vlaneseq
    %v3525 = vshrl.u32 %v3524, 7
    %v3526 = vsub.s32 1, %v3525
    %v3527 = vrot.slane %v3518, %v3526
    %v3530 = vrcp.pop %v3523
    %v3531 = vmul.f32 %v3495, %v3530
    %v3532 = vrcp.pop %v3527
    %v3533 = vmul.f32 %v3497, %v3532
    %3535 = vset.pattern.permute.xlu0 0
    %3536 = vperm.xlu0 %3535, %v3531
    %v3537 = vpop.permute.xlu0 %3536
    %3540 = vset.pattern.permute.xlu0 0
    %3541 = vperm.xlu0 %3540, %v3533
    %v3542 = vpop.permute.xlu0 %3541
    %v3544 = vmul.f32 %v3537, %v2965
    %v3545 = vmul.f32 %v3542, %v2966
    %v3546 = vrot.slane %v3544, 4
    %v3547 = vadd.f32 %v3544, %v3546
    %v3548 = vrot.slane %v3547, 2
    %v3549 = vadd.f32 %v3547, %v3548
    %v3550 = vrot.slane %v3549, 1
    %v3551 = vadd.f32 %v3549, %v3550
    %v3552 = vrot.slane %v3545, 4
    %v3553 = vadd.f32 %v3545, %v3552
    %v3554 = vrot.slane %v3553, 2
    %v3555 = vadd.f32 %v3553, %v3554
    %v3556 = vrot.slane %v3555, 1
    %v3557 = vadd.f32 %v3555, %v3556
    %v3560 = vsel %vm3036, %v3557, %v3551
    %v3562 = vld [vmem:[%s652] sm:$0xff]
    %v3563 = vld [vmem:[#allocation18] sm:$0xff]
    %v3564 = vld [vmem:[#allocation18 + $0x8] sm:$0xff]
    %v3565 = vld [vmem:[#allocation18 + $0x10] sm:$0xff]
    %v3566 = vld [vmem:[#allocation18 + $0x18] sm:$0xff]
    %v3567 = vld [vmem:[#allocation18 + $0x20] sm:$0xff]
    %v3568 = vld [vmem:[#allocation18 + $0x28] sm:$0xff]
    %v3569 = vld [vmem:[#allocation18 + $0x30] sm:$0xff]
    %v3570 = vld [vmem:[#allocation18 + $0x38] sm:$0xff]
    %v3571 = vld [vmem:[#allocation18 + $0x40] sm:$0xff]
    %v3572 = vld [vmem:[#allocation18 + $0x48] sm:$0xff]
    %v3573 = vld [vmem:[#allocation18 + $0x50] sm:$0xff]
    %v3574 = vld [vmem:[#allocation18 + $0x58] sm:$0xff]
    %v3575 = vld [vmem:[#allocation18 + $0x60] sm:$0xff]
    %v3576 = vld [vmem:[#allocation18 + $0x68] sm:$0xff]
    %v3577 = vld [vmem:[#allocation18 + $0x70] sm:$0xff]
    %v3578 = vld [vmem:[#allocation18 + $0x78] sm:$0xff]
    %v3579 = vld [vmem:[#allocation18 + $0x80] sm:$0xff]
    %v3580 = vld [vmem:[#allocation18 + $0x88] sm:$0xff]
    %v3581 = vld [vmem:[#allocation18 + $0x90] sm:$0xff]
    %v3582 = vld [vmem:[#allocation18 + $0x98] sm:$0xff]
    %v3583 = vld [vmem:[#allocation18 + $0xa0] sm:$0xff]
    %v3584 = vld [vmem:[#allocation18 + $0xa8] sm:$0xff]
    %v3585 = vld [vmem:[#allocation18 + $0xb0] sm:$0xff]
    %v3586 = vld [vmem:[#allocation18 + $0xb8] sm:$0xff]
    %v3587 = vld [vmem:[#allocation18 + $0xc0] sm:$0xff]
    %v3588 = vld [vmem:[#allocation18 + $0xc8] sm:$0xff]
    %v3589 = vld [vmem:[#allocation18 + $0xd0] sm:$0xff]
    %v3590 = vld [vmem:[#allocation18 + $0xd8] sm:$0xff]
    %v3591 = vld [vmem:[#allocation18 + $0xe0] sm:$0xff]
    %v3592 = vld [vmem:[#allocation18 + $0xe8] sm:$0xff]
    %v3593 = vld [vmem:[#allocation18 + $0xf0] sm:$0xff]
    %v3594 = vld [vmem:[#allocation18 + $0xf8] sm:$0xff]
    %v3595 = vld [vmem:[#allocation18 + $0x100] sm:$0xff]
    %v3596 = vld [vmem:[#allocation18 + $0x108] sm:$0xff]
    %v3597 = vld [vmem:[#allocation18 + $0x110] sm:$0xff]
    %v3598 = vld [vmem:[#allocation18 + $0x118] sm:$0xff]
    %v3599 = vld [vmem:[#allocation18 + $0x120] sm:$0xff]
    %v3600 = vld [vmem:[#allocation18 + $0x128] sm:$0xff]
    %v3601 = vld [vmem:[#allocation18 + $0x130] sm:$0xff]
    %v3602 = vld [vmem:[#allocation18 + $0x138] sm:$0xff]
    %v3603 = vld [vmem:[#allocation18 + $0x140] sm:$0xff]
    %v3604 = vld [vmem:[#allocation18 + $0x148] sm:$0xff]
    %v3605 = vld [vmem:[#allocation18 + $0x150] sm:$0xff]
    %v3606 = vld [vmem:[#allocation18 + $0x158] sm:$0xff]
    %v3607 = vld [vmem:[#allocation18 + $0x160] sm:$0xff]
    %v3608 = vld [vmem:[#allocation18 + $0x168] sm:$0xff]
    %v3609 = vld [vmem:[#allocation18 + $0x170] sm:$0xff]
    %v3610 = vld [vmem:[#allocation18 + $0x178] sm:$0xff]
    %v3611 = vld [vmem:[#allocation18 + $0x180] sm:$0xff]
    %v3612 = vld [vmem:[#allocation18 + $0x188] sm:$0xff]
    %v3613 = vld [vmem:[#allocation18 + $0x190] sm:$0xff]
    %v3614 = vld [vmem:[#allocation18 + $0x198] sm:$0xff]
    %v3615 = vld [vmem:[#allocation18 + $0x1a0] sm:$0xff]
    %v3616 = vld [vmem:[#allocation18 + $0x1a8] sm:$0xff]
    %v3617 = vld [vmem:[#allocation18 + $0x1b0] sm:$0xff]
    %v3618 = vld [vmem:[#allocation18 + $0x1b8] sm:$0xff]
    %v3619 = vld [vmem:[#allocation18 + $0x1c0] sm:$0xff]
    %v3620 = vld [vmem:[#allocation18 + $0x1c8] sm:$0xff]
    %v3621 = vld [vmem:[#allocation18 + $0x1d0] sm:$0xff]
    %v3622 = vld [vmem:[#allocation18 + $0x1d8] sm:$0xff]
    %v3623 = vld [vmem:[#allocation18 + $0x1e0] sm:$0xff]
    %v3624 = vld [vmem:[#allocation18 + $0x1e8] sm:$0xff]
    %v3625 = vld [vmem:[#allocation18 + $0x1f0] sm:$0xff]
    %v3626 = vld [vmem:[#allocation18 + $0x1f8] sm:$0xff]
    %v3627 = vld [vmem:[#allocation18 + $0x200] sm:$0xff]
    %v3628 = vld [vmem:[#allocation18 + $0x208] sm:$0xff]
    %v3629 = vld [vmem:[#allocation18 + $0x210] sm:$0xff]
    %v3630 = vld [vmem:[#allocation18 + $0x218] sm:$0xff]
    %v3631 = vld [vmem:[#allocation18 + $0x220] sm:$0xff]
    %v3632 = vld [vmem:[#allocation18 + $0x228] sm:$0xff]
    %v3633 = vld [vmem:[#allocation18 + $0x230] sm:$0xff]
    %v3634 = vld [vmem:[#allocation18 + $0x238] sm:$0xff]
    %v3635 = vld [vmem:[#allocation18 + $0x240] sm:$0xff]
    %v3636 = vld [vmem:[#allocation18 + $0x248] sm:$0xff]
    %v3637 = vld [vmem:[#allocation18 + $0x250] sm:$0xff]
    %v3638 = vld [vmem:[#allocation18 + $0x258] sm:$0xff]
    %v3639 = vld [vmem:[#allocation18 + $0x260] sm:$0xff]
    %v3640 = vld [vmem:[#allocation18 + $0x268] sm:$0xff]
    %v3641 = vld [vmem:[#allocation18 + $0x270] sm:$0xff]
    %v3642 = vld [vmem:[#allocation18 + $0x278] sm:$0xff]
    %v3643 = vld [vmem:[#allocation18 + $0x280] sm:$0xff]
    %v3644 = vld [vmem:[#allocation18 + $0x288] sm:$0xff]
    %v3645 = vld [vmem:[#allocation18 + $0x290] sm:$0xff]
    %v3646 = vld [vmem:[#allocation18 + $0x298] sm:$0xff]
    %v3647 = vld [vmem:[#allocation18 + $0x2a0] sm:$0xff]
    %v3648 = vld [vmem:[#allocation18 + $0x2a8] sm:$0xff]
    %v3649 = vld [vmem:[#allocation18 + $0x2b0] sm:$0xff]
    %v3650 = vld [vmem:[#allocation18 + $0x2b8] sm:$0xff]
    %v3651 = vld [vmem:[#allocation18 + $0x2c0] sm:$0xff]
    %v3652 = vld [vmem:[#allocation18 + $0x2c8] sm:$0xff]
    %v3653 = vld [vmem:[#allocation18 + $0x2d0] sm:$0xff]
    %v3654 = vld [vmem:[#allocation18 + $0x2d8] sm:$0xff]
    %v3655 = vld [vmem:[#allocation18 + $0x2e0] sm:$0xff]
    %v3656 = vld [vmem:[#allocation18 + $0x2e8] sm:$0xff]
    %v3657 = vld [vmem:[#allocation18 + $0x2f0] sm:$0xff]
    %v3658 = vld [vmem:[#allocation18 + $0x2f8] sm:$0xff]
    %v3659 = vld [vmem:[#allocation18 + $0x300] sm:$0xff]
    %v3660 = vld [vmem:[#allocation18 + $0x308] sm:$0xff]
    %v3661 = vld [vmem:[#allocation18 + $0x310] sm:$0xff]
    %v3662 = vld [vmem:[#allocation18 + $0x318] sm:$0xff]
    %v3663 = vld [vmem:[#allocation18 + $0x320] sm:$0xff]
    %v3664 = vld [vmem:[#allocation18 + $0x328] sm:$0xff]
    %v3665 = vld [vmem:[#allocation18 + $0x330] sm:$0xff]
    %v3666 = vld [vmem:[#allocation18 + $0x338] sm:$0xff]
    %v3667 = vld [vmem:[#allocation18 + $0x340] sm:$0xff]
    %v3668 = vld [vmem:[#allocation18 + $0x348] sm:$0xff]
    %v3669 = vld [vmem:[#allocation18 + $0x350] sm:$0xff]
    %v3670 = vld [vmem:[#allocation18 + $0x358] sm:$0xff]
    %v3671 = vld [vmem:[#allocation18 + $0x360] sm:$0xff]
    %v3672 = vld [vmem:[#allocation18 + $0x368] sm:$0xff]
    %v3673 = vld [vmem:[#allocation18 + $0x370] sm:$0xff]
    %v3674 = vld [vmem:[#allocation18 + $0x378] sm:$0xff]
    %v3675 = vld [vmem:[#allocation18 + $0x380] sm:$0xff]
    %v3676 = vld [vmem:[#allocation18 + $0x388] sm:$0xff]
    %v3677 = vld [vmem:[#allocation18 + $0x390] sm:$0xff]
    %v3678 = vld [vmem:[#allocation18 + $0x398] sm:$0xff]
    %v3679 = vld [vmem:[#allocation18 + $0x3a0] sm:$0xff]
    %v3680 = vld [vmem:[#allocation18 + $0x3a8] sm:$0xff]
    %v3681 = vld [vmem:[#allocation18 + $0x3b0] sm:$0xff]
    %v3682 = vld [vmem:[#allocation18 + $0x3b8] sm:$0xff]
    %v3683 = vld [vmem:[#allocation18 + $0x3c0] sm:$0xff]
    %v3684 = vld [vmem:[#allocation18 + $0x3c8] sm:$0xff]
    %v3685 = vld [vmem:[#allocation18 + $0x3d0] sm:$0xff]
    %v3686 = vld [vmem:[#allocation18 + $0x3d8] sm:$0xff]
    %v3687 = vld [vmem:[#allocation18 + $0x3e0] sm:$0xff]
    %v3688 = vld [vmem:[#allocation18 + $0x3e8] sm:$0xff]
    %v3689 = vld [vmem:[#allocation18 + $0x3f0] sm:$0xff]
    %v3690 = vld [vmem:[#allocation18 + $0x3f8] sm:$0xff]
    %3691 = vmatprep.subr.mxu0 %v3564
    %3692 = vmatpush1.msra.mxu0 %v3563
    %3693 = vmatprep.subr.mxu0 %v3568
    %3694 = vmatpush1.msra.mxu0 %v3567
    %3695 = vmatprep.subr.mxu0 %v3572
    %3696 = vmatpush1.msra.mxu0 %v3571
    %3697 = vmatprep.subr.mxu0 %v3576
    %3698 = vmatpush1.msra.mxu0 %v3575
    %3699 = vmatprep.subr.mxu0 %v3580
    %3700 = vmatpush1.msra.mxu0 %v3579
    %3701 = vmatprep.subr.mxu0 %v3584
    %3702 = vmatpush1.msra.mxu0 %v3583
    %3703 = vmatprep.subr.mxu0 %v3588
    %3704 = vmatpush1.msra.mxu0 %v3587
    %3705 = vmatprep.subr.mxu0 %v3592
    %3706 = vmatpush1.msra.mxu0 %v3591
    %3707 = vmatprep.subr.mxu0 %v3596
    %3708 = vmatpush1.msra.mxu0 %v3595
    %3709 = vmatprep.subr.mxu0 %v3600
    %3710 = vmatpush1.msra.mxu0 %v3599
    %3711 = vmatprep.subr.mxu0 %v3604
    %3712 = vmatpush1.msra.mxu0 %v3603
    %3713 = vmatprep.subr.mxu0 %v3608
    %3714 = vmatpush1.msra.mxu0 %v3607
    %3715 = vmatprep.subr.mxu0 %v3612
    %3716 = vmatpush1.msra.mxu0 %v3611
    %3717 = vmatprep.subr.mxu0 %v3616
    %3718 = vmatpush1.msra.mxu0 %v3615
    %3719 = vmatprep.subr.mxu0 %v3620
    %3720 = vmatpush1.msra.mxu0 %v3619
    %3721 = vmatprep.subr.mxu0 %v3624
    %3722 = vmatpush1.msra.mxu0 %v3623
    %3723 = vmatprep.subr.mxu0 %v3628
    %3724 = vmatpush1.msra.mxu0 %v3627
    %3725 = vmatprep.subr.mxu0 %v3632
    %3726 = vmatpush1.msra.mxu0 %v3631
    %3727 = vmatprep.subr.mxu0 %v3636
    %3728 = vmatpush1.msra.mxu0 %v3635
    %3729 = vmatprep.subr.mxu0 %v3640
    %3730 = vmatpush1.msra.mxu0 %v3639
    %3731 = vmatprep.subr.mxu0 %v3644
    %3732 = vmatpush1.msra.mxu0 %v3643
    %3733 = vmatprep.subr.mxu0 %v3648
    %3734 = vmatpush1.msra.mxu0 %v3647
    %3735 = vmatprep.subr.mxu0 %v3652
    %3736 = vmatpush1.msra.mxu0 %v3651
    %3737 = vmatprep.subr.mxu0 %v3656
    %3738 = vmatpush1.msra.mxu0 %v3655
    %3739 = vmatprep.subr.mxu0 %v3660
    %3740 = vmatpush1.msra.mxu0 %v3659
    %3741 = vmatprep.subr.mxu0 %v3664
    %3742 = vmatpush1.msra.mxu0 %v3663
    %3743 = vmatprep.subr.mxu0 %v3668
    %3744 = vmatpush1.msra.mxu0 %v3667
    %3745 = vmatprep.subr.mxu0 %v3672
    %3746 = vmatpush1.msra.mxu0 %v3671
    %3747 = vmatprep.subr.mxu0 %v3676
    %3748 = vmatpush1.msra.mxu0 %v3675
    %3749 = vmatprep.subr.mxu0 %v3680
    %3750 = vmatpush1.msra.mxu0 %v3679
    %3751 = vmatprep.subr.mxu0 %v3684
    %3752 = vmatpush1.msra.mxu0 %v3683
    %3753 = vmatprep.subr.mxu0 %v3688
    %3754 = vmatpush1.msra.mxu0 %v3687
    %3755 = vmatprep.mubr.f32.mxu0 %v3437
    %3756 = vmatmul.mubr.f32.gmra.mrb[0].mxu0 %v3560
    %v3757 = vpop.f32.mrb[0].mxu0
    %v3758 = vadd.f32 0.0, %v3757
    %v3759 = vpop.f32.mrb[0].mxu0
    %v3760 = vadd.f32 0.0, %v3759
    %3761 = vdwg.mxu0
    %3762 = vmatprep.subr.mxu0 %v3566
    %3763 = vmatpush1.msra.mxu0 %v3565
    %3764 = vmatprep.subr.mxu0 %v3570
    %3765 = vmatpush1.msra.mxu0 %v3569
    %3766 = vmatprep.subr.mxu0 %v3574
    %3767 = vmatpush1.msra.mxu0 %v3573
    %3768 = vmatprep.subr.mxu0 %v3578
    %3769 = vmatpush1.msra.mxu0 %v3577
    %3770 = vmatprep.subr.mxu0 %v3582
    %3771 = vmatpush1.msra.mxu0 %v3581
    %3772 = vmatprep.subr.mxu0 %v3586
    %3773 = vmatpush1.msra.mxu0 %v3585
    %3774 = vmatprep.subr.mxu0 %v3590
    %3775 = vmatpush1.msra.mxu0 %v3589
    %3776 = vmatprep.subr.mxu0 %v3594
    %3777 = vmatpush1.msra.mxu0 %v3593
    %3778 = vmatprep.subr.mxu0 %v3598
    %3779 = vmatpush1.msra.mxu0 %v3597
    %3780 = vmatprep.subr.mxu0 %v3602
    %3781 = vmatpush1.msra.mxu0 %v3601
    %3782 = vmatprep.subr.mxu0 %v3606
    %3783 = vmatpush1.msra.mxu0 %v3605
    %3784 = vmatprep.subr.mxu0 %v3610
    %3785 = vmatpush1.msra.mxu0 %v3609
    %3786 = vmatprep.subr.mxu0 %v3614
    %3787 = vmatpush1.msra.mxu0 %v3613
    %3788 = vmatprep.subr.mxu0 %v3618
    %3789 = vmatpush1.msra.mxu0 %v3617
    %3790 = vmatprep.subr.mxu0 %v3622
    %3791 = vmatpush1.msra.mxu0 %v3621
    %3792 = vmatprep.subr.mxu0 %v3626
    %3793 = vmatpush1.msra.mxu0 %v3625
    %3794 = vmatprep.subr.mxu0 %v3630
    %3795 = vmatpush1.msra.mxu0 %v3629
    %3796 = vmatprep.subr.mxu0 %v3634
    %3797 = vmatpush1.msra.mxu0 %v3633
    %3798 = vmatprep.subr.mxu0 %v3638
    %3799 = vmatpush1.msra.mxu0 %v3637
    %3800 = vmatprep.subr.mxu0 %v3642
    %3801 = vmatpush1.msra.mxu0 %v3641
    %3802 = vmatprep.subr.mxu0 %v3646
    %3803 = vmatpush1.msra.mxu0 %v3645
    %3804 = vmatprep.subr.mxu0 %v3650
    %3805 = vmatpush1.msra.mxu0 %v3649
    %3806 = vmatprep.subr.mxu0 %v3654
    %3807 = vmatpush1.msra.mxu0 %v3653
    %3808 = vmatprep.subr.mxu0 %v3658
    %3809 = vmatpush1.msra.mxu0 %v3657
    %3810 = vmatprep.subr.mxu0 %v3662
    %3811 = vmatpush1.msra.mxu0 %v3661
    %3812 = vmatprep.subr.mxu0 %v3666
    %3813 = vmatpush1.msra.mxu0 %v3665
    %3814 = vmatprep.subr.mxu0 %v3670
    %3815 = vmatpush1.msra.mxu0 %v3669
    %3816 = vmatprep.subr.mxu0 %v3674
    %3817 = vmatpush1.msra.mxu0 %v3673
    %3818 = vmatprep.subr.mxu0 %v3678
    %3819 = vmatpush1.msra.mxu0 %v3677
    %3820 = vmatprep.subr.mxu0 %v3682
    %3821 = vmatpush1.msra.mxu0 %v3681
    %3822 = vmatprep.subr.mxu0 %v3686
    %3823 = vmatpush1.msra.mxu0 %v3685
    %3824 = vmatprep.subr.mxu0 %v3690
    %3825 = vmatpush1.msra.mxu0 %v3689
    %3826 = vmatprep.mubr.f32.mxu0 %v3437
    %3827 = vmatmul.mubr.f32.gmra.mrb[0].mxu0 %v3560
    %v3828 = vpop.f32.mrb[0].mxu0
    %v3829 = vadd.f32 0.0, %v3828
    %v3830 = vpop.f32.mrb[0].mxu0
    %v3831 = vadd.f32 0.0, %v3830
    %3832 = vdwg.mxu0
    %v3837 = vcombine.low %v3758, %v3760
    %v3838 = vcombine.low %v3829, %v3831
    %v3840 = vunpack.c.l.s4 1983009808
    %v3841 = vunpack.c.0.s8 %v3840
    %v3842 = vlaneseq
    %v3843 = vshrl.u32 %v3842, 7
    %v3844 = vsub.s32 %v3841, %v3843
    %v3845 = vrot.slane %v3837, %v3844
    %v3847 = vunpack.c.l.s4 1983009808
    %v3848 = vunpack.c.0.s8 %v3847
    %v3849 = vlaneseq
    %v3850 = vshrl.u32 %v3849, 7
    %v3851 = vsub.s32 %v3848, %v3850
    %v3852 = vrot.slane %v3838, %v3851
    %v3853 = vcombine.low %v3845, %v3852
    %v3855 = vadd.f32 %v3562, %v3853
    %v3856 = vxor.u32 %v3855, 2147483648
    %v3857 = vmul.f32 %v3856, 1.442695
    %v3858 = vpow.pop %v3857
    %v3859 = vadd.f32 %v3858, 1.0
    %v3860 = vrcp.pop %v3859
    %v3861 = vmul.f32 1.0, %v3860
    %v3862 = vtanh.pop %v3855
    %v3864 = vrot.slane %v3861, 2
    %v3866 = vmul.f32 %v3864, %v3433
    %v3868 = vrot.slane %v3862, 4
    %v3870 = vmul.f32 %v3861, %v3868
    %v3871 = vadd.f32 %v3866, %v3870
    %v3872 = vtanh.pop %v3871
    %v3873 = vrot.slane %v3861, 6
    %v3875 = vmul.f32 %v3873, %v3872
    %s3876 = scalar_lea.vmem [#allocation6], 2
    %3877 = vst [vmem:[%s3876] sm:$0x3] %v3875
    %v3878 = vmul.f32 %v3875, %v2985
    %v3879 = vsel %vm2988, %v3878, 0.0
    %3880 = vadd.xlane.f32.xlu0 %v3879
    %v3881 = vpop.xlane.xlu0 %3880
    %v3883 = vlaneseq
    %v3884 = vshrl.u32 %v3883, 7
    %v3885 = vsub.s32 0, %v3884
    %v3886 = vrot.slane %v3881, %v3885
    %v3887 = vlaneseq
    %v3888 = vshrl.u32 %v3887, 7
    %v3889 = vsub.s32 1, %v3888
    %v3890 = vrot.slane %v3881, %v3889
    %v3893 = vadd.f32 %v2979, %v3886
    %v3894 = vadd.f32 %v2981, %v3890
    %v3895 = vadd.f32 %v3893, %v3012
    %v3896 = vadd.f32 %v3894, %v3012
    %v3897 = vmax.f32 %v3895, 0.0
    %v3898 = vmax.f32 %v3896, 0.0
    %3901 = vset.pattern.permute.xlu0 0
    %3902 = vperm.xlu0 %3901, %v3897
    %v3903 = vpop.permute.xlu0 %3902
    %3904 = vset.pattern.permute.xlu0 0
    %3905 = vperm.xlu0 %3904, %v3898
    %v3906 = vpop.permute.xlu0 %3905
    %v3907 = vlaneseq
    %v3908 = vshrl.u32 %v3907, 7
    %v3909 = vsub.s32 %v3027, %v3908
    %v3910 = vrot.slane %v3903, %v3909
    %v3911 = vlaneseq
    %v3912 = vshrl.u32 %v3911, 7
    %v3913 = vsub.s32 %v3027, %v3912
    %v3914 = vrot.slane %v3906, %v3913
    %v3915 = vsel %vm3036, %v3914, %v3910
    %v3917 = vsel %vm3039, %v3915, -inf
    %3918 = vmax.xlane.f32.xlu0 %v3917
    %v3919 = vpop.xlane.xlu0 %3918
    %v3921 = vlaneseq
    %v3922 = vshrl.u32 %v3921, 7
    %v3923 = vsub.s32 0, %v3922
    %v3924 = vrot.slane %v3919, %v3923
    %v3925 = vlaneseq
    %v3926 = vshrl.u32 %v3925, 7
    %v3927 = vsub.s32 1, %v3926
    %v3928 = vrot.slane %v3919, %v3927
    %v3931 = vsub.f32 %v3897, %v3924
    %v3932 = vsub.f32 %v3898, %v3928
    %v3933 = vmul.f32 %v3931, 1.442695
    %v3934 = vpow.pop %v3933
    %v3935 = vmul.f32 %v3932, 1.442695
    %v3936 = vpow.pop %v3935
    %3939 = vset.pattern.permute.xlu0 0
    %3940 = vperm.xlu0 %3939, %v3934
    %v3941 = vpop.permute.xlu0 %3940
    %3942 = vset.pattern.permute.xlu0 0
    %3943 = vperm.xlu0 %3942, %v3936
    %v3944 = vpop.permute.xlu0 %3943
    %v3945 = vlaneseq
    %v3946 = vshrl.u32 %v3945, 7
    %v3947 = vsub.s32 %v3027, %v3946
    %v3948 = vrot.slane %v3941, %v3947
    %v3949 = vlaneseq
    %v3950 = vshrl.u32 %v3949, 7
    %v3951 = vsub.s32 %v3027, %v3950
    %v3952 = vrot.slane %v3944, %v3951
    %v3953 = vsel %vm3036, %v3952, %v3948
    %v3955 = vsel %vm3039, %v3953, 0.0
    %3956 = vadd.xlane.f32.xlu0 %v3955
    %v3957 = vpop.xlane.xlu0 %3956
    %v3959 = vlaneseq
    %v3960 = vshrl.u32 %v3959, 7
    %v3961 = vsub.s32 0, %v3960
    %v3962 = vrot.slane %v3957, %v3961
    %v3963 = vlaneseq
    %v3964 = vshrl.u32 %v3963, 7
    %v3965 = vsub.s32 1, %v3964
    %v3966 = vrot.slane %v3957, %v3965
    %v3969 = vrcp.pop %v3962
    %v3970 = vmul.f32 %v3934, %v3969
    %v3971 = vrcp.pop %v3966
    %v3972 = vmul.f32 %v3936, %v3971
    %3974 = vset.pattern.permute.xlu0 0
    %3975 = vperm.xlu0 %3974, %v3970
    %v3976 = vpop.permute.xlu0 %3975
    %3979 = vset.pattern.permute.xlu0 0
    %3980 = vperm.xlu0 %3979, %v3972
    %v3981 = vpop.permute.xlu0 %3980
    %v3983 = vmul.f32 %v3976, %v2965
    %v3984 = vmul.f32 %v3981, %v2966
    %v3985 = vrot.slane %v3983, 4
    %v3986 = vadd.f32 %v3983, %v3985
    %v3987 = vrot.slane %v3986, 2
    %v3988 = vadd.f32 %v3986, %v3987
    %v3989 = vrot.slane %v3988, 1
    %v3990 = vadd.f32 %v3988, %v3989
    %v3991 = vrot.slane %v3984, 4
    %v3992 = vadd.f32 %v3984, %v3991
    %v3993 = vrot.slane %v3992, 2
    %v3994 = vadd.f32 %v3992, %v3993
    %v3995 = vrot.slane %v3994, 1
    %v3996 = vadd.f32 %v3994, %v3995
    %v3999 = vsel %vm3036, %v3996, %v3990
    %v4001 = vld [vmem:[%s672] sm:$0xff]
    %v4002 = vld [vmem:[#allocation18] sm:$0xff]
    %v4003 = vld [vmem:[#allocation18 + $0x8] sm:$0xff]
    %v4004 = vld [vmem:[#allocation18 + $0x10] sm:$0xff]
    %v4005 = vld [vmem:[#allocation18 + $0x18] sm:$0xff]
    %v4006 = vld [vmem:[#allocation18 + $0x20] sm:$0xff]
    %v4007 = vld [vmem:[#allocation18 + $0x28] sm:$0xff]
    %v4008 = vld [vmem:[#allocation18 + $0x30] sm:$0xff]
    %v4009 = vld [vmem:[#allocation18 + $0x38] sm:$0xff]
    %v4010 = vld [vmem:[#allocation18 + $0x40] sm:$0xff]
    %v4011 = vld [vmem:[#allocation18 + $0x48] sm:$0xff]
    %v4012 = vld [vmem:[#allocation18 + $0x50] sm:$0xff]
    %v4013 = vld [vmem:[#allocation18 + $0x58] sm:$0xff]
    %v4014 = vld [vmem:[#allocation18 + $0x60] sm:$0xff]
    %v4015 = vld [vmem:[#allocation18 + $0x68] sm:$0xff]
    %v4016 = vld [vmem:[#allocation18 + $0x70] sm:$0xff]
    %v4017 = vld [vmem:[#allocation18 + $0x78] sm:$0xff]
    %v4018 = vld [vmem:[#allocation18 + $0x80] sm:$0xff]
    %v4019 = vld [vmem:[#allocation18 + $0x88] sm:$0xff]
    %v4020 = vld [vmem:[#allocation18 + $0x90] sm:$0xff]
    %v4021 = vld [vmem:[#allocation18 + $0x98] sm:$0xff]
    %v4022 = vld [vmem:[#allocation18 + $0xa0] sm:$0xff]
    %v4023 = vld [vmem:[#allocation18 + $0xa8] sm:$0xff]
    %v4024 = vld [vmem:[#allocation18 + $0xb0] sm:$0xff]
    %v4025 = vld [vmem:[#allocation18 + $0xb8] sm:$0xff]
    %v4026 = vld [vmem:[#allocation18 + $0xc0] sm:$0xff]
    %v4027 = vld [vmem:[#allocation18 + $0xc8] sm:$0xff]
    %v4028 = vld [vmem:[#allocation18 + $0xd0] sm:$0xff]
    %v4029 = vld [vmem:[#allocation18 + $0xd8] sm:$0xff]
    %v4030 = vld [vmem:[#allocation18 + $0xe0] sm:$0xff]
    %v4031 = vld [vmem:[#allocation18 + $0xe8] sm:$0xff]
    %v4032 = vld [vmem:[#allocation18 + $0xf0] sm:$0xff]
    %v4033 = vld [vmem:[#allocation18 + $0xf8] sm:$0xff]
    %v4034 = vld [vmem:[#allocation18 + $0x100] sm:$0xff]
    %v4035 = vld [vmem:[#allocation18 + $0x108] sm:$0xff]
    %v4036 = vld [vmem:[#allocation18 + $0x110] sm:$0xff]
    %v4037 = vld [vmem:[#allocation18 + $0x118] sm:$0xff]
    %v4038 = vld [vmem:[#allocation18 + $0x120] sm:$0xff]
    %v4039 = vld [vmem:[#allocation18 + $0x128] sm:$0xff]
    %v4040 = vld [vmem:[#allocation18 + $0x130] sm:$0xff]
    %v4041 = vld [vmem:[#allocation18 + $0x138] sm:$0xff]
    %v4042 = vld [vmem:[#allocation18 + $0x140] sm:$0xff]
    %v4043 = vld [vmem:[#allocation18 + $0x148] sm:$0xff]
    %v4044 = vld [vmem:[#allocation18 + $0x150] sm:$0xff]
    %v4045 = vld [vmem:[#allocation18 + $0x158] sm:$0xff]
    %v4046 = vld [vmem:[#allocation18 + $0x160] sm:$0xff]
    %v4047 = vld [vmem:[#allocation18 + $0x168] sm:$0xff]
    %v4048 = vld [vmem:[#allocation18 + $0x170] sm:$0xff]
    %v4049 = vld [vmem:[#allocation18 + $0x178] sm:$0xff]
    %v4050 = vld [vmem:[#allocation18 + $0x180] sm:$0xff]
    %v4051 = vld [vmem:[#allocation18 + $0x188] sm:$0xff]
    %v4052 = vld [vmem:[#allocation18 + $0x190] sm:$0xff]
    %v4053 = vld [vmem:[#allocation18 + $0x198] sm:$0xff]
    %v4054 = vld [vmem:[#allocation18 + $0x1a0] sm:$0xff]
    %v4055 = vld [vmem:[#allocation18 + $0x1a8] sm:$0xff]
    %v4056 = vld [vmem:[#allocation18 + $0x1b0] sm:$0xff]
    %v4057 = vld [vmem:[#allocation18 + $0x1b8] sm:$0xff]
    %v4058 = vld [vmem:[#allocation18 + $0x1c0] sm:$0xff]
    %v4059 = vld [vmem:[#allocation18 + $0x1c8] sm:$0xff]
    %v4060 = vld [vmem:[#allocation18 + $0x1d0] sm:$0xff]
    %v4061 = vld [vmem:[#allocation18 + $0x1d8] sm:$0xff]
    %v4062 = vld [vmem:[#allocation18 + $0x1e0] sm:$0xff]
    %v4063 = vld [vmem:[#allocation18 + $0x1e8] sm:$0xff]
    %v4064 = vld [vmem:[#allocation18 + $0x1f0] sm:$0xff]
    %v4065 = vld [vmem:[#allocation18 + $0x1f8] sm:$0xff]
    %v4066 = vld [vmem:[#allocation18 + $0x200] sm:$0xff]
    %v4067 = vld [vmem:[#allocation18 + $0x208] sm:$0xff]
    %v4068 = vld [vmem:[#allocation18 + $0x210] sm:$0xff]
    %v4069 = vld [vmem:[#allocation18 + $0x218] sm:$0xff]
    %v4070 = vld [vmem:[#allocation18 + $0x220] sm:$0xff]
    %v4071 = vld [vmem:[#allocation18 + $0x228] sm:$0xff]
    %v4072 = vld [vmem:[#allocation18 + $0x230] sm:$0xff]
    %v4073 = vld [vmem:[#allocation18 + $0x238] sm:$0xff]
    %v4074 = vld [vmem:[#allocation18 + $0x240] sm:$0xff]
    %v4075 = vld [vmem:[#allocation18 + $0x248] sm:$0xff]
    %v4076 = vld [vmem:[#allocation18 + $0x250] sm:$0xff]
    %v4077 = vld [vmem:[#allocation18 + $0x258] sm:$0xff]
    %v4078 = vld [vmem:[#allocation18 + $0x260] sm:$0xff]
    %v4079 = vld [vmem:[#allocation18 + $0x268] sm:$0xff]
    %v4080 = vld [vmem:[#allocation18 + $0x270] sm:$0xff]
    %v4081 = vld [vmem:[#allocation18 + $0x278] sm:$0xff]
    %v4082 = vld [vmem:[#allocation18 + $0x280] sm:$0xff]
    %v4083 = vld [vmem:[#allocation18 + $0x288] sm:$0xff]
    %v4084 = vld [vmem:[#allocation18 + $0x290] sm:$0xff]
    %v4085 = vld [vmem:[#allocation18 + $0x298] sm:$0xff]
    %v4086 = vld [vmem:[#allocation18 + $0x2a0] sm:$0xff]
    %v4087 = vld [vmem:[#allocation18 + $0x2a8] sm:$0xff]
    %v4088 = vld [vmem:[#allocation18 + $0x2b0] sm:$0xff]
    %v4089 = vld [vmem:[#allocation18 + $0x2b8] sm:$0xff]
    %v4090 = vld [vmem:[#allocation18 + $0x2c0] sm:$0xff]
    %v4091 = vld [vmem:[#allocation18 + $0x2c8] sm:$0xff]
    %v4092 = vld [vmem:[#allocation18 + $0x2d0] sm:$0xff]
    %v4093 = vld [vmem:[#allocation18 + $0x2d8] sm:$0xff]
    %v4094 = vld [vmem:[#allocation18 + $0x2e0] sm:$0xff]
    %v4095 = vld [vmem:[#allocation18 + $0x2e8] sm:$0xff]
    %v4096 = vld [vmem:[#allocation18 + $0x2f0] sm:$0xff]
    %v4097 = vld [vmem:[#allocation18 + $0x2f8] sm:$0xff]
    %v4098 = vld [vmem:[#allocation18 + $0x300] sm:$0xff]
    %v4099 = vld [vmem:[#allocation18 + $0x308] sm:$0xff]
    %v4100 = vld [vmem:[#allocation18 + $0x310] sm:$0xff]
    %v4101 = vld [vmem:[#allocation18 + $0x318] sm:$0xff]
    %v4102 = vld [vmem:[#allocation18 + $0x320] sm:$0xff]
    %v4103 = vld [vmem:[#allocation18 + $0x328] sm:$0xff]
    %v4104 = vld [vmem:[#allocation18 + $0x330] sm:$0xff]
    %v4105 = vld [vmem:[#allocation18 + $0x338] sm:$0xff]
    %v4106 = vld [vmem:[#allocation18 + $0x340] sm:$0xff]
    %v4107 = vld [vmem:[#allocation18 + $0x348] sm:$0xff]
    %v4108 = vld [vmem:[#allocation18 + $0x350] sm:$0xff]
    %v4109 = vld [vmem:[#allocation18 + $0x358] sm:$0xff]
    %v4110 = vld [vmem:[#allocation18 + $0x360] sm:$0xff]
    %v4111 = vld [vmem:[#allocation18 + $0x368] sm:$0xff]
    %v4112 = vld [vmem:[#allocation18 + $0x370] sm:$0xff]
    %v4113 = vld [vmem:[#allocation18 + $0x378] sm:$0xff]
    %v4114 = vld [vmem:[#allocation18 + $0x380] sm:$0xff]
    %v4115 = vld [vmem:[#allocation18 + $0x388] sm:$0xff]
    %v4116 = vld [vmem:[#allocation18 + $0x390] sm:$0xff]
    %v4117 = vld [vmem:[#allocation18 + $0x398] sm:$0xff]
    %v4118 = vld [vmem:[#allocation18 + $0x3a0] sm:$0xff]
    %v4119 = vld [vmem:[#allocation18 + $0x3a8] sm:$0xff]
    %v4120 = vld [vmem:[#allocation18 + $0x3b0] sm:$0xff]
    %v4121 = vld [vmem:[#allocation18 + $0x3b8] sm:$0xff]
    %v4122 = vld [vmem:[#allocation18 + $0x3c0] sm:$0xff]
    %v4123 = vld [vmem:[#allocation18 + $0x3c8] sm:$0xff]
    %v4124 = vld [vmem:[#allocation18 + $0x3d0] sm:$0xff]
    %v4125 = vld [vmem:[#allocation18 + $0x3d8] sm:$0xff]
    %v4126 = vld [vmem:[#allocation18 + $0x3e0] sm:$0xff]
    %v4127 = vld [vmem:[#allocation18 + $0x3e8] sm:$0xff]
    %v4128 = vld [vmem:[#allocation18 + $0x3f0] sm:$0xff]
    %v4129 = vld [vmem:[#allocation18 + $0x3f8] sm:$0xff]
    %4130 = vmatprep.subr.mxu0 %v4003
    %4131 = vmatpush1.msra.mxu0 %v4002
    %4132 = vmatprep.subr.mxu0 %v4007
    %4133 = vmatpush1.msra.mxu0 %v4006
    %4134 = vmatprep.subr.mxu0 %v4011
    %4135 = vmatpush1.msra.mxu0 %v4010
    %4136 = vmatprep.subr.mxu0 %v4015
    %4137 = vmatpush1.msra.mxu0 %v4014
    %4138 = vmatprep.subr.mxu0 %v4019
    %4139 = vmatpush1.msra.mxu0 %v4018
    %4140 = vmatprep.subr.mxu0 %v4023
    %4141 = vmatpush1.msra.mxu0 %v4022
    %4142 = vmatprep.subr.mxu0 %v4027
    %4143 = vmatpush1.msra.mxu0 %v4026
    %4144 = vmatprep.subr.mxu0 %v4031
    %4145 = vmatpush1.msra.mxu0 %v4030
    %4146 = vmatprep.subr.mxu0 %v4035
    %4147 = vmatpush1.msra.mxu0 %v4034
    %4148 = vmatprep.subr.mxu0 %v4039
    %4149 = vmatpush1.msra.mxu0 %v4038
    %4150 = vmatprep.subr.mxu0 %v4043
    %4151 = vmatpush1.msra.mxu0 %v4042
    %4152 = vmatprep.subr.mxu0 %v4047
    %4153 = vmatpush1.msra.mxu0 %v4046
    %4154 = vmatprep.subr.mxu0 %v4051
    %4155 = vmatpush1.msra.mxu0 %v4050
    %4156 = vmatprep.subr.mxu0 %v4055
    %4157 = vmatpush1.msra.mxu0 %v4054
    %4158 = vmatprep.subr.mxu0 %v4059
    %4159 = vmatpush1.msra.mxu0 %v4058
    %4160 = vmatprep.subr.mxu0 %v4063
    %4161 = vmatpush1.msra.mxu0 %v4062
    %4162 = vmatprep.subr.mxu0 %v4067
    %4163 = vmatpush1.msra.mxu0 %v4066
    %4164 = vmatprep.subr.mxu0 %v4071
    %4165 = vmatpush1.msra.mxu0 %v4070
    %4166 = vmatprep.subr.mxu0 %v4075
    %4167 = vmatpush1.msra.mxu0 %v4074
    %4168 = vmatprep.subr.mxu0 %v4079
    %4169 = vmatpush1.msra.mxu0 %v4078
    %4170 = vmatprep.subr.mxu0 %v4083
    %4171 = vmatpush1.msra.mxu0 %v4082
    %4172 = vmatprep.subr.mxu0 %v4087
    %4173 = vmatpush1.msra.mxu0 %v4086
    %4174 = vmatprep.subr.mxu0 %v4091
    %4175 = vmatpush1.msra.mxu0 %v4090
    %4176 = vmatprep.subr.mxu0 %v4095
    %4177 = vmatpush1.msra.mxu0 %v4094
    %4178 = vmatprep.subr.mxu0 %v4099
    %4179 = vmatpush1.msra.mxu0 %v4098
    %4180 = vmatprep.subr.mxu0 %v4103
    %4181 = vmatpush1.msra.mxu0 %v4102
    %4182 = vmatprep.subr.mxu0 %v4107
    %4183 = vmatpush1.msra.mxu0 %v4106
    %4184 = vmatprep.subr.mxu0 %v4111
    %4185 = vmatpush1.msra.mxu0 %v4110
    %4186 = vmatprep.subr.mxu0 %v4115
    %4187 = vmatpush1.msra.mxu0 %v4114
    %4188 = vmatprep.subr.mxu0 %v4119
    %4189 = vmatpush1.msra.mxu0 %v4118
    %4190 = vmatprep.subr.mxu0 %v4123
    %4191 = vmatpush1.msra.mxu0 %v4122
    %4192 = vmatprep.subr.mxu0 %v4127
    %4193 = vmatpush1.msra.mxu0 %v4126
    %4194 = vmatprep.mubr.f32.mxu0 %v3875
    %4195 = vmatmul.mubr.f32.gmra.mrb[0].mxu0 %v3999
    %v4196 = vpop.f32.mrb[0].mxu0
    %v4197 = vadd.f32 0.0, %v4196
    %v4198 = vpop.f32.mrb[0].mxu0
    %v4199 = vadd.f32 0.0, %v4198
    %4200 = vdwg.mxu0
    %4201 = vmatprep.subr.mxu0 %v4005
    %4202 = vmatpush1.msra.mxu0 %v4004
    %4203 = vmatprep.subr.mxu0 %v4009
    %4204 = vmatpush1.msra.mxu0 %v4008
    %4205 = vmatprep.subr.mxu0 %v4013
    %4206 = vmatpush1.msra.mxu0 %v4012
    %4207 = vmatprep.subr.mxu0 %v4017
    %4208 = vmatpush1.msra.mxu0 %v4016
    %4209 = vmatprep.subr.mxu0 %v4021
    %4210 = vmatpush1.msra.mxu0 %v4020
    %4211 = vmatprep.subr.mxu0 %v4025
    %4212 = vmatpush1.msra.mxu0 %v4024
    %4213 = vmatprep.subr.mxu0 %v4029
    %4214 = vmatpush1.msra.mxu0 %v4028
    %4215 = vmatprep.subr.mxu0 %v4033
    %4216 = vmatpush1.msra.mxu0 %v4032
    %4217 = vmatprep.subr.mxu0 %v4037
    %4218 = vmatpush1.msra.mxu0 %v4036
    %4219 = vmatprep.subr.mxu0 %v4041
    %4220 = vmatpush1.msra.mxu0 %v4040
    %4221 = vmatprep.subr.mxu0 %v4045
    %4222 = vmatpush1.msra.mxu0 %v4044
    %4223 = vmatprep.subr.mxu0 %v4049
    %4224 = vmatpush1.msra.mxu0 %v4048
    %4225 = vmatprep.subr.mxu0 %v4053
    %4226 = vmatpush1.msra.mxu0 %v4052
    %4227 = vmatprep.subr.mxu0 %v4057
    %4228 = vmatpush1.msra.mxu0 %v4056
    %4229 = vmatprep.subr.mxu0 %v4061
    %4230 = vmatpush1.msra.mxu0 %v4060
    %4231 = vmatprep.subr.mxu0 %v4065
    %4232 = vmatpush1.msra.mxu0 %v4064
    %4233 = vmatprep.subr.mxu0 %v4069
    %4234 = vmatpush1.msra.mxu0 %v4068
    %4235 = vmatprep.subr.mxu0 %v4073
    %4236 = vmatpush1.msra.mxu0 %v4072
    %4237 = vmatprep.subr.mxu0 %v4077
    %4238 = vmatpush1.msra.mxu0 %v4076
    %4239 = vmatprep.subr.mxu0 %v4081
    %4240 = vmatpush1.msra.mxu0 %v4080
    %4241 = vmatprep.subr.mxu0 %v4085
    %4242 = vmatpush1.msra.mxu0 %v4084
    %4243 = vmatprep.subr.mxu0 %v4089
    %4244 = vmatpush1.msra.mxu0 %v4088
    %4245 = vmatprep.subr.mxu0 %v4093
    %4246 = vmatpush1.msra.mxu0 %v4092
    %4247 = vmatprep.subr.mxu0 %v4097
    %4248 = vmatpush1.msra.mxu0 %v4096
    %4249 = vmatprep.subr.mxu0 %v4101
    %4250 = vmatpush1.msra.mxu0 %v4100
    %4251 = vmatprep.subr.mxu0 %v4105
    %4252 = vmatpush1.msra.mxu0 %v4104
    %4253 = vmatprep.subr.mxu0 %v4109
    %4254 = vmatpush1.msra.mxu0 %v4108
    %4255 = vmatprep.subr.mxu0 %v4113
    %4256 = vmatpush1.msra.mxu0 %v4112
    %4257 = vmatprep.subr.mxu0 %v4117
    %4258 = vmatpush1.msra.mxu0 %v4116
    %4259 = vmatprep.subr.mxu0 %v4121
    %4260 = vmatpush1.msra.mxu0 %v4120
    %4261 = vmatprep.subr.mxu0 %v4125
    %4262 = vmatpush1.msra.mxu0 %v4124
    %4263 = vmatprep.subr.mxu0 %v4129
    %4264 = vmatpush1.msra.mxu0 %v4128
    %4265 = vmatprep.mubr.f32.mxu0 %v3875
    %4266 = vmatmul.mubr.f32.gmra.mrb[0].mxu0 %v3999
    %v4267 = vpop.f32.mrb[0].mxu0
    %v4268 = vadd.f32 0.0, %v4267
    %v4269 = vpop.f32.mrb[0].mxu0
    %v4270 = vadd.f32 0.0, %v4269
    %4271 = vdwg.mxu0
    %v4276 = vcombine.low %v4197, %v4199
    %v4277 = vcombine.low %v4268, %v4270
    %v4279 = vunpack.c.l.s4 1983009808
    %v4280 = vunpack.c.0.s8 %v4279
    %v4281 = vlaneseq
    %v4282 = vshrl.u32 %v4281, 7
    %v4283 = vsub.s32 %v4280, %v4282
    %v4284 = vrot.slane %v4276, %v4283
    %v4286 = vunpack.c.l.s4 1983009808
    %v4287 = vunpack.c.0.s8 %v4286
    %v4288 = vlaneseq
    %v4289 = vshrl.u32 %v4288, 7
    %v4290 = vsub.s32 %v4287, %v4289
    %v4291 = vrot.slane %v4277, %v4290
    %v4292 = vcombine.low %v4284, %v4291
    %v4294 = vadd.f32 %v4001, %v4292
    %v4295 = vxor.u32 %v4294, 2147483648
    %v4296 = vmul.f32 %v4295, 1.442695
    %v4297 = vpow.pop %v4296
    %v4298 = vadd.f32 %v4297, 1.0
    %v4299 = vrcp.pop %v4298
    %v4300 = vmul.f32 1.0, %v4299
    %v4301 = vtanh.pop %v4294
    %v4303 = vrot.slane %v4300, 2
    %v4305 = vmul.f32 %v4303, %v3871
    %v4307 = vrot.slane %v4301, 4
    %v4309 = vmul.f32 %v4300, %v4307
    %v4310 = vadd.f32 %v4305, %v4309
    %v4311 = vtanh.pop %v4310
    %v4312 = vrot.slane %v4300, 6
    %v4314 = vmul.f32 %v4312, %v4311
    %s4315 = scalar_lea.vmem [#allocation6], 4
    %4316 = vst [vmem:[%s4315] sm:$0x3] %v4314
    %v4317 = vmul.f32 %v4314, %v2985
    %v4318 = vsel %vm2988, %v4317, 0.0
    %4319 = vadd.xlane.f32.xlu0 %v4318
    %v4320 = vpop.xlane.xlu0 %4319
    %v4322 = vlaneseq
    %v4323 = vshrl.u32 %v4322, 7
    %v4324 = vsub.s32 0, %v4323
    %v4325 = vrot.slane %v4320, %v4324
    %v4326 = vlaneseq
    %v4327 = vshrl.u32 %v4326, 7
    %v4328 = vsub.s32 1, %v4327
    %v4329 = vrot.slane %v4320, %v4328
    %v4332 = vadd.f32 %v2979, %v4325
    %v4333 = vadd.f32 %v2981, %v4329
    %v4334 = vadd.f32 %v4332, %v3012
    %v4335 = vadd.f32 %v4333, %v3012
    %v4336 = vmax.f32 %v4334, 0.0
    %v4337 = vmax.f32 %v4335, 0.0
    %4340 = vset.pattern.permute.xlu0 0
    %4341 = vperm.xlu0 %4340, %v4336
    %v4342 = vpop.permute.xlu0 %4341
    %4343 = vset.pattern.permute.xlu0 0
    %4344 = vperm.xlu0 %4343, %v4337
    %v4345 = vpop.permute.xlu0 %4344
    %v4346 = vlaneseq
    %v4347 = vshrl.u32 %v4346, 7
    %v4348 = vsub.s32 %v3027, %v4347
    %v4349 = vrot.slane %v4342, %v4348
    %v4350 = vlaneseq
    %v4351 = vshrl.u32 %v4350, 7
    %v4352 = vsub.s32 %v3027, %v4351
    %v4353 = vrot.slane %v4345, %v4352
    %v4354 = vsel %vm3036, %v4353, %v4349
    %v4356 = vsel %vm3039, %v4354, -inf
    %4357 = vmax.xlane.f32.xlu0 %v4356
    %v4358 = vpop.xlane.xlu0 %4357
    %v4360 = vlaneseq
    %v4361 = vshrl.u32 %v4360, 7
    %v4362 = vsub.s32 0, %v4361
    %v4363 = vrot.slane %v4358, %v4362
    %v4364 = vlaneseq
    %v4365 = vshrl.u32 %v4364, 7
    %v4366 = vsub.s32 1, %v4365
    %v4367 = vrot.slane %v4358, %v4366
    %v4370 = vsub.f32 %v4336, %v4363
    %v4371 = vsub.f32 %v4337, %v4367
    %v4372 = vmul.f32 %v4370, 1.442695
    %v4373 = vpow.pop %v4372
    %v4374 = vmul.f32 %v4371, 1.442695
    %v4375 = vpow.pop %v4374
    %4378 = vset.pattern.permute.xlu0 0
    %4379 = vperm.xlu0 %4378, %v4373
    %v4380 = vpop.permute.xlu0 %4379
    %4381 = vset.pattern.permute.xlu0 0
    %4382 = vperm.xlu0 %4381, %v4375
    %v4383 = vpop.permute.xlu0 %4382
    %v4384 = vlaneseq
    %v4385 = vshrl.u32 %v4384, 7
    %v4386 = vsub.s32 %v3027, %v4385
    %v4387 = vrot.slane %v4380, %v4386
    %v4388 = vlaneseq
    %v4389 = vshrl.u32 %v4388, 7
    %v4390 = vsub.s32 %v3027, %v4389
    %v4391 = vrot.slane %v4383, %v4390
    %v4392 = vsel %vm3036, %v4391, %v4387
    %v4394 = vsel %vm3039, %v4392, 0.0
    %4395 = vadd.xlane.f32.xlu0 %v4394
    %v4396 = vpop.xlane.xlu0 %4395
    %v4398 = vlaneseq
    %v4399 = vshrl.u32 %v4398, 7
    %v4400 = vsub.s32 0, %v4399
    %v4401 = vrot.slane %v4396, %v4400
    %v4402 = vlaneseq
    %v4403 = vshrl.u32 %v4402, 7
    %v4404 = vsub.s32 1, %v4403
    %v4405 = vrot.slane %v4396, %v4404
    %v4408 = vrcp.pop %v4401
    %v4409 = vmul.f32 %v4373, %v4408
    %v4410 = vrcp.pop %v4405
    %v4411 = vmul.f32 %v4375, %v4410
    %4413 = vset.pattern.permute.xlu0 0
    %4414 = vperm.xlu0 %4413, %v4409
    %v4415 = vpop.permute.xlu0 %4414
    %4418 = vset.pattern.permute.xlu0 0
    %4419 = vperm.xlu0 %4418, %v4411
    %v4420 = vpop.permute.xlu0 %4419
    %v4422 = vmul.f32 %v4415, %v2965
    %v4423 = vmul.f32 %v4420, %v2966
    %v4424 = vrot.slane %v4422, 4
    %v4425 = vadd.f32 %v4422, %v4424
    %v4426 = vrot.slane %v4425, 2
    %v4427 = vadd.f32 %v4425, %v4426
    %v4428 = vrot.slane %v4427, 1
    %v4429 = vadd.f32 %v4427, %v4428
    %v4430 = vrot.slane %v4423, 4
    %v4431 = vadd.f32 %v4423, %v4430
    %v4432 = vrot.slane %v4431, 2
    %v4433 = vadd.f32 %v4431, %v4432
    %v4434 = vrot.slane %v4433, 1
    %v4435 = vadd.f32 %v4433, %v4434
    %v4438 = vsel %vm3036, %v4435, %v4429
    %v4440 = vld [vmem:[%s676] sm:$0xff]
    %v4441 = vld [vmem:[#allocation18] sm:$0xff]
    %v4442 = vld [vmem:[#allocation18 + $0x8] sm:$0xff]
    %v4443 = vld [vmem:[#allocation18 + $0x10] sm:$0xff]
    %v4444 = vld [vmem:[#allocation18 + $0x18] sm:$0xff]
    %v4445 = vld [vmem:[#allocation18 + $0x20] sm:$0xff]
    %v4446 = vld [vmem:[#allocation18 + $0x28] sm:$0xff]
    %v4447 = vld [vmem:[#allocation18 + $0x30] sm:$0xff]
    %v4448 = vld [vmem:[#allocation18 + $0x38] sm:$0xff]
    %v4449 = vld [vmem:[#allocation18 + $0x40] sm:$0xff]
    %v4450 = vld [vmem:[#allocation18 + $0x48] sm:$0xff]
    %v4451 = vld [vmem:[#allocation18 + $0x50] sm:$0xff]
    %v4452 = vld [vmem:[#allocation18 + $0x58] sm:$0xff]
    %v4453 = vld [vmem:[#allocation18 + $0x60] sm:$0xff]
    %v4454 = vld [vmem:[#allocation18 + $0x68] sm:$0xff]
    %v4455 = vld [vmem:[#allocation18 + $0x70] sm:$0xff]
    %v4456 = vld [vmem:[#allocation18 + $0x78] sm:$0xff]
    %v4457 = vld [vmem:[#allocation18 + $0x80] sm:$0xff]
    %v4458 = vld [vmem:[#allocation18 + $0x88] sm:$0xff]
    %v4459 = vld [vmem:[#allocation18 + $0x90] sm:$0xff]
    %v4460 = vld [vmem:[#allocation18 + $0x98] sm:$0xff]
    %v4461 = vld [vmem:[#allocation18 + $0xa0] sm:$0xff]
    %v4462 = vld [vmem:[#allocation18 + $0xa8] sm:$0xff]
    %v4463 = vld [vmem:[#allocation18 + $0xb0] sm:$0xff]
    %v4464 = vld [vmem:[#allocation18 + $0xb8] sm:$0xff]
    %v4465 = vld [vmem:[#allocation18 + $0xc0] sm:$0xff]
    %v4466 = vld [vmem:[#allocation18 + $0xc8] sm:$0xff]
    %v4467 = vld [vmem:[#allocation18 + $0xd0] sm:$0xff]
    %v4468 = vld [vmem:[#allocation18 + $0xd8] sm:$0xff]
    %v4469 = vld [vmem:[#allocation18 + $0xe0] sm:$0xff]
    %v4470 = vld [vmem:[#allocation18 + $0xe8] sm:$0xff]
    %v4471 = vld [vmem:[#allocation18 + $0xf0] sm:$0xff]
    %v4472 = vld [vmem:[#allocation18 + $0xf8] sm:$0xff]
    %v4473 = vld [vmem:[#allocation18 + $0x100] sm:$0xff]
    %v4474 = vld [vmem:[#allocation18 + $0x108] sm:$0xff]
    %v4475 = vld [vmem:[#allocation18 + $0x110] sm:$0xff]
    %v4476 = vld [vmem:[#allocation18 + $0x118] sm:$0xff]
    %v4477 = vld [vmem:[#allocation18 + $0x120] sm:$0xff]
    %v4478 = vld [vmem:[#allocation18 + $0x128] sm:$0xff]
    %v4479 = vld [vmem:[#allocation18 + $0x130] sm:$0xff]
    %v4480 = vld [vmem:[#allocation18 + $0x138] sm:$0xff]
    %v4481 = vld [vmem:[#allocation18 + $0x140] sm:$0xff]
    %v4482 = vld [vmem:[#allocation18 + $0x148] sm:$0xff]
    %v4483 = vld [vmem:[#allocation18 + $0x150] sm:$0xff]
    %v4484 = vld [vmem:[#allocation18 + $0x158] sm:$0xff]
    %v4485 = vld [vmem:[#allocation18 + $0x160] sm:$0xff]
    %v4486 = vld [vmem:[#allocation18 + $0x168] sm:$0xff]
    %v4487 = vld [vmem:[#allocation18 + $0x170] sm:$0xff]
    %v4488 = vld [vmem:[#allocation18 + $0x178] sm:$0xff]
    %v4489 = vld [vmem:[#allocation18 + $0x180] sm:$0xff]
    %v4490 = vld [vmem:[#allocation18 + $0x188] sm:$0xff]
    %v4491 = vld [vmem:[#allocation18 + $0x190] sm:$0xff]
    %v4492 = vld [vmem:[#allocation18 + $0x198] sm:$0xff]
    %v4493 = vld [vmem:[#allocation18 + $0x1a0] sm:$0xff]
    %v4494 = vld [vmem:[#allocation18 + $0x1a8] sm:$0xff]
    %v4495 = vld [vmem:[#allocation18 + $0x1b0] sm:$0xff]
    %v4496 = vld [vmem:[#allocation18 + $0x1b8] sm:$0xff]
    %v4497 = vld [vmem:[#allocation18 + $0x1c0] sm:$0xff]
    %v4498 = vld [vmem:[#allocation18 + $0x1c8] sm:$0xff]
    %v4499 = vld [vmem:[#allocation18 + $0x1d0] sm:$0xff]
    %v4500 = vld [vmem:[#allocation18 + $0x1d8] sm:$0xff]
    %v4501 = vld [vmem:[#allocation18 + $0x1e0] sm:$0xff]
    %v4502 = vld [vmem:[#allocation18 + $0x1e8] sm:$0xff]
    %v4503 = vld [vmem:[#allocation18 + $0x1f0] sm:$0xff]
    %v4504 = vld [vmem:[#allocation18 + $0x1f8] sm:$0xff]
    %v4505 = vld [vmem:[#allocation18 + $0x200] sm:$0xff]
    %v4506 = vld [vmem:[#allocation18 + $0x208] sm:$0xff]
    %v4507 = vld [vmem:[#allocation18 + $0x210] sm:$0xff]
    %v4508 = vld [vmem:[#allocation18 + $0x218] sm:$0xff]
    %v4509 = vld [vmem:[#allocation18 + $0x220] sm:$0xff]
    %v4510 = vld [vmem:[#allocation18 + $0x228] sm:$0xff]
    %v4511 = vld [vmem:[#allocation18 + $0x230] sm:$0xff]
    %v4512 = vld [vmem:[#allocation18 + $0x238] sm:$0xff]
    %v4513 = vld [vmem:[#allocation18 + $0x240] sm:$0xff]
    %v4514 = vld [vmem:[#allocation18 + $0x248] sm:$0xff]
    %v4515 = vld [vmem:[#allocation18 + $0x250] sm:$0xff]
    %v4516 = vld [vmem:[#allocation18 + $0x258] sm:$0xff]
    %v4517 = vld [vmem:[#allocation18 + $0x260] sm:$0xff]
    %v4518 = vld [vmem:[#allocation18 + $0x268] sm:$0xff]
    %v4519 = vld [vmem:[#allocation18 + $0x270] sm:$0xff]
    %v4520 = vld [vmem:[#allocation18 + $0x278] sm:$0xff]
    %v4521 = vld [vmem:[#allocation18 + $0x280] sm:$0xff]
    %v4522 = vld [vmem:[#allocation18 + $0x288] sm:$0xff]
    %v4523 = vld [vmem:[#allocation18 + $0x290] sm:$0xff]
    %v4524 = vld [vmem:[#allocation18 + $0x298] sm:$0xff]
    %v4525 = vld [vmem:[#allocation18 + $0x2a0] sm:$0xff]
    %v4526 = vld [vmem:[#allocation18 + $0x2a8] sm:$0xff]
    %v4527 = vld [vmem:[#allocation18 + $0x2b0] sm:$0xff]
    %v4528 = vld [vmem:[#allocation18 + $0x2b8] sm:$0xff]
    %v4529 = vld [vmem:[#allocation18 + $0x2c0] sm:$0xff]
    %v4530 = vld [vmem:[#allocation18 + $0x2c8] sm:$0xff]
    %v4531 = vld [vmem:[#allocation18 + $0x2d0] sm:$0xff]
    %v4532 = vld [vmem:[#allocation18 + $0x2d8] sm:$0xff]
    %v4533 = vld [vmem:[#allocation18 + $0x2e0] sm:$0xff]
    %v4534 = vld [vmem:[#allocation18 + $0x2e8] sm:$0xff]
    %v4535 = vld [vmem:[#allocation18 + $0x2f0] sm:$0xff]
    %v4536 = vld [vmem:[#allocation18 + $0x2f8] sm:$0xff]
    %v4537 = vld [vmem:[#allocation18 + $0x300] sm:$0xff]
    %v4538 = vld [vmem:[#allocation18 + $0x308] sm:$0xff]
    %v4539 = vld [vmem:[#allocation18 + $0x310] sm:$0xff]
    %v4540 = vld [vmem:[#allocation18 + $0x318] sm:$0xff]
    %v4541 = vld [vmem:[#allocation18 + $0x320] sm:$0xff]
    %v4542 = vld [vmem:[#allocation18 + $0x328] sm:$0xff]
    %v4543 = vld [vmem:[#allocation18 + $0x330] sm:$0xff]
    %v4544 = vld [vmem:[#allocation18 + $0x338] sm:$0xff]
    %v4545 = vld [vmem:[#allocation18 + $0x340] sm:$0xff]
    %v4546 = vld [vmem:[#allocation18 + $0x348] sm:$0xff]
    %v4547 = vld [vmem:[#allocation18 + $0x350] sm:$0xff]
    %v4548 = vld [vmem:[#allocation18 + $0x358] sm:$0xff]
    %v4549 = vld [vmem:[#allocation18 + $0x360] sm:$0xff]
    %v4550 = vld [vmem:[#allocation18 + $0x368] sm:$0xff]
    %v4551 = vld [vmem:[#allocation18 + $0x370] sm:$0xff]
    %v4552 = vld [vmem:[#allocation18 + $0x378] sm:$0xff]
    %v4553 = vld [vmem:[#allocation18 + $0x380] sm:$0xff]
    %v4554 = vld [vmem:[#allocation18 + $0x388] sm:$0xff]
    %v4555 = vld [vmem:[#allocation18 + $0x390] sm:$0xff]
    %v4556 = vld [vmem:[#allocation18 + $0x398] sm:$0xff]
    %v4557 = vld [vmem:[#allocation18 + $0x3a0] sm:$0xff]
    %v4558 = vld [vmem:[#allocation18 + $0x3a8] sm:$0xff]
    %v4559 = vld [vmem:[#allocation18 + $0x3b0] sm:$0xff]
    %v4560 = vld [vmem:[#allocation18 + $0x3b8] sm:$0xff]
    %v4561 = vld [vmem:[#allocation18 + $0x3c0] sm:$0xff]
    %v4562 = vld [vmem:[#allocation18 + $0x3c8] sm:$0xff]
    %v4563 = vld [vmem:[#allocation18 + $0x3d0] sm:$0xff]
    %v4564 = vld [vmem:[#allocation18 + $0x3d8] sm:$0xff]
    %v4565 = vld [vmem:[#allocation18 + $0x3e0] sm:$0xff]
    %v4566 = vld [vmem:[#allocation18 + $0x3e8] sm:$0xff]
    %v4567 = vld [vmem:[#allocation18 + $0x3f0] sm:$0xff]
    %v4568 = vld [vmem:[#allocation18 + $0x3f8] sm:$0xff]
    %4569 = vmatprep.subr.mxu0 %v4442
    %4570 = vmatpush1.msra.mxu0 %v4441
    %4571 = vmatprep.subr.mxu0 %v4446
    %4572 = vmatpush1.msra.mxu0 %v4445
    %4573 = vmatprep.subr.mxu0 %v4450
    %4574 = vmatpush1.msra.mxu0 %v4449
    %4575 = vmatprep.subr.mxu0 %v4454
    %4576 = vmatpush1.msra.mxu0 %v4453
    %4577 = vmatprep.subr.mxu0 %v4458
    %4578 = vmatpush1.msra.mxu0 %v4457
    %4579 = vmatprep.subr.mxu0 %v4462
    %4580 = vmatpush1.msra.mxu0 %v4461
    %4581 = vmatprep.subr.mxu0 %v4466
    %4582 = vmatpush1.msra.mxu0 %v4465
    %4583 = vmatprep.subr.mxu0 %v4470
    %4584 = vmatpush1.msra.mxu0 %v4469
    %4585 = vmatprep.subr.mxu0 %v4474
    %4586 = vmatpush1.msra.mxu0 %v4473
    %4587 = vmatprep.subr.mxu0 %v4478
    %4588 = vmatpush1.msra.mxu0 %v4477
    %4589 = vmatprep.subr.mxu0 %v4482
    %4590 = vmatpush1.msra.mxu0 %v4481
    %4591 = vmatprep.subr.mxu0 %v4486
    %4592 = vmatpush1.msra.mxu0 %v4485
    %4593 = vmatprep.subr.mxu0 %v4490
    %4594 = vmatpush1.msra.mxu0 %v4489
    %4595 = vmatprep.subr.mxu0 %v4494
    %4596 = vmatpush1.msra.mxu0 %v4493
    %4597 = vmatprep.subr.mxu0 %v4498
    %4598 = vmatpush1.msra.mxu0 %v4497
    %4599 = vmatprep.subr.mxu0 %v4502
    %4600 = vmatpush1.msra.mxu0 %v4501
    %4601 = vmatprep.subr.mxu0 %v4506
    %4602 = vmatpush1.msra.mxu0 %v4505
    %4603 = vmatprep.subr.mxu0 %v4510
    %4604 = vmatpush1.msra.mxu0 %v4509
    %4605 = vmatprep.subr.mxu0 %v4514
    %4606 = vmatpush1.msra.mxu0 %v4513
    %4607 = vmatprep.subr.mxu0 %v4518
    %4608 = vmatpush1.msra.mxu0 %v4517
    %4609 = vmatprep.subr.mxu0 %v4522
    %4610 = vmatpush1.msra.mxu0 %v4521
    %4611 = vmatprep.subr.mxu0 %v4526
    %4612 = vmatpush1.msra.mxu0 %v4525
    %4613 = vmatprep.subr.mxu0 %v4530
    %4614 = vmatpush1.msra.mxu0 %v4529
    %4615 = vmatprep.subr.mxu0 %v4534
    %4616 = vmatpush1.msra.mxu0 %v4533
    %4617 = vmatprep.subr.mxu0 %v4538
    %4618 = vmatpush1.msra.mxu0 %v4537
    %4619 = vmatprep.subr.mxu0 %v4542
    %4620 = vmatpush1.msra.mxu0 %v4541
    %4621 = vmatprep.subr.mxu0 %v4546
    %4622 = vmatpush1.msra.mxu0 %v4545
    %4623 = vmatprep.subr.mxu0 %v4550
    %4624 = vmatpush1.msra.mxu0 %v4549
    %4625 = vmatprep.subr.mxu0 %v4554
    %4626 = vmatpush1.msra.mxu0 %v4553
    %4627 = vmatprep.subr.mxu0 %v4558
    %4628 = vmatpush1.msra.mxu0 %v4557
    %4629 = vmatprep.subr.mxu0 %v4562
    %4630 = vmatpush1.msra.mxu0 %v4561
    %4631 = vmatprep.subr.mxu0 %v4566
    %4632 = vmatpush1.msra.mxu0 %v4565
    %4633 = vmatprep.mubr.f32.mxu0 %v4314
    %4634 = vmatmul.mubr.f32.gmra.mrb[0].mxu0 %v4438
    %v4635 = vpop.f32.mrb[0].mxu0
    %v4636 = vadd.f32 0.0, %v4635
    %v4637 = vpop.f32.mrb[0].mxu0
    %v4638 = vadd.f32 0.0, %v4637
    %4639 = vdwg.mxu0
    %4640 = vmatprep.subr.mxu0 %v4444
    %4641 = vmatpush1.msra.mxu0 %v4443
    %4642 = vmatprep.subr.mxu0 %v4448
    %4643 = vmatpush1.msra.mxu0 %v4447
    %4644 = vmatprep.subr.mxu0 %v4452
    %4645 = vmatpush1.msra.mxu0 %v4451
    %4646 = vmatprep.subr.mxu0 %v4456
    %4647 = vmatpush1.msra.mxu0 %v4455
    %4648 = vmatprep.subr.mxu0 %v4460
    %4649 = vmatpush1.msra.mxu0 %v4459
    %4650 = vmatprep.subr.mxu0 %v4464
    %4651 = vmatpush1.msra.mxu0 %v4463
    %4652 = vmatprep.subr.mxu0 %v4468
    %4653 = vmatpush1.msra.mxu0 %v4467
    %4654 = vmatprep.subr.mxu0 %v4472
    %4655 = vmatpush1.msra.mxu0 %v4471
    %4656 = vmatprep.subr.mxu0 %v4476
    %4657 = vmatpush1.msra.mxu0 %v4475
    %4658 = vmatprep.subr.mxu0 %v4480
    %4659 = vmatpush1.msra.mxu0 %v4479
    %4660 = vmatprep.subr.mxu0 %v4484
    %4661 = vmatpush1.msra.mxu0 %v4483
    %4662 = vmatprep.subr.mxu0 %v4488
    %4663 = vmatpush1.msra.mxu0 %v4487
    %4664 = vmatprep.subr.mxu0 %v4492
    %4665 = vmatpush1.msra.mxu0 %v4491
    %4666 = vmatprep.subr.mxu0 %v4496
    %4667 = vmatpush1.msra.mxu0 %v4495
    %4668 = vmatprep.subr.mxu0 %v4500
    %4669 = vmatpush1.msra.mxu0 %v4499
    %4670 = vmatprep.subr.mxu0 %v4504
    %4671 = vmatpush1.msra.mxu0 %v4503
    %4672 = vmatprep.subr.mxu0 %v4508
    %4673 = vmatpush1.msra.mxu0 %v4507
    %4674 = vmatprep.subr.mxu0 %v4512
    %4675 = vmatpush1.msra.mxu0 %v4511
    %4676 = vmatprep.subr.mxu0 %v4516
    %4677 = vmatpush1.msra.mxu0 %v4515
    %4678 = vmatprep.subr.mxu0 %v4520
    %4679 = vmatpush1.msra.mxu0 %v4519
    %4680 = vmatprep.subr.mxu0 %v4524
    %4681 = vmatpush1.msra.mxu0 %v4523
    %4682 = vmatprep.subr.mxu0 %v4528
    %4683 = vmatpush1.msra.mxu0 %v4527
    %4684 = vmatprep.subr.mxu0 %v4532
    %4685 = vmatpush1.msra.mxu0 %v4531
    %4686 = vmatprep.subr.mxu0 %v4536
    %4687 = vmatpush1.msra.mxu0 %v4535
    %4688 = vmatprep.subr.mxu0 %v4540
    %4689 = vmatpush1.msra.mxu0 %v4539
    %4690 = vmatprep.subr.mxu0 %v4544
    %4691 = vmatpush1.msra.mxu0 %v4543
    %4692 = vmatprep.subr.mxu0 %v4548
    %4693 = vmatpush1.msra.mxu0 %v4547
    %4694 = vmatprep.subr.mxu0 %v4552
    %4695 = vmatpush1.msra.mxu0 %v4551
    %4696 = vmatprep.subr.mxu0 %v4556
    %4697 = vmatpush1.msra.mxu0 %v4555
    %4698 = vmatprep.subr.mxu0 %v4560
    %4699 = vmatpush1.msra.mxu0 %v4559
    %4700 = vmatprep.subr.mxu0 %v4564
    %4701 = vmatpush1.msra.mxu0 %v4563
    %4702 = vmatprep.subr.mxu0 %v4568
    %4703 = vmatpush1.msra.mxu0 %v4567
    %4704 = vmatprep.mubr.f32.mxu0 %v4314
    %4705 = vmatmul.mubr.f32.gmra.mrb[0].mxu0 %v4438
    %v4706 = vpop.f32.mrb[0].mxu0
    %v4707 = vadd.f32 0.0, %v4706
    %v4708 = vpop.f32.mrb[0].mxu0
    %v4709 = vadd.f32 0.0, %v4708
    %4710 = vdwg.mxu0
    %v4715 = vcombine.low %v4636, %v4638
    %v4716 = vcombine.low %v4707, %v4709
    %v4718 = vunpack.c.l.s4 1983009808
    %v4719 = vunpack.c.0.s8 %v4718
    %v4720 = vlaneseq
    %v4721 = vshrl.u32 %v4720, 7
    %v4722 = vsub.s32 %v4719, %v4721
    %v4723 = vrot.slane %v4715, %v4722
    %v4725 = vunpack.c.l.s4 1983009808
    %v4726 = vunpack.c.0.s8 %v4725
    %v4727 = vlaneseq
    %v4728 = vshrl.u32 %v4727, 7
    %v4729 = vsub.s32 %v4726, %v4728
    %v4730 = vrot.slane %v4716, %v4729
    %v4731 = vcombine.low %v4723, %v4730
    %v4733 = vadd.f32 %v4440, %v4731
    %v4734 = vxor.u32 %v4733, 2147483648
    %v4735 = vmul.f32 %v4734, 1.442695
    %v4736 = vpow.pop %v4735
    %v4737 = vadd.f32 %v4736, 1.0
    %v4738 = vrcp.pop %v4737
    %v4739 = vmul.f32 1.0, %v4738
    %v4740 = vtanh.pop %v4733
    %v4742 = vrot.slane %v4739, 2
    %v4744 = vmul.f32 %v4742, %v4310
    %v4746 = vrot.slane %v4740, 4
    %v4748 = vmul.f32 %v4739, %v4746
    %v4749 = vadd.f32 %v4744, %v4748
    %v4750 = vtanh.pop %v4749
    %v4751 = vrot.slane %v4739, 6
    %v4753 = vmul.f32 %v4751, %v4750
    %s4754 = scalar_lea.vmem [#allocation6], 6
    %4755 = vst [vmem:[%s4754] sm:$0x3] %v4753
    %v4756 = vmul.f32 %v4753, %v2985
    %v4757 = vsel %vm2988, %v4756, 0.0
    %4758 = vadd.xlane.f32.xlu0 %v4757
    %v4759 = vpop.xlane.xlu0 %4758
    %v4761 = vlaneseq
    %v4762 = vshrl.u32 %v4761, 7
    %v4763 = vsub.s32 0, %v4762
    %v4764 = vrot.slane %v4759, %v4763
    %v4765 = vlaneseq
    %v4766 = vshrl.u32 %v4765, 7
    %v4767 = vsub.s32 1, %v4766
    %v4768 = vrot.slane %v4759, %v4767
    %v4771 = vadd.f32 %v2979, %v4764
    %v4772 = vadd.f32 %v2981, %v4768
    %v4773 = vadd.f32 %v4771, %v3012
    %v4774 = vadd.f32 %v4772, %v3012
    %v4775 = vmax.f32 %v4773, 0.0
    %v4776 = vmax.f32 %v4774, 0.0
    %4779 = vset.pattern.permute.xlu0 0
    %4780 = vperm.xlu0 %4779, %v4775
    %v4781 = vpop.permute.xlu0 %4780
    %4782 = vset.pattern.permute.xlu0 0
    %4783 = vperm.xlu0 %4782, %v4776
    %v4784 = vpop.permute.xlu0 %4783
    %v4785 = vlaneseq
    %v4786 = vshrl.u32 %v4785, 7
    %v4787 = vsub.s32 %v3027, %v4786
    %v4788 = vrot.slane %v4781, %v4787
    %v4789 = vlaneseq
    %v4790 = vshrl.u32 %v4789, 7
    %v4791 = vsub.s32 %v3027, %v4790
    %v4792 = vrot.slane %v4784, %v4791
    %v4793 = vsel %vm3036, %v4792, %v4788
    %v4795 = vsel %vm3039, %v4793, -inf
    %4796 = vmax.xlane.f32.xlu0 %v4795
    %v4797 = vpop.xlane.xlu0 %4796
    %v4799 = vlaneseq
    %v4800 = vshrl.u32 %v4799, 7
    %v4801 = vsub.s32 0, %v4800
    %v4802 = vrot.slane %v4797, %v4801
    %v4803 = vlaneseq
    %v4804 = vshrl.u32 %v4803, 7
    %v4805 = vsub.s32 1, %v4804
    %v4806 = vrot.slane %v4797, %v4805
    %v4809 = vsub.f32 %v4775, %v4802
    %v4810 = vsub.f32 %v4776, %v4806
    %v4811 = vmul.f32 %v4809, 1.442695
    %v4812 = vpow.pop %v4811
    %v4813 = vmul.f32 %v4810, 1.442695
    %v4814 = vpow.pop %v4813
    %4817 = vset.pattern.permute.xlu0 0
    %4818 = vperm.xlu0 %4817, %v4812
    %v4819 = vpop.permute.xlu0 %4818
    %4820 = vset.pattern.permute.xlu0 0
    %4821 = vperm.xlu0 %4820, %v4814
    %v4822 = vpop.permute.xlu0 %4821
    %v4823 = vlaneseq
    %v4824 = vshrl.u32 %v4823, 7
    %v4825 = vsub.s32 %v3027, %v4824
    %v4826 = vrot.slane %v4819, %v4825
    %v4827 = vlaneseq
    %v4828 = vshrl.u32 %v4827, 7
    %v4829 = vsub.s32 %v3027, %v4828
    %v4830 = vrot.slane %v4822, %v4829
    %v4831 = vsel %vm3036, %v4830, %v4826
    %v4833 = vsel %vm3039, %v4831, 0.0
    %4834 = vadd.xlane.f32.xlu0 %v4833
    %v4835 = vpop.xlane.xlu0 %4834
    %v4837 = vlaneseq
    %v4838 = vshrl.u32 %v4837, 7
    %v4839 = vsub.s32 0, %v4838
    %v4840 = vrot.slane %v4835, %v4839
    %v4841 = vlaneseq
    %v4842 = vshrl.u32 %v4841, 7
    %v4843 = vsub.s32 1, %v4842
    %v4844 = vrot.slane %v4835, %v4843
    %v4847 = vrcp.pop %v4840
    %v4848 = vmul.f32 %v4812, %v4847
    %v4849 = vrcp.pop %v4844
    %v4850 = vmul.f32 %v4814, %v4849
    %4852 = vset.pattern.permute.xlu0 0
    %4853 = vperm.xlu0 %4852, %v4848
    %v4854 = vpop.permute.xlu0 %4853
    %4857 = vset.pattern.permute.xlu0 0
    %4858 = vperm.xlu0 %4857, %v4850
    %v4859 = vpop.permute.xlu0 %4858
    %v4861 = vmul.f32 %v4854, %v2965
    %v4862 = vmul.f32 %v4859, %v2966
    %v4863 = vrot.slane %v4861, 4
    %v4864 = vadd.f32 %v4861, %v4863
    %v4865 = vrot.slane %v4864, 2
    %v4866 = vadd.f32 %v4864, %v4865
    %v4867 = vrot.slane %v4866, 1
    %v4868 = vadd.f32 %v4866, %v4867
    %v4869 = vrot.slane %v4862, 4
    %v4870 = vadd.f32 %v4862, %v4869
    %v4871 = vrot.slane %v4870, 2
    %v4872 = vadd.f32 %v4870, %v4871
    %v4873 = vrot.slane %v4872, 1
    %v4874 = vadd.f32 %v4872, %v4873
    %v4877 = vsel %vm3036, %v4874, %v4868
    %v4879 = vld [vmem:[%s700] sm:$0xff]
    %v4880 = vld [vmem:[#allocation18] sm:$0xff]
    %v4881 = vld [vmem:[#allocation18 + $0x8] sm:$0xff]
    %v4882 = vld [vmem:[#allocation18 + $0x10] sm:$0xff]
    %v4883 = vld [vmem:[#allocation18 + $0x18] sm:$0xff]
    %v4884 = vld [vmem:[#allocation18 + $0x20] sm:$0xff]
    %v4885 = vld [vmem:[#allocation18 + $0x28] sm:$0xff]
    %v4886 = vld [vmem:[#allocation18 + $0x30] sm:$0xff]
    %v4887 = vld [vmem:[#allocation18 + $0x38] sm:$0xff]
    %v4888 = vld [vmem:[#allocation18 + $0x40] sm:$0xff]
    %v4889 = vld [vmem:[#allocation18 + $0x48] sm:$0xff]
    %v4890 = vld [vmem:[#allocation18 + $0x50] sm:$0xff]
    %v4891 = vld [vmem:[#allocation18 + $0x58] sm:$0xff]
    %v4892 = vld [vmem:[#allocation18 + $0x60] sm:$0xff]
    %v4893 = vld [vmem:[#allocation18 + $0x68] sm:$0xff]
    %v4894 = vld [vmem:[#allocation18 + $0x70] sm:$0xff]
    %v4895 = vld [vmem:[#allocation18 + $0x78] sm:$0xff]
    %v4896 = vld [vmem:[#allocation18 + $0x80] sm:$0xff]
    %v4897 = vld [vmem:[#allocation18 + $0x88] sm:$0xff]
    %v4898 = vld [vmem:[#allocation18 + $0x90] sm:$0xff]
    %v4899 = vld [vmem:[#allocation18 + $0x98] sm:$0xff]
    %v4900 = vld [vmem:[#allocation18 + $0xa0] sm:$0xff]
    %v4901 = vld [vmem:[#allocation18 + $0xa8] sm:$0xff]
    %v4902 = vld [vmem:[#allocation18 + $0xb0] sm:$0xff]
    %v4903 = vld [vmem:[#allocation18 + $0xb8] sm:$0xff]
    %v4904 = vld [vmem:[#allocation18 + $0xc0] sm:$0xff]
    %v4905 = vld [vmem:[#allocation18 + $0xc8] sm:$0xff]
    %v4906 = vld [vmem:[#allocation18 + $0xd0] sm:$0xff]
    %v4907 = vld [vmem:[#allocation18 + $0xd8] sm:$0xff]
    %v4908 = vld [vmem:[#allocation18 + $0xe0] sm:$0xff]
    %v4909 = vld [vmem:[#allocation18 + $0xe8] sm:$0xff]
    %v4910 = vld [vmem:[#allocation18 + $0xf0] sm:$0xff]
    %v4911 = vld [vmem:[#allocation18 + $0xf8] sm:$0xff]
    %v4912 = vld [vmem:[#allocation18 + $0x100] sm:$0xff]
    %v4913 = vld [vmem:[#allocation18 + $0x108] sm:$0xff]
    %v4914 = vld [vmem:[#allocation18 + $0x110] sm:$0xff]
    %v4915 = vld [vmem:[#allocation18 + $0x118] sm:$0xff]
    %v4916 = vld [vmem:[#allocation18 + $0x120] sm:$0xff]
    %v4917 = vld [vmem:[#allocation18 + $0x128] sm:$0xff]
    %v4918 = vld [vmem:[#allocation18 + $0x130] sm:$0xff]
    %v4919 = vld [vmem:[#allocation18 + $0x138] sm:$0xff]
    %v4920 = vld [vmem:[#allocation18 + $0x140] sm:$0xff]
    %v4921 = vld [vmem:[#allocation18 + $0x148] sm:$0xff]
    %v4922 = vld [vmem:[#allocation18 + $0x150] sm:$0xff]
    %v4923 = vld [vmem:[#allocation18 + $0x158] sm:$0xff]
    %v4924 = vld [vmem:[#allocation18 + $0x160] sm:$0xff]
    %v4925 = vld [vmem:[#allocation18 + $0x168] sm:$0xff]
    %v4926 = vld [vmem:[#allocation18 + $0x170] sm:$0xff]
    %v4927 = vld [vmem:[#allocation18 + $0x178] sm:$0xff]
    %v4928 = vld [vmem:[#allocation18 + $0x180] sm:$0xff]
    %v4929 = vld [vmem:[#allocation18 + $0x188] sm:$0xff]
    %v4930 = vld [vmem:[#allocation18 + $0x190] sm:$0xff]
    %v4931 = vld [vmem:[#allocation18 + $0x198] sm:$0xff]
    %v4932 = vld [vmem:[#allocation18 + $0x1a0] sm:$0xff]
    %v4933 = vld [vmem:[#allocation18 + $0x1a8] sm:$0xff]
    %v4934 = vld [vmem:[#allocation18 + $0x1b0] sm:$0xff]
    %v4935 = vld [vmem:[#allocation18 + $0x1b8] sm:$0xff]
    %v4936 = vld [vmem:[#allocation18 + $0x1c0] sm:$0xff]
    %v4937 = vld [vmem:[#allocation18 + $0x1c8] sm:$0xff]
    %v4938 = vld [vmem:[#allocation18 + $0x1d0] sm:$0xff]
    %v4939 = vld [vmem:[#allocation18 + $0x1d8] sm:$0xff]
    %v4940 = vld [vmem:[#allocation18 + $0x1e0] sm:$0xff]
    %v4941 = vld [vmem:[#allocation18 + $0x1e8] sm:$0xff]
    %v4942 = vld [vmem:[#allocation18 + $0x1f0] sm:$0xff]
    %v4943 = vld [vmem:[#allocation18 + $0x1f8] sm:$0xff]
    %v4944 = vld [vmem:[#allocation18 + $0x200] sm:$0xff]
    %v4945 = vld [vmem:[#allocation18 + $0x208] sm:$0xff]
    %v4946 = vld [vmem:[#allocation18 + $0x210] sm:$0xff]
    %v4947 = vld [vmem:[#allocation18 + $0x218] sm:$0xff]
    %v4948 = vld [vmem:[#allocation18 + $0x220] sm:$0xff]
    %v4949 = vld [vmem:[#allocation18 + $0x228] sm:$0xff]
    %v4950 = vld [vmem:[#allocation18 + $0x230] sm:$0xff]
    %v4951 = vld [vmem:[#allocation18 + $0x238] sm:$0xff]
    %v4952 = vld [vmem:[#allocation18 + $0x240] sm:$0xff]
    %v4953 = vld [vmem:[#allocation18 + $0x248] sm:$0xff]
    %v4954 = vld [vmem:[#allocation18 + $0x250] sm:$0xff]
    %v4955 = vld [vmem:[#allocation18 + $0x258] sm:$0xff]
    %v4956 = vld [vmem:[#allocation18 + $0x260] sm:$0xff]
    %v4957 = vld [vmem:[#allocation18 + $0x268] sm:$0xff]
    %v4958 = vld [vmem:[#allocation18 + $0x270] sm:$0xff]
    %v4959 = vld [vmem:[#allocation18 + $0x278] sm:$0xff]
    %v4960 = vld [vmem:[#allocation18 + $0x280] sm:$0xff]
    %v4961 = vld [vmem:[#allocation18 + $0x288] sm:$0xff]
    %v4962 = vld [vmem:[#allocation18 + $0x290] sm:$0xff]
    %v4963 = vld [vmem:[#allocation18 + $0x298] sm:$0xff]
    %v4964 = vld [vmem:[#allocation18 + $0x2a0] sm:$0xff]
    %v4965 = vld [vmem:[#allocation18 + $0x2a8] sm:$0xff]
    %v4966 = vld [vmem:[#allocation18 + $0x2b0] sm:$0xff]
    %v4967 = vld [vmem:[#allocation18 + $0x2b8] sm:$0xff]
    %v4968 = vld [vmem:[#allocation18 + $0x2c0] sm:$0xff]
    %v4969 = vld [vmem:[#allocation18 + $0x2c8] sm:$0xff]
    %v4970 = vld [vmem:[#allocation18 + $0x2d0] sm:$0xff]
    %v4971 = vld [vmem:[#allocation18 + $0x2d8] sm:$0xff]
    %v4972 = vld [vmem:[#allocation18 + $0x2e0] sm:$0xff]
    %v4973 = vld [vmem:[#allocation18 + $0x2e8] sm:$0xff]
    %v4974 = vld [vmem:[#allocation18 + $0x2f0] sm:$0xff]
    %v4975 = vld [vmem:[#allocation18 + $0x2f8] sm:$0xff]
    %v4976 = vld [vmem:[#allocation18 + $0x300] sm:$0xff]
    %v4977 = vld [vmem:[#allocation18 + $0x308] sm:$0xff]
    %v4978 = vld [vmem:[#allocation18 + $0x310] sm:$0xff]
    %v4979 = vld [vmem:[#allocation18 + $0x318] sm:$0xff]
    %v4980 = vld [vmem:[#allocation18 + $0x320] sm:$0xff]
    %v4981 = vld [vmem:[#allocation18 + $0x328] sm:$0xff]
    %v4982 = vld [vmem:[#allocation18 + $0x330] sm:$0xff]
    %v4983 = vld [vmem:[#allocation18 + $0x338] sm:$0xff]
    %v4984 = vld [vmem:[#allocation18 + $0x340] sm:$0xff]
    %v4985 = vld [vmem:[#allocation18 + $0x348] sm:$0xff]
    %v4986 = vld [vmem:[#allocation18 + $0x350] sm:$0xff]
    %v4987 = vld [vmem:[#allocation18 + $0x358] sm:$0xff]
    %v4988 = vld [vmem:[#allocation18 + $0x360] sm:$0xff]
    %v4989 = vld [vmem:[#allocation18 + $0x368] sm:$0xff]
    %v4990 = vld [vmem:[#allocation18 + $0x370] sm:$0xff]
    %v4991 = vld [vmem:[#allocation18 + $0x378] sm:$0xff]
    %v4992 = vld [vmem:[#allocation18 + $0x380] sm:$0xff]
    %v4993 = vld [vmem:[#allocation18 + $0x388] sm:$0xff]
    %v4994 = vld [vmem:[#allocation18 + $0x390] sm:$0xff]
    %v4995 = vld [vmem:[#allocation18 + $0x398] sm:$0xff]
    %v4996 = vld [vmem:[#allocation18 + $0x3a0] sm:$0xff]
    %v4997 = vld [vmem:[#allocation18 + $0x3a8] sm:$0xff]
    %v4998 = vld [vmem:[#allocation18 + $0x3b0] sm:$0xff]
    %v4999 = vld [vmem:[#allocation18 + $0x3b8] sm:$0xff]
    %v5000 = vld [vmem:[#allocation18 + $0x3c0] sm:$0xff]
    %v5001 = vld [vmem:[#allocation18 + $0x3c8] sm:$0xff]
    %v5002 = vld [vmem:[#allocation18 + $0x3d0] sm:$0xff]
    %v5003 = vld [vmem:[#allocation18 + $0x3d8] sm:$0xff]
    %v5004 = vld [vmem:[#allocation18 + $0x3e0] sm:$0xff]
    %v5005 = vld [vmem:[#allocation18 + $0x3e8] sm:$0xff]
    %v5006 = vld [vmem:[#allocation18 + $0x3f0] sm:$0xff]
    %v5007 = vld [vmem:[#allocation18 + $0x3f8] sm:$0xff]
    %5008 = vmatprep.subr.mxu0 %v4881
    %5009 = vmatpush1.msra.mxu0 %v4880
    %5010 = vmatprep.subr.mxu0 %v4885
    %5011 = vmatpush1.msra.mxu0 %v4884
    %5012 = vmatprep.subr.mxu0 %v4889
    %5013 = vmatpush1.msra.mxu0 %v4888
    %5014 = vmatprep.subr.mxu0 %v4893
    %5015 = vmatpush1.msra.mxu0 %v4892
    %5016 = vmatprep.subr.mxu0 %v4897
    %5017 = vmatpush1.msra.mxu0 %v4896
    %5018 = vmatprep.subr.mxu0 %v4901
    %5019 = vmatpush1.msra.mxu0 %v4900
    %5020 = vmatprep.subr.mxu0 %v4905
    %5021 = vmatpush1.msra.mxu0 %v4904
    %5022 = vmatprep.subr.mxu0 %v4909
    %5023 = vmatpush1.msra.mxu0 %v4908
    %5024 = vmatprep.subr.mxu0 %v4913
    %5025 = vmatpush1.msra.mxu0 %v4912
    %5026 = vmatprep.subr.mxu0 %v4917
    %5027 = vmatpush1.msra.mxu0 %v4916
    %5028 = vmatprep.subr.mxu0 %v4921
    %5029 = vmatpush1.msra.mxu0 %v4920
    %5030 = vmatprep.subr.mxu0 %v4925
    %5031 = vmatpush1.msra.mxu0 %v4924
    %5032 = vmatprep.subr.mxu0 %v4929
    %5033 = vmatpush1.msra.mxu0 %v4928
    %5034 = vmatprep.subr.mxu0 %v4933
    %5035 = vmatpush1.msra.mxu0 %v4932
    %5036 = vmatprep.subr.mxu0 %v4937
    %5037 = vmatpush1.msra.mxu0 %v4936
    %5038 = vmatprep.subr.mxu0 %v4941
    %5039 = vmatpush1.msra.mxu0 %v4940
    %5040 = vmatprep.subr.mxu0 %v4945
    %5041 = vmatpush1.msra.mxu0 %v4944
    %5042 = vmatprep.subr.mxu0 %v4949
    %5043 = vmatpush1.msra.mxu0 %v4948
    %5044 = vmatprep.subr.mxu0 %v4953
    %5045 = vmatpush1.msra.mxu0 %v4952
    %5046 = vmatprep.subr.mxu0 %v4957
    %5047 = vmatpush1.msra.mxu0 %v4956
    %5048 = vmatprep.subr.mxu0 %v4961
    %5049 = vmatpush1.msra.mxu0 %v4960
    %5050 = vmatprep.subr.mxu0 %v4965
    %5051 = vmatpush1.msra.mxu0 %v4964
    %5052 = vmatprep.subr.mxu0 %v4969
    %5053 = vmatpush1.msra.mxu0 %v4968
    %5054 = vmatprep.subr.mxu0 %v4973
    %5055 = vmatpush1.msra.mxu0 %v4972
    %5056 = vmatprep.subr.mxu0 %v4977
    %5057 = vmatpush1.msra.mxu0 %v4976
    %5058 = vmatprep.subr.mxu0 %v4981
    %5059 = vmatpush1.msra.mxu0 %v4980
    %5060 = vmatprep.subr.mxu0 %v4985
    %5061 = vmatpush1.msra.mxu0 %v4984
    %5062 = vmatprep.subr.mxu0 %v4989
    %5063 = vmatpush1.msra.mxu0 %v4988
    %5064 = vmatprep.subr.mxu0 %v4993
    %5065 = vmatpush1.msra.mxu0 %v4992
    %5066 = vmatprep.subr.mxu0 %v4997
    %5067 = vmatpush1.msra.mxu0 %v4996
    %5068 = vmatprep.subr.mxu0 %v5001
    %5069 = vmatpush1.msra.mxu0 %v5000
    %5070 = vmatprep.subr.mxu0 %v5005
    %5071 = vmatpush1.msra.mxu0 %v5004
    %5072 = vmatprep.mubr.f32.mxu0 %v4753
    %5073 = vmatmul.mubr.f32.gmra.mrb[0].mxu0 %v4877
    %v5074 = vpop.f32.mrb[0].mxu0
    %v5075 = vadd.f32 0.0, %v5074
    %v5076 = vpop.f32.mrb[0].mxu0
    %v5077 = vadd.f32 0.0, %v5076
    %5078 = vdwg.mxu0
    %5079 = vmatprep.subr.mxu0 %v4883
    %5080 = vmatpush1.msra.mxu0 %v4882
    %5081 = vmatprep.subr.mxu0 %v4887
    %5082 = vmatpush1.msra.mxu0 %v4886
    %5083 = vmatprep.subr.mxu0 %v4891
    %5084 = vmatpush1.msra.mxu0 %v4890
    %5085 = vmatprep.subr.mxu0 %v4895
    %5086 = vmatpush1.msra.mxu0 %v4894
    %5087 = vmatprep.subr.mxu0 %v4899
    %5088 = vmatpush1.msra.mxu0 %v4898
    %5089 = vmatprep.subr.mxu0 %v4903
    %5090 = vmatpush1.msra.mxu0 %v4902
    %5091 = vmatprep.subr.mxu0 %v4907
    %5092 = vmatpush1.msra.mxu0 %v4906
    %5093 = vmatprep.subr.mxu0 %v4911
    %5094 = vmatpush1.msra.mxu0 %v4910
    %5095 = vmatprep.subr.mxu0 %v4915
    %5096 = vmatpush1.msra.mxu0 %v4914
    %5097 = vmatprep.subr.mxu0 %v4919
    %5098 = vmatpush1.msra.mxu0 %v4918
    %5099 = vmatprep.subr.mxu0 %v4923
    %5100 = vmatpush1.msra.mxu0 %v4922
    %5101 = vmatprep.subr.mxu0 %v4927
    %5102 = vmatpush1.msra.mxu0 %v4926
    %5103 = vmatprep.subr.mxu0 %v4931
    %5104 = vmatpush1.msra.mxu0 %v4930
    %5105 = vmatprep.subr.mxu0 %v4935
    %5106 = vmatpush1.msra.mxu0 %v4934
    %5107 = vmatprep.subr.mxu0 %v4939
    %5108 = vmatpush1.msra.mxu0 %v4938
    %5109 = vmatprep.subr.mxu0 %v4943
    %5110 = vmatpush1.msra.mxu0 %v4942
    %5111 = vmatprep.subr.mxu0 %v4947
    %5112 = vmatpush1.msra.mxu0 %v4946
    %5113 = vmatprep.subr.mxu0 %v4951
    %5114 = vmatpush1.msra.mxu0 %v4950
    %5115 = vmatprep.subr.mxu0 %v4955
    %5116 = vmatpush1.msra.mxu0 %v4954
    %5117 = vmatprep.subr.mxu0 %v4959
    %5118 = vmatpush1.msra.mxu0 %v4958
    %5119 = vmatprep.subr.mxu0 %v4963
    %5120 = vmatpush1.msra.mxu0 %v4962
    %5121 = vmatprep.subr.mxu0 %v4967
    %5122 = vmatpush1.msra.mxu0 %v4966
    %5123 = vmatprep.subr.mxu0 %v4971
    %5124 = vmatpush1.msra.mxu0 %v4970
    %5125 = vmatprep.subr.mxu0 %v4975
    %5126 = vmatpush1.msra.mxu0 %v4974
    %5127 = vmatprep.subr.mxu0 %v4979
    %5128 = vmatpush1.msra.mxu0 %v4978
    %5129 = vmatprep.subr.mxu0 %v4983
    %5130 = vmatpush1.msra.mxu0 %v4982
    %5131 = vmatprep.subr.mxu0 %v4987
    %5132 = vmatpush1.msra.mxu0 %v4986
    %5133 = vmatprep.subr.mxu0 %v4991
    %5134 = vmatpush1.msra.mxu0 %v4990
    %5135 = vmatprep.subr.mxu0 %v4995
    %5136 = vmatpush1.msra.mxu0 %v4994
    %5137 = vmatprep.subr.mxu0 %v4999
    %5138 = vmatpush1.msra.mxu0 %v4998
    %5139 = vmatprep.subr.mxu0 %v5003
    %5140 = vmatpush1.msra.mxu0 %v5002
    %5141 = vmatprep.subr.mxu0 %v5007
    %5142 = vmatpush1.msra.mxu0 %v5006
    %5143 = vmatprep.mubr.f32.mxu0 %v4753
    %5144 = vmatmul.mubr.f32.gmra.mrb[0].mxu0 %v4877
    %v5145 = vpop.f32.mrb[0].mxu0
    %v5146 = vadd.f32 0.0, %v5145
    %v5147 = vpop.f32.mrb[0].mxu0
    %v5148 = vadd.f32 0.0, %v5147
    %5149 = vdwg.mxu0
    %v5154 = vcombine.low %v5075, %v5077
    %v5155 = vcombine.low %v5146, %v5148
    %v5157 = vunpack.c.l.s4 1983009808
    %v5158 = vunpack.c.0.s8 %v5157
    %v5159 = vlaneseq
    %v5160 = vshrl.u32 %v5159, 7
    %v5161 = vsub.s32 %v5158, %v5160
    %v5162 = vrot.slane %v5154, %v5161
    %v5164 = vunpack.c.l.s4 1983009808
    %v5165 = vunpack.c.0.s8 %v5164
    %v5166 = vlaneseq
    %v5167 = vshrl.u32 %v5166, 7
    %v5168 = vsub.s32 %v5165, %v5167
    %v5169 = vrot.slane %v5155, %v5168
    %v5170 = vcombine.low %v5162, %v5169
    %v5172 = vadd.f32 %v4879, %v5170
    %v5173 = vxor.u32 %v5172, 2147483648
    %v5174 = vmul.f32 %v5173, 1.442695
    %v5175 = vpow.pop %v5174
    %v5176 = vadd.f32 %v5175, 1.0
    %v5177 = vrcp.pop %v5176
    %v5178 = vmul.f32 1.0, %v5177
    %v5179 = vtanh.pop %v5172
    %v5181 = vrot.slane %v5178, 2
    %v5183 = vmul.f32 %v5181, %v4749
    %v5185 = vrot.slane %v5179, 4
    %v5187 = vmul.f32 %v5178, %v5185
    %v5188 = vadd.f32 %v5183, %v5187
    %v5189 = vtanh.pop %v5188
    %v5190 = vrot.slane %v5178, 6
    %v5192 = vmul.f32 %v5190, %v5189
    %s5193 = scalar_lea.vmem [#allocation6], 8
    %5194 = vst [vmem:[%s5193] sm:$0x3] %v5192
    %v5195 = vmul.f32 %v5192, %v2985
    %v5196 = vsel %vm2988, %v5195, 0.0
    %5197 = vadd.xlane.f32.xlu0 %v5196
    %v5198 = vpop.xlane.xlu0 %5197
    %v5200 = vlaneseq
    %v5201 = vshrl.u32 %v5200, 7
    %v5202 = vsub.s32 0, %v5201
    %v5203 = vrot.slane %v5198, %v5202
    %v5204 = vlaneseq
    %v5205 = vshrl.u32 %v5204, 7
    %v5206 = vsub.s32 1, %v5205
    %v5207 = vrot.slane %v5198, %v5206
    %v5210 = vadd.f32 %v2979, %v5203
    %v5211 = vadd.f32 %v2981, %v5207
    %v5212 = vadd.f32 %v5210, %v3012
    %v5213 = vadd.f32 %v5211, %v3012
    %v5214 = vmax.f32 %v5212, 0.0
    %v5215 = vmax.f32 %v5213, 0.0
    %5218 = vset.pattern.permute.xlu0 0
    %5219 = vperm.xlu0 %5218, %v5214
    %v5220 = vpop.permute.xlu0 %5219
    %5221 = vset.pattern.permute.xlu0 0
    %5222 = vperm.xlu0 %5221, %v5215
    %v5223 = vpop.permute.xlu0 %5222
    %v5224 = vlaneseq
    %v5225 = vshrl.u32 %v5224, 7
    %v5226 = vsub.s32 %v3027, %v5225
    %v5227 = vrot.slane %v5220, %v5226
    %v5228 = vlaneseq
    %v5229 = vshrl.u32 %v5228, 7
    %v5230 = vsub.s32 %v3027, %v5229
    %v5231 = vrot.slane %v5223, %v5230
    %v5232 = vsel %vm3036, %v5231, %v5227
    %v5234 = vsel %vm3039, %v5232, -inf
    %5235 = vmax.xlane.f32.xlu0 %v5234
    %v5236 = vpop.xlane.xlu0 %5235
    %v5238 = vlaneseq
    %v5239 = vshrl.u32 %v5238, 7
    %v5240 = vsub.s32 0, %v5239
    %v5241 = vrot.slane %v5236, %v5240
    %v5242 = vlaneseq
    %v5243 = vshrl.u32 %v5242, 7
    %v5244 = vsub.s32 1, %v5243
    %v5245 = vrot.slane %v5236, %v5244
    %v5248 = vsub.f32 %v5214, %v5241
    %v5249 = vsub.f32 %v5215, %v5245
    %v5250 = vmul.f32 %v5248, 1.442695
    %v5251 = vpow.pop %v5250
    %v5252 = vmul.f32 %v5249, 1.442695
    %v5253 = vpow.pop %v5252
    %5256 = vset.pattern.permute.xlu0 0
    %5257 = vperm.xlu0 %5256, %v5251
    %v5258 = vpop.permute.xlu0 %5257
    %5259 = vset.pattern.permute.xlu0 0
    %5260 = vperm.xlu0 %5259, %v5253
    %v5261 = vpop.permute.xlu0 %5260
    %v5262 = vlaneseq
    %v5263 = vshrl.u32 %v5262, 7
    %v5264 = vsub.s32 %v3027, %v5263
    %v5265 = vrot.slane %v5258, %v5264
    %v5266 = vlaneseq
    %v5267 = vshrl.u32 %v5266, 7
    %v5268 = vsub.s32 %v3027, %v5267
    %v5269 = vrot.slane %v5261, %v5268
    %v5270 = vsel %vm3036, %v5269, %v5265
    %v5272 = vsel %vm3039, %v5270, 0.0
    %5273 = vadd.xlane.f32.xlu0 %v5272
    %v5274 = vpop.xlane.xlu0 %5273
    %v5276 = vlaneseq
    %v5277 = vshrl.u32 %v5276, 7
    %v5278 = vsub.s32 0, %v5277
    %v5279 = vrot.slane %v5274, %v5278
    %v5280 = vlaneseq
    %v5281 = vshrl.u32 %v5280, 7
    %v5282 = vsub.s32 1, %v5281
    %v5283 = vrot.slane %v5274, %v5282
    %v5286 = vrcp.pop %v5279
    %v5287 = vmul.f32 %v5251, %v5286
    %v5288 = vrcp.pop %v5283
    %v5289 = vmul.f32 %v5253, %v5288
    %5291 = vset.pattern.permute.xlu0 0
    %5292 = vperm.xlu0 %5291, %v5287
    %v5293 = vpop.permute.xlu0 %5292
    %5296 = vset.pattern.permute.xlu0 0
    %5297 = vperm.xlu0 %5296, %v5289
    %v5298 = vpop.permute.xlu0 %5297
    %v5300 = vmul.f32 %v5293, %v2965
    %v5301 = vmul.f32 %v5298, %v2966
    %v5302 = vrot.slane %v5300, 4
    %v5303 = vadd.f32 %v5300, %v5302
    %v5304 = vrot.slane %v5303, 2
    %v5305 = vadd.f32 %v5303, %v5304
    %v5306 = vrot.slane %v5305, 1
    %v5307 = vadd.f32 %v5305, %v5306
    %v5308 = vrot.slane %v5301, 4
    %v5309 = vadd.f32 %v5301, %v5308
    %v5310 = vrot.slane %v5309, 2
    %v5311 = vadd.f32 %v5309, %v5310
    %v5312 = vrot.slane %v5311, 1
    %v5313 = vadd.f32 %v5311, %v5312
    %v5316 = vsel %vm3036, %v5313, %v5307
    %v5318 = vld [vmem:[%s704] sm:$0xff]
    %v5319 = vld [vmem:[#allocation18] sm:$0xff]
    %v5320 = vld [vmem:[#allocation18 + $0x8] sm:$0xff]
    %v5321 = vld [vmem:[#allocation18 + $0x10] sm:$0xff]
    %v5322 = vld [vmem:[#allocation18 + $0x18] sm:$0xff]
    %v5323 = vld [vmem:[#allocation18 + $0x20] sm:$0xff]
    %v5324 = vld [vmem:[#allocation18 + $0x28] sm:$0xff]
    %v5325 = vld [vmem:[#allocation18 + $0x30] sm:$0xff]
    %v5326 = vld [vmem:[#allocation18 + $0x38] sm:$0xff]
    %v5327 = vld [vmem:[#allocation18 + $0x40] sm:$0xff]
    %v5328 = vld [vmem:[#allocation18 + $0x48] sm:$0xff]
    %v5329 = vld [vmem:[#allocation18 + $0x50] sm:$0xff]
    %v5330 = vld [vmem:[#allocation18 + $0x58] sm:$0xff]
    %v5331 = vld [vmem:[#allocation18 + $0x60] sm:$0xff]
    %v5332 = vld [vmem:[#allocation18 + $0x68] sm:$0xff]
    %v5333 = vld [vmem:[#allocation18 + $0x70] sm:$0xff]
    %v5334 = vld [vmem:[#allocation18 + $0x78] sm:$0xff]
    %v5335 = vld [vmem:[#allocation18 + $0x80] sm:$0xff]
    %v5336 = vld [vmem:[#allocation18 + $0x88] sm:$0xff]
    %v5337 = vld [vmem:[#allocation18 + $0x90] sm:$0xff]
    %v5338 = vld [vmem:[#allocation18 + $0x98] sm:$0xff]
    %v5339 = vld [vmem:[#allocation18 + $0xa0] sm:$0xff]
    %v5340 = vld [vmem:[#allocation18 + $0xa8] sm:$0xff]
    %v5341 = vld [vmem:[#allocation18 + $0xb0] sm:$0xff]
    %v5342 = vld [vmem:[#allocation18 + $0xb8] sm:$0xff]
    %v5343 = vld [vmem:[#allocation18 + $0xc0] sm:$0xff]
    %v5344 = vld [vmem:[#allocation18 + $0xc8] sm:$0xff]
    %v5345 = vld [vmem:[#allocation18 + $0xd0] sm:$0xff]
    %v5346 = vld [vmem:[#allocation18 + $0xd8] sm:$0xff]
    %v5347 = vld [vmem:[#allocation18 + $0xe0] sm:$0xff]
    %v5348 = vld [vmem:[#allocation18 + $0xe8] sm:$0xff]
    %v5349 = vld [vmem:[#allocation18 + $0xf0] sm:$0xff]
    %v5350 = vld [vmem:[#allocation18 + $0xf8] sm:$0xff]
    %v5351 = vld [vmem:[#allocation18 + $0x100] sm:$0xff]
    %v5352 = vld [vmem:[#allocation18 + $0x108] sm:$0xff]
    %v5353 = vld [vmem:[#allocation18 + $0x110] sm:$0xff]
    %v5354 = vld [vmem:[#allocation18 + $0x118] sm:$0xff]
    %v5355 = vld [vmem:[#allocation18 + $0x120] sm:$0xff]
    %v5356 = vld [vmem:[#allocation18 + $0x128] sm:$0xff]
    %v5357 = vld [vmem:[#allocation18 + $0x130] sm:$0xff]
    %v5358 = vld [vmem:[#allocation18 + $0x138] sm:$0xff]
    %v5359 = vld [vmem:[#allocation18 + $0x140] sm:$0xff]
    %v5360 = vld [vmem:[#allocation18 + $0x148] sm:$0xff]
    %v5361 = vld [vmem:[#allocation18 + $0x150] sm:$0xff]
    %v5362 = vld [vmem:[#allocation18 + $0x158] sm:$0xff]
    %v5363 = vld [vmem:[#allocation18 + $0x160] sm:$0xff]
    %v5364 = vld [vmem:[#allocation18 + $0x168] sm:$0xff]
    %v5365 = vld [vmem:[#allocation18 + $0x170] sm:$0xff]
    %v5366 = vld [vmem:[#allocation18 + $0x178] sm:$0xff]
    %v5367 = vld [vmem:[#allocation18 + $0x180] sm:$0xff]
    %v5368 = vld [vmem:[#allocation18 + $0x188] sm:$0xff]
    %v5369 = vld [vmem:[#allocation18 + $0x190] sm:$0xff]
    %v5370 = vld [vmem:[#allocation18 + $0x198] sm:$0xff]
    %v5371 = vld [vmem:[#allocation18 + $0x1a0] sm:$0xff]
    %v5372 = vld [vmem:[#allocation18 + $0x1a8] sm:$0xff]
    %v5373 = vld [vmem:[#allocation18 + $0x1b0] sm:$0xff]
    %v5374 = vld [vmem:[#allocation18 + $0x1b8] sm:$0xff]
    %v5375 = vld [vmem:[#allocation18 + $0x1c0] sm:$0xff]
    %v5376 = vld [vmem:[#allocation18 + $0x1c8] sm:$0xff]
    %v5377 = vld [vmem:[#allocation18 + $0x1d0] sm:$0xff]
    %v5378 = vld [vmem:[#allocation18 + $0x1d8] sm:$0xff]
    %v5379 = vld [vmem:[#allocation18 + $0x1e0] sm:$0xff]
    %v5380 = vld [vmem:[#allocation18 + $0x1e8] sm:$0xff]
    %v5381 = vld [vmem:[#allocation18 + $0x1f0] sm:$0xff]
    %v5382 = vld [vmem:[#allocation18 + $0x1f8] sm:$0xff]
    %v5383 = vld [vmem:[#allocation18 + $0x200] sm:$0xff]
    %v5384 = vld [vmem:[#allocation18 + $0x208] sm:$0xff]
    %v5385 = vld [vmem:[#allocation18 + $0x210] sm:$0xff]
    %v5386 = vld [vmem:[#allocation18 + $0x218] sm:$0xff]
    %v5387 = vld [vmem:[#allocation18 + $0x220] sm:$0xff]
    %v5388 = vld [vmem:[#allocation18 + $0x228] sm:$0xff]
    %v5389 = vld [vmem:[#allocation18 + $0x230] sm:$0xff]
    %v5390 = vld [vmem:[#allocation18 + $0x238] sm:$0xff]
    %v5391 = vld [vmem:[#allocation18 + $0x240] sm:$0xff]
    %v5392 = vld [vmem:[#allocation18 + $0x248] sm:$0xff]
    %v5393 = vld [vmem:[#allocation18 + $0x250] sm:$0xff]
    %v5394 = vld [vmem:[#allocation18 + $0x258] sm:$0xff]
    %v5395 = vld [vmem:[#allocation18 + $0x260] sm:$0xff]
    %v5396 = vld [vmem:[#allocation18 + $0x268] sm:$0xff]
    %v5397 = vld [vmem:[#allocation18 + $0x270] sm:$0xff]
    %v5398 = vld [vmem:[#allocation18 + $0x278] sm:$0xff]
    %v5399 = vld [vmem:[#allocation18 + $0x280] sm:$0xff]
    %v5400 = vld [vmem:[#allocation18 + $0x288] sm:$0xff]
    %v5401 = vld [vmem:[#allocation18 + $0x290] sm:$0xff]
    %v5402 = vld [vmem:[#allocation18 + $0x298] sm:$0xff]
    %v5403 = vld [vmem:[#allocation18 + $0x2a0] sm:$0xff]
    %v5404 = vld [vmem:[#allocation18 + $0x2a8] sm:$0xff]
    %v5405 = vld [vmem:[#allocation18 + $0x2b0] sm:$0xff]
    %v5406 = vld [vmem:[#allocation18 + $0x2b8] sm:$0xff]
    %v5407 = vld [vmem:[#allocation18 + $0x2c0] sm:$0xff]
    %v5408 = vld [vmem:[#allocation18 + $0x2c8] sm:$0xff]
    %v5409 = vld [vmem:[#allocation18 + $0x2d0] sm:$0xff]
    %v5410 = vld [vmem:[#allocation18 + $0x2d8] sm:$0xff]
    %v5411 = vld [vmem:[#allocation18 + $0x2e0] sm:$0xff]
    %v5412 = vld [vmem:[#allocation18 + $0x2e8] sm:$0xff]
    %v5413 = vld [vmem:[#allocation18 + $0x2f0] sm:$0xff]
    %v5414 = vld [vmem:[#allocation18 + $0x2f8] sm:$0xff]
    %v5415 = vld [vmem:[#allocation18 + $0x300] sm:$0xff]
    %v5416 = vld [vmem:[#allocation18 + $0x308] sm:$0xff]
    %v5417 = vld [vmem:[#allocation18 + $0x310] sm:$0xff]
    %v5418 = vld [vmem:[#allocation18 + $0x318] sm:$0xff]
    %v5419 = vld [vmem:[#allocation18 + $0x320] sm:$0xff]
    %v5420 = vld [vmem:[#allocation18 + $0x328] sm:$0xff]
    %v5421 = vld [vmem:[#allocation18 + $0x330] sm:$0xff]
    %v5422 = vld [vmem:[#allocation18 + $0x338] sm:$0xff]
    %v5423 = vld [vmem:[#allocation18 + $0x340] sm:$0xff]
    %v5424 = vld [vmem:[#allocation18 + $0x348] sm:$0xff]
    %v5425 = vld [vmem:[#allocation18 + $0x350] sm:$0xff]
    %v5426 = vld [vmem:[#allocation18 + $0x358] sm:$0xff]
    %v5427 = vld [vmem:[#allocation18 + $0x360] sm:$0xff]
    %v5428 = vld [vmem:[#allocation18 + $0x368] sm:$0xff]
    %v5429 = vld [vmem:[#allocation18 + $0x370] sm:$0xff]
    %v5430 = vld [vmem:[#allocation18 + $0x378] sm:$0xff]
    %v5431 = vld [vmem:[#allocation18 + $0x380] sm:$0xff]
    %v5432 = vld [vmem:[#allocation18 + $0x388] sm:$0xff]
    %v5433 = vld [vmem:[#allocation18 + $0x390] sm:$0xff]
    %v5434 = vld [vmem:[#allocation18 + $0x398] sm:$0xff]
    %v5435 = vld [vmem:[#allocation18 + $0x3a0] sm:$0xff]
    %v5436 = vld [vmem:[#allocation18 + $0x3a8] sm:$0xff]
    %v5437 = vld [vmem:[#allocation18 + $0x3b0] sm:$0xff]
    %v5438 = vld [vmem:[#allocation18 + $0x3b8] sm:$0xff]
    %v5439 = vld [vmem:[#allocation18 + $0x3c0] sm:$0xff]
    %v5440 = vld [vmem:[#allocation18 + $0x3c8] sm:$0xff]
    %v5441 = vld [vmem:[#allocation18 + $0x3d0] sm:$0xff]
    %v5442 = vld [vmem:[#allocation18 + $0x3d8] sm:$0xff]
    %v5443 = vld [vmem:[#allocation18 + $0x3e0] sm:$0xff]
    %v5444 = vld [vmem:[#allocation18 + $0x3e8] sm:$0xff]
    %v5445 = vld [vmem:[#allocation18 + $0x3f0] sm:$0xff]
    %v5446 = vld [vmem:[#allocation18 + $0x3f8] sm:$0xff]
    %5447 = vmatprep.subr.mxu0 %v5320
    %5448 = vmatpush1.msra.mxu0 %v5319
    %5449 = vmatprep.subr.mxu0 %v5324
    %5450 = vmatpush1.msra.mxu0 %v5323
    %5451 = vmatprep.subr.mxu0 %v5328
    %5452 = vmatpush1.msra.mxu0 %v5327
    %5453 = vmatprep.subr.mxu0 %v5332
    %5454 = vmatpush1.msra.mxu0 %v5331
    %5455 = vmatprep.subr.mxu0 %v5336
    %5456 = vmatpush1.msra.mxu0 %v5335
    %5457 = vmatprep.subr.mxu0 %v5340
    %5458 = vmatpush1.msra.mxu0 %v5339
    %5459 = vmatprep.subr.mxu0 %v5344
    %5460 = vmatpush1.msra.mxu0 %v5343
    %5461 = vmatprep.subr.mxu0 %v5348
    %5462 = vmatpush1.msra.mxu0 %v5347
    %5463 = vmatprep.subr.mxu0 %v5352
    %5464 = vmatpush1.msra.mxu0 %v5351
    %5465 = vmatprep.subr.mxu0 %v5356
    %5466 = vmatpush1.msra.mxu0 %v5355
    %5467 = vmatprep.subr.mxu0 %v5360
    %5468 = vmatpush1.msra.mxu0 %v5359
    %5469 = vmatprep.subr.mxu0 %v5364
    %5470 = vmatpush1.msra.mxu0 %v5363
    %5471 = vmatprep.subr.mxu0 %v5368
    %5472 = vmatpush1.msra.mxu0 %v5367
    %5473 = vmatprep.subr.mxu0 %v5372
    %5474 = vmatpush1.msra.mxu0 %v5371
    %5475 = vmatprep.subr.mxu0 %v5376
    %5476 = vmatpush1.msra.mxu0 %v5375
    %5477 = vmatprep.subr.mxu0 %v5380
    %5478 = vmatpush1.msra.mxu0 %v5379
    %5479 = vmatprep.subr.mxu0 %v5384
    %5480 = vmatpush1.msra.mxu0 %v5383
    %5481 = vmatprep.subr.mxu0 %v5388
    %5482 = vmatpush1.msra.mxu0 %v5387
    %5483 = vmatprep.subr.mxu0 %v5392
    %5484 = vmatpush1.msra.mxu0 %v5391
    %5485 = vmatprep.subr.mxu0 %v5396
    %5486 = vmatpush1.msra.mxu0 %v5395
    %5487 = vmatprep.subr.mxu0 %v5400
    %5488 = vmatpush1.msra.mxu0 %v5399
    %5489 = vmatprep.subr.mxu0 %v5404
    %5490 = vmatpush1.msra.mxu0 %v5403
    %5491 = vmatprep.subr.mxu0 %v5408
    %5492 = vmatpush1.msra.mxu0 %v5407
    %5493 = vmatprep.subr.mxu0 %v5412
    %5494 = vmatpush1.msra.mxu0 %v5411
    %5495 = vmatprep.subr.mxu0 %v5416
    %5496 = vmatpush1.msra.mxu0 %v5415
    %5497 = vmatprep.subr.mxu0 %v5420
    %5498 = vmatpush1.msra.mxu0 %v5419
    %5499 = vmatprep.subr.mxu0 %v5424
    %5500 = vmatpush1.msra.mxu0 %v5423
    %5501 = vmatprep.subr.mxu0 %v5428
    %5502 = vmatpush1.msra.mxu0 %v5427
    %5503 = vmatprep.subr.mxu0 %v5432
    %5504 = vmatpush1.msra.mxu0 %v5431
    %5505 = vmatprep.subr.mxu0 %v5436
    %5506 = vmatpush1.msra.mxu0 %v5435
    %5507 = vmatprep.subr.mxu0 %v5440
    %5508 = vmatpush1.msra.mxu0 %v5439
    %5509 = vmatprep.subr.mxu0 %v5444
    %5510 = vmatpush1.msra.mxu0 %v5443
    %5511 = vmatprep.mubr.f32.mxu0 %v5192
    %5512 = vmatmul.mubr.f32.gmra.mrb[0].mxu0 %v5316
    %v5513 = vpop.f32.mrb[0].mxu0
    %v5514 = vadd.f32 0.0, %v5513
    %v5515 = vpop.f32.mrb[0].mxu0
    %v5516 = vadd.f32 0.0, %v5515
    %5517 = vdwg.mxu0
    %5518 = vmatprep.subr.mxu0 %v5322
    %5519 = vmatpush1.msra.mxu0 %v5321
    %5520 = vmatprep.subr.mxu0 %v5326
    %5521 = vmatpush1.msra.mxu0 %v5325
    %5522 = vmatprep.subr.mxu0 %v5330
    %5523 = vmatpush1.msra.mxu0 %v5329
    %5524 = vmatprep.subr.mxu0 %v5334
    %5525 = vmatpush1.msra.mxu0 %v5333
    %5526 = vmatprep.subr.mxu0 %v5338
    %5527 = vmatpush1.msra.mxu0 %v5337
    %5528 = vmatprep.subr.mxu0 %v5342
    %5529 = vmatpush1.msra.mxu0 %v5341
    %5530 = vmatprep.subr.mxu0 %v5346
    %5531 = vmatpush1.msra.mxu0 %v5345
    %5532 = vmatprep.subr.mxu0 %v5350
    %5533 = vmatpush1.msra.mxu0 %v5349
    %5534 = vmatprep.subr.mxu0 %v5354
    %5535 = vmatpush1.msra.mxu0 %v5353
    %5536 = vmatprep.subr.mxu0 %v5358
    %5537 = vmatpush1.msra.mxu0 %v5357
    %5538 = vmatprep.subr.mxu0 %v5362
    %5539 = vmatpush1.msra.mxu0 %v5361
    %5540 = vmatprep.subr.mxu0 %v5366
    %5541 = vmatpush1.msra.mxu0 %v5365
    %5542 = vmatprep.subr.mxu0 %v5370
    %5543 = vmatpush1.msra.mxu0 %v5369
    %5544 = vmatprep.subr.mxu0 %v5374
    %5545 = vmatpush1.msra.mxu0 %v5373
    %5546 = vmatprep.subr.mxu0 %v5378
    %5547 = vmatpush1.msra.mxu0 %v5377
    %5548 = vmatprep.subr.mxu0 %v5382
    %5549 = vmatpush1.msra.mxu0 %v5381
    %5550 = vmatprep.subr.mxu0 %v5386
    %5551 = vmatpush1.msra.mxu0 %v5385
    %5552 = vmatprep.subr.mxu0 %v5390
    %5553 = vmatpush1.msra.mxu0 %v5389
    %5554 = vmatprep.subr.mxu0 %v5394
    %5555 = vmatpush1.msra.mxu0 %v5393
    %5556 = vmatprep.subr.mxu0 %v5398
    %5557 = vmatpush1.msra.mxu0 %v5397
    %5558 = vmatprep.subr.mxu0 %v5402
    %5559 = vmatpush1.msra.mxu0 %v5401
    %5560 = vmatprep.subr.mxu0 %v5406
    %5561 = vmatpush1.msra.mxu0 %v5405
    %5562 = vmatprep.subr.mxu0 %v5410
    %5563 = vmatpush1.msra.mxu0 %v5409
    %5564 = vmatprep.subr.mxu0 %v5414
    %5565 = vmatpush1.msra.mxu0 %v5413
    %5566 = vmatprep.subr.mxu0 %v5418
    %5567 = vmatpush1.msra.mxu0 %v5417
    %5568 = vmatprep.subr.mxu0 %v5422
    %5569 = vmatpush1.msra.mxu0 %v5421
    %5570 = vmatprep.subr.mxu0 %v5426
    %5571 = vmatpush1.msra.mxu0 %v5425
    %5572 = vmatprep.subr.mxu0 %v5430
    %5573 = vmatpush1.msra.mxu0 %v5429
    %5574 = vmatprep.subr.mxu0 %v5434
    %5575 = vmatpush1.msra.mxu0 %v5433
    %5576 = vmatprep.subr.mxu0 %v5438
    %5577 = vmatpush1.msra.mxu0 %v5437
    %5578 = vmatprep.subr.mxu0 %v5442
    %5579 = vmatpush1.msra.mxu0 %v5441
    %5580 = vmatprep.subr.mxu0 %v5446
    %5581 = vmatpush1.msra.mxu0 %v5445
    %5582 = vmatprep.mubr.f32.mxu0 %v5192
    %5583 = vmatmul.mubr.f32.gmra.mrb[0].mxu0 %v5316
    %v5584 = vpop.f32.mrb[0].mxu0
    %v5585 = vadd.f32 0.0, %v5584
    %v5586 = vpop.f32.mrb[0].mxu0
    %v5587 = vadd.f32 0.0, %v5586
    %5588 = vdwg.mxu0
    %v5593 = vcombine.low %v5514, %v5516
    %v5594 = vcombine.low %v5585, %v5587
    %v5596 = vunpack.c.l.s4 1983009808
    %v5597 = vunpack.c.0.s8 %v5596
    %v5598 = vlaneseq
    %v5599 = vshrl.u32 %v5598, 7
    %v5600 = vsub.s32 %v5597, %v5599
    %v5601 = vrot.slane %v5593, %v5600
    %v5603 = vunpack.c.l.s4 1983009808
    %v5604 = vunpack.c.0.s8 %v5603
    %v5605 = vlaneseq
    %v5606 = vshrl.u32 %v5605, 7
    %v5607 = vsub.s32 %v5604, %v5606
    %v5608 = vrot.slane %v5594, %v5607
    %v5609 = vcombine.low %v5601, %v5608
    %v5611 = vadd.f32 %v5318, %v5609
    %v5612 = vxor.u32 %v5611, 2147483648
    %v5613 = vmul.f32 %v5612, 1.442695
    %v5614 = vpow.pop %v5613
    %v5615 = vadd.f32 %v5614, 1.0
    %v5616 = vrcp.pop %v5615
    %v5617 = vmul.f32 1.0, %v5616
    %v5618 = vtanh.pop %v5611
    %v5620 = vrot.slane %v5617, 2
    %v5622 = vmul.f32 %v5620, %v5188
    %v5624 = vrot.slane %v5618, 4
    %v5626 = vmul.f32 %v5617, %v5624
    %v5627 = vadd.f32 %v5622, %v5626
    %v5628 = vtanh.pop %v5627
    %v5629 = vrot.slane %v5617, 6
    %v5631 = vmul.f32 %v5629, %v5628
    %s5632 = scalar_lea.vmem [#allocation6], 10
    %5633 = vst [vmem:[%s5632] sm:$0x3] %v5631
    %v5634 = vmul.f32 %v5631, %v2985
    %v5635 = vsel %vm2988, %v5634, 0.0
    %5636 = vadd.xlane.f32.xlu0 %v5635
    %v5637 = vpop.xlane.xlu0 %5636
    %v5639 = vlaneseq
    %v5640 = vshrl.u32 %v5639, 7
    %v5641 = vsub.s32 0, %v5640
    %v5642 = vrot.slane %v5637, %v5641
    %v5643 = vlaneseq
    %v5644 = vshrl.u32 %v5643, 7
    %v5645 = vsub.s32 1, %v5644
    %v5646 = vrot.slane %v5637, %v5645
    %v5649 = vadd.f32 %v2979, %v5642
    %v5650 = vadd.f32 %v2981, %v5646
    %v5651 = vadd.f32 %v5649, %v3012
    %v5652 = vadd.f32 %v5650, %v3012
    %v5653 = vmax.f32 %v5651, 0.0
    %v5654 = vmax.f32 %v5652, 0.0
    %5657 = vset.pattern.permute.xlu0 0
    %5658 = vperm.xlu0 %5657, %v5653
    %v5659 = vpop.permute.xlu0 %5658
    %5660 = vset.pattern.permute.xlu0 0
    %5661 = vperm.xlu0 %5660, %v5654
    %v5662 = vpop.permute.xlu0 %5661
    %v5663 = vlaneseq
    %v5664 = vshrl.u32 %v5663, 7
    %v5665 = vsub.s32 %v3027, %v5664
    %v5666 = vrot.slane %v5659, %v5665
    %v5667 = vlaneseq
    %v5668 = vshrl.u32 %v5667, 7
    %v5669 = vsub.s32 %v3027, %v5668
    %v5670 = vrot.slane %v5662, %v5669
    %v5671 = vsel %vm3036, %v5670, %v5666
    %v5673 = vsel %vm3039, %v5671, -inf
    %5674 = vmax.xlane.f32.xlu0 %v5673
    %v5675 = vpop.xlane.xlu0 %5674
    %v5677 = vlaneseq
    %v5678 = vshrl.u32 %v5677, 7
    %v5679 = vsub.s32 0, %v5678
    %v5680 = vrot.slane %v5675, %v5679
    %v5681 = vlaneseq
    %v5682 = vshrl.u32 %v5681, 7
    %v5683 = vsub.s32 1, %v5682
    %v5684 = vrot.slane %v5675, %v5683
    %v5687 = vsub.f32 %v5653, %v5680
    %v5688 = vsub.f32 %v5654, %v5684
    %v5689 = vmul.f32 %v5687, 1.442695
    %v5690 = vpow.pop %v5689
    %v5691 = vmul.f32 %v5688, 1.442695
    %v5692 = vpow.pop %v5691
    %5695 = vset.pattern.permute.xlu0 0
    %5696 = vperm.xlu0 %5695, %v5690
    %v5697 = vpop.permute.xlu0 %5696
    %5698 = vset.pattern.permute.xlu0 0
    %5699 = vperm.xlu0 %5698, %v5692
    %v5700 = vpop.permute.xlu0 %5699
    %v5701 = vlaneseq
    %v5702 = vshrl.u32 %v5701, 7
    %v5703 = vsub.s32 %v3027, %v5702
    %v5704 = vrot.slane %v5697, %v5703
    %v5705 = vlaneseq
    %v5706 = vshrl.u32 %v5705, 7
    %v5707 = vsub.s32 %v3027, %v5706
    %v5708 = vrot.slane %v5700, %v5707
    %v5709 = vsel %vm3036, %v5708, %v5704
    %v5711 = vsel %vm3039, %v5709, 0.0
    %5712 = vadd.xlane.f32.xlu0 %v5711
    %v5713 = vpop.xlane.xlu0 %5712
    %v5715 = vlaneseq
    %v5716 = vshrl.u32 %v5715, 7
    %v5717 = vsub.s32 0, %v5716
    %v5718 = vrot.slane %v5713, %v5717
    %v5719 = vlaneseq
    %v5720 = vshrl.u32 %v5719, 7
    %v5721 = vsub.s32 1, %v5720
    %v5722 = vrot.slane %v5713, %v5721
    %v5725 = vrcp.pop %v5718
    %v5726 = vmul.f32 %v5690, %v5725
    %v5727 = vrcp.pop %v5722
    %v5728 = vmul.f32 %v5692, %v5727
    %5730 = vset.pattern.permute.xlu0 0
    %5731 = vperm.xlu0 %5730, %v5726
    %v5732 = vpop.permute.xlu0 %5731
    %5735 = vset.pattern.permute.xlu0 0
    %5736 = vperm.xlu0 %5735, %v5728
    %v5737 = vpop.permute.xlu0 %5736
    %v5739 = vmul.f32 %v5732, %v2965
    %v5740 = vmul.f32 %v5737, %v2966
    %v5741 = vrot.slane %v5739, 4
    %v5742 = vadd.f32 %v5739, %v5741
    %v5743 = vrot.slane %v5742, 2
    %v5744 = vadd.f32 %v5742, %v5743
    %v5745 = vrot.slane %v5744, 1
    %v5746 = vadd.f32 %v5744, %v5745
    %v5747 = vrot.slane %v5740, 4
    %v5748 = vadd.f32 %v5740, %v5747
    %v5749 = vrot.slane %v5748, 2
    %v5750 = vadd.f32 %v5748, %v5749
    %v5751 = vrot.slane %v5750, 1
    %v5752 = vadd.f32 %v5750, %v5751
    %v5755 = vsel %vm3036, %v5752, %v5746
    %v5757 = vld [vmem:[%s724] sm:$0xff]
    %v5758 = vld [vmem:[#allocation18] sm:$0xff]
    %v5759 = vld [vmem:[#allocation18 + $0x8] sm:$0xff]
    %v5760 = vld [vmem:[#allocation18 + $0x10] sm:$0xff]
    %v5761 = vld [vmem:[#allocation18 + $0x18] sm:$0xff]
    %v5762 = vld [vmem:[#allocation18 + $0x20] sm:$0xff]
    %v5763 = vld [vmem:[#allocation18 + $0x28] sm:$0xff]
    %v5764 = vld [vmem:[#allocation18 + $0x30] sm:$0xff]
    %v5765 = vld [vmem:[#allocation18 + $0x38] sm:$0xff]
    %v5766 = vld [vmem:[#allocation18 + $0x40] sm:$0xff]
    %v5767 = vld [vmem:[#allocation18 + $0x48] sm:$0xff]
    %v5768 = vld [vmem:[#allocation18 + $0x50] sm:$0xff]
    %v5769 = vld [vmem:[#allocation18 + $0x58] sm:$0xff]
    %v5770 = vld [vmem:[#allocation18 + $0x60] sm:$0xff]
    %v5771 = vld [vmem:[#allocation18 + $0x68] sm:$0xff]
    %v5772 = vld [vmem:[#allocation18 + $0x70] sm:$0xff]
    %v5773 = vld [vmem:[#allocation18 + $0x78] sm:$0xff]
    %v5774 = vld [vmem:[#allocation18 + $0x80] sm:$0xff]
    %v5775 = vld [vmem:[#allocation18 + $0x88] sm:$0xff]
    %v5776 = vld [vmem:[#allocation18 + $0x90] sm:$0xff]
    %v5777 = vld [vmem:[#allocation18 + $0x98] sm:$0xff]
    %v5778 = vld [vmem:[#allocation18 + $0xa0] sm:$0xff]
    %v5779 = vld [vmem:[#allocation18 + $0xa8] sm:$0xff]
    %v5780 = vld [vmem:[#allocation18 + $0xb0] sm:$0xff]
    %v5781 = vld [vmem:[#allocation18 + $0xb8] sm:$0xff]
    %v5782 = vld [vmem:[#allocation18 + $0xc0] sm:$0xff]
    %v5783 = vld [vmem:[#allocation18 + $0xc8] sm:$0xff]
    %v5784 = vld [vmem:[#allocation18 + $0xd0] sm:$0xff]
    %v5785 = vld [vmem:[#allocation18 + $0xd8] sm:$0xff]
    %v5786 = vld [vmem:[#allocation18 + $0xe0] sm:$0xff]
    %v5787 = vld [vmem:[#allocation18 + $0xe8] sm:$0xff]
    %v5788 = vld [vmem:[#allocation18 + $0xf0] sm:$0xff]
    %v5789 = vld [vmem:[#allocation18 + $0xf8] sm:$0xff]
    %v5790 = vld [vmem:[#allocation18 + $0x100] sm:$0xff]
    %v5791 = vld [vmem:[#allocation18 + $0x108] sm:$0xff]
    %v5792 = vld [vmem:[#allocation18 + $0x110] sm:$0xff]
    %v5793 = vld [vmem:[#allocation18 + $0x118] sm:$0xff]
    %v5794 = vld [vmem:[#allocation18 + $0x120] sm:$0xff]
    %v5795 = vld [vmem:[#allocation18 + $0x128] sm:$0xff]
    %v5796 = vld [vmem:[#allocation18 + $0x130] sm:$0xff]
    %v5797 = vld [vmem:[#allocation18 + $0x138] sm:$0xff]
    %v5798 = vld [vmem:[#allocation18 + $0x140] sm:$0xff]
    %v5799 = vld [vmem:[#allocation18 + $0x148] sm:$0xff]
    %v5800 = vld [vmem:[#allocation18 + $0x150] sm:$0xff]
    %v5801 = vld [vmem:[#allocation18 + $0x158] sm:$0xff]
    %v5802 = vld [vmem:[#allocation18 + $0x160] sm:$0xff]
    %v5803 = vld [vmem:[#allocation18 + $0x168] sm:$0xff]
    %v5804 = vld [vmem:[#allocation18 + $0x170] sm:$0xff]
    %v5805 = vld [vmem:[#allocation18 + $0x178] sm:$0xff]
    %v5806 = vld [vmem:[#allocation18 + $0x180] sm:$0xff]
    %v5807 = vld [vmem:[#allocation18 + $0x188] sm:$0xff]
    %v5808 = vld [vmem:[#allocation18 + $0x190] sm:$0xff]
    %v5809 = vld [vmem:[#allocation18 + $0x198] sm:$0xff]
    %v5810 = vld [vmem:[#allocation18 + $0x1a0] sm:$0xff]
    %v5811 = vld [vmem:[#allocation18 + $0x1a8] sm:$0xff]
    %v5812 = vld [vmem:[#allocation18 + $0x1b0] sm:$0xff]
    %v5813 = vld [vmem:[#allocation18 + $0x1b8] sm:$0xff]
    %v5814 = vld [vmem:[#allocation18 + $0x1c0] sm:$0xff]
    %v5815 = vld [vmem:[#allocation18 + $0x1c8] sm:$0xff]
    %v5816 = vld [vmem:[#allocation18 + $0x1d0] sm:$0xff]
    %v5817 = vld [vmem:[#allocation18 + $0x1d8] sm:$0xff]
    %v5818 = vld [vmem:[#allocation18 + $0x1e0] sm:$0xff]
    %v5819 = vld [vmem:[#allocation18 + $0x1e8] sm:$0xff]
    %v5820 = vld [vmem:[#allocation18 + $0x1f0] sm:$0xff]
    %v5821 = vld [vmem:[#allocation18 + $0x1f8] sm:$0xff]
    %v5822 = vld [vmem:[#allocation18 + $0x200] sm:$0xff]
    %v5823 = vld [vmem:[#allocation18 + $0x208] sm:$0xff]
    %v5824 = vld [vmem:[#allocation18 + $0x210] sm:$0xff]
    %v5825 = vld [vmem:[#allocation18 + $0x218] sm:$0xff]
    %v5826 = vld [vmem:[#allocation18 + $0x220] sm:$0xff]
    %v5827 = vld [vmem:[#allocation18 + $0x228] sm:$0xff]
    %v5828 = vld [vmem:[#allocation18 + $0x230] sm:$0xff]
    %v5829 = vld [vmem:[#allocation18 + $0x238] sm:$0xff]
    %v5830 = vld [vmem:[#allocation18 + $0x240] sm:$0xff]
    %v5831 = vld [vmem:[#allocation18 + $0x248] sm:$0xff]
    %v5832 = vld [vmem:[#allocation18 + $0x250] sm:$0xff]
    %v5833 = vld [vmem:[#allocation18 + $0x258] sm:$0xff]
    %v5834 = vld [vmem:[#allocation18 + $0x260] sm:$0xff]
    %v5835 = vld [vmem:[#allocation18 + $0x268] sm:$0xff]
    %v5836 = vld [vmem:[#allocation18 + $0x270] sm:$0xff]
    %v5837 = vld [vmem:[#allocation18 + $0x278] sm:$0xff]
    %v5838 = vld [vmem:[#allocation18 + $0x280] sm:$0xff]
    %v5839 = vld [vmem:[#allocation18 + $0x288] sm:$0xff]
    %v5840 = vld [vmem:[#allocation18 + $0x290] sm:$0xff]
    %v5841 = vld [vmem:[#allocation18 + $0x298] sm:$0xff]
    %v5842 = vld [vmem:[#allocation18 + $0x2a0] sm:$0xff]
    %v5843 = vld [vmem:[#allocation18 + $0x2a8] sm:$0xff]
    %v5844 = vld [vmem:[#allocation18 + $0x2b0] sm:$0xff]
    %v5845 = vld [vmem:[#allocation18 + $0x2b8] sm:$0xff]
    %v5846 = vld [vmem:[#allocation18 + $0x2c0] sm:$0xff]
    %v5847 = vld [vmem:[#allocation18 + $0x2c8] sm:$0xff]
    %v5848 = vld [vmem:[#allocation18 + $0x2d0] sm:$0xff]
    %v5849 = vld [vmem:[#allocation18 + $0x2d8] sm:$0xff]
    %v5850 = vld [vmem:[#allocation18 + $0x2e0] sm:$0xff]
    %v5851 = vld [vmem:[#allocation18 + $0x2e8] sm:$0xff]
    %v5852 = vld [vmem:[#allocation18 + $0x2f0] sm:$0xff]
    %v5853 = vld [vmem:[#allocation18 + $0x2f8] sm:$0xff]
    %v5854 = vld [vmem:[#allocation18 + $0x300] sm:$0xff]
    %v5855 = vld [vmem:[#allocation18 + $0x308] sm:$0xff]
    %v5856 = vld [vmem:[#allocation18 + $0x310] sm:$0xff]
    %v5857 = vld [vmem:[#allocation18 + $0x318] sm:$0xff]
    %v5858 = vld [vmem:[#allocation18 + $0x320] sm:$0xff]
    %v5859 = vld [vmem:[#allocation18 + $0x328] sm:$0xff]
    %v5860 = vld [vmem:[#allocation18 + $0x330] sm:$0xff]
    %v5861 = vld [vmem:[#allocation18 + $0x338] sm:$0xff]
    %v5862 = vld [vmem:[#allocation18 + $0x340] sm:$0xff]
    %v5863 = vld [vmem:[#allocation18 + $0x348] sm:$0xff]
    %v5864 = vld [vmem:[#allocation18 + $0x350] sm:$0xff]
    %v5865 = vld [vmem:[#allocation18 + $0x358] sm:$0xff]
    %v5866 = vld [vmem:[#allocation18 + $0x360] sm:$0xff]
    %v5867 = vld [vmem:[#allocation18 + $0x368] sm:$0xff]
    %v5868 = vld [vmem:[#allocation18 + $0x370] sm:$0xff]
    %v5869 = vld [vmem:[#allocation18 + $0x378] sm:$0xff]
    %v5870 = vld [vmem:[#allocation18 + $0x380] sm:$0xff]
    %v5871 = vld [vmem:[#allocation18 + $0x388] sm:$0xff]
    %v5872 = vld [vmem:[#allocation18 + $0x390] sm:$0xff]
    %v5873 = vld [vmem:[#allocation18 + $0x398] sm:$0xff]
    %v5874 = vld [vmem:[#allocation18 + $0x3a0] sm:$0xff]
    %v5875 = vld [vmem:[#allocation18 + $0x3a8] sm:$0xff]
    %v5876 = vld [vmem:[#allocation18 + $0x3b0] sm:$0xff]
    %v5877 = vld [vmem:[#allocation18 + $0x3b8] sm:$0xff]
    %v5878 = vld [vmem:[#allocation18 + $0x3c0] sm:$0xff]
    %v5879 = vld [vmem:[#allocation18 + $0x3c8] sm:$0xff]
    %v5880 = vld [vmem:[#allocation18 + $0x3d0] sm:$0xff]
    %v5881 = vld [vmem:[#allocation18 + $0x3d8] sm:$0xff]
    %v5882 = vld [vmem:[#allocation18 + $0x3e0] sm:$0xff]
    %v5883 = vld [vmem:[#allocation18 + $0x3e8] sm:$0xff]
    %v5884 = vld [vmem:[#allocation18 + $0x3f0] sm:$0xff]
    %v5885 = vld [vmem:[#allocation18 + $0x3f8] sm:$0xff]
    %5886 = vmatprep.subr.mxu0 %v5759
    %5887 = vmatpush1.msra.mxu0 %v5758
    %5888 = vmatprep.subr.mxu0 %v5763
    %5889 = vmatpush1.msra.mxu0 %v5762
    %5890 = vmatprep.subr.mxu0 %v5767
    %5891 = vmatpush1.msra.mxu0 %v5766
    %5892 = vmatprep.subr.mxu0 %v5771
    %5893 = vmatpush1.msra.mxu0 %v5770
    %5894 = vmatprep.subr.mxu0 %v5775
    %5895 = vmatpush1.msra.mxu0 %v5774
    %5896 = vmatprep.subr.mxu0 %v5779
    %5897 = vmatpush1.msra.mxu0 %v5778
    %5898 = vmatprep.subr.mxu0 %v5783
    %5899 = vmatpush1.msra.mxu0 %v5782
    %5900 = vmatprep.subr.mxu0 %v5787
    %5901 = vmatpush1.msra.mxu0 %v5786
    %5902 = vmatprep.subr.mxu0 %v5791
    %5903 = vmatpush1.msra.mxu0 %v5790
    %5904 = vmatprep.subr.mxu0 %v5795
    %5905 = vmatpush1.msra.mxu0 %v5794
    %5906 = vmatprep.subr.mxu0 %v5799
    %5907 = vmatpush1.msra.mxu0 %v5798
    %5908 = vmatprep.subr.mxu0 %v5803
    %5909 = vmatpush1.msra.mxu0 %v5802
    %5910 = vmatprep.subr.mxu0 %v5807
    %5911 = vmatpush1.msra.mxu0 %v5806
    %5912 = vmatprep.subr.mxu0 %v5811
    %5913 = vmatpush1.msra.mxu0 %v5810
    %5914 = vmatprep.subr.mxu0 %v5815
    %5915 = vmatpush1.msra.mxu0 %v5814
    %5916 = vmatprep.subr.mxu0 %v5819
    %5917 = vmatpush1.msra.mxu0 %v5818
    %5918 = vmatprep.subr.mxu0 %v5823
    %5919 = vmatpush1.msra.mxu0 %v5822
    %5920 = vmatprep.subr.mxu0 %v5827
    %5921 = vmatpush1.msra.mxu0 %v5826
    %5922 = vmatprep.subr.mxu0 %v5831
    %5923 = vmatpush1.msra.mxu0 %v5830
    %5924 = vmatprep.subr.mxu0 %v5835
    %5925 = vmatpush1.msra.mxu0 %v5834
    %5926 = vmatprep.subr.mxu0 %v5839
    %5927 = vmatpush1.msra.mxu0 %v5838
    %5928 = vmatprep.subr.mxu0 %v5843
    %5929 = vmatpush1.msra.mxu0 %v5842
    %5930 = vmatprep.subr.mxu0 %v5847
    %5931 = vmatpush1.msra.mxu0 %v5846
    %5932 = vmatprep.subr.mxu0 %v5851
    %5933 = vmatpush1.msra.mxu0 %v5850
    %5934 = vmatprep.subr.mxu0 %v5855
    %5935 = vmatpush1.msra.mxu0 %v5854
    %5936 = vmatprep.subr.mxu0 %v5859
    %5937 = vmatpush1.msra.mxu0 %v5858
    %5938 = vmatprep.subr.mxu0 %v5863
    %5939 = vmatpush1.msra.mxu0 %v5862
    %5940 = vmatprep.subr.mxu0 %v5867
    %5941 = vmatpush1.msra.mxu0 %v5866
    %5942 = vmatprep.subr.mxu0 %v5871
    %5943 = vmatpush1.msra.mxu0 %v5870
    %5944 = vmatprep.subr.mxu0 %v5875
    %5945 = vmatpush1.msra.mxu0 %v5874
    %5946 = vmatprep.subr.mxu0 %v5879
    %5947 = vmatpush1.msra.mxu0 %v5878
    %5948 = vmatprep.subr.mxu0 %v5883
    %5949 = vmatpush1.msra.mxu0 %v5882
    %5950 = vmatprep.mubr.f32.mxu0 %v5631
    %5951 = vmatmul.mubr.f32.gmra.mrb[0].mxu0 %v5755
    %v5952 = vpop.f32.mrb[0].mxu0
    %v5953 = vadd.f32 0.0, %v5952
    %v5954 = vpop.f32.mrb[0].mxu0
    %v5955 = vadd.f32 0.0, %v5954
    %5956 = vdwg.mxu0
    %5957 = vmatprep.subr.mxu0 %v5761
    %5958 = vmatpush1.msra.mxu0 %v5760
    %5959 = vmatprep.subr.mxu0 %v5765
    %5960 = vmatpush1.msra.mxu0 %v5764
    %5961 = vmatprep.subr.mxu0 %v5769
    %5962 = vmatpush1.msra.mxu0 %v5768
    %5963 = vmatprep.subr.mxu0 %v5773
    %5964 = vmatpush1.msra.mxu0 %v5772
    %5965 = vmatprep.subr.mxu0 %v5777
    %5966 = vmatpush1.msra.mxu0 %v5776
    %5967 = vmatprep.subr.mxu0 %v5781
    %5968 = vmatpush1.msra.mxu0 %v5780
    %5969 = vmatprep.subr.mxu0 %v5785
    %5970 = vmatpush1.msra.mxu0 %v5784
    %5971 = vmatprep.subr.mxu0 %v5789
    %5972 = vmatpush1.msra.mxu0 %v5788
    %5973 = vmatprep.subr.mxu0 %v5793
    %5974 = vmatpush1.msra.mxu0 %v5792
    %5975 = vmatprep.subr.mxu0 %v5797
    %5976 = vmatpush1.msra.mxu0 %v5796
    %5977 = vmatprep.subr.mxu0 %v5801
    %5978 = vmatpush1.msra.mxu0 %v5800
    %5979 = vmatprep.subr.mxu0 %v5805
    %5980 = vmatpush1.msra.mxu0 %v5804
    %5981 = vmatprep.subr.mxu0 %v5809
    %5982 = vmatpush1.msra.mxu0 %v5808
    %5983 = vmatprep.subr.mxu0 %v5813
    %5984 = vmatpush1.msra.mxu0 %v5812
    %5985 = vmatprep.subr.mxu0 %v5817
    %5986 = vmatpush1.msra.mxu0 %v5816
    %5987 = vmatprep.subr.mxu0 %v5821
    %5988 = vmatpush1.msra.mxu0 %v5820
    %5989 = vmatprep.subr.mxu0 %v5825
    %5990 = vmatpush1.msra.mxu0 %v5824
    %5991 = vmatprep.subr.mxu0 %v5829
    %5992 = vmatpush1.msra.mxu0 %v5828
    %5993 = vmatprep.subr.mxu0 %v5833
    %5994 = vmatpush1.msra.mxu0 %v5832
    %5995 = vmatprep.subr.mxu0 %v5837
    %5996 = vmatpush1.msra.mxu0 %v5836
    %5997 = vmatprep.subr.mxu0 %v5841
    %5998 = vmatpush1.msra.mxu0 %v5840
    %5999 = vmatprep.subr.mxu0 %v5845
    %6000 = vmatpush1.msra.mxu0 %v5844
    %6001 = vmatprep.subr.mxu0 %v5849
    %6002 = vmatpush1.msra.mxu0 %v5848
    %6003 = vmatprep.subr.mxu0 %v5853
    %6004 = vmatpush1.msra.mxu0 %v5852
    %6005 = vmatprep.subr.mxu0 %v5857
    %6006 = vmatpush1.msra.mxu0 %v5856
    %6007 = vmatprep.subr.mxu0 %v5861
    %6008 = vmatpush1.msra.mxu0 %v5860
    %6009 = vmatprep.subr.mxu0 %v5865
    %6010 = vmatpush1.msra.mxu0 %v5864
    %6011 = vmatprep.subr.mxu0 %v5869
    %6012 = vmatpush1.msra.mxu0 %v5868
    %6013 = vmatprep.subr.mxu0 %v5873
    %6014 = vmatpush1.msra.mxu0 %v5872
    %6015 = vmatprep.subr.mxu0 %v5877
    %6016 = vmatpush1.msra.mxu0 %v5876
    %6017 = vmatprep.subr.mxu0 %v5881
    %6018 = vmatpush1.msra.mxu0 %v5880
    %6019 = vmatprep.subr.mxu0 %v5885
    %6020 = vmatpush1.msra.mxu0 %v5884
    %6021 = vmatprep.mubr.f32.mxu0 %v5631
    %6022 = vmatmul.mubr.f32.gmra.mrb[0].mxu0 %v5755
    %v6023 = vpop.f32.mrb[0].mxu0
    %v6024 = vadd.f32 0.0, %v6023
    %v6025 = vpop.f32.mrb[0].mxu0
    %v6026 = vadd.f32 0.0, %v6025
    %6027 = vdwg.mxu0
    %v6032 = vcombine.low %v5953, %v5955
    %v6033 = vcombine.low %v6024, %v6026
    %v6035 = vunpack.c.l.s4 1983009808
    %v6036 = vunpack.c.0.s8 %v6035
    %v6037 = vlaneseq
    %v6038 = vshrl.u32 %v6037, 7
    %v6039 = vsub.s32 %v6036, %v6038
    %v6040 = vrot.slane %v6032, %v6039
    %v6042 = vunpack.c.l.s4 1983009808
    %v6043 = vunpack.c.0.s8 %v6042
    %v6044 = vlaneseq
    %v6045 = vshrl.u32 %v6044, 7
    %v6046 = vsub.s32 %v6043, %v6045
    %v6047 = vrot.slane %v6033, %v6046
    %v6048 = vcombine.low %v6040, %v6047
    %v6050 = vadd.f32 %v5757, %v6048
    %v6051 = vxor.u32 %v6050, 2147483648
    %v6052 = vmul.f32 %v6051, 1.442695
    %v6053 = vpow.pop %v6052
    %v6054 = vadd.f32 %v6053, 1.0
    %v6055 = vrcp.pop %v6054
    %v6056 = vmul.f32 1.0, %v6055
    %v6057 = vtanh.pop %v6050
    %v6059 = vrot.slane %v6056, 2
    %v6061 = vmul.f32 %v6059, %v5627
    %v6063 = vrot.slane %v6057, 4
    %v6065 = vmul.f32 %v6056, %v6063
    %v6066 = vadd.f32 %v6061, %v6065
    %v6067 = vtanh.pop %v6066
    %v6068 = vrot.slane %v6056, 6
    %v6070 = vmul.f32 %v6068, %v6067
    %s6071 = scalar_lea.vmem [#allocation6], 12
    %6072 = vst [vmem:[%s6071] sm:$0x3] %v6070
    %6073 = vst [vmem:[#allocation7] sm:$0x3] 0.0
    %v6074 = vld [vmem:[#allocation6] sm:$0x3]
    %6075 = vst [vmem:[#allocation7 + $0x2] sm:$0x3] %v6074
    %v6076 = vld [vmem:[%s3876] sm:$0x3]
    %6077 = vst [vmem:[#allocation7 + $0x4] sm:$0x3] %v6076
    %v6078 = vld [vmem:[%s4315] sm:$0x3]
    %6079 = vst [vmem:[#allocation7 + $0x6] sm:$0x3] %v6078
    %v6080 = vld [vmem:[%s4754] sm:$0x3]
    %6081 = vst [vmem:[#allocation7 + $0x8] sm:$0x3] %v6080
    %v6082 = vld [vmem:[%s5193] sm:$0x3]
    %6083 = vst [vmem:[#allocation7 + $0xa] sm:$0x3] %v6082
    %v6084 = vld [vmem:[%s5632] sm:$0x3]
    %6085 = vst [vmem:[#allocation7 + $0xc] sm:$0x3] %v6084
    %v6086 = vld [vmem:[%s6071] sm:$0x3]
    %6087 = vst [vmem:[#allocation7 + $0xe] sm:$0x3] %v6086
    %v6088 = vld [vmem:[#allocation7] sm:$0xff]
    %v6089 = vld [vmem:[#allocation7 + $0x8] sm:$0xff]
    %v6090 = vld [vmem:[#allocation20] sm:$0xff]
    %v6091 = vld [vmem:[#allocation20 + $0x8] sm:$0xff]
    %v6092 = vld [vmem:[#allocation20 + $0x10] sm:$0xff]
    %v6093 = vld [vmem:[#allocation20 + $0x18] sm:$0xff]
    %v6094 = vld [vmem:[#allocation20 + $0x20] sm:$0xff]
    %v6095 = vld [vmem:[#allocation20 + $0x28] sm:$0xff]
    %v6096 = vld [vmem:[#allocation20 + $0x30] sm:$0xff]
    %v6097 = vld [vmem:[#allocation20 + $0x38] sm:$0xff]
    %v6098 = vld [vmem:[#allocation20 + $0x40] sm:$0xff]
    %v6099 = vld [vmem:[#allocation20 + $0x48] sm:$0xff]
    %v6100 = vld [vmem:[#allocation20 + $0x50] sm:$0xff]
    %v6101 = vld [vmem:[#allocation20 + $0x58] sm:$0xff]
    %v6102 = vld [vmem:[#allocation20 + $0x60] sm:$0xff]
    %v6103 = vld [vmem:[#allocation20 + $0x68] sm:$0xff]
    %v6104 = vld [vmem:[#allocation20 + $0x70] sm:$0xff]
    %v6105 = vld [vmem:[#allocation20 + $0x78] sm:$0xff]
    %v6106 = vld [vmem:[%s11] sm:$0x1]
    %v6108 = vlaneseq
    %v6109 = vshrl.u32 %v6108, 7
    %v6110 = vsub.s32 0, %v6109
    %v6111 = vrot.slane %v6106, %v6110
    %6113 = vmatprep.subr.mxu0 0.0
    %6114 = vmatpush1.msra.mxu0 %v6090
    %6115 = vmatprep.subr.mxu0 0.0
    %6116 = vmatpush1.msra.mxu0 %v6091
    %6117 = vmatprep.subr.mxu0 0.0
    %6118 = vmatpush1.msra.mxu0 %v6092
    %6119 = vmatprep.subr.mxu0 0.0
    %6120 = vmatpush1.msra.mxu0 %v6093
    %6121 = vmatprep.subr.mxu0 0.0
    %6122 = vmatpush1.msra.mxu0 %v6094
    %6123 = vmatprep.subr.mxu0 0.0
    %6124 = vmatpush1.msra.mxu0 %v6095
    %6125 = vmatprep.subr.mxu0 0.0
    %6126 = vmatpush1.msra.mxu0 %v6096
    %6127 = vmatprep.subr.mxu0 0.0
    %6128 = vmatpush1.msra.mxu0 %v6097
    %6129 = vmatprep.subr.mxu0 0.0
    %6130 = vmatpush1.msra.mxu0 %v6098
    %6131 = vmatprep.subr.mxu0 0.0
    %6132 = vmatpush1.msra.mxu0 %v6099
    %6133 = vmatprep.subr.mxu0 0.0
    %6134 = vmatpush1.msra.mxu0 %v6100
    %6135 = vmatprep.subr.mxu0 0.0
    %6136 = vmatpush1.msra.mxu0 %v6101
    %6137 = vmatprep.subr.mxu0 0.0
    %6138 = vmatpush1.msra.mxu0 %v6102
    %6139 = vmatprep.subr.mxu0 0.0
    %6140 = vmatpush1.msra.mxu0 %v6103
    %6141 = vmatprep.subr.mxu0 0.0
    %6142 = vmatpush1.msra.mxu0 %v6104
    %6143 = vmatprep.subr.mxu0 0.0
    %6144 = vmatpush1.msra.mxu0 %v6105
    %6145 = vmatprep.subr.mxu0 0.0
    %6146 = vmatpush1.msra.mxu0 0.0
    %6147 = vmatprep.subr.mxu0 0.0
    %6148 = vmatpush1.msra.mxu0 0.0
    %6149 = vmatprep.subr.mxu0 0.0
    %6150 = vmatpush1.msra.mxu0 0.0
    %6151 = vmatprep.subr.mxu0 0.0
    %6152 = vmatpush1.msra.mxu0 0.0
    %6153 = vmatprep.subr.mxu0 0.0
    %6154 = vmatpush1.msra.mxu0 0.0
    %6155 = vmatprep.subr.mxu0 0.0
    %6156 = vmatpush1.msra.mxu0 0.0
    %6157 = vmatprep.subr.mxu0 0.0
    %6158 = vmatpush1.msra.mxu0 0.0
    %6159 = vmatprep.subr.mxu0 0.0
    %6160 = vmatpush1.msra.mxu0 0.0
    %6161 = vmatprep.subr.mxu0 0.0
    %6162 = vmatpush1.msra.mxu0 0.0
    %6163 = vmatprep.subr.mxu0 0.0
    %6164 = vmatpush1.msra.mxu0 0.0
    %6165 = vmatprep.subr.mxu0 0.0
    %6166 = vmatpush1.msra.mxu0 0.0
    %6167 = vmatprep.subr.mxu0 0.0
    %6168 = vmatpush1.msra.mxu0 0.0
    %6169 = vmatprep.subr.mxu0 0.0
    %6170 = vmatpush1.msra.mxu0 0.0
    %6171 = vmatprep.subr.mxu0 0.0
    %6172 = vmatpush1.msra.mxu0 0.0
    %6173 = vmatprep.subr.mxu0 0.0
    %6174 = vmatpush1.msra.mxu0 0.0
    %6175 = vmatprep.subr.mxu0 0.0
    %6176 = vmatpush1.msra.mxu0 0.0
    %6177 = vmatprep.mubr.f32.mxu0 0.0
    %6178 = vmatmul.mubr.f32.gmra.mrb[0].mxu0 %v6088
    %v6179 = vpop.f32.mrb[0].mxu0
    %v6180 = vadd.f32 %v6111, %v6179
    %v6181 = vpop.f32.mrb[0].mxu0
    %6182 = vmatprep.mubr.f32.mxu0 0.0
    %6183 = vmatmul.mubr.f32.gmra.mrb[0].mxu0 %v6089
    %v6184 = vpop.f32.mrb[0].mxu0
    %v6185 = vadd.f32 %v6111, %v6184
    %v6186 = vpop.f32.mrb[0].mxu0
    %6187 = vdwg.mxu0
    %6188 = vst [vmem:[#allocation21] sm:$0xff] %v6180
    %6189 = vst [vmem:[#allocation21 + $0x8] sm:$0xff] %v6185
    %6190 = vst [vmem:[#allocation21] sm:$0x3] 0.0
    // Predicated region
    $region78: #{tpu_custom_call.1} parent=1 // pred_check
      _
    $region79: #{tpu_custom_call.1} parent=1 // pred_check_branch
      %6192 = sbr.rel (0) target = $region81
    $region80: #{tpu_custom_call.1} parent=1 // pred_region
      %s6194 = ssub.s32 256, 256
      %6195 = vsyncadd [#allocation11], %s6194
      %s6196 = sshll.u32 [#allocation21], 4
      %s6197 = int_to_ptr.vmem [resolvable:$true] %s6196
      %6202 = dma.vmem_to_hbm [thread:$0]  %s6197, 256, %s12, [#allocation11], 128, 128, 8
    $region81: #{tpu_custom_call.1} parent=1 // pred_fallthru
      _
    // Predicated region
    $region82: #{tpu_custom_call.1} parent=1 // pred_check
      _
    $region83: #{tpu_custom_call.1} parent=1 // pred_check_branch
      %6204 = sbr.rel (0) target = $region85
    $region84: #{tpu_custom_call.1} parent=1 // pred_region
      %6205 = dma.done [#allocation11], 256
    $region85: #{tpu_custom_call.1} parent=1 // pred_fallthru
      _
    %6206 = vsyncpa [#allocation10], 1
    %6207 = vsyncpa [#allocation13], 1
    %6208 = vsyncpa [#allocation16], 1
    %6209 = vsyncpa [#allocation19], 1
    %6210 = vsyncpa [#allocation11], 1

</llo_original>
